<compile_context>
chip_gen: v5e
topology: v5e:2x2
jax: 0.10.0
libtpu: 0.0.40
codegen_flags: <defaults>
</compile_context>

<pallas_src>
import math
from functools import partial

import jax
import jax.numpy as jnp
from jax.experimental import pallas as pl
from jax.experimental.pallas import tpu as pltpu


# ----------------------------------------------------------------------------
# In-kernel helpers
# ----------------------------------------------------------------------------
def _mm(a, b):
    """MXU matmul: bf16 operands (no-op cast when already bf16), f32 accumulate."""
    return jnp.dot(a.astype(jnp.bfloat16), b.astype(jnp.bfloat16),
                   preferred_element_type=jnp.float32)


def _mm_f32(a, b):
    return jnp.dot(a, b, preferred_element_type=jnp.float32)


def _ln(x, g, b, eps=1e-5):
    mu = jnp.mean(x, axis=-1, keepdims=True)
    c = x - mu
    var = jnp.mean(c * c, axis=-1, keepdims=True)
    return c * jax.lax.rsqrt(var + eps) * g + b


def _lane_to_head(E, H):
    """(E, H) 0/1 selector: lane j belongs to head j//(E//H). Built on VPU."""
    d = E // H
    lane = jax.lax.broadcasted_iota(jnp.int32, (E, H), 0)
    head = jax.lax.broadcasted_iota(jnp.int32, (E, H), 1)
    lo = head * d
    return ((lane >= lo) & (lane < lo + d)).astype(jnp.float32)


def _head_to_lane(E, H):
    """(H, E) transpose of _lane_to_head (built directly, no in-kernel transpose)."""
    d = E // H
    head = jax.lax.broadcasted_iota(jnp.int32, (H, E), 0)
    lane = jax.lax.broadcasted_iota(jnp.int32, (H, E), 1)
    lo = head * d
    return ((lane >= lo) & (lane < lo + d)).astype(jnp.float32)


# ----------------------------------------------------------------------------
# Fused kernel: player-history encoder + team-composition transformer
# ----------------------------------------------------------------------------
def _fused_encoder_kernel(cur_ref, wl_ref, bias_ref, xt_ref,
                          h_mats_ref, h_kv_ref, h_ff1_ref, h_ff2_ref,
                          h_vec_ref, h_ffb1_ref,
                          t_mats_ref, t_ff1_ref, t_ff2_ref,
                          t_vec_ref, t_ffb1_ref,
                          hist_out_ref, team_out_ref,
                          *, num_heads_h, num_heads_t):
    f32 = jnp.float32

    # ------------------- player-history encoder -----------------------------
    Bb, R, Eh = cur_ref.shape
    L = bias_ref.shape[2]
    N = Bb * R
    Hh = num_heads_h
    dh = Eh // Hh
    sel_h = _lane_to_head(Eh, Hh)            # (Eh, Hh)
    sel_h_t = _head_to_lane(Eh, Hh)          # (Hh, Eh)

    hv = h_vec_ref[...]                      # (12, Eh) f32 bias/gain rows
    b_q, b_k, b_v, b_o = hv[0:1], hv[1:2], hv[2:3], hv[3:4]
    an_g, an_b = hv[4:5], hv[5:6]
    h_ffb2, fn_g, fn_b = hv[6:7], hv[7:8], hv[8:9]
    hp_b, hn_g, hn_b = hv[9:10], hv[10:11], hv[11:12]

    cur = cur_ref[...].reshape(N, Eh)                       # bf16
    cur_f = cur.astype(f32)
    wl = wl_ref[...].reshape(N * L, 2 * Eh)                 # bf16

    # folded projections (win/loss -> k/v -> MHA in-proj, q -> MHA in-proj)
    q = _mm(cur, h_mats_ref[0]) + b_q                       # (N, Eh)
    k = (_mm(wl, h_kv_ref[0]) + b_k).reshape(N, L, Eh)      # (N, L, Eh)
    v = (_mm(wl, h_kv_ref[1]) + b_v).reshape(N, L, Eh)

    # all-heads scores via lane->head selector matmul (no per-head slicing)
    qk = q[:, None, :] * k                                  # (N, L, Eh)
    s = _mm_f32(qk.reshape(N * L, Eh), sel_h).reshape(N, L, Hh)
    s = s * (1.0 / math.sqrt(dh)) + bias_ref[...].reshape(N, L)[:, :, None]
    # add_zero_attn: one extra unmasked key with logit 0 and value 0
    m = jnp.maximum(jnp.max(s, axis=1, keepdims=True), 0.0)  # (N, 1, Hh)
    e = jnp.exp(s - m)
    denom = jnp.sum(e, axis=1, keepdims=True) + jnp.exp(-m)
    p = e * pl.reciprocal(denom, approx=True)   # ~1e-3 rel err (eval-only)
    p_full = _mm_f32(p.reshape(N * L, Hh), sel_h_t).reshape(N, L, Eh)
    o = jnp.sum(p_full * v, axis=1)                          # (N, Eh)

    attn = _mm(o, h_mats_ref[1]) + b_o                       # fused out-proj, K=Eh
    x = _ln(attn + cur_f, an_g, an_b)
    ff = _mm(jnp.maximum(_mm(x, h_ff1_ref[...]) + h_ffb1_ref[...], 0.0),
             h_ff2_ref[...]) + h_ffb2
    y = _ln(ff + x, fn_g, fn_b)
    # top-level history projection + ReLU + residual LayerNorm
    proj = jnp.maximum(_mm(y, h_mats_ref[2]) + hp_b, 0.0)
    hist_out_ref[...] = _ln(y + proj, hn_g, hn_b).reshape(Bb, R, Eh)

    # ------------------- team-composition transformer -----------------------
    _, S, Et = xt_ref.shape
    Ht = num_heads_t
    dt = Et // Ht
    sel_t = _lane_to_head(Et, Ht)
    sel_t_t = _head_to_lane(Et, Ht)

    tv = t_vec_ref[...]                      # (13, Et) f32 bias/gain rows
    sbq, sbk, sbv, sbo = tv[0:1], tv[1:2], tv[2:3], tv[3:4]
    n1_g, n1_b = tv[4:5], tv[5:6]
    l1_b, l2_b = tv[6:7], tv[7:8]
    n2_g, n2_b = tv[8:9], tv[9:10]
    t_ffb2, ln_g, ln_b = tv[10:11], tv[11:12], tv[12:13]

    xt = xt_ref[...].reshape(Bb * S, Et)                     # bf16
    xt_f = xt.astype(f32)

    q3 = (_mm(xt, t_mats_ref[0]) + sbq).reshape(Bb, S, Et)
    k3 = (_mm(xt, t_mats_ref[1]) + sbk).reshape(Bb, S, Et)
    v3 = (_mm(xt, t_mats_ref[2]) + sbv).reshape(Bb, S, Et)

    # VPU broadcast-multiply + selector matmul instead of d=8 MXU score GEMMs
    qk3 = q3[:, :, None, :] * k3[:, None, :, :]              # (Bb, S, S, Et)
    s2 = _mm_f32(qk3.reshape(Bb * S * S, Et), sel_t).reshape(Bb, S, S, Ht)
    s2 = s2 * (1.0 / math.sqrt(dt))
    m2 = jnp.max(s2, axis=2, keepdims=True)
    e2 = jnp.exp(s2 - m2)
    p2 = e2 * pl.reciprocal(jnp.sum(e2, axis=2, keepdims=True), approx=True)
    p2_full = _mm_f32(p2.reshape(Bb * S * S, Ht), sel_t_t).reshape(Bb, S, S, Et)
    o2 = jnp.sum(p2_full * v3[:, None, :, :], axis=2).reshape(Bb * S, Et)

    sa = _mm(o2, t_mats_ref[3]) + sbo                        # fused out-proj
    # TransformerEncoderLayer (post-LN, relu, dim_feedforward = Et)
    h1 = _ln(xt_f + sa, n1_g, n1_b)
    ffa = _mm(jnp.maximum(_mm(h1, t_mats_ref[4]) + l1_b, 0.0),
              t_mats_ref[5]) + l2_b
    h2 = _ln(h1 + ffa, n2_g, n2_b)
    # module-level feedforward (Et -> 4Et -> Et) + LayerNorm
    ffb = _mm(jnp.maximum(_mm(h2, t_ff1_ref[...]) + t_ffb1_ref[...], 0.0),
              t_ff2_ref[...]) + t_ffb2
    team_out_ref[...] = _ln(h2 + ffb, ln_g, ln_b).reshape(Bb, S, Et)


def fused_encoders(cur, wl, mask_bias, x_team, hist_w, team_w,
                   num_heads_h, num_heads_t, batch_block):
    B, R, Eh = cur.shape
    L = mask_bias.shape[2]
    S, Et = x_team.shape[1], x_team.shape[2]
    B_blk = max(1, min(int(batch_block), B))
    B_pad = ((B + B_blk - 1) // B_blk) * B_blk

    def pad(a):
        if B_pad == B:
            return a
        return jnp.pad(a, [(0, B_pad - B)] + [(0, 0)] * (a.ndim - 1))

    cur, wl, mask_bias, x_team = pad(cur), pad(wl), pad(mask_bias), pad(x_team)
    h_mats, h_kv, h_ff1, h_ff2, h_vec, h_ffb1 = hist_w
    t_mats, t_ff1, t_ff2, t_vec, t_ffb1 = team_w

    def wspec(a):
        nd = a.ndim
        return pl.BlockSpec(a.shape, lambda b, _nd=nd: (0,) * _nd)

    # VMEM footprint per grid step is tiny (<1 MiB); weights have constant
    # block indices so they are DMA'd once.  If B_blk is scaled up on v7x
    # (64 MiB VMEM, 32 MiB scoped default), set vmem_limit_bytes explicitly.
    hist_out, team_out = pl.pallas_call(
        partial(_fused_encoder_kernel,
                num_heads_h=num_heads_h, num_heads_t=num_heads_t),
        grid=(B_pad // B_blk,),
        in_specs=[pl.BlockSpec((B_blk, R, Eh), lambda b: (b, 0, 0)),
                  pl.BlockSpec((B_blk, R * L, 2 * Eh), lambda b: (b, 0, 0)),
                  pl.BlockSpec((B_blk, R, L), lambda b: (b, 0, 0)),
                  pl.BlockSpec((B_blk, S, Et), lambda b: (b, 0, 0)),
                  wspec(h_mats), wspec(h_kv), wspec(h_ff1), wspec(h_ff2),
                  wspec(h_vec), wspec(h_ffb1),
                  wspec(t_mats), wspec(t_ff1), wspec(t_ff2),
                  wspec(t_vec), wspec(t_ffb1)],
        out_specs=[pl.BlockSpec((B_blk, R, Eh), lambda b: (b, 0, 0)),
                   pl.BlockSpec((B_blk, S, Et), lambda b: (b, 0, 0))],
        out_shape=[jax.ShapeDtypeStruct((B_pad, R, Eh), jnp.float32),
                   jax.ShapeDtypeStruct((B_pad, S, Et), jnp.float32)],
        compiler_params=pltpu.CompilerParams(
            dimension_semantics=("parallel",)),
    )(cur, wl, mask_bias, x_team,
      h_mats, h_kv, h_ff1, h_ff2, h_vec, h_ffb1,
      t_mats, t_ff1, t_ff2, t_vec, t_ffb1)
    return hist_out[:B], team_out[:B]


# ----------------------------------------------------------------------------
# Parameter init (deterministic, synthetic)
# ----------------------------------------------------------------------------
def positional_encoding(seq_len, dim):
    positions = jnp.arange(seq_len, dtype=jnp.float32)[:, None]
    scaling = jnp.exp(jnp.arange(0, dim, 2, dtype=jnp.float32)
                      * (-math.log(10000.0) / dim))
    pe = jnp.zeros((1, seq_len, dim), jnp.float32)
    pe = pe.at[0, :, 0::2].set(jnp.sin(positions * scaling))
    pe = pe.at[0, :, 1::2].set(jnp.cos(positions * scaling))
    return pe


def init_params(key, num_champions, E_h, E_t, seq=10):
    keys = iter(jax.random.split(key, 64))

    def w(shape, scale=0.05):
        return (scale * jax.random.normal(next(keys), shape)).astype(jnp.float32)

    zeros = lambda s: jnp.zeros(s, jnp.float32)
    ones = lambda s: jnp.ones(s, jnp.float32)
    C = 10 * E_h + 10 * E_t

    phe = dict(
        champ_emb=w((num_champions, E_h)).at[0].set(0.0),   # padding_idx=0
        win_W=w((E_h, E_h)), loss_W=w((E_h, E_h)),
        q_W=w((E_h, E_h)), k_W=w((E_h, E_h)), v_W=w((E_h, E_h)),
        mha_Wq=w((E_h, E_h)), mha_Wk=w((E_h, E_h)), mha_Wv=w((E_h, E_h)),
        mha_bq=zeros((E_h,)), mha_bk=zeros((E_h,)), mha_bv=zeros((E_h,)),
        mha_Wo=w((E_h, E_h)), mha_bo=zeros((E_h,)),
        an_g=ones((E_h,)), an_b=zeros((E_h,)),
        ff_W1=w((E_h, 4 * E_h)), ff_b1=zeros((4 * E_h,)),
        ff_W2=w((4 * E_h, E_h)), ff_b2=zeros((E_h,)),
        fn_g=ones((E_h,)), fn_b=zeros((E_h,)),
    )
    tct = dict(
        champ_emb=w((num_champions, E_t)),
        pos_enc=positional_encoding(seq, E_t),
        sa_Wq=w((E_t, E_t)), sa_Wk=w((E_t, E_t)), sa_Wv=w((E_t, E_t)),
        sa_bq=zeros((E_t,)), sa_bk=zeros((E_t,)), sa_bv=zeros((E_t,)),
        sa_Wo=w((E_t, E_t)), sa_bo=zeros((E_t,)),
        l1_W=w((E_t, E_t)), l1_b=zeros((E_t,)),
        l2_W=w((E_t, E_t)), l2_b=zeros((E_t,)),
        n1_g=ones((E_t,)), n1_b=zeros((E_t,)),
        n2_g=ones((E_t,)), n2_b=zeros((E_t,)),
        ff_W1=w((E_t, 4 * E_t)), ff_b1=zeros((4 * E_t,)),
        ff_W2=w((4 * E_t, E_t)), ff_b2=zeros((E_t,)),
        ln_g=ones((E_t,)), ln_b=zeros((E_t,)),
    )
    top = dict(
        hist_proj_W=w((E_h, E_h)), hist_proj_b=zeros((E_h,)),
        hist_norm_g=ones((E_h,)), hist_norm_b=zeros((E_h,)),
        final_W=w((C, C)), final_b=zeros((C,)),
        out_W=w((C, 1)), out_b=zeros((1,)),
    )
    return dict(phe=phe, tct=tct, top=top)


# ----------------------------------------------------------------------------
# Forward: embedding gathers + weight folding/packing in JAX, one fused Pallas
# kernel for both encoders, prediction head in plain XLA.
# ----------------------------------------------------------------------------
def game_prediction_forward(params, player_history_table, match_data, timestamp,
                            history_heads, team_heads, batch_block=16):
    B = match_data.shape[0]
    phe, tct, top = params["phe"], params["tct"], params["top"]
    f32, bf16 = jnp.float32, jnp.bfloat16
    row = lambda a: a.reshape(1, -1).astype(f32)

    # ---- prepare_history_data (data-dependent gathers stay in XLA) ----
    player_ids = match_data[:, 0::2]                         # (B, 10)
    champ_ids = match_data[:, 1::2]                          # (B, 10)
    match_history = player_history_table[player_ids]         # (B, 10, L, 3)
    R = player_ids.shape[1]
    L = match_history.shape[2]
    E_h = phe["champ_emb"].shape[1]
    E_t = tct["champ_emb"].shape[1]

    cur_emb = phe["champ_emb"][champ_ids]                    # (B, 10, E_h)
    hist_emb = phe["champ_emb"][match_history[..., 0]]       # (B, 10, L, E_h)
    outcomes = match_history[..., 1][..., None]
    win_in = jnp.where(outcomes == 1, hist_emb, 0.0)
    loss_in = jnp.where(outcomes == 0, hist_emb, 0.0)
    wl = jnp.concatenate([win_in, loss_in], axis=-1).reshape(B, R * L, 2 * E_h)

    # temporal key_padding_mask as an additive f32 bias (0 = keep, -1e30 = mask)
    cur_time = timestamp[:, None, None]
    masked = (cur_time == match_history[..., 2]) | (match_history[..., 2] == 0)
    mask_bias = jnp.where(masked, -1e30, 0.0).astype(f32)    # (B, 10, L)

    # ---- trace-time projection folding + packing into a few stacked refs ----
    # (exact because the inner q/k/v projections are bias-free)
    wl_cat = jnp.concatenate([phe["win_W"], phe["loss_W"]], axis=0)       # (2E, E)
    w_q_full = phe["q_W"] @ phe["mha_Wq"]
    w_k_full = wl_cat @ (phe["k_W"] @ phe["mha_Wk"])
    w_v_full = wl_cat @ (phe["v_W"] @ phe["mha_Wv"])
    h_mats = jnp.stack([w_q_full, phe["mha_Wo"], top["hist_proj_W"]]).astype(bf16)
    h_kv = jnp.stack([w_k_full, w_v_full]).astype(bf16)
    h_vec = jnp.concatenate(
        [row(phe["mha_bq"]), row(phe["mha_bk"]), row(phe["mha_bv"]),
         row(phe["mha_bo"]), row(phe["an_g"]), row(phe["an_b"]),
         row(phe["ff_b2"]), row(phe["fn_g"]), row(phe["fn_b"]),
         row(top["hist_proj_b"]), row(top["hist_norm_g"]),
         row(top["hist_norm_b"])], axis=0)                                # (12, E_h)
    h_ff1 = phe["ff_W1"].astype(bf16)
    h_ff2 = phe["ff_W2"].astype(bf16)
    h_ffb1 = row(phe["ff_b1"])

    t_mats = jnp.stack([tct["sa_Wq"], tct["sa_Wk"], tct["sa_Wv"], tct["sa_Wo"],
                        tct["l1_W"], tct["l2_W"]]).astype(bf16)
    t_vec = jnp.concatenate(
        [row(tct["sa_bq"]), row(tct["sa_bk"]), row(tct["sa_bv"]),
         row(tct["sa_bo"]), row(tct["n1_g"]), row(tct["n1_b"]),
         row(tct["l1_b"]), row(tct["l2_b"]), row(tct["n2_g"]),
         row(tct["n2_b"]), row(tct["ff_b2"]), row(tct["ln_g"]),
         row(tct["ln_b"])], axis=0)                                       # (13, E_t)
    t_ff1 = tct["ff_W1"].astype(bf16)
    t_ff2 = tct["ff_W2"].astype(bf16)
    t_ffb1 = row(tct["ff_b1"])

    x_team = tct["champ_emb"][champ_ids] + tct["pos_enc"][:, :R, :]       # (B, 10, E_t)

    hist, team = fused_encoders(
        cur_emb.astype(bf16), wl.astype(bf16), mask_bias, x_team.astype(bf16),
        (h_mats, h_kv, h_ff1, h_ff2, h_vec, h_ffb1),
        (t_mats, t_ff1, t_ff2, t_vec, t_ffb1),
        history_heads, team_heads, batch_block)

    # ---- prediction head in plain XLA: a single (B, C)@(C, C) GEMM, for
    #      which pallas_call launch overhead would exceed the compute ----
    combined = jnp.concatenate([hist.reshape(B, R * E_h),
                                team.reshape(B, R * E_t)], axis=1)
    hdn = jax.nn.relu(combined @ top["final_W"] + top["final_b"])
    logit = hdn @ top["out_W"] + top["out_b"]
    return jax.nn.sigmoid(logit)


# ----------------------------------------------------------------------------
if __name__ == "__main__":
    B = 4
    NUM_CHAMPIONS = 32
    NUM_PLAYERS = 16
    HIST_LEN = 8
    E_H, H_H = 32, 4     # history embedding dim / heads
    E_T, H_T = 32, 4     # team embedding dim / heads

    root = jax.random.PRNGKey(0)
    data_key, param_key = jax.random.split(root)
    k1, k2, k3, k4, k5, k6 = jax.random.split(data_key, 6)

    players = jax.random.randint(k1, (B, 10), 0, NUM_PLAYERS)
    champs = jax.random.randint(k2, (B, 10), 1, NUM_CHAMPIONS)
    match_data = jnp.zeros((B, 20), jnp.int32)
    match_data = match_data.at[:, 0::2].set(players).at[:, 1::2].set(champs)
    timestamp = jax.random.randint(k3, (B,), 1, 50).astype(jnp.int32)

    # PlayerHistory lookup table: (num_players, HIST_LEN, 3) = [champ, outcome, time]
    hist_champ = jax.random.randint(k4, (NUM_PLAYERS, HIST_LEN, 1), 0, NUM_CHAMPIONS)
    hist_outcome = jax.random.randint(k5, (NUM_PLAYERS, HIST_LEN, 1), 0, 2)
    hist_time = jax.random.randint(k6, (NUM_PLAYERS, HIST_LEN, 1), 0, 50)
    player_history_table = jnp.concatenate(
        [hist_champ, hist_outcome, hist_time], axis=2).astype(jnp.int32)
    # mark the last two history slots as padding (timestamp 0 -> masked keys)
    player_history_table = player_history_table.at[:, -2:, 2].set(0)

    params = init_params(param_key, NUM_CHAMPIONS, E_H, E_T, seq=10)

    # batch_block=2 -> 2 grid steps over the parallel axis (keeps both v7x
    # TensorCores busy even at this tiny demo batch).
    fwd = jax.jit(partial(game_prediction_forward,
                          history_heads=H_H, team_heads=H_T, batch_block=2))
    pred = jax.block_until_ready(fwd(params, player_history_table, match_data, timestamp))
    assert pred.shape == (B, 1)
    assert bool(jnp.all(jnp.isfinite(pred)))
    print("KERNEL_OK")
</pallas_src>

<mosaic_0001>
module attributes {stable_mosaic.version = 11 : i64} {
  func.func @_fused_encoder_kernel(%arg0: i32, %arg1: memref<2x10x32xbf16, #tpu.memory_space<vmem>>, %arg2: memref<2x80x64xbf16, #tpu.memory_space<vmem>>, %arg3: memref<2x10x8xf32, #tpu.memory_space<vmem>>, %arg4: memref<2x10x32xbf16, #tpu.memory_space<vmem>>, %arg5: memref<3x32x32xbf16, #tpu.memory_space<vmem>>, %arg6: memref<2x64x32xbf16, #tpu.memory_space<vmem>>, %arg7: memref<32x128xbf16, #tpu.memory_space<vmem>>, %arg8: memref<128x32xbf16, #tpu.memory_space<vmem>>, %arg9: memref<12x32xf32, #tpu.memory_space<vmem>>, %arg10: memref<1x128xf32, #tpu.memory_space<vmem>>, %arg11: memref<6x32x32xbf16, #tpu.memory_space<vmem>>, %arg12: memref<32x128xbf16, #tpu.memory_space<vmem>>, %arg13: memref<128x32xbf16, #tpu.memory_space<vmem>>, %arg14: memref<13x32xf32, #tpu.memory_space<vmem>>, %arg15: memref<1x128xf32, #tpu.memory_space<vmem>>, %arg16: memref<2x10x32xf32, #tpu.memory_space<vmem>>, %arg17: memref<2x10x32xf32, #tpu.memory_space<vmem>>) attributes {dimension_semantics = [#tpu.dimension_semantics<parallel>], iteration_bounds = array<i64: 2>, scalar_prefetch = 0 : i64, scratch_operands = 0 : i64, tpu.core_type = #tpu.core_type<tc>, window_params = [{transform_indices = @transform_0, window_bounds = array<i64: 2, 10, 32>}, {transform_indices = @transform_1, window_bounds = array<i64: 2, 80, 64>}, {transform_indices = @transform_2, window_bounds = array<i64: 2, 10, 8>}, {transform_indices = @transform_3, window_bounds = array<i64: 2, 10, 32>}, {pipeline_mode = #tpu.pipeline_mode<synchronous>, transform_indices = @transform_4, window_bounds = array<i64: 3, 32, 32>}, {pipeline_mode = #tpu.pipeline_mode<synchronous>, transform_indices = @transform_5, window_bounds = array<i64: 2, 64, 32>}, {pipeline_mode = #tpu.pipeline_mode<synchronous>, transform_indices = @transform_6, window_bounds = array<i64: 32, 128>}, {pipeline_mode = #tpu.pipeline_mode<synchronous>, transform_indices = @transform_7, window_bounds = array<i64: 128, 32>}, {pipeline_mode = #tpu.pipeline_mode<synchronous>, transform_indices = @transform_8, window_bounds = array<i64: 12, 32>}, {pipeline_mode = #tpu.pipeline_mode<synchronous>, transform_indices = @transform_9, window_bounds = array<i64: 1, 128>}, {pipeline_mode = #tpu.pipeline_mode<synchronous>, transform_indices = @transform_10, window_bounds = array<i64: 6, 32, 32>}, {pipeline_mode = #tpu.pipeline_mode<synchronous>, transform_indices = @transform_11, window_bounds = array<i64: 32, 128>}, {pipeline_mode = #tpu.pipeline_mode<synchronous>, transform_indices = @transform_12, window_bounds = array<i64: 128, 32>}, {pipeline_mode = #tpu.pipeline_mode<synchronous>, transform_indices = @transform_13, window_bounds = array<i64: 13, 32>}, {pipeline_mode = #tpu.pipeline_mode<synchronous>, transform_indices = @transform_14, window_bounds = array<i64: 1, 128>}, {transform_indices = @transform_15, window_bounds = array<i64: 2, 10, 32>}, {transform_indices = @transform_16, window_bounds = array<i64: 2, 10, 32>}]} {
    %0 = tpu.iota {dimensions = array<i32: 0>} : vector<32x4xi32>
    %1 = tpu.iota {dimensions = array<i32: 1>} : vector<32x4xi32>
    %c8_i32 = arith.constant 8 : i32
    %2 = vector.broadcast %c8_i32 : i32 to vector<32x4xi32>
    %3 = arith.muli %1, %2 : vector<32x4xi32>
    %4 = arith.cmpi sge, %0, %3 : vector<32x4xi32>
    %c8_i32_0 = arith.constant 8 : i32
    %5 = vector.broadcast %c8_i32_0 : i32 to vector<32x4xi32>
    %6 = arith.addi %3, %5 : vector<32x4xi32>
    %7 = arith.cmpi slt, %0, %6 : vector<32x4xi32>
    %8 = arith.andi %4, %7 : vector<32x4xi1>
    %9 = arith.extui %8 : vector<32x4xi1> to vector<32x4xi32>
    %10 = arith.sitofp %9 : vector<32x4xi32> to vector<32x4xf32>
    %11 = tpu.iota {dimensions = array<i32: 0>} : vector<4x32xi32>
    %12 = tpu.iota {dimensions = array<i32: 1>} : vector<4x32xi32>
    %c8_i32_1 = arith.constant 8 : i32
    %13 = vector.broadcast %c8_i32_1 : i32 to vector<4x32xi32>
    %14 = arith.muli %11, %13 : vector<4x32xi32>
    %15 = arith.cmpi sge, %12, %14 : vector<4x32xi32>
    %c8_i32_2 = arith.constant 8 : i32
    %16 = vector.broadcast %c8_i32_2 : i32 to vector<4x32xi32>
    %17 = arith.addi %14, %16 : vector<4x32xi32>
    %18 = arith.cmpi slt, %12, %17 : vector<4x32xi32>
    %19 = arith.andi %15, %18 : vector<4x32xi1>
    %20 = arith.extui %19 : vector<4x32xi1> to vector<4x32xi32>
    %21 = arith.sitofp %20 : vector<4x32xi32> to vector<4x32xf32>
    %c0 = arith.constant 0 : index
    %c0_3 = arith.constant 0 : index
    %22 = vector.load %arg9[%c0, %c0_3] : memref<12x32xf32, #tpu.memory_space<vmem>>, vector<12x32xf32>
    %23 = vector.extract_strided_slice %22 {offsets = [0, 0], sizes = [1, 32], strides = [1, 1]} : vector<12x32xf32> to vector<1x32xf32>
    %24 = vector.extract_strided_slice %22 {offsets = [1, 0], sizes = [1, 32], strides = [1, 1]} : vector<12x32xf32> to vector<1x32xf32>
    %25 = vector.extract_strided_slice %22 {offsets = [2, 0], sizes = [1, 32], strides = [1, 1]} : vector<12x32xf32> to vector<1x32xf32>
    %26 = vector.extract_strided_slice %22 {offsets = [3, 0], sizes = [1, 32], strides = [1, 1]} : vector<12x32xf32> to vector<1x32xf32>
    %27 = vector.extract_strided_slice %22 {offsets = [4, 0], sizes = [1, 32], strides = [1, 1]} : vector<12x32xf32> to vector<1x32xf32>
    %28 = vector.extract_strided_slice %22 {offsets = [5, 0], sizes = [1, 32], strides = [1, 1]} : vector<12x32xf32> to vector<1x32xf32>
    %29 = vector.extract_strided_slice %22 {offsets = [6, 0], sizes = [1, 32], strides = [1, 1]} : vector<12x32xf32> to vector<1x32xf32>
    %30 = vector.extract_strided_slice %22 {offsets = [7, 0], sizes = [1, 32], strides = [1, 1]} : vector<12x32xf32> to vector<1x32xf32>
    %31 = vector.extract_strided_slice %22 {offsets = [8, 0], sizes = [1, 32], strides = [1, 1]} : vector<12x32xf32> to vector<1x32xf32>
    %32 = vector.extract_strided_slice %22 {offsets = [9, 0], sizes = [1, 32], strides = [1, 1]} : vector<12x32xf32> to vector<1x32xf32>
    %33 = vector.extract_strided_slice %22 {offsets = [10, 0], sizes = [1, 32], strides = [1, 1]} : vector<12x32xf32> to vector<1x32xf32>
    %34 = vector.extract_strided_slice %22 {offsets = [11, 0], sizes = [1, 32], strides = [1, 1]} : vector<12x32xf32> to vector<1x32xf32>
    %c0_4 = arith.constant 0 : index
    %c0_5 = arith.constant 0 : index
    %c0_6 = arith.constant 0 : index
    %35 = vector.load %arg1[%c0_4, %c0_5, %c0_6] : memref<2x10x32xbf16, #tpu.memory_space<vmem>>, vector<2x10x32xbf16>
    %36 = vector.shape_cast %35 : vector<2x10x32xbf16> to vector<20x32xbf16>
    %37 = arith.extf %36 : vector<20x32xbf16> to vector<20x32xf32>
    %c0_7 = arith.constant 0 : index
    %c0_8 = arith.constant 0 : index
    %c0_9 = arith.constant 0 : index
    %38 = vector.load %arg2[%c0_7, %c0_8, %c0_9] : memref<2x80x64xbf16, #tpu.memory_space<vmem>>, vector<2x80x64xbf16>
    %39 = vector.shape_cast %38 : vector<2x80x64xbf16> to vector<160x64xbf16>
    %c0_10 = arith.constant 0 : index
    %c0_11 = arith.constant 0 : index
    %c0_12 = arith.constant 0 : index
    %40 = vector.load %arg5[%c0_10, %c0_11, %c0_12] : memref<3x32x32xbf16, #tpu.memory_space<vmem>>, vector<1x32x32xbf16>
    %41 = vector.shape_cast %40 : vector<1x32x32xbf16> to vector<32x32xbf16>
    %cst = arith.constant dense<0.000000e+00> : vector<20x32xf32>
    %42 = tpu.matmul %36, %41, %cst {dimension_numbers = #tpu.dot_dimension_numbers<[1], [0], [0], [1], [0, 0, 1, 1], [], []>} : vector<20x32xbf16>, vector<32x32xbf16>, vector<20x32xf32> -> vector<20x32xf32>
    %43 = vector.broadcast %23 : vector<1x32xf32> to vector<20x32xf32>
    %44 = arith.addf %42, %43 : vector<20x32xf32>
    %c0_13 = arith.constant 0 : index
    %c0_14 = arith.constant 0 : index
    %c0_15 = arith.constant 0 : index
    %45 = vector.load %arg6[%c0_13, %c0_14, %c0_15] : memref<2x64x32xbf16, #tpu.memory_space<vmem>>, vector<1x64x32xbf16>
    %46 = vector.shape_cast %45 : vector<1x64x32xbf16> to vector<64x32xbf16>
    %cst_16 = arith.constant dense<0.000000e+00> : vector<160x32xf32>
    %47 = tpu.matmul %39, %46, %cst_16 {dimension_numbers = #tpu.dot_dimension_numbers<[1], [0], [0], [1], [0, 0, 1, 1], [], []>} : vector<160x64xbf16>, vector<64x32xbf16>, vector<160x32xf32> -> vector<160x32xf32>
    %48 = vector.broadcast %24 : vector<1x32xf32> to vector<160x32xf32>
    %49 = arith.addf %47, %48 : vector<160x32xf32>
    %50 = vector.shape_cast %49 : vector<160x32xf32> to vector<20x8x32xf32>
    %c1 = arith.constant 1 : index
    %c0_17 = arith.constant 0 : index
    %c0_18 = arith.constant 0 : index
    %51 = vector.load %arg6[%c1, %c0_17, %c0_18] : memref<2x64x32xbf16, #tpu.memory_space<vmem>>, vector<1x64x32xbf16>
    %52 = vector.shape_cast %51 : vector<1x64x32xbf16> to vector<64x32xbf16>
    %cst_19 = arith.constant dense<0.000000e+00> : vector<160x32xf32>
    %53 = tpu.matmul %39, %52, %cst_19 {dimension_numbers = #tpu.dot_dimension_numbers<[1], [0], [0], [1], [0, 0, 1, 1], [], []>} : vector<160x64xbf16>, vector<64x32xbf16>, vector<160x32xf32> -> vector<160x32xf32>
    %54 = vector.broadcast %25 : vector<1x32xf32> to vector<160x32xf32>
    %55 = arith.addf %53, %54 : vector<160x32xf32>
    %56 = vector.shape_cast %55 : vector<160x32xf32> to vector<20x8x32xf32>
    %57 = vector.shape_cast %44 : vector<20x32xf32> to vector<20x1x32xf32>
    %58 = vector.broadcast %57 : vector<20x1x32xf32> to vector<20x8x32xf32>
    %59 = arith.mulf %58, %50 : vector<20x8x32xf32>
    %60 = vector.shape_cast %59 : vector<20x8x32xf32> to vector<160x32xf32>
    %cst_20 = arith.constant dense<0.000000e+00> : vector<160x4xf32>
    %61 = tpu.matmul %60, %10, %cst_20 {dimension_numbers = #tpu.dot_dimension_numbers<[1], [0], [0], [1], [0, 0, 1, 1], [], []>} : vector<160x32xf32>, vector<32x4xf32>, vector<160x4xf32> -> vector<160x4xf32>
    %62 = vector.shape_cast %61 : vector<160x4xf32> to vector<20x8x4xf32>
    %cst_21 = arith.constant 0.353553385 : f32
    %63 = vector.broadcast %cst_21 : f32 to vector<20x8x4xf32>
    %64 = arith.mulf %62, %63 : vector<20x8x4xf32>
    %c0_22 = arith.constant 0 : index
    %c0_23 = arith.constant 0 : index
    %c0_24 = arith.constant 0 : index
    %65 = vector.load %arg3[%c0_22, %c0_23, %c0_24] : memref<2x10x8xf32, #tpu.memory_space<vmem>>, vector<2x10x8xf32>
    %66 = vector.shape_cast %65 : vector<2x10x8xf32> to vector<20x8xf32>
    %67 = vector.shape_cast %66 : vector<20x8xf32> to vector<20x8x1xf32>
    %68 = vector.broadcast %67 : vector<20x8x1xf32> to vector<20x8x4xf32>
    %69 = arith.addf %64, %68 : vector<20x8x4xf32>
    %cst_25 = arith.constant dense<0xFF800000> : vector<20x4xf32>
    %70 = vector.multi_reduction <maximumf>, %69, %cst_25 [1] : vector<20x8x4xf32> to vector<20x4xf32>
    %71 = vector.shape_cast %70 : vector<20x4xf32> to vector<20x1x4xf32>
    %cst_26 = arith.constant 0.000000e+00 : f32
    %72 = vector.broadcast %cst_26 : f32 to vector<20x1x4xf32>
    %73 = arith.maximumf %71, %72 : vector<20x1x4xf32>
    %74 = vector.broadcast %73 : vector<20x1x4xf32> to vector<20x8x4xf32>
    %75 = arith.subf %69, %74 : vector<20x8x4xf32>
    %76 = math.exp %75 : vector<20x8x4xf32>
    %cst_27 = arith.constant dense<0.000000e+00> : vector<20x4xf32>
    %77 = vector.multi_reduction <add>, %76, %cst_27 [1] : vector<20x8x4xf32> to vector<20x4xf32>
    %78 = vector.shape_cast %77 : vector<20x4xf32> to vector<20x1x4xf32>
    %cst_28 = arith.constant 0.000000e+00 : f32
    %79 = vector.broadcast %cst_28 : f32 to vector<20x1x4xf32>
    %80 = arith.subf %79, %73 : vector<20x1x4xf32>
    %81 = math.exp %80 : vector<20x1x4xf32>
    %82 = arith.addf %78, %81 : vector<20x1x4xf32>
    %83 = tpu.reciprocal %82 {approx = true} : vector<20x1x4xf32> -> vector<20x1x4xf32>
    %84 = vector.broadcast %83 : vector<20x1x4xf32> to vector<20x8x4xf32>
    %85 = arith.mulf %76, %84 : vector<20x8x4xf32>
    %86 = vector.shape_cast %85 : vector<20x8x4xf32> to vector<160x4xf32>
    %cst_29 = arith.constant dense<0.000000e+00> : vector<160x32xf32>
    %87 = tpu.matmul %86, %21, %cst_29 {dimension_numbers = #tpu.dot_dimension_numbers<[1], [0], [0], [1], [0, 0, 1, 1], [], []>} : vector<160x4xf32>, vector<4x32xf32>, vector<160x32xf32> -> vector<160x32xf32>
    %88 = vector.shape_cast %87 : vector<160x32xf32> to vector<20x8x32xf32>
    %89 = arith.mulf %88, %56 : vector<20x8x32xf32>
    %cst_30 = arith.constant dense<0.000000e+00> : vector<20x32xf32>
    %90 = vector.multi_reduction <add>, %89, %cst_30 [1] : vector<20x8x32xf32> to vector<20x32xf32>
    %c1_31 = arith.constant 1 : index
    %c0_32 = arith.constant 0 : index
    %c0_33 = arith.constant 0 : index
    %91 = vector.load %arg5[%c1_31, %c0_32, %c0_33] : memref<3x32x32xbf16, #tpu.memory_space<vmem>>, vector<1x32x32xbf16>
    %92 = vector.shape_cast %91 : vector<1x32x32xbf16> to vector<32x32xbf16>
    %93 = arith.truncf %90 : vector<20x32xf32> to vector<20x32xbf16>
    %cst_34 = arith.constant dense<0.000000e+00> : vector<20x32xf32>
    %94 = tpu.matmul %93, %92, %cst_34 {dimension_numbers = #tpu.dot_dimension_numbers<[1], [0], [0], [1], [0, 0, 1, 1], [], []>} : vector<20x32xbf16>, vector<32x32xbf16>, vector<20x32xf32> -> vector<20x32xf32>
    %95 = vector.broadcast %26 : vector<1x32xf32> to vector<20x32xf32>
    %96 = arith.addf %94, %95 : vector<20x32xf32>
    %97 = arith.addf %96, %37 : vector<20x32xf32>
    %cst_35 = arith.constant dense<0.000000e+00> : vector<20xf32>
    %98 = vector.multi_reduction <add>, %97, %cst_35 [1] : vector<20x32xf32> to vector<20xf32>
    %99 = vector.shape_cast %98 : vector<20xf32> to vector<20x1xf32>
    %cst_36 = arith.constant 3.200000e+01 : f32
    %100 = vector.broadcast %cst_36 : f32 to vector<20x1xf32>
    %101 = arith.divf %99, %100 : vector<20x1xf32>
    %102 = vector.broadcast %101 : vector<20x1xf32> to vector<20x32xf32>
    %103 = arith.subf %97, %102 : vector<20x32xf32>
    %104 = arith.mulf %103, %103 : vector<20x32xf32>
    %cst_37 = arith.constant dense<0.000000e+00> : vector<20xf32>
    %105 = vector.multi_reduction <add>, %104, %cst_37 [1] : vector<20x32xf32> to vector<20xf32>
    %106 = vector.shape_cast %105 : vector<20xf32> to vector<20x1xf32>
    %cst_38 = arith.constant 3.200000e+01 : f32
    %107 = vector.broadcast %cst_38 : f32 to vector<20x1xf32>
    %108 = arith.divf %106, %107 : vector<20x1xf32>
    %cst_39 = arith.constant 9.99999974E-6 : f32
    %109 = vector.broadcast %cst_39 : f32 to vector<20x1xf32>
    %110 = arith.addf %108, %109 : vector<20x1xf32>
    %111 = math.rsqrt %110 : vector<20x1xf32>
    %112 = vector.broadcast %111 : vector<20x1xf32> to vector<20x32xf32>
    %113 = arith.mulf %103, %112 : vector<20x32xf32>
    %114 = vector.broadcast %27 : vector<1x32xf32> to vector<20x32xf32>
    %115 = arith.mulf %113, %114 : vector<20x32xf32>
    %116 = vector.broadcast %28 : vector<1x32xf32> to vector<20x32xf32>
    %117 = arith.addf %115, %116 : vector<20x32xf32>
    %c0_40 = arith.constant 0 : index
    %c0_41 = arith.constant 0 : index
    %118 = vector.load %arg7[%c0_40, %c0_41] : memref<32x128xbf16, #tpu.memory_space<vmem>>, vector<32x128xbf16>
    %119 = arith.truncf %117 : vector<20x32xf32> to vector<20x32xbf16>
    %cst_42 = arith.constant dense<0.000000e+00> : vector<20x128xf32>
    %120 = tpu.matmul %119, %118, %cst_42 {dimension_numbers = #tpu.dot_dimension_numbers<[1], [0], [0], [1], [0, 0, 1, 1], [], []>} : vector<20x32xbf16>, vector<32x128xbf16>, vector<20x128xf32> -> vector<20x128xf32>
    %c0_43 = arith.constant 0 : index
    %c0_44 = arith.constant 0 : index
    %121 = vector.load %arg10[%c0_43, %c0_44] : memref<1x128xf32, #tpu.memory_space<vmem>>, vector<1x128xf32>
    %122 = vector.broadcast %121 : vector<1x128xf32> to vector<20x128xf32>
    %123 = arith.addf %120, %122 : vector<20x128xf32>
    %cst_45 = arith.constant 0.000000e+00 : f32
    %124 = vector.broadcast %cst_45 : f32 to vector<20x128xf32>
    %125 = arith.maximumf %123, %124 : vector<20x128xf32>
    %c0_46 = arith.constant 0 : index
    %c0_47 = arith.constant 0 : index
    %126 = vector.load %arg8[%c0_46, %c0_47] : memref<128x32xbf16, #tpu.memory_space<vmem>>, vector<128x32xbf16>
    %127 = arith.truncf %125 : vector<20x128xf32> to vector<20x128xbf16>
    %cst_48 = arith.constant dense<0.000000e+00> : vector<20x32xf32>
    %128 = tpu.matmul %127, %126, %cst_48 {dimension_numbers = #tpu.dot_dimension_numbers<[1], [0], [0], [1], [0, 0, 1, 1], [], []>} : vector<20x128xbf16>, vector<128x32xbf16>, vector<20x32xf32> -> vector<20x32xf32>
    %129 = vector.broadcast %29 : vector<1x32xf32> to vector<20x32xf32>
    %130 = arith.addf %128, %129 : vector<20x32xf32>
    %131 = arith.addf %130, %117 : vector<20x32xf32>
    %cst_49 = arith.constant dense<0.000000e+00> : vector<20xf32>
    %132 = vector.multi_reduction <add>, %131, %cst_49 [1] : vector<20x32xf32> to vector<20xf32>
    %133 = vector.shape_cast %132 : vector<20xf32> to vector<20x1xf32>
    %cst_50 = arith.constant 3.200000e+01 : f32
    %134 = vector.broadcast %cst_50 : f32 to vector<20x1xf32>
    %135 = arith.divf %133, %134 : vector<20x1xf32>
    %136 = vector.broadcast %135 : vector<20x1xf32> to vector<20x32xf32>
    %137 = arith.subf %131, %136 : vector<20x32xf32>
    %138 = arith.mulf %137, %137 : vector<20x32xf32>
    %cst_51 = arith.constant dense<0.000000e+00> : vector<20xf32>
    %139 = vector.multi_reduction <add>, %138, %cst_51 [1] : vector<20x32xf32> to vector<20xf32>
    %140 = vector.shape_cast %139 : vector<20xf32> to vector<20x1xf32>
    %cst_52 = arith.constant 3.200000e+01 : f32
    %141 = vector.broadcast %cst_52 : f32 to vector<20x1xf32>
    %142 = arith.divf %140, %141 : vector<20x1xf32>
    %cst_53 = arith.constant 9.99999974E-6 : f32
    %143 = vector.broadcast %cst_53 : f32 to vector<20x1xf32>
    %144 = arith.addf %142, %143 : vector<20x1xf32>
    %145 = math.rsqrt %144 : vector<20x1xf32>
    %146 = vector.broadcast %145 : vector<20x1xf32> to vector<20x32xf32>
    %147 = arith.mulf %137, %146 : vector<20x32xf32>
    %148 = vector.broadcast %30 : vector<1x32xf32> to vector<20x32xf32>
    %149 = arith.mulf %147, %148 : vector<20x32xf32>
    %150 = vector.broadcast %31 : vector<1x32xf32> to vector<20x32xf32>
    %151 = arith.addf %149, %150 : vector<20x32xf32>
    %c2 = arith.constant 2 : index
    %c0_54 = arith.constant 0 : index
    %c0_55 = arith.constant 0 : index
    %152 = vector.load %arg5[%c2, %c0_54, %c0_55] : memref<3x32x32xbf16, #tpu.memory_space<vmem>>, vector<1x32x32xbf16>
    %153 = vector.shape_cast %152 : vector<1x32x32xbf16> to vector<32x32xbf16>
    %154 = arith.truncf %151 : vector<20x32xf32> to vector<20x32xbf16>
    %cst_56 = arith.constant dense<0.000000e+00> : vector<20x32xf32>
    %155 = tpu.matmul %154, %153, %cst_56 {dimension_numbers = #tpu.dot_dimension_numbers<[1], [0], [0], [1], [0, 0, 1, 1], [], []>} : vector<20x32xbf16>, vector<32x32xbf16>, vector<20x32xf32> -> vector<20x32xf32>
    %156 = vector.broadcast %32 : vector<1x32xf32> to vector<20x32xf32>
    %157 = arith.addf %155, %156 : vector<20x32xf32>
    %cst_57 = arith.constant 0.000000e+00 : f32
    %158 = vector.broadcast %cst_57 : f32 to vector<20x32xf32>
    %159 = arith.maximumf %157, %158 : vector<20x32xf32>
    %160 = arith.addf %151, %159 : vector<20x32xf32>
    %cst_58 = arith.constant dense<0.000000e+00> : vector<20xf32>
    %161 = vector.multi_reduction <add>, %160, %cst_58 [1] : vector<20x32xf32> to vector<20xf32>
    %162 = vector.shape_cast %161 : vector<20xf32> to vector<20x1xf32>
    %cst_59 = arith.constant 3.200000e+01 : f32
    %163 = vector.broadcast %cst_59 : f32 to vector<20x1xf32>
    %164 = arith.divf %162, %163 : vector<20x1xf32>
    %165 = vector.broadcast %164 : vector<20x1xf32> to vector<20x32xf32>
    %166 = arith.subf %160, %165 : vector<20x32xf32>
    %167 = arith.mulf %166, %166 : vector<20x32xf32>
    %cst_60 = arith.constant dense<0.000000e+00> : vector<20xf32>
    %168 = vector.multi_reduction <add>, %167, %cst_60 [1] : vector<20x32xf32> to vector<20xf32>
    %169 = vector.shape_cast %168 : vector<20xf32> to vector<20x1xf32>
    %cst_61 = arith.constant 3.200000e+01 : f32
    %170 = vector.broadcast %cst_61 : f32 to vector<20x1xf32>
    %171 = arith.divf %169, %170 : vector<20x1xf32>
    %cst_62 = arith.constant 9.99999974E-6 : f32
    %172 = vector.broadcast %cst_62 : f32 to vector<20x1xf32>
    %173 = arith.addf %171, %172 : vector<20x1xf32>
    %174 = math.rsqrt %173 : vector<20x1xf32>
    %175 = vector.broadcast %174 : vector<20x1xf32> to vector<20x32xf32>
    %176 = arith.mulf %166, %175 : vector<20x32xf32>
    %177 = vector.broadcast %33 : vector<1x32xf32> to vector<20x32xf32>
    %178 = arith.mulf %176, %177 : vector<20x32xf32>
    %179 = vector.broadcast %34 : vector<1x32xf32> to vector<20x32xf32>
    %180 = arith.addf %178, %179 : vector<20x32xf32>
    %181 = vector.shape_cast %180 : vector<20x32xf32> to vector<2x10x32xf32>
    %c0_63 = arith.constant 0 : index
    %c0_64 = arith.constant 0 : index
    %c0_65 = arith.constant 0 : index
    %182 = vector.load %arg16[%c0_63, %c0_64, %c0_65] : memref<2x10x32xf32, #tpu.memory_space<vmem>>, vector<2x10x32xf32>
    tpu.vector_store %arg16[%c0_63, %c0_64, %c0_65], %181 {strides = array<i32>} : memref<2x10x32xf32, #tpu.memory_space<vmem>>, vector<2x10x32xf32>,
    %183 = tpu.iota {dimensions = array<i32: 0>} : vector<32x4xi32>
    %184 = tpu.iota {dimensions = array<i32: 1>} : vector<32x4xi32>
    %c8_i32_66 = arith.constant 8 : i32
    %185 = vector.broadcast %c8_i32_66 : i32 to vector<32x4xi32>
    %186 = arith.muli %184, %185 : vector<32x4xi32>
    %187 = arith.cmpi sge, %183, %186 : vector<32x4xi32>
    %c8_i32_67 = arith.constant 8 : i32
    %188 = vector.broadcast %c8_i32_67 : i32 to vector<32x4xi32>
    %189 = arith.addi %186, %188 : vector<32x4xi32>
    %190 = arith.cmpi slt, %183, %189 : vector<32x4xi32>
    %191 = arith.andi %187, %190 : vector<32x4xi1>
    %192 = arith.extui %191 : vector<32x4xi1> to vector<32x4xi32>
    %193 = arith.sitofp %192 : vector<32x4xi32> to vector<32x4xf32>
    %194 = tpu.iota {dimensions = array<i32: 0>} : vector<4x32xi32>
    %195 = tpu.iota {dimensions = array<i32: 1>} : vector<4x32xi32>
    %c8_i32_68 = arith.constant 8 : i32
    %196 = vector.broadcast %c8_i32_68 : i32 to vector<4x32xi32>
    %197 = arith.muli %194, %196 : vector<4x32xi32>
    %198 = arith.cmpi sge, %195, %197 : vector<4x32xi32>
    %c8_i32_69 = arith.constant 8 : i32
    %199 = vector.broadcast %c8_i32_69 : i32 to vector<4x32xi32>
    %200 = arith.addi %197, %199 : vector<4x32xi32>
    %201 = arith.cmpi slt, %195, %200 : vector<4x32xi32>
    %202 = arith.andi %198, %201 : vector<4x32xi1>
    %203 = arith.extui %202 : vector<4x32xi1> to vector<4x32xi32>
    %204 = arith.sitofp %203 : vector<4x32xi32> to vector<4x32xf32>
    %c0_70 = arith.constant 0 : index
    %c0_71 = arith.constant 0 : index
    %205 = vector.load %arg14[%c0_70, %c0_71] : memref<13x32xf32, #tpu.memory_space<vmem>>, vector<13x32xf32>
    %206 = vector.extract_strided_slice %205 {offsets = [0, 0], sizes = [1, 32], strides = [1, 1]} : vector<13x32xf32> to vector<1x32xf32>
    %207 = vector.extract_strided_slice %205 {offsets = [1, 0], sizes = [1, 32], strides = [1, 1]} : vector<13x32xf32> to vector<1x32xf32>
    %208 = vector.extract_strided_slice %205 {offsets = [2, 0], sizes = [1, 32], strides = [1, 1]} : vector<13x32xf32> to vector<1x32xf32>
    %209 = vector.extract_strided_slice %205 {offsets = [3, 0], sizes = [1, 32], strides = [1, 1]} : vector<13x32xf32> to vector<1x32xf32>
    %210 = vector.extract_strided_slice %205 {offsets = [4, 0], sizes = [1, 32], strides = [1, 1]} : vector<13x32xf32> to vector<1x32xf32>
    %211 = vector.extract_strided_slice %205 {offsets = [5, 0], sizes = [1, 32], strides = [1, 1]} : vector<13x32xf32> to vector<1x32xf32>
    %212 = vector.extract_strided_slice %205 {offsets = [6, 0], sizes = [1, 32], strides = [1, 1]} : vector<13x32xf32> to vector<1x32xf32>
    %213 = vector.extract_strided_slice %205 {offsets = [7, 0], sizes = [1, 32], strides = [1, 1]} : vector<13x32xf32> to vector<1x32xf32>
    %214 = vector.extract_strided_slice %205 {offsets = [8, 0], sizes = [1, 32], strides = [1, 1]} : vector<13x32xf32> to vector<1x32xf32>
    %215 = vector.extract_strided_slice %205 {offsets = [9, 0], sizes = [1, 32], strides = [1, 1]} : vector<13x32xf32> to vector<1x32xf32>
    %216 = vector.extract_strided_slice %205 {offsets = [10, 0], sizes = [1, 32], strides = [1, 1]} : vector<13x32xf32> to vector<1x32xf32>
    %217 = vector.extract_strided_slice %205 {offsets = [11, 0], sizes = [1, 32], strides = [1, 1]} : vector<13x32xf32> to vector<1x32xf32>
    %218 = vector.extract_strided_slice %205 {offsets = [12, 0], sizes = [1, 32], strides = [1, 1]} : vector<13x32xf32> to vector<1x32xf32>
    %c0_72 = arith.constant 0 : index
    %c0_73 = arith.constant 0 : index
    %c0_74 = arith.constant 0 : index
    %219 = vector.load %arg4[%c0_72, %c0_73, %c0_74] : memref<2x10x32xbf16, #tpu.memory_space<vmem>>, vector<2x10x32xbf16>
    %220 = vector.shape_cast %219 : vector<2x10x32xbf16> to vector<20x32xbf16>
    %221 = arith.extf %220 : vector<20x32xbf16> to vector<20x32xf32>
    %c0_75 = arith.constant 0 : index
    %c0_76 = arith.constant 0 : index
    %c0_77 = arith.constant 0 : index
    %222 = vector.load %arg11[%c0_75, %c0_76, %c0_77] : memref<6x32x32xbf16, #tpu.memory_space<vmem>>, vector<1x32x32xbf16>
    %223 = vector.shape_cast %222 : vector<1x32x32xbf16> to vector<32x32xbf16>
    %cst_78 = arith.constant dense<0.000000e+00> : vector<20x32xf32>
    %224 = tpu.matmul %220, %223, %cst_78 {dimension_numbers = #tpu.dot_dimension_numbers<[1], [0], [0], [1], [0, 0, 1, 1], [], []>} : vector<20x32xbf16>, vector<32x32xbf16>, vector<20x32xf32> -> vector<20x32xf32>
    %225 = vector.broadcast %206 : vector<1x32xf32> to vector<20x32xf32>
    %226 = arith.addf %224, %225 : vector<20x32xf32>
    %227 = vector.shape_cast %226 : vector<20x32xf32> to vector<2x10x32xf32>
    %c1_79 = arith.constant 1 : index
    %c0_80 = arith.constant 0 : index
    %c0_81 = arith.constant 0 : index
    %228 = vector.load %arg11[%c1_79, %c0_80, %c0_81] : memref<6x32x32xbf16, #tpu.memory_space<vmem>>, vector<1x32x32xbf16>
    %229 = vector.shape_cast %228 : vector<1x32x32xbf16> to vector<32x32xbf16>
    %cst_82 = arith.constant dense<0.000000e+00> : vector<20x32xf32>
    %230 = tpu.matmul %220, %229, %cst_82 {dimension_numbers = #tpu.dot_dimension_numbers<[1], [0], [0], [1], [0, 0, 1, 1], [], []>} : vector<20x32xbf16>, vector<32x32xbf16>, vector<20x32xf32> -> vector<20x32xf32>
    %231 = vector.broadcast %207 : vector<1x32xf32> to vector<20x32xf32>
    %232 = arith.addf %230, %231 : vector<20x32xf32>
    %233 = vector.shape_cast %232 : vector<20x32xf32> to vector<2x10x32xf32>
    %c2_83 = arith.constant 2 : index
    %c0_84 = arith.constant 0 : index
    %c0_85 = arith.constant 0 : index
    %234 = vector.load %arg11[%c2_83, %c0_84, %c0_85] : memref<6x32x32xbf16, #tpu.memory_space<vmem>>, vector<1x32x32xbf16>
    %235 = vector.shape_cast %234 : vector<1x32x32xbf16> to vector<32x32xbf16>
    %cst_86 = arith.constant dense<0.000000e+00> : vector<20x32xf32>
    %236 = tpu.matmul %220, %235, %cst_86 {dimension_numbers = #tpu.dot_dimension_numbers<[1], [0], [0], [1], [0, 0, 1, 1], [], []>} : vector<20x32xbf16>, vector<32x32xbf16>, vector<20x32xf32> -> vector<20x32xf32>
    %237 = vector.broadcast %208 : vector<1x32xf32> to vector<20x32xf32>
    %238 = arith.addf %236, %237 : vector<20x32xf32>
    %239 = vector.shape_cast %238 : vector<20x32xf32> to vector<2x10x32xf32>
    %240 = vector.shape_cast %227 : vector<2x10x32xf32> to vector<2x10x1x32xf32>
    %241 = vector.shape_cast %233 : vector<2x10x32xf32> to vector<2x1x10x32xf32>
    %242 = vector.broadcast %240 : vector<2x10x1x32xf32> to vector<2x10x10x32xf32>
    %243 = vector.broadcast %241 : vector<2x1x10x32xf32> to vector<2x10x10x32xf32>
    %244 = arith.mulf %242, %243 : vector<2x10x10x32xf32>
    %245 = vector.shape_cast %244 : vector<2x10x10x32xf32> to vector<200x32xf32>
    %cst_87 = arith.constant dense<0.000000e+00> : vector<200x4xf32>
    %246 = tpu.matmul %245, %193, %cst_87 {dimension_numbers = #tpu.dot_dimension_numbers<[1], [0], [0], [1], [0, 0, 1, 1], [], []>} : vector<200x32xf32>, vector<32x4xf32>, vector<200x4xf32> -> vector<200x4xf32>
    %247 = vector.shape_cast %246 : vector<200x4xf32> to vector<2x10x10x4xf32>
    %cst_88 = arith.constant 0.353553385 : f32
    %248 = vector.broadcast %cst_88 : f32 to vector<2x10x10x4xf32>
    %249 = arith.mulf %247, %248 : vector<2x10x10x4xf32>
    %cst_89 = arith.constant dense<0xFF800000> : vector<2x10x4xf32>
    %250 = vector.multi_reduction <maximumf>, %249, %cst_89 [2] : vector<2x10x10x4xf32> to vector<2x10x4xf32>
    %251 = vector.shape_cast %250 : vector<2x10x4xf32> to vector<2x10x1x4xf32>
    %252 = vector.broadcast %251 : vector<2x10x1x4xf32> to vector<2x10x10x4xf32>
    %253 = arith.subf %249, %252 : vector<2x10x10x4xf32>
    %254 = math.exp %253 : vector<2x10x10x4xf32>
    %cst_90 = arith.constant dense<0.000000e+00> : vector<2x10x4xf32>
    %255 = vector.multi_reduction <add>, %254, %cst_90 [2] : vector<2x10x10x4xf32> to vector<2x10x4xf32>
    %256 = vector.shape_cast %255 : vector<2x10x4xf32> to vector<2x10x1x4xf32>
    %257 = tpu.reciprocal %256 {approx = true} : vector<2x10x1x4xf32> -> vector<2x10x1x4xf32>
    %258 = vector.broadcast %257 : vector<2x10x1x4xf32> to vector<2x10x10x4xf32>
    %259 = arith.mulf %254, %258 : vector<2x10x10x4xf32>
    %260 = vector.shape_cast %259 : vector<2x10x10x4xf32> to vector<200x4xf32>
    %cst_91 = arith.constant dense<0.000000e+00> : vector<200x32xf32>
    %261 = tpu.matmul %260, %204, %cst_91 {dimension_numbers = #tpu.dot_dimension_numbers<[1], [0], [0], [1], [0, 0, 1, 1], [], []>} : vector<200x4xf32>, vector<4x32xf32>, vector<200x32xf32> -> vector<200x32xf32>
    %262 = vector.shape_cast %261 : vector<200x32xf32> to vector<2x10x10x32xf32>
    %263 = vector.shape_cast %239 : vector<2x10x32xf32> to vector<2x1x10x32xf32>
    %264 = vector.broadcast %263 : vector<2x1x10x32xf32> to vector<2x10x10x32xf32>
    %265 = arith.mulf %262, %264 : vector<2x10x10x32xf32>
    %cst_92 = arith.constant dense<0.000000e+00> : vector<2x10x32xf32>
    %266 = vector.multi_reduction <add>, %265, %cst_92 [2] : vector<2x10x10x32xf32> to vector<2x10x32xf32>
    %267 = vector.shape_cast %266 : vector<2x10x32xf32> to vector<20x32xf32>
    %c3 = arith.constant 3 : index
    %c0_93 = arith.constant 0 : index
    %c0_94 = arith.constant 0 : index
    %268 = vector.load %arg11[%c3, %c0_93, %c0_94] : memref<6x32x32xbf16, #tpu.memory_space<vmem>>, vector<1x32x32xbf16>
    %269 = vector.shape_cast %268 : vector<1x32x32xbf16> to vector<32x32xbf16>
    %270 = arith.truncf %267 : vector<20x32xf32> to vector<20x32xbf16>
    %cst_95 = arith.constant dense<0.000000e+00> : vector<20x32xf32>
    %271 = tpu.matmul %270, %269, %cst_95 {dimension_numbers = #tpu.dot_dimension_numbers<[1], [0], [0], [1], [0, 0, 1, 1], [], []>} : vector<20x32xbf16>, vector<32x32xbf16>, vector<20x32xf32> -> vector<20x32xf32>
    %272 = vector.broadcast %209 : vector<1x32xf32> to vector<20x32xf32>
    %273 = arith.addf %271, %272 : vector<20x32xf32>
    %274 = arith.addf %221, %273 : vector<20x32xf32>
    %cst_96 = arith.constant dense<0.000000e+00> : vector<20xf32>
    %275 = vector.multi_reduction <add>, %274, %cst_96 [1] : vector<20x32xf32> to vector<20xf32>
    %276 = vector.shape_cast %275 : vector<20xf32> to vector<20x1xf32>
    %cst_97 = arith.constant 3.200000e+01 : f32
    %277 = vector.broadcast %cst_97 : f32 to vector<20x1xf32>
    %278 = arith.divf %276, %277 : vector<20x1xf32>
    %279 = vector.broadcast %278 : vector<20x1xf32> to vector<20x32xf32>
    %280 = arith.subf %274, %279 : vector<20x32xf32>
    %281 = arith.mulf %280, %280 : vector<20x32xf32>
    %cst_98 = arith.constant dense<0.000000e+00> : vector<20xf32>
    %282 = vector.multi_reduction <add>, %281, %cst_98 [1] : vector<20x32xf32> to vector<20xf32>
    %283 = vector.shape_cast %282 : vector<20xf32> to vector<20x1xf32>
    %cst_99 = arith.constant 3.200000e+01 : f32
    %284 = vector.broadcast %cst_99 : f32 to vector<20x1xf32>
    %285 = arith.divf %283, %284 : vector<20x1xf32>
    %cst_100 = arith.constant 9.99999974E-6 : f32
    %286 = vector.broadcast %cst_100 : f32 to vector<20x1xf32>
    %287 = arith.addf %285, %286 : vector<20x1xf32>
    %288 = math.rsqrt %287 : vector<20x1xf32>
    %289 = vector.broadcast %288 : vector<20x1xf32> to vector<20x32xf32>
    %290 = arith.mulf %280, %289 : vector<20x32xf32>
    %291 = vector.broadcast %210 : vector<1x32xf32> to vector<20x32xf32>
    %292 = arith.mulf %290, %291 : vector<20x32xf32>
    %293 = vector.broadcast %211 : vector<1x32xf32> to vector<20x32xf32>
    %294 = arith.addf %292, %293 : vector<20x32xf32>
    %c4 = arith.constant 4 : index
    %c0_101 = arith.constant 0 : index
    %c0_102 = arith.constant 0 : index
    %295 = vector.load %arg11[%c4, %c0_101, %c0_102] : memref<6x32x32xbf16, #tpu.memory_space<vmem>>, vector<1x32x32xbf16>
    %296 = vector.shape_cast %295 : vector<1x32x32xbf16> to vector<32x32xbf16>
    %297 = arith.truncf %294 : vector<20x32xf32> to vector<20x32xbf16>
    %cst_103 = arith.constant dense<0.000000e+00> : vector<20x32xf32>
    %298 = tpu.matmul %297, %296, %cst_103 {dimension_numbers = #tpu.dot_dimension_numbers<[1], [0], [0], [1], [0, 0, 1, 1], [], []>} : vector<20x32xbf16>, vector<32x32xbf16>, vector<20x32xf32> -> vector<20x32xf32>
    %299 = vector.broadcast %212 : vector<1x32xf32> to vector<20x32xf32>
    %300 = arith.addf %298, %299 : vector<20x32xf32>
    %cst_104 = arith.constant 0.000000e+00 : f32
    %301 = vector.broadcast %cst_104 : f32 to vector<20x32xf32>
    %302 = arith.maximumf %300, %301 : vector<20x32xf32>
    %c5 = arith.constant 5 : index
    %c0_105 = arith.constant 0 : index
    %c0_106 = arith.constant 0 : index
    %303 = vector.load %arg11[%c5, %c0_105, %c0_106] : memref<6x32x32xbf16, #tpu.memory_space<vmem>>, vector<1x32x32xbf16>
    %304 = vector.shape_cast %303 : vector<1x32x32xbf16> to vector<32x32xbf16>
    %305 = arith.truncf %302 : vector<20x32xf32> to vector<20x32xbf16>
    %cst_107 = arith.constant dense<0.000000e+00> : vector<20x32xf32>
    %306 = tpu.matmul %305, %304, %cst_107 {dimension_numbers = #tpu.dot_dimension_numbers<[1], [0], [0], [1], [0, 0, 1, 1], [], []>} : vector<20x32xbf16>, vector<32x32xbf16>, vector<20x32xf32> -> vector<20x32xf32>
    %307 = vector.broadcast %213 : vector<1x32xf32> to vector<20x32xf32>
    %308 = arith.addf %306, %307 : vector<20x32xf32>
    %309 = arith.addf %294, %308 : vector<20x32xf32>
    %cst_108 = arith.constant dense<0.000000e+00> : vector<20xf32>
    %310 = vector.multi_reduction <add>, %309, %cst_108 [1] : vector<20x32xf32> to vector<20xf32>
    %311 = vector.shape_cast %310 : vector<20xf32> to vector<20x1xf32>
    %cst_109 = arith.constant 3.200000e+01 : f32
    %312 = vector.broadcast %cst_109 : f32 to vector<20x1xf32>
    %313 = arith.divf %311, %312 : vector<20x1xf32>
    %314 = vector.broadcast %313 : vector<20x1xf32> to vector<20x32xf32>
    %315 = arith.subf %309, %314 : vector<20x32xf32>
    %316 = arith.mulf %315, %315 : vector<20x32xf32>
    %cst_110 = arith.constant dense<0.000000e+00> : vector<20xf32>
    %317 = vector.multi_reduction <add>, %316, %cst_110 [1] : vector<20x32xf32> to vector<20xf32>
    %318 = vector.shape_cast %317 : vector<20xf32> to vector<20x1xf32>
    %cst_111 = arith.constant 3.200000e+01 : f32
    %319 = vector.broadcast %cst_111 : f32 to vector<20x1xf32>
    %320 = arith.divf %318, %319 : vector<20x1xf32>
    %cst_112 = arith.constant 9.99999974E-6 : f32
    %321 = vector.broadcast %cst_112 : f32 to vector<20x1xf32>
    %322 = arith.addf %320, %321 : vector<20x1xf32>
    %323 = math.rsqrt %322 : vector<20x1xf32>
    %324 = vector.broadcast %323 : vector<20x1xf32> to vector<20x32xf32>
    %325 = arith.mulf %315, %324 : vector<20x32xf32>
    %326 = vector.broadcast %214 : vector<1x32xf32> to vector<20x32xf32>
    %327 = arith.mulf %325, %326 : vector<20x32xf32>
    %328 = vector.broadcast %215 : vector<1x32xf32> to vector<20x32xf32>
    %329 = arith.addf %327, %328 : vector<20x32xf32>
    %c0_113 = arith.constant 0 : index
    %c0_114 = arith.constant 0 : index
    %330 = vector.load %arg12[%c0_113, %c0_114] : memref<32x128xbf16, #tpu.memory_space<vmem>>, vector<32x128xbf16>
    %331 = arith.truncf %329 : vector<20x32xf32> to vector<20x32xbf16>
    %cst_115 = arith.constant dense<0.000000e+00> : vector<20x128xf32>
    %332 = tpu.matmul %331, %330, %cst_115 {dimension_numbers = #tpu.dot_dimension_numbers<[1], [0], [0], [1], [0, 0, 1, 1], [], []>} : vector<20x32xbf16>, vector<32x128xbf16>, vector<20x128xf32> -> vector<20x128xf32>
    %c0_116 = arith.constant 0 : index
    %c0_117 = arith.constant 0 : index
    %333 = vector.load %arg15[%c0_116, %c0_117] : memref<1x128xf32, #tpu.memory_space<vmem>>, vector<1x128xf32>
    %334 = vector.broadcast %333 : vector<1x128xf32> to vector<20x128xf32>
    %335 = arith.addf %332, %334 : vector<20x128xf32>
    %cst_118 = arith.constant 0.000000e+00 : f32
    %336 = vector.broadcast %cst_118 : f32 to vector<20x128xf32>
    %337 = arith.maximumf %335, %336 : vector<20x128xf32>
    %c0_119 = arith.constant 0 : index
    %c0_120 = arith.constant 0 : index
    %338 = vector.load %arg13[%c0_119, %c0_120] : memref<128x32xbf16, #tpu.memory_space<vmem>>, vector<128x32xbf16>
    %339 = arith.truncf %337 : vector<20x128xf32> to vector<20x128xbf16>
    %cst_121 = arith.constant dense<0.000000e+00> : vector<20x32xf32>
    %340 = tpu.matmul %339, %338, %cst_121 {dimension_numbers = #tpu.dot_dimension_numbers<[1], [0], [0], [1], [0, 0, 1, 1], [], []>} : vector<20x128xbf16>, vector<128x32xbf16>, vector<20x32xf32> -> vector<20x32xf32>
    %341 = vector.broadcast %216 : vector<1x32xf32> to vector<20x32xf32>
    %342 = arith.addf %340, %341 : vector<20x32xf32>
    %343 = arith.addf %329, %342 : vector<20x32xf32>
    %cst_122 = arith.constant dense<0.000000e+00> : vector<20xf32>
    %344 = vector.multi_reduction <add>, %343, %cst_122 [1] : vector<20x32xf32> to vector<20xf32>
    %345 = vector.shape_cast %344 : vector<20xf32> to vector<20x1xf32>
    %cst_123 = arith.constant 3.200000e+01 : f32
    %346 = vector.broadcast %cst_123 : f32 to vector<20x1xf32>
    %347 = arith.divf %345, %346 : vector<20x1xf32>
    %348 = vector.broadcast %347 : vector<20x1xf32> to vector<20x32xf32>
    %349 = arith.subf %343, %348 : vector<20x32xf32>
    %350 = arith.mulf %349, %349 : vector<20x32xf32>
    %cst_124 = arith.constant dense<0.000000e+00> : vector<20xf32>
    %351 = vector.multi_reduction <add>, %350, %cst_124 [1] : vector<20x32xf32> to vector<20xf32>
    %352 = vector.shape_cast %351 : vector<20xf32> to vector<20x1xf32>
    %cst_125 = arith.constant 3.200000e+01 : f32
    %353 = vector.broadcast %cst_125 : f32 to vector<20x1xf32>
    %354 = arith.divf %352, %353 : vector<20x1xf32>
    %cst_126 = arith.constant 9.99999974E-6 : f32
    %355 = vector.broadcast %cst_126 : f32 to vector<20x1xf32>
    %356 = arith.addf %354, %355 : vector<20x1xf32>
    %357 = math.rsqrt %356 : vector<20x1xf32>
    %358 = vector.broadcast %357 : vector<20x1xf32> to vector<20x32xf32>
    %359 = arith.mulf %349, %358 : vector<20x32xf32>
    %360 = vector.broadcast %217 : vector<1x32xf32> to vector<20x32xf32>
    %361 = arith.mulf %359, %360 : vector<20x32xf32>
    %362 = vector.broadcast %218 : vector<1x32xf32> to vector<20x32xf32>
    %363 = arith.addf %361, %362 : vector<20x32xf32>
    %364 = vector.shape_cast %363 : vector<20x32xf32> to vector<2x10x32xf32>
    %c0_127 = arith.constant 0 : index
    %c0_128 = arith.constant 0 : index
    %c0_129 = arith.constant 0 : index
    %365 = vector.load %arg17[%c0_127, %c0_128, %c0_129] : memref<2x10x32xf32, #tpu.memory_space<vmem>>, vector<2x10x32xf32>
    tpu.vector_store %arg17[%c0_127, %c0_128, %c0_129], %364 {strides = array<i32>} : memref<2x10x32xf32, #tpu.memory_space<vmem>>, vector<2x10x32xf32>,
    return
  }
  func.func @transform_0(%arg0: i32) -> (i32, i32, i32) {
    %c0_i32 = arith.constant 0 : i32
    %c0_i32_0 = arith.constant 0 : i32
    %c0_i32_1 = arith.constant 0 : i32
    return %arg0, %c0_i32, %c0_i32_0 : i32, i32, i32
  }
  func.func @transform_1(%arg0: i32) -> (i32, i32, i32) {
    %c0_i32 = arith.constant 0 : i32
    %c0_i32_0 = arith.constant 0 : i32
    %c0_i32_1 = arith.constant 0 : i32
    return %arg0, %c0_i32, %c0_i32_0 : i32, i32, i32
  }
  func.func @transform_2(%arg0: i32) -> (i32, i32, i32) {
    %c0_i32 = arith.constant 0 : i32
    %c0_i32_0 = arith.constant 0 : i32
    %c0_i32_1 = arith.constant 0 : i32
    return %arg0, %c0_i32, %c0_i32_0 : i32, i32, i32
  }
  func.func @transform_3(%arg0: i32) -> (i32, i32, i32) {
    %c0_i32 = arith.constant 0 : i32
    %c0_i32_0 = arith.constant 0 : i32
    %c0_i32_1 = arith.constant 0 : i32
    return %arg0, %c0_i32, %c0_i32_0 : i32, i32, i32
  }
  func.func @transform_4(%arg0: i32) -> (i32, i32, i32) {
    %c0_i32 = arith.constant 0 : i32
    %c0_i32_0 = arith.constant 0 : i32
    %c0_i32_1 = arith.constant 0 : i32
    %c0_i32_2 = arith.constant 0 : i32
    return %c0_i32, %c0_i32_0, %c0_i32_1 : i32, i32, i32
  }
  func.func @transform_5(%arg0: i32) -> (i32, i32, i32) {
    %c0_i32 = arith.constant 0 : i32
    %c0_i32_0 = arith.constant 0 : i32
    %c0_i32_1 = arith.constant 0 : i32
    %c0_i32_2 = arith.constant 0 : i32
    return %c0_i32, %c0_i32_0, %c0_i32_1 : i32, i32, i32
  }
  func.func @transform_6(%arg0: i32) -> (i32, i32) {
    %c0_i32 = arith.constant 0 : i32
    %c0_i32_0 = arith.constant 0 : i32
    %c0_i32_1 = arith.constant 0 : i32
    return %c0_i32, %c0_i32_0 : i32, i32
  }
  func.func @transform_7(%arg0: i32) -> (i32, i32) {
    %c0_i32 = arith.constant 0 : i32
    %c0_i32_0 = arith.constant 0 : i32
    %c0_i32_1 = arith.constant 0 : i32
    return %c0_i32, %c0_i32_0 : i32, i32
  }
  func.func @transform_8(%arg0: i32) -> (i32, i32) {
    %c0_i32 = arith.constant 0 : i32
    %c0_i32_0 = arith.constant 0 : i32
    %c0_i32_1 = arith.constant 0 : i32
    return %c0_i32, %c0_i32_0 : i32, i32
  }
  func.func @transform_9(%arg0: i32) -> (i32, i32) {
    %c0_i32 = arith.constant 0 : i32
    %c0_i32_0 = arith.constant 0 : i32
    %c0_i32_1 = arith.constant 0 : i32
    return %c0_i32, %c0_i32_0 : i32, i32
  }
  func.func @transform_10(%arg0: i32) -> (i32, i32, i32) {
    %c0_i32 = arith.constant 0 : i32
    %c0_i32_0 = arith.constant 0 : i32
    %c0_i32_1 = arith.constant 0 : i32
    %c0_i32_2 = arith.constant 0 : i32
    return %c0_i32, %c0_i32_0, %c0_i32_1 : i32, i32, i32
  }
  func.func @transform_11(%arg0: i32) -> (i32, i32) {
    %c0_i32 = arith.constant 0 : i32
    %c0_i32_0 = arith.constant 0 : i32
    %c0_i32_1 = arith.constant 0 : i32
    return %c0_i32, %c0_i32_0 : i32, i32
  }
  func.func @transform_12(%arg0: i32) -> (i32, i32) {
    %c0_i32 = arith.constant 0 : i32
    %c0_i32_0 = arith.constant 0 : i32
    %c0_i32_1 = arith.constant 0 : i32
    return %c0_i32, %c0_i32_0 : i32, i32
  }
  func.func @transform_13(%arg0: i32) -> (i32, i32) {
    %c0_i32 = arith.constant 0 : i32
    %c0_i32_0 = arith.constant 0 : i32
    %c0_i32_1 = arith.constant 0 : i32
    return %c0_i32, %c0_i32_0 : i32, i32
  }
  func.func @transform_14(%arg0: i32) -> (i32, i32) {
    %c0_i32 = arith.constant 0 : i32
    %c0_i32_0 = arith.constant 0 : i32
    %c0_i32_1 = arith.constant 0 : i32
    return %c0_i32, %c0_i32_0 : i32, i32
  }
  func.func @transform_15(%arg0: i32) -> (i32, i32, i32) {
    %c0_i32 = arith.constant 0 : i32
    %c0_i32_0 = arith.constant 0 : i32
    %c0_i32_1 = arith.constant 0 : i32
    return %arg0, %c0_i32, %c0_i32_0 : i32, i32, i32
  }
  func.func @transform_16(%arg0: i32) -> (i32, i32, i32) {
    %c0_i32 = arith.constant 0 : i32
    %c0_i32_0 = arith.constant 0 : i32
    %c0_i32_1 = arith.constant 0 : i32
    return %arg0, %c0_i32, %c0_i32_0 : i32, i32, i32
  }
}

</mosaic_0001>

<llo_original>
// kernel: game_prediction_forward.1
$region0: #{game_prediction_forward.1}
  #allocation0 [shape = 'u32[]', space=smem, size = 0x4, offset = 0x4, fixed_abs, tag = 'smem constant byte address 0x4 - core index']
  #allocation1 [shape = 'u32[72,128]{1,0:T(1,128)}', space=vmem, size = 0x9000, scoped, tag = 'internal scratch']
  %s0 = inlined_call_operand.vmem [shape: bf16[4,10,32], index: 0, kind: input, shape index: {}]
  %s1 = inlined_call_operand.vmem [shape: bf16[4,80,64], index: 1, kind: input, shape index: {}]
  %s2 = inlined_call_operand.vmem [shape: f32[4,10,8], index: 2, kind: input, shape index: {}]
  %s3 = inlined_call_operand.vmem [shape: bf16[4,10,32], index: 3, kind: input, shape index: {}]
  %s4 = inlined_call_operand.vmem [shape: bf16[3,32,32], index: 4, kind: input, shape index: {}]
  %s5 = inlined_call_operand.vmem [shape: bf16[2,64,32], index: 5, kind: input, shape index: {}]
  %s6 = inlined_call_operand.vmem [shape: bf16[32,128], index: 6, kind: input, shape index: {}]
  %s7 = inlined_call_operand.vmem [shape: bf16[128,32], index: 7, kind: input, shape index: {}]
  %s8 = inlined_call_operand.vmem [shape: f32[12,32], index: 8, kind: input, shape index: {}]
  %s9 = inlined_call_operand.hbm [shape: f32[1,128], index: 9, kind: input, shape index: {}]
  %s10 = inlined_call_operand.vmem [shape: bf16[6,32,32], index: 10, kind: input, shape index: {}]
  %s11 = inlined_call_operand.vmem [shape: bf16[32,128], index: 11, kind: input, shape index: {}]
  %s12 = inlined_call_operand.vmem [shape: bf16[128,32], index: 12, kind: input, shape index: {}]
  %s13 = inlined_call_operand.vmem [shape: f32[13,32], index: 13, kind: input, shape index: {}]
  %s14 = inlined_call_operand.hbm [shape: f32[1,128], index: 14, kind: input, shape index: {}]
  %s15 = inlined_call_operand.vmem [shape: f32[4,10,32], index: 15, kind: output, shape index: {0}]
  %s16 = inlined_call_operand.vmem [shape: f32[4,10,32], index: 16, kind: output, shape index: {1}]
  %17 = xla_tuple %s15, %s16
  %s18 = sld [smem:[#allocation0]]
  $region109: #{game_prediction_forward.1} parent=0
    _
  %s20 = ssub.s32 1, %s18
  %s21 = scalar_select 0, %s20, %s18
  $region1: #{game_prediction_forward.1} parent=0
    #allocation2 [shape = 'u8[512]{0}', space=vmem, size = 0x400, scoped, tag = 'input window, operand 9, single buffered']
    #allocation3 [shape = 's32[2]{0}', space=sflag, size = 0x8, scoped, tag = 'scoped memory for game_prediction_forward.1']
    #allocation4 [shape = 'u8[512]{0}', space=vmem, size = 0x400, scoped, tag = 'input window, operand 14, single buffered']
    #allocation5 [shape = 's32[1]{0}', space=sflag, size = 0x4, scoped, tag = 'scoped memory for game_prediction_forward.1']
    %22 = vsyncpa [#allocation3], 0
    %23 = vsyncpa [#allocation5], 0
    loop: start=0, step=1, limit=4
    $region2: #{game_prediction_forward.1} parent=1 // loop_pre_header
      _
    $region3: #{game_prediction_forward.1} parent=1 // loop_header
      %s25 = sphi 0, %s29
      %p26 = scmp.ge.s32.totalorder %s25, 4
      %s35 = sphi 0, %s37
      %s38 = sphi 0, %s35
      %s39 = sphi 0, %s38
      %s55 = sphi 0, %s39
      %s61 = sphi 0, %s63
      %s64 = sphi 0, %s61
      %s65 = sphi 0, %s64
      %s81 = sphi 0, %s65
      %s87 = sphi 0, %s89
      %s90 = sphi 0, %s87
      %s91 = sphi 0, %s90
      %s107 = sphi 0, %s91
      %s113 = sphi 0, %s115
      %s116 = sphi 0, %s113
      %s117 = sphi 0, %s116
      %s133 = sphi 0, %s117
      %s137 = sphi 0, %s137
      %s139 = sphi 0, %s137
      %s140 = sphi 0, %s139
      %s154 = sphi 0, %s140
      %s158 = sphi 0, %s158
      %s160 = sphi 0, %s158
      %s161 = sphi 0, %s160
      %s175 = sphi 0, %s161
      %s179 = sphi 0, %s179
      %s181 = sphi 0, %s179
      %s182 = sphi 0, %s181
      %s196 = sphi 0, %s182
      %s200 = sphi 0, %s200
      %s202 = sphi 0, %s200
      %s203 = sphi 0, %s202
      %s217 = sphi 0, %s203
      %s221 = sphi 0, %s221
      %s223 = sphi 0, %s221
      %s224 = sphi 0, %s223
      %s238 = sphi 0, %s224
      %s242 = sphi 0, %s242
      %s244 = sphi 0, %s242
      %s245 = sphi 0, %s244
      %s259 = sphi 0, %s245
      %s263 = sphi 0, %s263
      %s265 = sphi 0, %s263
      %s266 = sphi 0, %s265
      %s280 = sphi 0, %s266
      %s284 = sphi 0, %s284
      %s286 = sphi 0, %s284
      %s287 = sphi 0, %s286
      %s301 = sphi 0, %s287
      %s305 = sphi 0, %s305
      %s307 = sphi 0, %s305
      %s308 = sphi 0, %s307
      %s322 = sphi 0, %s308
      %s326 = sphi 0, %s326
      %s328 = sphi 0, %s326
      %s329 = sphi 0, %s328
      %s343 = sphi 0, %s329
      %s347 = sphi 0, %s347
      %s349 = sphi 0, %s347
      %s350 = sphi 0, %s349
      %s364 = sphi 0, %s350
      %s370 = sphi 0, %s372
      %s373 = sphi 0, %s370
      %s374 = sphi 0, %s373
      %s390 = sphi 0, %s374
      %s396 = sphi 0, %s398
      %s399 = sphi 0, %s396
      %s400 = sphi 0, %s399
      %s416 = sphi 0, %s400
    $region4: #{game_prediction_forward.1} parent=1 // loop_header_branch
      %28 = sbr.rel (%p26) target = $region8
    $region5: #{game_prediction_forward.1} parent=1 // loop_body
      %s30 = ssub.s32 %s25, 1
      %s31 = ssub.s32 %s25, 2
      %s32 = sadd.s32 %s25, 1
      %s33 = ssub.s32 %s25, %s32
      %p34 = scmp.eq.s32.totalorder %s33, 0
      %s36 = sadd.s32 %s35, 1
      %s37 = scalar_select %p34, %s35, %s36
      %p40 = pneg %p34
      %p41 = scmp.eq.s32.totalorder %s25, 1
      %p42 = por %p40, %p41
      %p43 = scmp.ne.s32.totalorder %s35, %s38
      %p44 = scmp.eq.s32.totalorder %s25, 0
      %p45 = por %p43, %p44
      %p46 = scmp.ne.s32.totalorder %s35, %s38
      %p47 = scmp.eq.s32.totalorder %s30, 1
      %p48 = por %p46, %p47
      %p49 = scmp.ne.s32.totalorder %s38, %s39
      %p50 = scmp.eq.s32.totalorder %s30, 0
      %p51 = por %p49, %p50
      %p52 = scmp.ne.s32.totalorder %s38, %s39
      %p53 = scmp.eq.s32.totalorder %s31, 1
      %p54 = por %p52, %p53
      %p56 = scmp.ne.s32.totalorder %s39, %s55
      %p57 = scmp.eq.s32.totalorder %s31, 0
      %p58 = por %p56, %p57
      %s59 = ssub.s32 %s25, %s32
      %p60 = scmp.eq.s32.totalorder %s59, 0
      %s62 = sadd.s32 %s61, 1
      %s63 = scalar_select %p60, %s61, %s62
      %p66 = pneg %p60
      %p67 = scmp.eq.s32.totalorder %s25, 1
      %p68 = por %p66, %p67
      %p69 = scmp.ne.s32.totalorder %s61, %s64
      %p70 = scmp.eq.s32.totalorder %s25, 0
      %p71 = por %p69, %p70
      %p72 = scmp.ne.s32.totalorder %s61, %s64
      %p73 = scmp.eq.s32.totalorder %s30, 1
      %p74 = por %p72, %p73
      %p75 = scmp.ne.s32.totalorder %s64, %s65
      %p76 = scmp.eq.s32.totalorder %s30, 0
      %p77 = por %p75, %p76
      %p78 = scmp.ne.s32.totalorder %s64, %s65
      %p79 = scmp.eq.s32.totalorder %s31, 1
      %p80 = por %p78, %p79
      %p82 = scmp.ne.s32.totalorder %s65, %s81
      %p83 = scmp.eq.s32.totalorder %s31, 0
      %p84 = por %p82, %p83
      %s85 = ssub.s32 %s25, %s32
      %p86 = scmp.eq.s32.totalorder %s85, 0
      %s88 = sadd.s32 %s87, 1
      %s89 = scalar_select %p86, %s87, %s88
      %p92 = pneg %p86
      %p93 = scmp.eq.s32.totalorder %s25, 1
      %p94 = por %p92, %p93
      %p95 = scmp.ne.s32.totalorder %s87, %s90
      %p96 = scmp.eq.s32.totalorder %s25, 0
      %p97 = por %p95, %p96
      %p98 = scmp.ne.s32.totalorder %s87, %s90
      %p99 = scmp.eq.s32.totalorder %s30, 1
      %p100 = por %p98, %p99
      %p101 = scmp.ne.s32.totalorder %s90, %s91
      %p102 = scmp.eq.s32.totalorder %s30, 0
      %p103 = por %p101, %p102
      %p104 = scmp.ne.s32.totalorder %s90, %s91
      %p105 = scmp.eq.s32.totalorder %s31, 1
      %p106 = por %p104, %p105
      %p108 = scmp.ne.s32.totalorder %s91, %s107
      %p109 = scmp.eq.s32.totalorder %s31, 0
      %p110 = por %p108, %p109
      %s111 = ssub.s32 %s25, %s32
      %p112 = scmp.eq.s32.totalorder %s111, 0
      %s114 = sadd.s32 %s113, 1
      %s115 = scalar_select %p112, %s113, %s114
      %p118 = pneg %p112
      %p119 = scmp.eq.s32.totalorder %s25, 1
      %p120 = por %p118, %p119
      %p121 = scmp.ne.s32.totalorder %s113, %s116
      %p122 = scmp.eq.s32.totalorder %s25, 0
      %p123 = por %p121, %p122
      %p124 = scmp.ne.s32.totalorder %s113, %s116
      %p125 = scmp.eq.s32.totalorder %s30, 1
      %p126 = por %p124, %p125
      %p127 = scmp.ne.s32.totalorder %s116, %s117
      %p128 = scmp.eq.s32.totalorder %s30, 0
      %p129 = por %p127, %p128
      %p130 = scmp.ne.s32.totalorder %s116, %s117
      %p131 = scmp.eq.s32.totalorder %s31, 1
      %p132 = por %p130, %p131
      %p134 = scmp.ne.s32.totalorder %s117, %s133
      %p135 = scmp.eq.s32.totalorder %s31, 0
      %p136 = por %p134, %p135
      %s138 = sadd.s32 %s137, 1
      %p141 = scmp.eq.s32.totalorder %s25, 1
      %p142 = scmp.ne.s32.totalorder %s137, %s139
      %p143 = scmp.eq.s32.totalorder %s25, 0
      %p144 = por %p142, %p143
      %p145 = scmp.ne.s32.totalorder %s137, %s139
      %p146 = scmp.eq.s32.totalorder %s30, 1
      %p147 = por %p145, %p146
      %p148 = scmp.ne.s32.totalorder %s139, %s140
      %p149 = scmp.eq.s32.totalorder %s30, 0
      %p150 = por %p148, %p149
      %p151 = scmp.ne.s32.totalorder %s139, %s140
      %p152 = scmp.eq.s32.totalorder %s31, 1
      %p153 = por %p151, %p152
      %p155 = scmp.ne.s32.totalorder %s140, %s154
      %p156 = scmp.eq.s32.totalorder %s31, 0
      %p157 = por %p155, %p156
      %s159 = sadd.s32 %s158, 1
      %p162 = scmp.eq.s32.totalorder %s25, 1
      %p163 = scmp.ne.s32.totalorder %s158, %s160
      %p164 = scmp.eq.s32.totalorder %s25, 0
      %p165 = por %p163, %p164
      %p166 = scmp.ne.s32.totalorder %s158, %s160
      %p167 = scmp.eq.s32.totalorder %s30, 1
      %p168 = por %p166, %p167
      %p169 = scmp.ne.s32.totalorder %s160, %s161
      %p170 = scmp.eq.s32.totalorder %s30, 0
      %p171 = por %p169, %p170
      %p172 = scmp.ne.s32.totalorder %s160, %s161
      %p173 = scmp.eq.s32.totalorder %s31, 1
      %p174 = por %p172, %p173
      %p176 = scmp.ne.s32.totalorder %s161, %s175
      %p177 = scmp.eq.s32.totalorder %s31, 0
      %p178 = por %p176, %p177
      %s180 = sadd.s32 %s179, 1
      %p183 = scmp.eq.s32.totalorder %s25, 1
      %p184 = scmp.ne.s32.totalorder %s179, %s181
      %p185 = scmp.eq.s32.totalorder %s25, 0
      %p186 = por %p184, %p185
      %p187 = scmp.ne.s32.totalorder %s179, %s181
      %p188 = scmp.eq.s32.totalorder %s30, 1
      %p189 = por %p187, %p188
      %p190 = scmp.ne.s32.totalorder %s181, %s182
      %p191 = scmp.eq.s32.totalorder %s30, 0
      %p192 = por %p190, %p191
      %p193 = scmp.ne.s32.totalorder %s181, %s182
      %p194 = scmp.eq.s32.totalorder %s31, 1
      %p195 = por %p193, %p194
      %p197 = scmp.ne.s32.totalorder %s182, %s196
      %p198 = scmp.eq.s32.totalorder %s31, 0
      %p199 = por %p197, %p198
      %s201 = sadd.s32 %s200, 1
      %p204 = scmp.eq.s32.totalorder %s25, 1
      %p205 = scmp.ne.s32.totalorder %s200, %s202
      %p206 = scmp.eq.s32.totalorder %s25, 0
      %p207 = por %p205, %p206
      %p208 = scmp.ne.s32.totalorder %s200, %s202
      %p209 = scmp.eq.s32.totalorder %s30, 1
      %p210 = por %p208, %p209
      %p211 = scmp.ne.s32.totalorder %s202, %s203
      %p212 = scmp.eq.s32.totalorder %s30, 0
      %p213 = por %p211, %p212
      %p214 = scmp.ne.s32.totalorder %s202, %s203
      %p215 = scmp.eq.s32.totalorder %s31, 1
      %p216 = por %p214, %p215
      %p218 = scmp.ne.s32.totalorder %s203, %s217
      %p219 = scmp.eq.s32.totalorder %s31, 0
      %p220 = por %p218, %p219
      %s222 = sadd.s32 %s221, 1
      %p225 = scmp.eq.s32.totalorder %s25, 1
      %p226 = scmp.ne.s32.totalorder %s221, %s223
      %p227 = scmp.eq.s32.totalorder %s25, 0
      %p228 = por %p226, %p227
      %p229 = scmp.ne.s32.totalorder %s221, %s223
      %p230 = scmp.eq.s32.totalorder %s30, 1
      %p231 = por %p229, %p230
      %p232 = scmp.ne.s32.totalorder %s223, %s224
      %p233 = scmp.eq.s32.totalorder %s30, 0
      %p234 = por %p232, %p233
      %p235 = scmp.ne.s32.totalorder %s223, %s224
      %p236 = scmp.eq.s32.totalorder %s31, 1
      %p237 = por %p235, %p236
      %p239 = scmp.ne.s32.totalorder %s224, %s238
      %p240 = scmp.eq.s32.totalorder %s31, 0
      %p241 = por %p239, %p240
      %s243 = sadd.s32 %s242, 1
      %p246 = scmp.eq.s32.totalorder %s25, 1
      %p247 = scmp.ne.s32.totalorder %s242, %s244
      %p248 = scmp.eq.s32.totalorder %s25, 0
      %p249 = por %p247, %p248
      %p250 = scmp.ne.s32.totalorder %s242, %s244
      %p251 = scmp.eq.s32.totalorder %s30, 1
      %p252 = por %p250, %p251
      %p253 = scmp.ne.s32.totalorder %s244, %s245
      %p254 = scmp.eq.s32.totalorder %s30, 0
      %p255 = por %p253, %p254
      %p256 = scmp.ne.s32.totalorder %s244, %s245
      %p257 = scmp.eq.s32.totalorder %s31, 1
      %p258 = por %p256, %p257
      %p260 = scmp.ne.s32.totalorder %s245, %s259
      %p261 = scmp.eq.s32.totalorder %s31, 0
      %p262 = por %p260, %p261
      %s264 = sadd.s32 %s263, 1
      %p267 = scmp.eq.s32.totalorder %s25, 1
      %p268 = scmp.ne.s32.totalorder %s263, %s265
      %p269 = scmp.eq.s32.totalorder %s25, 0
      %p270 = por %p268, %p269
      %p271 = scmp.ne.s32.totalorder %s263, %s265
      %p272 = scmp.eq.s32.totalorder %s30, 1
      %p273 = por %p271, %p272
      %p274 = scmp.ne.s32.totalorder %s265, %s266
      %p275 = scmp.eq.s32.totalorder %s30, 0
      %p276 = por %p274, %p275
      %p277 = scmp.ne.s32.totalorder %s265, %s266
      %p278 = scmp.eq.s32.totalorder %s31, 1
      %p279 = por %p277, %p278
      %p281 = scmp.ne.s32.totalorder %s266, %s280
      %p282 = scmp.eq.s32.totalorder %s31, 0
      %p283 = por %p281, %p282
      %s285 = sadd.s32 %s284, 1
      %p288 = scmp.eq.s32.totalorder %s25, 1
      %p289 = scmp.ne.s32.totalorder %s284, %s286
      %p290 = scmp.eq.s32.totalorder %s25, 0
      %p291 = por %p289, %p290
      %p292 = scmp.ne.s32.totalorder %s284, %s286
      %p293 = scmp.eq.s32.totalorder %s30, 1
      %p294 = por %p292, %p293
      %p295 = scmp.ne.s32.totalorder %s286, %s287
      %p296 = scmp.eq.s32.totalorder %s30, 0
      %p297 = por %p295, %p296
      %p298 = scmp.ne.s32.totalorder %s286, %s287
      %p299 = scmp.eq.s32.totalorder %s31, 1
      %p300 = por %p298, %p299
      %p302 = scmp.ne.s32.totalorder %s287, %s301
      %p303 = scmp.eq.s32.totalorder %s31, 0
      %p304 = por %p302, %p303
      %s306 = sadd.s32 %s305, 1
      %p309 = scmp.eq.s32.totalorder %s25, 1
      %p310 = scmp.ne.s32.totalorder %s305, %s307
      %p311 = scmp.eq.s32.totalorder %s25, 0
      %p312 = por %p310, %p311
      %p313 = scmp.ne.s32.totalorder %s305, %s307
      %p314 = scmp.eq.s32.totalorder %s30, 1
      %p315 = por %p313, %p314
      %p316 = scmp.ne.s32.totalorder %s307, %s308
      %p317 = scmp.eq.s32.totalorder %s30, 0
      %p318 = por %p316, %p317
      %p319 = scmp.ne.s32.totalorder %s307, %s308
      %p320 = scmp.eq.s32.totalorder %s31, 1
      %p321 = por %p319, %p320
      %p323 = scmp.ne.s32.totalorder %s308, %s322
      %p324 = scmp.eq.s32.totalorder %s31, 0
      %p325 = por %p323, %p324
      %s327 = sadd.s32 %s326, 1
      %p330 = scmp.eq.s32.totalorder %s25, 1
      %p331 = scmp.ne.s32.totalorder %s326, %s328
      %p332 = scmp.eq.s32.totalorder %s25, 0
      %p333 = por %p331, %p332
      %p334 = scmp.ne.s32.totalorder %s326, %s328
      %p335 = scmp.eq.s32.totalorder %s30, 1
      %p336 = por %p334, %p335
      %p337 = scmp.ne.s32.totalorder %s328, %s329
      %p338 = scmp.eq.s32.totalorder %s30, 0
      %p339 = por %p337, %p338
      %p340 = scmp.ne.s32.totalorder %s328, %s329
      %p341 = scmp.eq.s32.totalorder %s31, 1
      %p342 = por %p340, %p341
      %p344 = scmp.ne.s32.totalorder %s329, %s343
      %p345 = scmp.eq.s32.totalorder %s31, 0
      %p346 = por %p344, %p345
      %s348 = sadd.s32 %s347, 1
      %p351 = scmp.eq.s32.totalorder %s25, 1
      %p352 = scmp.ne.s32.totalorder %s347, %s349
      %p353 = scmp.eq.s32.totalorder %s25, 0
      %p354 = por %p352, %p353
      %p355 = scmp.ne.s32.totalorder %s347, %s349
      %p356 = scmp.eq.s32.totalorder %s30, 1
      %p357 = por %p355, %p356
      %p358 = scmp.ne.s32.totalorder %s349, %s350
      %p359 = scmp.eq.s32.totalorder %s30, 0
      %p360 = por %p358, %p359
      %p361 = scmp.ne.s32.totalorder %s349, %s350
      %p362 = scmp.eq.s32.totalorder %s31, 1
      %p363 = por %p361, %p362
      %p365 = scmp.ne.s32.totalorder %s350, %s364
      %p366 = scmp.eq.s32.totalorder %s31, 0
      %p367 = por %p365, %p366
      %s368 = ssub.s32 %s25, %s32
      %p369 = scmp.eq.s32.totalorder %s368, 0
      %s371 = sadd.s32 %s370, 1
      %s372 = scalar_select %p369, %s370, %s371
      %p375 = pneg %p369
      %p376 = scmp.eq.s32.totalorder %s25, 1
      %p377 = por %p375, %p376
      %p378 = scmp.ne.s32.totalorder %s370, %s373
      %p379 = scmp.eq.s32.totalorder %s25, 0
      %p380 = por %p378, %p379
      %p381 = scmp.ne.s32.totalorder %s370, %s373
      %p382 = scmp.eq.s32.totalorder %s30, 1
      %p383 = por %p381, %p382
      %p384 = scmp.ne.s32.totalorder %s373, %s374
      %p385 = scmp.eq.s32.totalorder %s30, 0
      %p386 = por %p384, %p385
      %p387 = scmp.ne.s32.totalorder %s373, %s374
      %p388 = scmp.eq.s32.totalorder %s31, 1
      %p389 = por %p387, %p388
      %p391 = scmp.ne.s32.totalorder %s374, %s390
      %p392 = scmp.eq.s32.totalorder %s31, 0
      %p393 = por %p391, %p392
      %s394 = ssub.s32 %s25, %s32
      %p395 = scmp.eq.s32.totalorder %s394, 0
      %s397 = sadd.s32 %s396, 1
      %s398 = scalar_select %p395, %s396, %s397
      %p401 = pneg %p395
      %p402 = scmp.eq.s32.totalorder %s25, 1
      %p403 = por %p401, %p402
      %p404 = scmp.ne.s32.totalorder %s396, %s399
      %p405 = scmp.eq.s32.totalorder %s25, 0
      %p406 = por %p404, %p405
      %p407 = scmp.ne.s32.totalorder %s396, %s399
      %p408 = scmp.eq.s32.totalorder %s30, 1
      %p409 = por %p407, %p408
      %p410 = scmp.ne.s32.totalorder %s399, %s400
      %p411 = scmp.eq.s32.totalorder %s30, 0
      %p412 = por %p410, %p411
      %p413 = scmp.ne.s32.totalorder %s399, %s400
      %p414 = scmp.eq.s32.totalorder %s31, 1
      %p415 = por %p413, %p414
      %p417 = scmp.ne.s32.totalorder %s400, %s416
      %p418 = scmp.eq.s32.totalorder %s31, 0
      %p419 = por %p417, %p418
      %p420 = scmp.le.s32.totalorder 1, %s25
      %p421 = scmp.lt.s32.totalorder %s25, 3
      %p422 = pnand %p420, %p421
      %p423 = pneg %p422
      // Predicated region
      $region9: #{game_prediction_forward.1} parent=5 // pred_check
        _
      $region10: #{game_prediction_forward.1} parent=5 // pred_check_branch
        %425 = sbr.rel (%p422) target = $region12
      $region11: #{game_prediction_forward.1} parent=5 // pred_region
        %s426 = ssub.s32 %s25, 1
        // Predicated region
        $region13: #{game_prediction_forward.1} parent=11 // pred_check
          %p427 = pneg %p150
        $region14: #{game_prediction_forward.1} parent=11 // pred_check_branch
          %429 = sbr.rel (%p427) target = $region16
        $region15: #{game_prediction_forward.1} parent=11 // pred_region
          _
        $region16: #{game_prediction_forward.1} parent=11 // pred_fallthru
          _
        // Predicated region
        $region17: #{game_prediction_forward.1} parent=11 // pred_check
          %p430 = pneg %p171
        $region18: #{game_prediction_forward.1} parent=11 // pred_check_branch
          %432 = sbr.rel (%p430) target = $region20
        $region19: #{game_prediction_forward.1} parent=11 // pred_region
          _
        $region20: #{game_prediction_forward.1} parent=11 // pred_fallthru
          _
        // Predicated region
        $region21: #{game_prediction_forward.1} parent=11 // pred_check
          %p433 = pneg %p192
        $region22: #{game_prediction_forward.1} parent=11 // pred_check_branch
          %435 = sbr.rel (%p433) target = $region24
        $region23: #{game_prediction_forward.1} parent=11 // pred_region
          _
        $region24: #{game_prediction_forward.1} parent=11 // pred_fallthru
          _
        // Predicated region
        $region25: #{game_prediction_forward.1} parent=11 // pred_check
          %p436 = pneg %p213
        $region26: #{game_prediction_forward.1} parent=11 // pred_check_branch
          %438 = sbr.rel (%p436) target = $region28
        $region27: #{game_prediction_forward.1} parent=11 // pred_region
          _
        $region28: #{game_prediction_forward.1} parent=11 // pred_fallthru
          _
        // Predicated region
        $region29: #{game_prediction_forward.1} parent=11 // pred_check
          %p439 = pneg %p234
        $region30: #{game_prediction_forward.1} parent=11 // pred_check_branch
          %441 = sbr.rel (%p439) target = $region32
        $region31: #{game_prediction_forward.1} parent=11 // pred_region
          _
        $region32: #{game_prediction_forward.1} parent=11 // pred_fallthru
          _
        // Predicated region
        $region33: #{game_prediction_forward.1} parent=11 // pred_check
          %p442 = pneg %p255
        $region34: #{game_prediction_forward.1} parent=11 // pred_check_branch
          %444 = sbr.rel (%p442) target = $region36
        $region35: #{game_prediction_forward.1} parent=11 // pred_region
          %446 = vsyncadd [#allocation3], 0
          %s448 = sshll.u32 %s9, 4
          %s449 = int_to_ptr.hbm [resolvable:$true] %s448
          %s450 = sshll.u32 [#allocation2], 4
          %s451 = int_to_ptr.vmem [resolvable:$true] %s450
          %453 = dma.hbm_to_vmem [thread:$0]  %s449, 16, %s451, [#allocation3]
        $region36: #{game_prediction_forward.1} parent=11 // pred_fallthru
          _
        // Predicated region
        $region37: #{game_prediction_forward.1} parent=11 // pred_check
          %p454 = pneg %p276
        $region38: #{game_prediction_forward.1} parent=11 // pred_check_branch
          %456 = sbr.rel (%p454) target = $region40
        $region39: #{game_prediction_forward.1} parent=11 // pred_region
          _
        $region40: #{game_prediction_forward.1} parent=11 // pred_fallthru
          _
        // Predicated region
        $region41: #{game_prediction_forward.1} parent=11 // pred_check
          %p457 = pneg %p297
        $region42: #{game_prediction_forward.1} parent=11 // pred_check_branch
          %459 = sbr.rel (%p457) target = $region44
        $region43: #{game_prediction_forward.1} parent=11 // pred_region
          _
        $region44: #{game_prediction_forward.1} parent=11 // pred_fallthru
          _
        // Predicated region
        $region45: #{game_prediction_forward.1} parent=11 // pred_check
          %p460 = pneg %p318
        $region46: #{game_prediction_forward.1} parent=11 // pred_check_branch
          %462 = sbr.rel (%p460) target = $region48
        $region47: #{game_prediction_forward.1} parent=11 // pred_region
          _
        $region48: #{game_prediction_forward.1} parent=11 // pred_fallthru
          _
        // Predicated region
        $region49: #{game_prediction_forward.1} parent=11 // pred_check
          %p463 = pneg %p339
        $region50: #{game_prediction_forward.1} parent=11 // pred_check_branch
          %465 = sbr.rel (%p463) target = $region52
        $region51: #{game_prediction_forward.1} parent=11 // pred_region
          _
        $region52: #{game_prediction_forward.1} parent=11 // pred_fallthru
          _
        // Predicated region
        $region53: #{game_prediction_forward.1} parent=11 // pred_check
          %p466 = pneg %p360
        $region54: #{game_prediction_forward.1} parent=11 // pred_check_branch
          %468 = sbr.rel (%p466) target = $region56
        $region55: #{game_prediction_forward.1} parent=11 // pred_region
          %470 = vsyncadd [#allocation5], 0
          %s472 = sshll.u32 %s14, 4
          %s473 = int_to_ptr.hbm [resolvable:$true] %s472
          %s474 = sshll.u32 [#allocation4], 4
          %s475 = int_to_ptr.vmem [resolvable:$true] %s474
          %477 = dma.hbm_to_vmem [thread:$0]  %s473, 16, %s475, [#allocation5]
        $region56: #{game_prediction_forward.1} parent=11 // pred_fallthru
          _
      $region12: #{game_prediction_forward.1} parent=5 // pred_fallthru
        _
      %p478 = scmp.lt.s32.totalorder %s25, 2
      // Predicated region
      $region57: #{game_prediction_forward.1} parent=5 // pred_check
        %p479 = pneg %p478
      $region58: #{game_prediction_forward.1} parent=5 // pred_check_branch
        %481 = sbr.rel (%p479) target = $region60
      $region59: #{game_prediction_forward.1} parent=5 // pred_region
        // Predicated region
        $region61: #{game_prediction_forward.1} parent=59 // pred_check
          %p482 = pneg %p45
        $region62: #{game_prediction_forward.1} parent=59 // pred_check_branch
          %484 = sbr.rel (%p482) target = $region64
        $region63: #{game_prediction_forward.1} parent=59 // pred_region
          %s485 = smul.u32 2, %s25
          %p486 = scmp.lt.s32.totalorder %s485, 3
          %s487 = scalar_select %p486, %s485, 3
          %s488 = smul.addr %s487, 2
          %s489 = smul.addr %s488, 4
          %s490 = scalar_lea.vmem %s0, %s489
          %s491 = smul.u32 2, %s25
        $region64: #{game_prediction_forward.1} parent=59 // pred_fallthru
          _
        // Predicated region
        $region65: #{game_prediction_forward.1} parent=59 // pred_check
          %p492 = pneg %p71
        $region66: #{game_prediction_forward.1} parent=59 // pred_check_branch
          %494 = sbr.rel (%p492) target = $region68
        $region67: #{game_prediction_forward.1} parent=59 // pred_region
          %s495 = smul.u32 2, %s25
          %p496 = scmp.lt.s32.totalorder %s495, 3
          %s497 = scalar_select %p496, %s495, 3
          %s498 = smul.addr %s497, 10
          %s499 = smul.addr %s498, 4
          %s500 = scalar_lea.vmem %s1, %s499
          %s501 = smul.u32 2, %s25
        $region68: #{game_prediction_forward.1} parent=59 // pred_fallthru
          _
        // Predicated region
        $region69: #{game_prediction_forward.1} parent=59 // pred_check
          %p502 = pneg %p97
        $region70: #{game_prediction_forward.1} parent=59 // pred_check_branch
          %504 = sbr.rel (%p502) target = $region72
        $region71: #{game_prediction_forward.1} parent=59 // pred_region
          %s505 = smul.u32 2, %s25
          %p506 = scmp.lt.s32.totalorder %s505, 3
          %s507 = scalar_select %p506, %s505, 3
          %s508 = smul.addr %s507, 2
          %s509 = smul.addr %s508, 8
          %s510 = scalar_lea.vmem %s2, %s509
          %s511 = smul.u32 2, %s25
        $region72: #{game_prediction_forward.1} parent=59 // pred_fallthru
          _
        // Predicated region
        $region73: #{game_prediction_forward.1} parent=59 // pred_check
          %p512 = pneg %p123
        $region74: #{game_prediction_forward.1} parent=59 // pred_check_branch
          %514 = sbr.rel (%p512) target = $region76
        $region75: #{game_prediction_forward.1} parent=59 // pred_region
          %s515 = smul.u32 2, %s25
          %p516 = scmp.lt.s32.totalorder %s515, 3
          %s517 = scalar_select %p516, %s515, 3
          %s518 = smul.addr %s517, 2
          %s519 = smul.addr %s518, 4
          %s520 = scalar_lea.vmem %s3, %s519
          %s521 = smul.u32 2, %s25
        $region76: #{game_prediction_forward.1} parent=59 // pred_fallthru
          _
      $region60: #{game_prediction_forward.1} parent=5 // pred_fallthru
        _
      %p522 = scmp.le.s32.totalorder 1, %s25
      %p523 = scmp.lt.s32.totalorder %s25, 3
      %p524 = pnand %p522, %p523
      %p525 = pneg %p524
      // Predicated region
      $region77: #{game_prediction_forward.1} parent=5 // pred_check
        _
      $region78: #{game_prediction_forward.1} parent=5 // pred_check_branch
        %527 = sbr.rel (%p524) target = $region80
      $region79: #{game_prediction_forward.1} parent=5 // pred_region
        %s528 = ssub.s32 %s25, 1
        // Predicated region
        $region81: #{game_prediction_forward.1} parent=79 // pred_check
          %p529 = pneg %p255
        $region82: #{game_prediction_forward.1} parent=79 // pred_check_branch
          %531 = sbr.rel (%p529) target = $region84
        $region83: #{game_prediction_forward.1} parent=79 // pred_region
          %533 = dma.done [#allocation3], 16
        $region84: #{game_prediction_forward.1} parent=79 // pred_fallthru
          _
        // Predicated region
        $region85: #{game_prediction_forward.1} parent=79 // pred_check
          %p534 = pneg %p360
        $region86: #{game_prediction_forward.1} parent=79 // pred_check_branch
          %536 = sbr.rel (%p534) target = $region88
        $region87: #{game_prediction_forward.1} parent=79 // pred_region
          %538 = dma.done [#allocation5], 16
        $region88: #{game_prediction_forward.1} parent=79 // pred_fallthru
          _
        %s539 = smul.u32 2, %s30
        %p540 = scmp.lt.s32.totalorder %s539, 3
        %s541 = scalar_select %p540, %s539, 3
        %s542 = smul.addr %s541, 2
        %s543 = smul.addr %s542, 4
        %s544 = scalar_lea.vmem %s0, %s543
        %p545 = pneg %p51
        %p546 = pneg %p48
        %s547 = smul.u32 2, %s30
        %p548 = scmp.lt.s32.totalorder %s547, 3
        %s549 = scalar_select %p548, %s547, 3
        %s550 = smul.addr %s549, 10
        %s551 = smul.addr %s550, 4
        %s552 = scalar_lea.vmem %s1, %s551
        %p553 = pneg %p77
        %p554 = pneg %p74
        %s555 = smul.u32 2, %s30
        %p556 = scmp.lt.s32.totalorder %s555, 3
        %s557 = scalar_select %p556, %s555, 3
        %s558 = smul.addr %s557, 2
        %s559 = smul.addr %s558, 8
        %s560 = scalar_lea.vmem %s2, %s559
        %p561 = pneg %p103
        %p562 = pneg %p100
        %s563 = smul.u32 2, %s30
        %p564 = scmp.lt.s32.totalorder %s563, 3
        %s565 = scalar_select %p564, %s563, 3
        %s566 = smul.addr %s565, 2
        %s567 = smul.addr %s566, 4
        %s568 = scalar_lea.vmem %s3, %s567
        %p569 = pneg %p129
        %p570 = pneg %p126
        %p571 = pneg %p150
        %p572 = pneg %p147
        %p573 = pneg %p171
        %p574 = pneg %p168
        %p575 = pneg %p192
        %p576 = pneg %p189
        %p577 = pneg %p213
        %p578 = pneg %p210
        %p579 = pneg %p234
        %p580 = pneg %p231
        %p581 = pneg %p255
        %p582 = pneg %p252
        %p583 = pneg %p276
        %p584 = pneg %p273
        %p585 = pneg %p297
        %p586 = pneg %p294
        %p587 = pneg %p318
        %p588 = pneg %p315
        %p589 = pneg %p339
        %p590 = pneg %p336
        %p591 = pneg %p360
        %p592 = pneg %p357
        %p593 = pneg %p386
        %p594 = pneg %p383
        %s595 = smul.u32 2, %s30
        %p596 = scmp.lt.s32.totalorder %s595, 3
        %s597 = scalar_select %p596, %s595, 3
        %s598 = smul.addr %s597, 2
        %s599 = smul.addr %s598, 8
        %s600 = scalar_lea.vmem %s15, %s599
        %p601 = pneg %p412
        %p602 = pneg %p409
        %s603 = smul.u32 2, %s30
        %p604 = scmp.lt.s32.totalorder %s603, 3
        %s605 = scalar_select %p604, %s603, 3
        %s606 = smul.addr %s605, 2
        %s607 = smul.addr %s606, 8
        %s608 = scalar_lea.vmem %s16, %s607
        %s609 = smul.u32 2, %s30
        %p610 = scmp.lt.s32.totalorder %s609, 3
        %s611 = scalar_select %p610, %s609, 3
        %s612 = smul.addr %s611, 2
        %s613 = smul.addr %s612, 4
        %s614 = scalar_lea.vmem %s0, %s613
        %s615 = smul.u32 2, %s30
        %s616 = smul.u32 2, %s30
        %p617 = scmp.lt.s32.totalorder %s616, 3
        %s618 = scalar_select %p617, %s616, 3
        %s619 = smul.addr %s618, 10
        %s620 = smul.addr %s619, 4
        %s621 = scalar_lea.vmem %s1, %s620
        %s622 = smul.u32 2, %s30
        %s623 = smul.u32 2, %s30
        %p624 = scmp.lt.s32.totalorder %s623, 3
        %s625 = scalar_select %p624, %s623, 3
        %s626 = smul.addr %s625, 2
        %s627 = smul.addr %s626, 8
        %s628 = scalar_lea.vmem %s2, %s627
        %s629 = smul.u32 2, %s30
        %s630 = smul.u32 2, %s30
        %p631 = scmp.lt.s32.totalorder %s630, 3
        %s632 = scalar_select %p631, %s630, 3
        %s633 = smul.addr %s632, 2
        %s634 = smul.addr %s633, 4
        %s635 = scalar_lea.vmem %s3, %s634
        %s636 = smul.u32 2, %s30
        %s637 = smul.u32 2, %s30
        %p638 = scmp.lt.s32.totalorder %s637, 3
        %s639 = scalar_select %p638, %s637, 3
        %s640 = smul.addr %s639, 2
        %s641 = smul.addr %s640, 8
        %s642 = scalar_lea.vmem %s15, %s641
        %s643 = smul.u32 2, %s30
        %s644 = smul.u32 2, %s30
        %p645 = scmp.lt.s32.totalorder %s644, 3
        %s646 = scalar_select %p645, %s644, 3
        %s647 = smul.addr %s646, 2
        %s648 = smul.addr %s647, 8
        %s649 = scalar_lea.vmem %s16, %s648
        %s650 = smul.u32 2, %s30
        %v652 = vlaneseq
        %v653 = vshrl.u32 %v652, 7
        %v654 = vadd.s32 %v653, 8
        %v655 = vadd.s32 %v653, 16
        %v656 = vadd.s32 %v653, 24
        %v657 = vlaneseq
        %v658 = vand.u32 %v657, 127
        %v659 = vmul.u32 %v658, 8
        %vm660 = vcmp.ge.s32.totalorder %v653, %v659
        %vm661 = vcmp.ge.s32.totalorder %v654, %v659
        %vm662 = vcmp.ge.s32.totalorder %v655, %v659
        %vm663 = vcmp.ge.s32.totalorder %v656, %v659
        %v664 = vadd.s32 %v659, 8
        %vm665 = vcmp.lt.s32.totalorder %v653, %v664
        %vm666 = vcmp.lt.s32.totalorder %v654, %v664
        %vm667 = vcmp.lt.s32.totalorder %v655, %v664
        %vm668 = vcmp.lt.s32.totalorder %v656, %v664
        %vm669 = vmand %vm660, %vm665
        %vm670 = vmand %vm661, %vm666
        %vm671 = vmand %vm662, %vm667
        %vm672 = vmand %vm663, %vm668
        %v673 = vsel %vm669, 1, 0
        %v674 = vsel %vm670, 1, 0
        %v675 = vsel %vm671, 1, 0
        %v676 = vsel %vm672, 1, 0
        %v677 = vcvt.s32.f32 %v673
        %v678 = vcvt.s32.f32 %v674
        %v679 = vcvt.s32.f32 %v675
        %v680 = vcvt.s32.f32 %v676
        %v681 = vmul.u32 %v653, 8
        %vm682 = vcmp.ge.s32.totalorder %v658, %v681
        %v683 = vadd.s32 %v681, 8
        %vm684 = vcmp.lt.s32.totalorder %v658, %v683
        %vm685 = vmand %vm682, %vm684
        %v686 = vsel %vm685, 1, 0
        %v687 = vcvt.s32.f32 %v686
        %v688 = vld [vmem:[%s8] sm:$0xff]
        %v689 = vld [vmem:[%s8 + $0x8] sm:$0xf]
        %v690 = vld [vmem:[%s614] sm:$0xf]
        %v691 = vld [vmem:[%s614 + $0x4] sm:$0x1]
        %v692 = vld [vmem:[%s614 + $0x8] sm:$0xf]
        %v693 = vld [vmem:[%s614 + $0xc] sm:$0x1]
        %v698 = vrot.slane %v690, 3
        %v699 = vrot.slane %v691, 3
        %v700 = vrot.slane %v692, 3
        %v701 = vrot.slane %v693, 3
        %vm702 = vcmask 1040384
        %v705 = vsel %vm702, %v690, %v698
        %vm706 = vcmask 1041409
        %v707 = vsel %vm706, %v690, %v698
        %v709 = vrot.slane %v707, 1
        %vm710 = vcmask 1042434
        %v711 = vsel %vm710, %v690, %v698
        %v713 = vrot.slane %v711, 2
        %vm714 = vcmask 1043459
        %v715 = vsel %vm714, %v690, %v698
        %v717 = vrot.slane %v715, 3
        %v720 = vsel %vm702, %v691, %v699
        %v723 = vsel %vm702, %v692, %v700
        %v724 = vsel %vm706, %v692, %v700
        %v726 = vrot.slane %v724, 1
        %v727 = vsel %vm710, %v692, %v700
        %v729 = vrot.slane %v727, 2
        %v730 = vsel %vm714, %v692, %v700
        %v732 = vrot.slane %v730, 3
        %v735 = vsel %vm702, %v693, %v701
        %v746 = vunpack.c.l.bf16 %v705
        %v747 = vunpack.c.l.bf16 %v709
        %v748 = vunpack.c.l.bf16 %v713
        %v749 = vunpack.c.l.bf16 %v717
        %v750 = vunpack.c.l.bf16 %v720
        %v751 = vunpack.c.l.bf16 %v723
        %v752 = vunpack.c.l.bf16 %v726
        %v753 = vunpack.c.l.bf16 %v729
        %v754 = vunpack.c.l.bf16 %v732
        %v755 = vunpack.c.l.bf16 %v735
        %v756 = vld [vmem:[%s621] sm:$0xf]
        %v757 = vld [vmem:[%s621 + $0x4] sm:$0xf]
        %v758 = vld [vmem:[%s621 + $0x8] sm:$0xf]
        %v759 = vld [vmem:[%s621 + $0xc] sm:$0xf]
        %v760 = vld [vmem:[%s621 + $0x10] sm:$0xf]
        %v761 = vld [vmem:[%s621 + $0x14] sm:$0xf]
        %v762 = vld [vmem:[%s621 + $0x18] sm:$0xf]
        %v763 = vld [vmem:[%s621 + $0x1c] sm:$0xf]
        %v764 = vld [vmem:[%s621 + $0x20] sm:$0xf]
        %v765 = vld [vmem:[%s621 + $0x24] sm:$0xf]
        %v766 = vld [vmem:[%s621 + $0x28] sm:$0xf]
        %v767 = vld [vmem:[%s621 + $0x2c] sm:$0xf]
        %v768 = vld [vmem:[%s621 + $0x30] sm:$0xf]
        %v769 = vld [vmem:[%s621 + $0x34] sm:$0xf]
        %v770 = vld [vmem:[%s621 + $0x38] sm:$0xf]
        %v771 = vld [vmem:[%s621 + $0x3c] sm:$0xf]
        %v772 = vld [vmem:[%s621 + $0x40] sm:$0xf]
        %v773 = vld [vmem:[%s621 + $0x44] sm:$0xf]
        %v774 = vld [vmem:[%s621 + $0x48] sm:$0xf]
        %v775 = vld [vmem:[%s621 + $0x4c] sm:$0xf]
        %v776 = vld [vmem:[%s4] sm:$0xf]
        %v777 = vld [vmem:[%s4 + $0x4] sm:$0xf]
        %v778 = vld [vmem:[%s4 + $0x8] sm:$0xf]
        %v779 = vld [vmem:[%s4 + $0xc] sm:$0xf]
        %v780 = vperm.slane %v688, 0
        %781 = vst [vmem:[#allocation1] ss:$9 sm:$0xff] %v705
        %s783 = scalar_lea.vmem [#allocation1], 1
        %784 = vst [vmem:[%s783] ss:$9 sm:$0xff] %v709
        %s786 = scalar_lea.vmem [#allocation1], 2
        %787 = vst [vmem:[%s786] ss:$9 sm:$0xff] %v713
        %s789 = scalar_lea.vmem [#allocation1], 3
        %790 = vst [vmem:[%s789] ss:$9 sm:$0xff] %v717
        %s791 = scalar_lea.vmem [#allocation1], 4
        %792 = vst [vmem:[%s791] ss:$9 sm:$0xff] %v720
        %s793 = scalar_lea.vmem [#allocation1], 5
        %794 = vst [vmem:[%s793] ss:$9 sm:$0xff] %v723
        %s796 = scalar_lea.vmem [#allocation1], 6
        %797 = vst [vmem:[%s796] ss:$9 sm:$0xff] %v726
        %s799 = scalar_lea.vmem [#allocation1], 7
        %800 = vst [vmem:[%s799] ss:$9 sm:$0xff] %v729
        %v801 = vld [vmem:[#allocation1] sm:$0xff]
        %803 = vst [vmem:[#allocation1] ss:$9 sm:$0xff] %v732
        %804 = vst [vmem:[%s783] ss:$9 sm:$0xff] %v735
        %v805 = vld [vmem:[#allocation1] sm:$0xff]
        %v810 = vunpack.c.l.b16 %v776
        %v811 = vunpack.c.l.b16 %v777
        %v812 = vunpack.c.l.b16 %v778
        %v813 = vunpack.c.l.b16 %v779
        %v814 = vpack.c.b16 %v811, %v810
        %v815 = vpack.c.b16 %v813, %v812
        %vm818 = vcmask 261120
        %v819 = vsel %vm818, %v801, 0
        %v821 = vsel %vm818, %v805, 0
        %823 = vmatpush.bf16.msra.mxu0 0
        %824 = vmatpush.bf16.msra.mxu0 0
        %825 = vmatpush.bf16.msra.mxu0 0
        %826 = vmatpush.bf16.msra.mxu0 0
        %827 = vmatpush.bf16.msra.mxu0 0
        %828 = vmatpush.bf16.msra.mxu0 0
        %829 = vmatpush.bf16.msra.mxu0 %v815
        %830 = vmatpush.bf16.msra.mxu0 %v814
        %831 = vmatmul.bf16.gmra.mxu0 %v819
        %v832 = vpop.f32.mrf.mxu0
        %v833 = vadd.f32 %v780, %v832
        %v834 = vpop.f32.mrf.mxu0
        %v835 = vadd.f32 %v780, %v834
        %836 = vmatmul.bf16.gmra.mxu0 %v821
        %v837 = vpop.f32.mrf.mxu0
        %v838 = vadd.f32 %v780, %v837
        %v839 = vpop.f32.mrf.mxu0
        %840 = vdwg.mxu0
        %v841 = vld [vmem:[%s5] sm:$0xf]
        %v842 = vld [vmem:[%s5 + $0x4] sm:$0xf]
        %v843 = vld [vmem:[%s5 + $0x8] sm:$0xf]
        %v844 = vld [vmem:[%s5 + $0xc] sm:$0xf]
        %v845 = vld [vmem:[%s5 + $0x10] sm:$0xf]
        %v846 = vld [vmem:[%s5 + $0x14] sm:$0xf]
        %v847 = vld [vmem:[%s5 + $0x18] sm:$0xf]
        %v848 = vld [vmem:[%s5 + $0x1c] sm:$0xf]
        %v849 = vperm.slane %v688, 1
        %v870 = vunpack.c.l.b16 %v756
        %v871 = vunpack.c.l.b16 %v757
        %v872 = vunpack.c.l.b16 %v758
        %v873 = vunpack.c.l.b16 %v759
        %v874 = vunpack.c.l.b16 %v760
        %v875 = vunpack.c.l.b16 %v761
        %v876 = vunpack.c.l.b16 %v762
        %v877 = vunpack.c.l.b16 %v763
        %v878 = vunpack.c.l.b16 %v764
        %v879 = vunpack.c.l.b16 %v765
        %v880 = vunpack.c.l.b16 %v766
        %v881 = vunpack.c.l.b16 %v767
        %v882 = vunpack.c.l.b16 %v768
        %v883 = vunpack.c.l.b16 %v769
        %v884 = vunpack.c.l.b16 %v770
        %v885 = vunpack.c.l.b16 %v771
        %v886 = vunpack.c.l.b16 %v772
        %v887 = vunpack.c.l.b16 %v773
        %v888 = vunpack.c.l.b16 %v774
        %v889 = vunpack.c.l.b16 %v775
        %v890 = vpack.c.b16 %v871, %v870
        %v891 = vpack.c.b16 %v873, %v872
        %v892 = vpack.c.b16 %v875, %v874
        %v893 = vpack.c.b16 %v877, %v876
        %v894 = vpack.c.b16 %v879, %v878
        %v895 = vpack.c.b16 %v881, %v880
        %v896 = vpack.c.b16 %v883, %v882
        %v897 = vpack.c.b16 %v885, %v884
        %v898 = vpack.c.b16 %v887, %v886
        %v899 = vpack.c.b16 %v889, %v888
        %v908 = vunpack.c.l.b16 %v841
        %v909 = vunpack.c.l.b16 %v842
        %v910 = vunpack.c.l.b16 %v843
        %v911 = vunpack.c.l.b16 %v844
        %v912 = vunpack.c.l.b16 %v845
        %v913 = vunpack.c.l.b16 %v846
        %v914 = vunpack.c.l.b16 %v847
        %v915 = vunpack.c.l.b16 %v848
        %v916 = vpack.c.b16 %v909, %v908
        %v917 = vpack.c.b16 %v911, %v910
        %v918 = vpack.c.b16 %v913, %v912
        %v919 = vpack.c.b16 %v915, %v914
        %vm924 = vcmask 523264
        %v926 = vsel %vm924, %v890, 0
        %v929 = vsel %vm924, %v891, 0
        %v932 = vsel %vm924, %v892, 0
        %v935 = vsel %vm924, %v893, 0
        %v938 = vsel %vm924, %v894, 0
        %v941 = vsel %vm924, %v895, 0
        %v944 = vsel %vm924, %v896, 0
        %v947 = vsel %vm924, %v897, 0
        %v950 = vsel %vm924, %v898, 0
        %v953 = vsel %vm924, %v899, 0
        %955 = vmatpush.bf16.msra.mxu0 0
        %956 = vmatpush.bf16.msra.mxu0 0
        %957 = vmatpush.bf16.msra.mxu0 0
        %958 = vmatpush.bf16.msra.mxu0 0
        %959 = vmatpush.bf16.msra.mxu0 %v919
        %960 = vmatpush.bf16.msra.mxu0 %v918
        %961 = vmatpush.bf16.msra.mxu0 %v917
        %962 = vmatpush.bf16.msra.mxu0 %v916
        %963 = vmatmul.bf16.gmra.mxu0 %v926
        %v964 = vpop.f32.mrf.mxu0
        %v965 = vadd.f32 %v849, %v964
        %v966 = vpop.f32.mrf.mxu0
        %v967 = vadd.f32 %v849, %v966
        %968 = vmatmul.bf16.gmra.mxu0 %v929
        %v969 = vpop.f32.mrf.mxu0
        %v970 = vadd.f32 %v849, %v969
        %v971 = vpop.f32.mrf.mxu0
        %v972 = vadd.f32 %v849, %v971
        %973 = vmatmul.bf16.gmra.mxu0 %v932
        %v974 = vpop.f32.mrf.mxu0
        %v975 = vadd.f32 %v849, %v974
        %v976 = vpop.f32.mrf.mxu0
        %v977 = vadd.f32 %v849, %v976
        %978 = vmatmul.bf16.gmra.mxu0 %v935
        %v979 = vpop.f32.mrf.mxu0
        %v980 = vadd.f32 %v849, %v979
        %v981 = vpop.f32.mrf.mxu0
        %v982 = vadd.f32 %v849, %v981
        %983 = vmatmul.bf16.gmra.mxu0 %v938
        %v984 = vpop.f32.mrf.mxu0
        %v985 = vadd.f32 %v849, %v984
        %v986 = vpop.f32.mrf.mxu0
        %v987 = vadd.f32 %v849, %v986
        %988 = vmatmul.bf16.gmra.mxu0 %v941
        %v989 = vpop.f32.mrf.mxu0
        %v990 = vadd.f32 %v849, %v989
        %v991 = vpop.f32.mrf.mxu0
        %v992 = vadd.f32 %v849, %v991
        %993 = vmatmul.bf16.gmra.mxu0 %v944
        %v994 = vpop.f32.mrf.mxu0
        %v995 = vadd.f32 %v849, %v994
        %v996 = vpop.f32.mrf.mxu0
        %v997 = vadd.f32 %v849, %v996
        %998 = vmatmul.bf16.gmra.mxu0 %v947
        %v999 = vpop.f32.mrf.mxu0
        %v1000 = vadd.f32 %v849, %v999
        %v1001 = vpop.f32.mrf.mxu0
        %v1002 = vadd.f32 %v849, %v1001
        %1003 = vmatmul.bf16.gmra.mxu0 %v950
        %v1004 = vpop.f32.mrf.mxu0
        %v1005 = vadd.f32 %v849, %v1004
        %v1006 = vpop.f32.mrf.mxu0
        %v1007 = vadd.f32 %v849, %v1006
        %1008 = vmatmul.bf16.gmra.mxu0 %v953
        %v1009 = vpop.f32.mrf.mxu0
        %v1010 = vadd.f32 %v849, %v1009
        %v1011 = vpop.f32.mrf.mxu0
        %v1012 = vadd.f32 %v849, %v1011
        %1013 = vdwg.mxu0
        %s1014 = scalar_lea.vmem %s5, 32
        %v1015 = vld [vmem:[%s1014] sm:$0xf]
        %v1016 = vld [vmem:[%s1014 + $0x4] sm:$0xf]
        %v1017 = vld [vmem:[%s1014 + $0x8] sm:$0xf]
        %v1018 = vld [vmem:[%s1014 + $0xc] sm:$0xf]
        %v1019 = vld [vmem:[%s1014 + $0x10] sm:$0xf]
        %v1020 = vld [vmem:[%s1014 + $0x14] sm:$0xf]
        %v1021 = vld [vmem:[%s1014 + $0x18] sm:$0xf]
        %v1022 = vld [vmem:[%s1014 + $0x1c] sm:$0xf]
        %v1023 = vperm.slane %v688, 2
        %v1032 = vunpack.c.l.b16 %v1015
        %v1033 = vunpack.c.l.b16 %v1016
        %v1034 = vunpack.c.l.b16 %v1017
        %v1035 = vunpack.c.l.b16 %v1018
        %v1036 = vunpack.c.l.b16 %v1019
        %v1037 = vunpack.c.l.b16 %v1020
        %v1038 = vunpack.c.l.b16 %v1021
        %v1039 = vunpack.c.l.b16 %v1022
        %v1040 = vpack.c.b16 %v1033, %v1032
        %v1041 = vpack.c.b16 %v1035, %v1034
        %v1042 = vpack.c.b16 %v1037, %v1036
        %v1043 = vpack.c.b16 %v1039, %v1038
        %1048 = vmatpush.bf16.msra.mxu0 0
        %1049 = vmatpush.bf16.msra.mxu0 0
        %1050 = vmatpush.bf16.msra.mxu0 0
        %1051 = vmatpush.bf16.msra.mxu0 0
        %1052 = vmatpush.bf16.msra.mxu0 %v1043
        %1053 = vmatpush.bf16.msra.mxu0 %v1042
        %1054 = vmatpush.bf16.msra.mxu0 %v1041
        %1055 = vmatpush.bf16.msra.mxu0 %v1040
        %1056 = vmatmul.bf16.gmra.mxu0 %v926
        %v1057 = vpop.f32.mrf.mxu0
        %v1058 = vadd.f32 %v1023, %v1057
        %v1059 = vpop.f32.mrf.mxu0
        %v1060 = vadd.f32 %v1023, %v1059
        %1061 = vmatmul.bf16.gmra.mxu0 %v929
        %v1062 = vpop.f32.mrf.mxu0
        %v1063 = vadd.f32 %v1023, %v1062
        %v1064 = vpop.f32.mrf.mxu0
        %v1065 = vadd.f32 %v1023, %v1064
        %1066 = vmatmul.bf16.gmra.mxu0 %v932
        %v1067 = vpop.f32.mrf.mxu0
        %v1068 = vadd.f32 %v1023, %v1067
        %v1069 = vpop.f32.mrf.mxu0
        %v1070 = vadd.f32 %v1023, %v1069
        %1071 = vmatmul.bf16.gmra.mxu0 %v935
        %v1072 = vpop.f32.mrf.mxu0
        %v1073 = vadd.f32 %v1023, %v1072
        %v1074 = vpop.f32.mrf.mxu0
        %v1075 = vadd.f32 %v1023, %v1074
        %1076 = vmatmul.bf16.gmra.mxu0 %v938
        %v1077 = vpop.f32.mrf.mxu0
        %v1078 = vadd.f32 %v1023, %v1077
        %v1079 = vpop.f32.mrf.mxu0
        %v1080 = vadd.f32 %v1023, %v1079
        %1081 = vmatmul.bf16.gmra.mxu0 %v941
        %v1082 = vpop.f32.mrf.mxu0
        %v1083 = vadd.f32 %v1023, %v1082
        %v1084 = vpop.f32.mrf.mxu0
        %v1085 = vadd.f32 %v1023, %v1084
        %1086 = vmatmul.bf16.gmra.mxu0 %v944
        %v1087 = vpop.f32.mrf.mxu0
        %v1088 = vadd.f32 %v1023, %v1087
        %v1089 = vpop.f32.mrf.mxu0
        %v1090 = vadd.f32 %v1023, %v1089
        %1091 = vmatmul.bf16.gmra.mxu0 %v947
        %v1092 = vpop.f32.mrf.mxu0
        %v1093 = vadd.f32 %v1023, %v1092
        %v1094 = vpop.f32.mrf.mxu0
        %v1095 = vadd.f32 %v1023, %v1094
        %1096 = vmatmul.bf16.gmra.mxu0 %v950
        %v1097 = vpop.f32.mrf.mxu0
        %v1098 = vadd.f32 %v1023, %v1097
        %v1099 = vpop.f32.mrf.mxu0
        %v1100 = vadd.f32 %v1023, %v1099
        %1101 = vmatmul.bf16.gmra.mxu0 %v953
        %v1102 = vpop.f32.mrf.mxu0
        %v1103 = vadd.f32 %v1023, %v1102
        %v1104 = vpop.f32.mrf.mxu0
        %v1105 = vadd.f32 %v1023, %v1104
        %1106 = vdwg.mxu0
        %v1110 = vrot.slane %v833, 1
        %v1111 = vrot.slane %v833, 2
        %v1112 = vrot.slane %v833, 3
        %v1113 = vrot.slane %v833, 4
        %v1114 = vrot.slane %v833, 5
        %v1115 = vrot.slane %v833, 6
        %v1116 = vrot.slane %v833, 7
        %v1117 = vrot.slane %v835, 1
        %v1118 = vrot.slane %v835, 2
        %v1119 = vrot.slane %v835, 3
        %v1120 = vrot.slane %v835, 4
        %v1121 = vrot.slane %v835, 5
        %v1122 = vrot.slane %v835, 6
        %v1123 = vrot.slane %v835, 7
        %v1124 = vrot.slane %v838, 1
        %v1125 = vrot.slane %v838, 2
        %v1126 = vrot.slane %v838, 3
        %v1127 = vperm.slane %v833, 0
        %v1128 = vperm.slane %v1110, 0
        %v1129 = vperm.slane %v1111, 0
        %v1130 = vperm.slane %v1112, 0
        %v1131 = vperm.slane %v1113, 0
        %v1132 = vperm.slane %v1114, 0
        %v1133 = vperm.slane %v1115, 0
        %v1134 = vperm.slane %v1116, 0
        %v1135 = vperm.slane %v835, 0
        %v1136 = vperm.slane %v1117, 0
        %v1137 = vperm.slane %v1118, 0
        %v1138 = vperm.slane %v1119, 0
        %v1139 = vperm.slane %v1120, 0
        %v1140 = vperm.slane %v1121, 0
        %v1141 = vperm.slane %v1122, 0
        %v1142 = vperm.slane %v1123, 0
        %v1143 = vperm.slane %v838, 0
        %v1144 = vperm.slane %v1124, 0
        %v1145 = vperm.slane %v1125, 0
        %v1146 = vperm.slane %v1126, 0
        %v1167 = vmul.f32 %v1127, %v965
        %v1168 = vmul.f32 %v1128, %v967
        %v1169 = vmul.f32 %v1129, %v970
        %v1170 = vmul.f32 %v1130, %v972
        %v1171 = vmul.f32 %v1131, %v975
        %v1172 = vmul.f32 %v1132, %v977
        %v1173 = vmul.f32 %v1133, %v980
        %v1174 = vmul.f32 %v1134, %v982
        %v1175 = vmul.f32 %v1135, %v985
        %v1176 = vmul.f32 %v1136, %v987
        %v1177 = vmul.f32 %v1137, %v990
        %v1178 = vmul.f32 %v1138, %v992
        %v1179 = vmul.f32 %v1139, %v995
        %v1180 = vmul.f32 %v1140, %v997
        %v1181 = vmul.f32 %v1141, %v1000
        %v1182 = vmul.f32 %v1142, %v1002
        %v1183 = vmul.f32 %v1143, %v1005
        %v1184 = vmul.f32 %v1144, %v1007
        %v1185 = vmul.f32 %v1145, %v1010
        %v1186 = vmul.f32 %v1146, %v1012
        %v1188 = vsel %vm818, %v1167, 0
        %v1191 = vsel %vm818, %v1168, 0
        %v1194 = vsel %vm818, %v1169, 0
        %v1197 = vsel %vm818, %v1170, 0
        %v1200 = vsel %vm818, %v1171, 0
        %v1203 = vsel %vm818, %v1172, 0
        %v1206 = vsel %vm818, %v1173, 0
        %v1209 = vsel %vm818, %v1174, 0
        %v1212 = vsel %vm818, %v1175, 0
        %v1215 = vsel %vm818, %v1176, 0
        %v1218 = vsel %vm818, %v1177, 0
        %v1221 = vsel %vm818, %v1178, 0
        %v1224 = vsel %vm818, %v1179, 0
        %v1227 = vsel %vm818, %v1180, 0
        %v1230 = vsel %vm818, %v1181, 0
        %v1233 = vsel %vm818, %v1182, 0
        %v1236 = vsel %vm818, %v1183, 0
        %v1239 = vsel %vm818, %v1184, 0
        %v1242 = vsel %vm818, %v1185, 0
        %v1245 = vsel %vm818, %v1186, 0
        %1247 = vmatpush.msra.mxu0 0.0
        %1248 = vmatpush.msra.mxu0 0.0
        %1249 = vmatpush.msra.mxu0 0.0
        %1250 = vmatpush.msra.mxu0 0.0
        %1251 = vmatpush.msra.mxu0 0.0
        %1252 = vmatpush.msra.mxu0 0.0
        %1253 = vmatpush.msra.mxu0 0.0
        %1254 = vmatpush.msra.mxu0 0.0
        %1255 = vmatpush.msra.mxu0 0.0
        %1256 = vmatpush.msra.mxu0 0.0
        %1257 = vmatpush.msra.mxu0 0.0
        %1258 = vmatpush.msra.mxu0 0.0
        %1259 = vmatpush.msra.mxu0 %v680
        %1260 = vmatpush.msra.mxu0 %v679
        %1261 = vmatpush.msra.mxu0 %v678
        %1262 = vmatpush.msra.mxu0 %v677
        %1263 = vmatmul.f32.gmra.mxu0 %v1188
        %v1264 = vpop.f32.mrf.mxu0
        %v1265 = vadd.f32 0.0, %v1264
        %1266 = vmatmul.f32.gmra.mxu0 %v1191
        %v1267 = vpop.f32.mrf.mxu0
        %v1268 = vadd.f32 0.0, %v1267
        %1269 = vmatmul.f32.gmra.mxu0 %v1194
        %v1270 = vpop.f32.mrf.mxu0
        %v1271 = vadd.f32 0.0, %v1270
        %1272 = vmatmul.f32.gmra.mxu0 %v1197
        %v1273 = vpop.f32.mrf.mxu0
        %v1274 = vadd.f32 0.0, %v1273
        %1275 = vmatmul.f32.gmra.mxu0 %v1200
        %v1276 = vpop.f32.mrf.mxu0
        %v1277 = vadd.f32 0.0, %v1276
        %1278 = vmatmul.f32.gmra.mxu0 %v1203
        %v1279 = vpop.f32.mrf.mxu0
        %v1280 = vadd.f32 0.0, %v1279
        %1281 = vmatmul.f32.gmra.mxu0 %v1206
        %v1282 = vpop.f32.mrf.mxu0
        %v1283 = vadd.f32 0.0, %v1282
        %1284 = vmatmul.f32.gmra.mxu0 %v1209
        %v1285 = vpop.f32.mrf.mxu0
        %v1286 = vadd.f32 0.0, %v1285
        %1287 = vmatmul.f32.gmra.mxu0 %v1212
        %v1288 = vpop.f32.mrf.mxu0
        %v1289 = vadd.f32 0.0, %v1288
        %1290 = vmatmul.f32.gmra.mxu0 %v1215
        %v1291 = vpop.f32.mrf.mxu0
        %v1292 = vadd.f32 0.0, %v1291
        %1293 = vmatmul.f32.gmra.mxu0 %v1218
        %v1294 = vpop.f32.mrf.mxu0
        %v1295 = vadd.f32 0.0, %v1294
        %1296 = vmatmul.f32.gmra.mxu0 %v1221
        %v1297 = vpop.f32.mrf.mxu0
        %v1298 = vadd.f32 0.0, %v1297
        %1299 = vmatmul.f32.gmra.mxu0 %v1224
        %v1300 = vpop.f32.mrf.mxu0
        %v1301 = vadd.f32 0.0, %v1300
        %1302 = vmatmul.f32.gmra.mxu0 %v1227
        %v1303 = vpop.f32.mrf.mxu0
        %v1304 = vadd.f32 0.0, %v1303
        %1305 = vmatmul.f32.gmra.mxu0 %v1230
        %v1306 = vpop.f32.mrf.mxu0
        %v1307 = vadd.f32 0.0, %v1306
        %1308 = vmatmul.f32.gmra.mxu0 %v1233
        %v1309 = vpop.f32.mrf.mxu0
        %v1310 = vadd.f32 0.0, %v1309
        %1311 = vmatmul.f32.gmra.mxu0 %v1236
        %v1312 = vpop.f32.mrf.mxu0
        %v1313 = vadd.f32 0.0, %v1312
        %1314 = vmatmul.f32.gmra.mxu0 %v1239
        %v1315 = vpop.f32.mrf.mxu0
        %v1316 = vadd.f32 0.0, %v1315
        %1317 = vmatmul.f32.gmra.mxu0 %v1242
        %v1318 = vpop.f32.mrf.mxu0
        %v1319 = vadd.f32 0.0, %v1318
        %1320 = vmatmul.f32.gmra.mxu0 %v1245
        %v1321 = vpop.f32.mrf.mxu0
        %v1322 = vadd.f32 0.0, %v1321
        %1323 = vdwg.mxu0
        %v1324 = vmul.f32 %v1265, 0.35355338
        %v1325 = vmul.f32 %v1268, 0.35355338
        %v1326 = vmul.f32 %v1271, 0.35355338
        %v1327 = vmul.f32 %v1274, 0.35355338
        %v1328 = vmul.f32 %v1277, 0.35355338
        %v1329 = vmul.f32 %v1280, 0.35355338
        %v1330 = vmul.f32 %v1283, 0.35355338
        %v1331 = vmul.f32 %v1286, 0.35355338
        %v1332 = vmul.f32 %v1289, 0.35355338
        %v1333 = vmul.f32 %v1292, 0.35355338
        %v1334 = vmul.f32 %v1295, 0.35355338
        %v1335 = vmul.f32 %v1298, 0.35355338
        %v1336 = vmul.f32 %v1301, 0.35355338
        %v1337 = vmul.f32 %v1304, 0.35355338
        %v1338 = vmul.f32 %v1307, 0.35355338
        %v1339 = vmul.f32 %v1310, 0.35355338
        %v1340 = vmul.f32 %v1313, 0.35355338
        %v1341 = vmul.f32 %v1316, 0.35355338
        %v1342 = vmul.f32 %v1319, 0.35355338
        %v1343 = vmul.f32 %v1322, 0.35355338
        %v1344 = vld [vmem:[%s628] sm:$0xff]
        %v1345 = vld [vmem:[%s628 + $0x8] sm:$0x3]
        %v1346 = vld [vmem:[%s628 + $0x10] sm:$0xff]
        %v1347 = vld [vmem:[%s628 + $0x18] sm:$0x3]
        %v1348 = vperm.slane %v1344, 0
        %v1349 = vlaneseq
        %v1350 = vshrl.u32 %v1349, 7
        %1352 = vset.pattern.permute.xlu0 %v1350
        %1353 = vperm.xlu0 %1352, %v1348
        %v1354 = vpop.permute.xlu0 %1353
        %v1355 = vperm.slane %v1344, 1
        %v1356 = vlaneseq
        %v1357 = vshrl.u32 %v1356, 7
        %1359 = vset.pattern.permute.xlu0 %v1357
        %1360 = vperm.xlu0 %1359, %v1355
        %v1361 = vpop.permute.xlu0 %1360
        %v1362 = vperm.slane %v1344, 2
        %v1363 = vlaneseq
        %v1364 = vshrl.u32 %v1363, 7
        %1366 = vset.pattern.permute.xlu0 %v1364
        %1367 = vperm.xlu0 %1366, %v1362
        %v1368 = vpop.permute.xlu0 %1367
        %v1369 = vperm.slane %v1344, 3
        %v1370 = vlaneseq
        %v1371 = vshrl.u32 %v1370, 7
        %1373 = vset.pattern.permute.xlu0 %v1371
        %1374 = vperm.xlu0 %1373, %v1369
        %v1375 = vpop.permute.xlu0 %1374
        %v1376 = vperm.slane %v1344, 4
        %v1377 = vlaneseq
        %v1378 = vshrl.u32 %v1377, 7
        %1380 = vset.pattern.permute.xlu0 %v1378
        %1381 = vperm.xlu0 %1380, %v1376
        %v1382 = vpop.permute.xlu0 %1381
        %v1383 = vperm.slane %v1344, 5
        %v1384 = vlaneseq
        %v1385 = vshrl.u32 %v1384, 7
        %1387 = vset.pattern.permute.xlu0 %v1385
        %1388 = vperm.xlu0 %1387, %v1383
        %v1389 = vpop.permute.xlu0 %1388
        %v1390 = vperm.slane %v1344, 6
        %v1391 = vlaneseq
        %v1392 = vshrl.u32 %v1391, 7
        %1394 = vset.pattern.permute.xlu0 %v1392
        %1395 = vperm.xlu0 %1394, %v1390
        %v1396 = vpop.permute.xlu0 %1395
        %v1397 = vperm.slane %v1344, 7
        %v1398 = vlaneseq
        %v1399 = vshrl.u32 %v1398, 7
        %1401 = vset.pattern.permute.xlu0 %v1399
        %1402 = vperm.xlu0 %1401, %v1397
        %v1403 = vpop.permute.xlu0 %1402
        %v1404 = vperm.slane %v1345, 0
        %v1405 = vlaneseq
        %v1406 = vshrl.u32 %v1405, 7
        %1408 = vset.pattern.permute.xlu0 %v1406
        %1409 = vperm.xlu0 %1408, %v1404
        %v1410 = vpop.permute.xlu0 %1409
        %v1411 = vperm.slane %v1345, 1
        %v1412 = vlaneseq
        %v1413 = vshrl.u32 %v1412, 7
        %1415 = vset.pattern.permute.xlu0 %v1413
        %1416 = vperm.xlu0 %1415, %v1411
        %v1417 = vpop.permute.xlu0 %1416
        %v1418 = vperm.slane %v1346, 0
        %v1419 = vlaneseq
        %v1420 = vshrl.u32 %v1419, 7
        %1422 = vset.pattern.permute.xlu0 %v1420
        %1423 = vperm.xlu0 %1422, %v1418
        %v1424 = vpop.permute.xlu0 %1423
        %v1425 = vperm.slane %v1346, 1
        %v1426 = vlaneseq
        %v1427 = vshrl.u32 %v1426, 7
        %1429 = vset.pattern.permute.xlu0 %v1427
        %1430 = vperm.xlu0 %1429, %v1425
        %v1431 = vpop.permute.xlu0 %1430
        %v1432 = vperm.slane %v1346, 2
        %v1433 = vlaneseq
        %v1434 = vshrl.u32 %v1433, 7
        %1436 = vset.pattern.permute.xlu0 %v1434
        %1437 = vperm.xlu0 %1436, %v1432
        %v1438 = vpop.permute.xlu0 %1437
        %v1439 = vperm.slane %v1346, 3
        %v1440 = vlaneseq
        %v1441 = vshrl.u32 %v1440, 7
        %1443 = vset.pattern.permute.xlu0 %v1441
        %1444 = vperm.xlu0 %1443, %v1439
        %v1445 = vpop.permute.xlu0 %1444
        %v1446 = vperm.slane %v1346, 4
        %v1447 = vlaneseq
        %v1448 = vshrl.u32 %v1447, 7
        %1450 = vset.pattern.permute.xlu0 %v1448
        %1451 = vperm.xlu0 %1450, %v1446
        %v1452 = vpop.permute.xlu0 %1451
        %v1453 = vperm.slane %v1346, 5
        %v1454 = vlaneseq
        %v1455 = vshrl.u32 %v1454, 7
        %1457 = vset.pattern.permute.xlu0 %v1455
        %1458 = vperm.xlu0 %1457, %v1453
        %v1459 = vpop.permute.xlu0 %1458
        %v1460 = vperm.slane %v1346, 6
        %v1461 = vlaneseq
        %v1462 = vshrl.u32 %v1461, 7
        %1464 = vset.pattern.permute.xlu0 %v1462
        %1465 = vperm.xlu0 %1464, %v1460
        %v1466 = vpop.permute.xlu0 %1465
        %v1467 = vperm.slane %v1346, 7
        %v1468 = vlaneseq
        %v1469 = vshrl.u32 %v1468, 7
        %1471 = vset.pattern.permute.xlu0 %v1469
        %1472 = vperm.xlu0 %1471, %v1467
        %v1473 = vpop.permute.xlu0 %1472
        %v1474 = vperm.slane %v1347, 0
        %v1475 = vlaneseq
        %v1476 = vshrl.u32 %v1475, 7
        %1478 = vset.pattern.permute.xlu0 %v1476
        %1479 = vperm.xlu0 %1478, %v1474
        %v1480 = vpop.permute.xlu0 %1479
        %v1481 = vperm.slane %v1347, 1
        %v1482 = vlaneseq
        %v1483 = vshrl.u32 %v1482, 7
        %1485 = vset.pattern.permute.xlu0 %v1483
        %1486 = vperm.xlu0 %1485, %v1481
        %v1487 = vpop.permute.xlu0 %1486
        %v1488 = vadd.f32 %v1324, %v1354
        %v1489 = vadd.f32 %v1325, %v1361
        %v1490 = vadd.f32 %v1326, %v1368
        %v1491 = vadd.f32 %v1327, %v1375
        %v1492 = vadd.f32 %v1328, %v1382
        %v1493 = vadd.f32 %v1329, %v1389
        %v1494 = vadd.f32 %v1330, %v1396
        %v1495 = vadd.f32 %v1331, %v1403
        %v1496 = vadd.f32 %v1332, %v1410
        %v1497 = vadd.f32 %v1333, %v1417
        %v1498 = vadd.f32 %v1334, %v1424
        %v1499 = vadd.f32 %v1335, %v1431
        %v1500 = vadd.f32 %v1336, %v1438
        %v1501 = vadd.f32 %v1337, %v1445
        %v1502 = vadd.f32 %v1338, %v1452
        %v1503 = vadd.f32 %v1339, %v1459
        %v1504 = vadd.f32 %v1340, %v1466
        %v1505 = vadd.f32 %v1341, %v1473
        %v1506 = vadd.f32 %v1342, %v1480
        %v1507 = vadd.f32 %v1343, %v1487
        %vm1508 = vcmask 31744
        %v1509 = vsel %vm1508, %v1488, -inf
        %v1510 = vrot.slane %v1509, 4
        %v1511 = vmax.f32 %v1509, %v1510
        %v1512 = vrot.slane %v1511, 2
        %v1513 = vmax.f32 %v1511, %v1512
        %v1514 = vrot.slane %v1513, 1
        %v1515 = vmax.f32 %v1513, %v1514
        %v1516 = vsel %vm1508, %v1489, -inf
        %v1517 = vrot.slane %v1516, 4
        %v1518 = vmax.f32 %v1516, %v1517
        %v1519 = vrot.slane %v1518, 2
        %v1520 = vmax.f32 %v1518, %v1519
        %v1521 = vrot.slane %v1520, 1
        %v1522 = vmax.f32 %v1520, %v1521
        %v1523 = vsel %vm1508, %v1490, -inf
        %v1524 = vrot.slane %v1523, 4
        %v1525 = vmax.f32 %v1523, %v1524
        %v1526 = vrot.slane %v1525, 2
        %v1527 = vmax.f32 %v1525, %v1526
        %v1528 = vrot.slane %v1527, 1
        %v1529 = vmax.f32 %v1527, %v1528
        %v1530 = vsel %vm1508, %v1491, -inf
        %v1531 = vrot.slane %v1530, 4
        %v1532 = vmax.f32 %v1530, %v1531
        %v1533 = vrot.slane %v1532, 2
        %v1534 = vmax.f32 %v1532, %v1533
        %v1535 = vrot.slane %v1534, 1
        %v1536 = vmax.f32 %v1534, %v1535
        %v1537 = vsel %vm1508, %v1492, -inf
        %v1538 = vrot.slane %v1537, 4
        %v1539 = vmax.f32 %v1537, %v1538
        %v1540 = vrot.slane %v1539, 2
        %v1541 = vmax.f32 %v1539, %v1540
        %v1542 = vrot.slane %v1541, 1
        %v1543 = vmax.f32 %v1541, %v1542
        %v1544 = vsel %vm1508, %v1493, -inf
        %v1545 = vrot.slane %v1544, 4
        %v1546 = vmax.f32 %v1544, %v1545
        %v1547 = vrot.slane %v1546, 2
        %v1548 = vmax.f32 %v1546, %v1547
        %v1549 = vrot.slane %v1548, 1
        %v1550 = vmax.f32 %v1548, %v1549
        %v1551 = vsel %vm1508, %v1494, -inf
        %v1552 = vrot.slane %v1551, 4
        %v1553 = vmax.f32 %v1551, %v1552
        %v1554 = vrot.slane %v1553, 2
        %v1555 = vmax.f32 %v1553, %v1554
        %v1556 = vrot.slane %v1555, 1
        %v1557 = vmax.f32 %v1555, %v1556
        %v1558 = vsel %vm1508, %v1495, -inf
        %v1559 = vrot.slane %v1558, 4
        %v1560 = vmax.f32 %v1558, %v1559
        %v1561 = vrot.slane %v1560, 2
        %v1562 = vmax.f32 %v1560, %v1561
        %v1563 = vrot.slane %v1562, 1
        %v1564 = vmax.f32 %v1562, %v1563
        %v1565 = vsel %vm1508, %v1496, -inf
        %v1566 = vrot.slane %v1565, 4
        %v1567 = vmax.f32 %v1565, %v1566
        %v1568 = vrot.slane %v1567, 2
        %v1569 = vmax.f32 %v1567, %v1568
        %v1570 = vrot.slane %v1569, 1
        %v1571 = vmax.f32 %v1569, %v1570
        %v1572 = vsel %vm1508, %v1497, -inf
        %v1573 = vrot.slane %v1572, 4
        %v1574 = vmax.f32 %v1572, %v1573
        %v1575 = vrot.slane %v1574, 2
        %v1576 = vmax.f32 %v1574, %v1575
        %v1577 = vrot.slane %v1576, 1
        %v1578 = vmax.f32 %v1576, %v1577
        %v1579 = vsel %vm1508, %v1498, -inf
        %v1580 = vrot.slane %v1579, 4
        %v1581 = vmax.f32 %v1579, %v1580
        %v1582 = vrot.slane %v1581, 2
        %v1583 = vmax.f32 %v1581, %v1582
        %v1584 = vrot.slane %v1583, 1
        %v1585 = vmax.f32 %v1583, %v1584
        %v1586 = vsel %vm1508, %v1499, -inf
        %v1587 = vrot.slane %v1586, 4
        %v1588 = vmax.f32 %v1586, %v1587
        %v1589 = vrot.slane %v1588, 2
        %v1590 = vmax.f32 %v1588, %v1589
        %v1591 = vrot.slane %v1590, 1
        %v1592 = vmax.f32 %v1590, %v1591
        %v1593 = vsel %vm1508, %v1500, -inf
        %v1594 = vrot.slane %v1593, 4
        %v1595 = vmax.f32 %v1593, %v1594
        %v1596 = vrot.slane %v1595, 2
        %v1597 = vmax.f32 %v1595, %v1596
        %v1598 = vrot.slane %v1597, 1
        %v1599 = vmax.f32 %v1597, %v1598
        %v1600 = vsel %vm1508, %v1501, -inf
        %v1601 = vrot.slane %v1600, 4
        %v1602 = vmax.f32 %v1600, %v1601
        %v1603 = vrot.slane %v1602, 2
        %v1604 = vmax.f32 %v1602, %v1603
        %v1605 = vrot.slane %v1604, 1
        %v1606 = vmax.f32 %v1604, %v1605
        %v1607 = vsel %vm1508, %v1502, -inf
        %v1608 = vrot.slane %v1607, 4
        %v1609 = vmax.f32 %v1607, %v1608
        %v1610 = vrot.slane %v1609, 2
        %v1611 = vmax.f32 %v1609, %v1610
        %v1612 = vrot.slane %v1611, 1
        %v1613 = vmax.f32 %v1611, %v1612
        %v1614 = vsel %vm1508, %v1503, -inf
        %v1615 = vrot.slane %v1614, 4
        %v1616 = vmax.f32 %v1614, %v1615
        %v1617 = vrot.slane %v1616, 2
        %v1618 = vmax.f32 %v1616, %v1617
        %v1619 = vrot.slane %v1618, 1
        %v1620 = vmax.f32 %v1618, %v1619
        %v1621 = vsel %vm1508, %v1504, -inf
        %v1622 = vrot.slane %v1621, 4
        %v1623 = vmax.f32 %v1621, %v1622
        %v1624 = vrot.slane %v1623, 2
        %v1625 = vmax.f32 %v1623, %v1624
        %v1626 = vrot.slane %v1625, 1
        %v1627 = vmax.f32 %v1625, %v1626
        %v1628 = vsel %vm1508, %v1505, -inf
        %v1629 = vrot.slane %v1628, 4
        %v1630 = vmax.f32 %v1628, %v1629
        %v1631 = vrot.slane %v1630, 2
        %v1632 = vmax.f32 %v1630, %v1631
        %v1633 = vrot.slane %v1632, 1
        %v1634 = vmax.f32 %v1632, %v1633
        %v1635 = vsel %vm1508, %v1506, -inf
        %v1636 = vrot.slane %v1635, 4
        %v1637 = vmax.f32 %v1635, %v1636
        %v1638 = vrot.slane %v1637, 2
        %v1639 = vmax.f32 %v1637, %v1638
        %v1640 = vrot.slane %v1639, 1
        %v1641 = vmax.f32 %v1639, %v1640
        %v1642 = vsel %vm1508, %v1507, -inf
        %v1643 = vrot.slane %v1642, 4
        %v1644 = vmax.f32 %v1642, %v1643
        %v1645 = vrot.slane %v1644, 2
        %v1646 = vmax.f32 %v1644, %v1645
        %v1647 = vrot.slane %v1646, 1
        %v1648 = vmax.f32 %v1646, %v1647
        %v1649 = vmax.f32 %v1515, 0.0
        %v1650 = vmax.f32 %v1522, 0.0
        %v1651 = vmax.f32 %v1529, 0.0
        %v1652 = vmax.f32 %v1536, 0.0
        %v1653 = vmax.f32 %v1543, 0.0
        %v1654 = vmax.f32 %v1550, 0.0
        %v1655 = vmax.f32 %v1557, 0.0
        %v1656 = vmax.f32 %v1564, 0.0
        %v1657 = vmax.f32 %v1571, 0.0
        %v1658 = vmax.f32 %v1578, 0.0
        %v1659 = vmax.f32 %v1585, 0.0
        %v1660 = vmax.f32 %v1592, 0.0
        %v1661 = vmax.f32 %v1599, 0.0
        %v1662 = vmax.f32 %v1606, 0.0
        %v1663 = vmax.f32 %v1613, 0.0
        %v1664 = vmax.f32 %v1620, 0.0
        %v1665 = vmax.f32 %v1627, 0.0
        %v1666 = vmax.f32 %v1634, 0.0
        %v1667 = vmax.f32 %v1641, 0.0
        %v1668 = vmax.f32 %v1648, 0.0
        %v1669 = vsub.f32 %v1488, %v1649
        %v1670 = vsub.f32 %v1489, %v1650
        %v1671 = vsub.f32 %v1490, %v1651
        %v1672 = vsub.f32 %v1491, %v1652
        %v1673 = vsub.f32 %v1492, %v1653
        %v1674 = vsub.f32 %v1493, %v1654
        %v1675 = vsub.f32 %v1494, %v1655
        %v1676 = vsub.f32 %v1495, %v1656
        %v1677 = vsub.f32 %v1496, %v1657
        %v1678 = vsub.f32 %v1497, %v1658
        %v1679 = vsub.f32 %v1498, %v1659
        %v1680 = vsub.f32 %v1499, %v1660
        %v1681 = vsub.f32 %v1500, %v1661
        %v1682 = vsub.f32 %v1501, %v1662
        %v1683 = vsub.f32 %v1502, %v1663
        %v1684 = vsub.f32 %v1503, %v1664
        %v1685 = vsub.f32 %v1504, %v1665
        %v1686 = vsub.f32 %v1505, %v1666
        %v1687 = vsub.f32 %v1506, %v1667
        %v1688 = vsub.f32 %v1507, %v1668
        %v1689 = vmul.f32 %v1669, 1.442695
        %v1690 = vpow.pop %v1689
        %v1691 = vmul.f32 %v1670, 1.442695
        %v1692 = vpow.pop %v1691
        %v1693 = vmul.f32 %v1671, 1.442695
        %v1694 = vpow.pop %v1693
        %v1695 = vmul.f32 %v1672, 1.442695
        %v1696 = vpow.pop %v1695
        %v1697 = vmul.f32 %v1673, 1.442695
        %v1698 = vpow.pop %v1697
        %v1699 = vmul.f32 %v1674, 1.442695
        %v1700 = vpow.pop %v1699
        %v1701 = vmul.f32 %v1675, 1.442695
        %v1702 = vpow.pop %v1701
        %v1703 = vmul.f32 %v1676, 1.442695
        %v1704 = vpow.pop %v1703
        %v1705 = vmul.f32 %v1677, 1.442695
        %v1706 = vpow.pop %v1705
        %v1707 = vmul.f32 %v1678, 1.442695
        %v1708 = vpow.pop %v1707
        %v1709 = vmul.f32 %v1679, 1.442695
        %v1710 = vpow.pop %v1709
        %v1711 = vmul.f32 %v1680, 1.442695
        %v1712 = vpow.pop %v1711
        %v1713 = vmul.f32 %v1681, 1.442695
        %v1714 = vpow.pop %v1713
        %v1715 = vmul.f32 %v1682, 1.442695
        %v1716 = vpow.pop %v1715
        %v1717 = vmul.f32 %v1683, 1.442695
        %v1718 = vpow.pop %v1717
        %v1719 = vmul.f32 %v1684, 1.442695
        %v1720 = vpow.pop %v1719
        %v1721 = vmul.f32 %v1685, 1.442695
        %v1722 = vpow.pop %v1721
        %v1723 = vmul.f32 %v1686, 1.442695
        %v1724 = vpow.pop %v1723
        %v1725 = vmul.f32 %v1687, 1.442695
        %v1726 = vpow.pop %v1725
        %v1727 = vmul.f32 %v1688, 1.442695
        %v1728 = vpow.pop %v1727
        %v1729 = vsel %vm1508, %v1690, 0.0
        %v1730 = vrot.slane %v1729, 4
        %v1731 = vadd.f32 %v1729, %v1730
        %v1732 = vrot.slane %v1731, 2
        %v1733 = vadd.f32 %v1731, %v1732
        %v1734 = vrot.slane %v1733, 1
        %v1735 = vadd.f32 %v1733, %v1734
        %v1736 = vsel %vm1508, %v1692, 0.0
        %v1737 = vrot.slane %v1736, 4
        %v1738 = vadd.f32 %v1736, %v1737
        %v1739 = vrot.slane %v1738, 2
        %v1740 = vadd.f32 %v1738, %v1739
        %v1741 = vrot.slane %v1740, 1
        %v1742 = vadd.f32 %v1740, %v1741
        %v1743 = vsel %vm1508, %v1694, 0.0
        %v1744 = vrot.slane %v1743, 4
        %v1745 = vadd.f32 %v1743, %v1744
        %v1746 = vrot.slane %v1745, 2
        %v1747 = vadd.f32 %v1745, %v1746
        %v1748 = vrot.slane %v1747, 1
        %v1749 = vadd.f32 %v1747, %v1748
        %v1750 = vsel %vm1508, %v1696, 0.0
        %v1751 = vrot.slane %v1750, 4
        %v1752 = vadd.f32 %v1750, %v1751
        %v1753 = vrot.slane %v1752, 2
        %v1754 = vadd.f32 %v1752, %v1753
        %v1755 = vrot.slane %v1754, 1
        %v1756 = vadd.f32 %v1754, %v1755
        %v1757 = vsel %vm1508, %v1698, 0.0
        %v1758 = vrot.slane %v1757, 4
        %v1759 = vadd.f32 %v1757, %v1758
        %v1760 = vrot.slane %v1759, 2
        %v1761 = vadd.f32 %v1759, %v1760
        %v1762 = vrot.slane %v1761, 1
        %v1763 = vadd.f32 %v1761, %v1762
        %v1764 = vsel %vm1508, %v1700, 0.0
        %v1765 = vrot.slane %v1764, 4
        %v1766 = vadd.f32 %v1764, %v1765
        %v1767 = vrot.slane %v1766, 2
        %v1768 = vadd.f32 %v1766, %v1767
        %v1769 = vrot.slane %v1768, 1
        %v1770 = vadd.f32 %v1768, %v1769
        %v1771 = vsel %vm1508, %v1702, 0.0
        %v1772 = vrot.slane %v1771, 4
        %v1773 = vadd.f32 %v1771, %v1772
        %v1774 = vrot.slane %v1773, 2
        %v1775 = vadd.f32 %v1773, %v1774
        %v1776 = vrot.slane %v1775, 1
        %v1777 = vadd.f32 %v1775, %v1776
        %v1778 = vsel %vm1508, %v1704, 0.0
        %v1779 = vrot.slane %v1778, 4
        %v1780 = vadd.f32 %v1778, %v1779
        %v1781 = vrot.slane %v1780, 2
        %v1782 = vadd.f32 %v1780, %v1781
        %v1783 = vrot.slane %v1782, 1
        %v1784 = vadd.f32 %v1782, %v1783
        %v1785 = vsel %vm1508, %v1706, 0.0
        %v1786 = vrot.slane %v1785, 4
        %v1787 = vadd.f32 %v1785, %v1786
        %v1788 = vrot.slane %v1787, 2
        %v1789 = vadd.f32 %v1787, %v1788
        %v1790 = vrot.slane %v1789, 1
        %v1791 = vadd.f32 %v1789, %v1790
        %v1792 = vsel %vm1508, %v1708, 0.0
        %v1793 = vrot.slane %v1792, 4
        %v1794 = vadd.f32 %v1792, %v1793
        %v1795 = vrot.slane %v1794, 2
        %v1796 = vadd.f32 %v1794, %v1795
        %v1797 = vrot.slane %v1796, 1
        %v1798 = vadd.f32 %v1796, %v1797
        %v1799 = vsel %vm1508, %v1710, 0.0
        %v1800 = vrot.slane %v1799, 4
        %v1801 = vadd.f32 %v1799, %v1800
        %v1802 = vrot.slane %v1801, 2
        %v1803 = vadd.f32 %v1801, %v1802
        %v1804 = vrot.slane %v1803, 1
        %v1805 = vadd.f32 %v1803, %v1804
        %v1806 = vsel %vm1508, %v1712, 0.0
        %v1807 = vrot.slane %v1806, 4
        %v1808 = vadd.f32 %v1806, %v1807
        %v1809 = vrot.slane %v1808, 2
        %v1810 = vadd.f32 %v1808, %v1809
        %v1811 = vrot.slane %v1810, 1
        %v1812 = vadd.f32 %v1810, %v1811
        %v1813 = vsel %vm1508, %v1714, 0.0
        %v1814 = vrot.slane %v1813, 4
        %v1815 = vadd.f32 %v1813, %v1814
        %v1816 = vrot.slane %v1815, 2
        %v1817 = vadd.f32 %v1815, %v1816
        %v1818 = vrot.slane %v1817, 1
        %v1819 = vadd.f32 %v1817, %v1818
        %v1820 = vsel %vm1508, %v1716, 0.0
        %v1821 = vrot.slane %v1820, 4
        %v1822 = vadd.f32 %v1820, %v1821
        %v1823 = vrot.slane %v1822, 2
        %v1824 = vadd.f32 %v1822, %v1823
        %v1825 = vrot.slane %v1824, 1
        %v1826 = vadd.f32 %v1824, %v1825
        %v1827 = vsel %vm1508, %v1718, 0.0
        %v1828 = vrot.slane %v1827, 4
        %v1829 = vadd.f32 %v1827, %v1828
        %v1830 = vrot.slane %v1829, 2
        %v1831 = vadd.f32 %v1829, %v1830
        %v1832 = vrot.slane %v1831, 1
        %v1833 = vadd.f32 %v1831, %v1832
        %v1834 = vsel %vm1508, %v1720, 0.0
        %v1835 = vrot.slane %v1834, 4
        %v1836 = vadd.f32 %v1834, %v1835
        %v1837 = vrot.slane %v1836, 2
        %v1838 = vadd.f32 %v1836, %v1837
        %v1839 = vrot.slane %v1838, 1
        %v1840 = vadd.f32 %v1838, %v1839
        %v1841 = vsel %vm1508, %v1722, 0.0
        %v1842 = vrot.slane %v1841, 4
        %v1843 = vadd.f32 %v1841, %v1842
        %v1844 = vrot.slane %v1843, 2
        %v1845 = vadd.f32 %v1843, %v1844
        %v1846 = vrot.slane %v1845, 1
        %v1847 = vadd.f32 %v1845, %v1846
        %v1848 = vsel %vm1508, %v1724, 0.0
        %v1849 = vrot.slane %v1848, 4
        %v1850 = vadd.f32 %v1848, %v1849
        %v1851 = vrot.slane %v1850, 2
        %v1852 = vadd.f32 %v1850, %v1851
        %v1853 = vrot.slane %v1852, 1
        %v1854 = vadd.f32 %v1852, %v1853
        %v1855 = vsel %vm1508, %v1726, 0.0
        %v1856 = vrot.slane %v1855, 4
        %v1857 = vadd.f32 %v1855, %v1856
        %v1858 = vrot.slane %v1857, 2
        %v1859 = vadd.f32 %v1857, %v1858
        %v1860 = vrot.slane %v1859, 1
        %v1861 = vadd.f32 %v1859, %v1860
        %v1862 = vsel %vm1508, %v1728, 0.0
        %v1863 = vrot.slane %v1862, 4
        %v1864 = vadd.f32 %v1862, %v1863
        %v1865 = vrot.slane %v1864, 2
        %v1866 = vadd.f32 %v1864, %v1865
        %v1867 = vrot.slane %v1866, 1
        %v1868 = vadd.f32 %v1866, %v1867
        %v1869 = vsub.f32 0.0, %v1649
        %v1870 = vsub.f32 0.0, %v1650
        %v1871 = vsub.f32 0.0, %v1651
        %v1872 = vsub.f32 0.0, %v1652
        %v1873 = vsub.f32 0.0, %v1653
        %v1874 = vsub.f32 0.0, %v1654
        %v1875 = vsub.f32 0.0, %v1655
        %v1876 = vsub.f32 0.0, %v1656
        %v1877 = vsub.f32 0.0, %v1657
        %v1878 = vsub.f32 0.0, %v1658
        %v1879 = vsub.f32 0.0, %v1659
        %v1880 = vsub.f32 0.0, %v1660
        %v1881 = vsub.f32 0.0, %v1661
        %v1882 = vsub.f32 0.0, %v1662
        %v1883 = vsub.f32 0.0, %v1663
        %v1884 = vsub.f32 0.0, %v1664
        %v1885 = vsub.f32 0.0, %v1665
        %v1886 = vsub.f32 0.0, %v1666
        %v1887 = vsub.f32 0.0, %v1667
        %v1888 = vsub.f32 0.0, %v1668
        %v1889 = vmul.f32 %v1869, 1.442695
        %v1890 = vpow.pop %v1889
        %v1891 = vmul.f32 %v1870, 1.442695
        %v1892 = vpow.pop %v1891
        %v1893 = vmul.f32 %v1871, 1.442695
        %v1894 = vpow.pop %v1893
        %v1895 = vmul.f32 %v1872, 1.442695
        %v1896 = vpow.pop %v1895
        %v1897 = vmul.f32 %v1873, 1.442695
        %v1898 = vpow.pop %v1897
        %v1899 = vmul.f32 %v1874, 1.442695
        %v1900 = vpow.pop %v1899
        %v1901 = vmul.f32 %v1875, 1.442695
        %v1902 = vpow.pop %v1901
        %v1903 = vmul.f32 %v1876, 1.442695
        %v1904 = vpow.pop %v1903
        %v1905 = vmul.f32 %v1877, 1.442695
        %v1906 = vpow.pop %v1905
        %v1907 = vmul.f32 %v1878, 1.442695
        %v1908 = vpow.pop %v1907
        %v1909 = vmul.f32 %v1879, 1.442695
        %v1910 = vpow.pop %v1909
        %v1911 = vmul.f32 %v1880, 1.442695
        %v1912 = vpow.pop %v1911
        %v1913 = vmul.f32 %v1881, 1.442695
        %v1914 = vpow.pop %v1913
        %v1915 = vmul.f32 %v1882, 1.442695
        %v1916 = vpow.pop %v1915
        %v1917 = vmul.f32 %v1883, 1.442695
        %v1918 = vpow.pop %v1917
        %v1919 = vmul.f32 %v1884, 1.442695
        %v1920 = vpow.pop %v1919
        %v1921 = vmul.f32 %v1885, 1.442695
        %v1922 = vpow.pop %v1921
        %v1923 = vmul.f32 %v1886, 1.442695
        %v1924 = vpow.pop %v1923
        %v1925 = vmul.f32 %v1887, 1.442695
        %v1926 = vpow.pop %v1925
        %v1927 = vmul.f32 %v1888, 1.442695
        %v1928 = vpow.pop %v1927
        %v1929 = vadd.f32 %v1735, %v1890
        %v1930 = vadd.f32 %v1742, %v1892
        %v1931 = vadd.f32 %v1749, %v1894
        %v1932 = vadd.f32 %v1756, %v1896
        %v1933 = vadd.f32 %v1763, %v1898
        %v1934 = vadd.f32 %v1770, %v1900
        %v1935 = vadd.f32 %v1777, %v1902
        %v1936 = vadd.f32 %v1784, %v1904
        %v1937 = vadd.f32 %v1791, %v1906
        %v1938 = vadd.f32 %v1798, %v1908
        %v1939 = vadd.f32 %v1805, %v1910
        %v1940 = vadd.f32 %v1812, %v1912
        %v1941 = vadd.f32 %v1819, %v1914
        %v1942 = vadd.f32 %v1826, %v1916
        %v1943 = vadd.f32 %v1833, %v1918
        %v1944 = vadd.f32 %v1840, %v1920
        %v1945 = vadd.f32 %v1847, %v1922
        %v1946 = vadd.f32 %v1854, %v1924
        %v1947 = vadd.f32 %v1861, %v1926
        %v1948 = vadd.f32 %v1868, %v1928
        %v1949 = vrcp.pop %v1929
        %v1950 = vrcp.pop %v1930
        %v1951 = vrcp.pop %v1931
        %v1952 = vrcp.pop %v1932
        %v1953 = vrcp.pop %v1933
        %v1954 = vrcp.pop %v1934
        %v1955 = vrcp.pop %v1935
        %v1956 = vrcp.pop %v1936
        %v1957 = vrcp.pop %v1937
        %v1958 = vrcp.pop %v1938
        %v1959 = vrcp.pop %v1939
        %v1960 = vrcp.pop %v1940
        %v1961 = vrcp.pop %v1941
        %v1962 = vrcp.pop %v1942
        %v1963 = vrcp.pop %v1943
        %v1964 = vrcp.pop %v1944
        %v1965 = vrcp.pop %v1945
        %v1966 = vrcp.pop %v1946
        %v1967 = vrcp.pop %v1947
        %v1968 = vrcp.pop %v1948
        %v1969 = vmul.f32 %v1690, %v1949
        %v1970 = vmul.f32 %v1692, %v1950
        %v1971 = vmul.f32 %v1694, %v1951
        %v1972 = vmul.f32 %v1696, %v1952
        %v1973 = vmul.f32 %v1698, %v1953
        %v1974 = vmul.f32 %v1700, %v1954
        %v1975 = vmul.f32 %v1702, %v1955
        %v1976 = vmul.f32 %v1704, %v1956
        %v1977 = vmul.f32 %v1706, %v1957
        %v1978 = vmul.f32 %v1708, %v1958
        %v1979 = vmul.f32 %v1710, %v1959
        %v1980 = vmul.f32 %v1712, %v1960
        %v1981 = vmul.f32 %v1714, %v1961
        %v1982 = vmul.f32 %v1716, %v1962
        %v1983 = vmul.f32 %v1718, %v1963
        %v1984 = vmul.f32 %v1720, %v1964
        %v1985 = vmul.f32 %v1722, %v1965
        %v1986 = vmul.f32 %v1724, %v1966
        %v1987 = vmul.f32 %v1726, %v1967
        %v1988 = vmul.f32 %v1728, %v1968
        %v1990 = vsel %vm1508, %v1969, 0
        %v1993 = vsel %vm1508, %v1970, 0
        %v1996 = vsel %vm1508, %v1971, 0
        %v1999 = vsel %vm1508, %v1972, 0
        %v2002 = vsel %vm1508, %v1973, 0
        %v2005 = vsel %vm1508, %v1974, 0
        %v2008 = vsel %vm1508, %v1975, 0
        %v2011 = vsel %vm1508, %v1976, 0
        %v2014 = vsel %vm1508, %v1977, 0
        %v2017 = vsel %vm1508, %v1978, 0
        %v2020 = vsel %vm1508, %v1979, 0
        %v2023 = vsel %vm1508, %v1980, 0
        %v2026 = vsel %vm1508, %v1981, 0
        %v2029 = vsel %vm1508, %v1982, 0
        %v2032 = vsel %vm1508, %v1983, 0
        %v2035 = vsel %vm1508, %v1984, 0
        %v2038 = vsel %vm1508, %v1985, 0
        %v2041 = vsel %vm1508, %v1986, 0
        %v2044 = vsel %vm1508, %v1987, 0
        %v2047 = vsel %vm1508, %v1988, 0
        %vm2049 = vcmask 1043456
        %v2051 = vsel %vm2049, %v687, 0
        %2053 = vmatpush.msra.mxu0 0.0
        %2054 = vmatpush.msra.mxu0 0.0
        %2055 = vmatpush.msra.mxu0 0.0
        %2056 = vmatpush.msra.mxu0 0.0
        %2057 = vmatpush.msra.mxu0 0.0
        %2058 = vmatpush.msra.mxu0 0.0
        %2059 = vmatpush.msra.mxu0 0.0
        %2060 = vmatpush.msra.mxu0 0.0
        %2061 = vmatpush.msra.mxu0 0.0
        %2062 = vmatpush.msra.mxu0 0.0
        %2063 = vmatpush.msra.mxu0 0.0
        %2064 = vmatpush.msra.mxu0 0.0
        %2065 = vmatpush.msra.mxu0 0.0
        %2066 = vmatpush.msra.mxu0 0.0
        %2067 = vmatpush.msra.mxu0 0.0
        %2068 = vmatpush.msra.mxu0 %v2051
        %2069 = vmatmul.f32.gmra.mxu0 %v1990
        %v2070 = vpop.f32.mrf.mxu0
        %v2071 = vadd.f32 0.0, %v2070
        %2072 = vmatmul.f32.gmra.mxu0 %v1993
        %v2073 = vpop.f32.mrf.mxu0
        %v2074 = vadd.f32 0.0, %v2073
        %2075 = vmatmul.f32.gmra.mxu0 %v1996
        %v2076 = vpop.f32.mrf.mxu0
        %v2077 = vadd.f32 0.0, %v2076
        %2078 = vmatmul.f32.gmra.mxu0 %v1999
        %v2079 = vpop.f32.mrf.mxu0
        %v2080 = vadd.f32 0.0, %v2079
        %2081 = vmatmul.f32.gmra.mxu0 %v2002
        %v2082 = vpop.f32.mrf.mxu0
        %v2083 = vadd.f32 0.0, %v2082
        %2084 = vmatmul.f32.gmra.mxu0 %v2005
        %v2085 = vpop.f32.mrf.mxu0
        %v2086 = vadd.f32 0.0, %v2085
        %2087 = vmatmul.f32.gmra.mxu0 %v2008
        %v2088 = vpop.f32.mrf.mxu0
        %v2089 = vadd.f32 0.0, %v2088
        %2090 = vmatmul.f32.gmra.mxu0 %v2011
        %v2091 = vpop.f32.mrf.mxu0
        %v2092 = vadd.f32 0.0, %v2091
        %2093 = vmatmul.f32.gmra.mxu0 %v2014
        %v2094 = vpop.f32.mrf.mxu0
        %v2095 = vadd.f32 0.0, %v2094
        %2096 = vmatmul.f32.gmra.mxu0 %v2017
        %v2097 = vpop.f32.mrf.mxu0
        %v2098 = vadd.f32 0.0, %v2097
        %2099 = vmatmul.f32.gmra.mxu0 %v2020
        %v2100 = vpop.f32.mrf.mxu0
        %v2101 = vadd.f32 0.0, %v2100
        %2102 = vmatmul.f32.gmra.mxu0 %v2023
        %v2103 = vpop.f32.mrf.mxu0
        %v2104 = vadd.f32 0.0, %v2103
        %2105 = vmatmul.f32.gmra.mxu0 %v2026
        %v2106 = vpop.f32.mrf.mxu0
        %v2107 = vadd.f32 0.0, %v2106
        %2108 = vmatmul.f32.gmra.mxu0 %v2029
        %v2109 = vpop.f32.mrf.mxu0
        %v2110 = vadd.f32 0.0, %v2109
        %2111 = vmatmul.f32.gmra.mxu0 %v2032
        %v2112 = vpop.f32.mrf.mxu0
        %v2113 = vadd.f32 0.0, %v2112
        %2114 = vmatmul.f32.gmra.mxu0 %v2035
        %v2115 = vpop.f32.mrf.mxu0
        %v2116 = vadd.f32 0.0, %v2115
        %2117 = vmatmul.f32.gmra.mxu0 %v2038
        %v2118 = vpop.f32.mrf.mxu0
        %v2119 = vadd.f32 0.0, %v2118
        %2120 = vmatmul.f32.gmra.mxu0 %v2041
        %v2121 = vpop.f32.mrf.mxu0
        %v2122 = vadd.f32 0.0, %v2121
        %2123 = vmatmul.f32.gmra.mxu0 %v2044
        %v2124 = vpop.f32.mrf.mxu0
        %v2125 = vadd.f32 0.0, %v2124
        %2126 = vmatmul.f32.gmra.mxu0 %v2047
        %v2127 = vpop.f32.mrf.mxu0
        %v2128 = vadd.f32 0.0, %v2127
        %2129 = vdwg.mxu0
        %v2130 = vmul.f32 %v2071, %v1058
        %v2131 = vmul.f32 %v2074, %v1060
        %v2132 = vmul.f32 %v2077, %v1063
        %v2133 = vmul.f32 %v2080, %v1065
        %v2134 = vmul.f32 %v2083, %v1068
        %v2135 = vmul.f32 %v2086, %v1070
        %v2136 = vmul.f32 %v2089, %v1073
        %v2137 = vmul.f32 %v2092, %v1075
        %v2138 = vmul.f32 %v2095, %v1078
        %v2139 = vmul.f32 %v2098, %v1080
        %v2140 = vmul.f32 %v2101, %v1083
        %v2141 = vmul.f32 %v2104, %v1085
        %v2142 = vmul.f32 %v2107, %v1088
        %v2143 = vmul.f32 %v2110, %v1090
        %v2144 = vmul.f32 %v2113, %v1093
        %v2145 = vmul.f32 %v2116, %v1095
        %v2146 = vmul.f32 %v2119, %v1098
        %v2147 = vmul.f32 %v2122, %v1100
        %v2148 = vmul.f32 %v2125, %v1103
        %v2149 = vmul.f32 %v2128, %v1105
        %v2150 = vsel %vm818, %v2130, 0.0
        %v2151 = vrot.slane %v2150, 4
        %v2152 = vadd.f32 %v2150, %v2151
        %v2153 = vrot.slane %v2152, 2
        %v2154 = vadd.f32 %v2152, %v2153
        %v2155 = vrot.slane %v2154, 1
        %v2156 = vadd.f32 %v2154, %v2155
        %v2157 = vsel %vm818, %v2131, 0.0
        %v2158 = vrot.slane %v2157, 4
        %v2159 = vadd.f32 %v2157, %v2158
        %v2160 = vrot.slane %v2159, 2
        %v2161 = vadd.f32 %v2159, %v2160
        %v2162 = vrot.slane %v2161, 1
        %v2163 = vadd.f32 %v2161, %v2162
        %v2164 = vsel %vm818, %v2132, 0.0
        %v2165 = vrot.slane %v2164, 4
        %v2166 = vadd.f32 %v2164, %v2165
        %v2167 = vrot.slane %v2166, 2
        %v2168 = vadd.f32 %v2166, %v2167
        %v2169 = vrot.slane %v2168, 1
        %v2170 = vadd.f32 %v2168, %v2169
        %v2171 = vsel %vm818, %v2133, 0.0
        %v2172 = vrot.slane %v2171, 4
        %v2173 = vadd.f32 %v2171, %v2172
        %v2174 = vrot.slane %v2173, 2
        %v2175 = vadd.f32 %v2173, %v2174
        %v2176 = vrot.slane %v2175, 1
        %v2177 = vadd.f32 %v2175, %v2176
        %v2178 = vsel %vm818, %v2134, 0.0
        %v2179 = vrot.slane %v2178, 4
        %v2180 = vadd.f32 %v2178, %v2179
        %v2181 = vrot.slane %v2180, 2
        %v2182 = vadd.f32 %v2180, %v2181
        %v2183 = vrot.slane %v2182, 1
        %v2184 = vadd.f32 %v2182, %v2183
        %v2185 = vsel %vm818, %v2135, 0.0
        %v2186 = vrot.slane %v2185, 4
        %v2187 = vadd.f32 %v2185, %v2186
        %v2188 = vrot.slane %v2187, 2
        %v2189 = vadd.f32 %v2187, %v2188
        %v2190 = vrot.slane %v2189, 1
        %v2191 = vadd.f32 %v2189, %v2190
        %v2192 = vsel %vm818, %v2136, 0.0
        %v2193 = vrot.slane %v2192, 4
        %v2194 = vadd.f32 %v2192, %v2193
        %v2195 = vrot.slane %v2194, 2
        %v2196 = vadd.f32 %v2194, %v2195
        %v2197 = vrot.slane %v2196, 1
        %v2198 = vadd.f32 %v2196, %v2197
        %v2199 = vsel %vm818, %v2137, 0.0
        %v2200 = vrot.slane %v2199, 4
        %v2201 = vadd.f32 %v2199, %v2200
        %v2202 = vrot.slane %v2201, 2
        %v2203 = vadd.f32 %v2201, %v2202
        %v2204 = vrot.slane %v2203, 1
        %v2205 = vadd.f32 %v2203, %v2204
        %v2206 = vsel %vm818, %v2138, 0.0
        %v2207 = vrot.slane %v2206, 4
        %v2208 = vadd.f32 %v2206, %v2207
        %v2209 = vrot.slane %v2208, 2
        %v2210 = vadd.f32 %v2208, %v2209
        %v2211 = vrot.slane %v2210, 1
        %v2212 = vadd.f32 %v2210, %v2211
        %v2213 = vsel %vm818, %v2139, 0.0
        %v2214 = vrot.slane %v2213, 4
        %v2215 = vadd.f32 %v2213, %v2214
        %v2216 = vrot.slane %v2215, 2
        %v2217 = vadd.f32 %v2215, %v2216
        %v2218 = vrot.slane %v2217, 1
        %v2219 = vadd.f32 %v2217, %v2218
        %v2220 = vsel %vm818, %v2140, 0.0
        %v2221 = vrot.slane %v2220, 4
        %v2222 = vadd.f32 %v2220, %v2221
        %v2223 = vrot.slane %v2222, 2
        %v2224 = vadd.f32 %v2222, %v2223
        %v2225 = vrot.slane %v2224, 1
        %v2226 = vadd.f32 %v2224, %v2225
        %v2227 = vsel %vm818, %v2141, 0.0
        %v2228 = vrot.slane %v2227, 4
        %v2229 = vadd.f32 %v2227, %v2228
        %v2230 = vrot.slane %v2229, 2
        %v2231 = vadd.f32 %v2229, %v2230
        %v2232 = vrot.slane %v2231, 1
        %v2233 = vadd.f32 %v2231, %v2232
        %v2234 = vsel %vm818, %v2142, 0.0
        %v2235 = vrot.slane %v2234, 4
        %v2236 = vadd.f32 %v2234, %v2235
        %v2237 = vrot.slane %v2236, 2
        %v2238 = vadd.f32 %v2236, %v2237
        %v2239 = vrot.slane %v2238, 1
        %v2240 = vadd.f32 %v2238, %v2239
        %v2241 = vsel %vm818, %v2143, 0.0
        %v2242 = vrot.slane %v2241, 4
        %v2243 = vadd.f32 %v2241, %v2242
        %v2244 = vrot.slane %v2243, 2
        %v2245 = vadd.f32 %v2243, %v2244
        %v2246 = vrot.slane %v2245, 1
        %v2247 = vadd.f32 %v2245, %v2246
        %v2248 = vsel %vm818, %v2144, 0.0
        %v2249 = vrot.slane %v2248, 4
        %v2250 = vadd.f32 %v2248, %v2249
        %v2251 = vrot.slane %v2250, 2
        %v2252 = vadd.f32 %v2250, %v2251
        %v2253 = vrot.slane %v2252, 1
        %v2254 = vadd.f32 %v2252, %v2253
        %v2255 = vsel %vm818, %v2145, 0.0
        %v2256 = vrot.slane %v2255, 4
        %v2257 = vadd.f32 %v2255, %v2256
        %v2258 = vrot.slane %v2257, 2
        %v2259 = vadd.f32 %v2257, %v2258
        %v2260 = vrot.slane %v2259, 1
        %v2261 = vadd.f32 %v2259, %v2260
        %v2262 = vsel %vm818, %v2146, 0.0
        %v2263 = vrot.slane %v2262, 4
        %v2264 = vadd.f32 %v2262, %v2263
        %v2265 = vrot.slane %v2264, 2
        %v2266 = vadd.f32 %v2264, %v2265
        %v2267 = vrot.slane %v2266, 1
        %v2268 = vadd.f32 %v2266, %v2267
        %v2269 = vsel %vm818, %v2147, 0.0
        %v2270 = vrot.slane %v2269, 4
        %v2271 = vadd.f32 %v2269, %v2270
        %v2272 = vrot.slane %v2271, 2
        %v2273 = vadd.f32 %v2271, %v2272
        %v2274 = vrot.slane %v2273, 1
        %v2275 = vadd.f32 %v2273, %v2274
        %v2276 = vsel %vm818, %v2148, 0.0
        %v2277 = vrot.slane %v2276, 4
        %v2278 = vadd.f32 %v2276, %v2277
        %v2279 = vrot.slane %v2278, 2
        %v2280 = vadd.f32 %v2278, %v2279
        %v2281 = vrot.slane %v2280, 1
        %v2282 = vadd.f32 %v2280, %v2281
        %v2283 = vsel %vm818, %v2149, 0.0
        %v2284 = vrot.slane %v2283, 4
        %v2285 = vadd.f32 %v2283, %v2284
        %v2286 = vrot.slane %v2285, 2
        %v2287 = vadd.f32 %v2285, %v2286
        %v2288 = vrot.slane %v2287, 1
        %v2289 = vadd.f32 %v2287, %v2288
        %s2290 = scalar_lea.vmem %s4, 16
        %v2291 = vld [vmem:[%s2290] sm:$0xf]
        %v2292 = vld [vmem:[%s2290 + $0x4] sm:$0xf]
        %v2293 = vld [vmem:[%s2290 + $0x8] sm:$0xf]
        %v2294 = vld [vmem:[%s2290 + $0xc] sm:$0xf]
        %v2295 = vpack.c.bf16 %v2156, %v2156
        %v2296 = vpack.c.bf16 %v2163, %v2163
        %v2297 = vpack.c.bf16 %v2170, %v2170
        %v2298 = vpack.c.bf16 %v2177, %v2177
        %v2299 = vpack.c.bf16 %v2184, %v2184
        %v2300 = vpack.c.bf16 %v2191, %v2191
        %v2301 = vpack.c.bf16 %v2198, %v2198
        %v2302 = vpack.c.bf16 %v2205, %v2205
        %v2303 = vpack.c.bf16 %v2212, %v2212
        %v2304 = vpack.c.bf16 %v2219, %v2219
        %v2305 = vpack.c.bf16 %v2226, %v2226
        %v2306 = vpack.c.bf16 %v2233, %v2233
        %v2307 = vpack.c.bf16 %v2240, %v2240
        %v2308 = vpack.c.bf16 %v2247, %v2247
        %v2309 = vpack.c.bf16 %v2254, %v2254
        %v2310 = vpack.c.bf16 %v2261, %v2261
        %v2311 = vpack.c.bf16 %v2268, %v2268
        %v2312 = vpack.c.bf16 %v2275, %v2275
        %v2313 = vpack.c.bf16 %v2282, %v2282
        %v2314 = vpack.c.bf16 %v2289, %v2289
        %v2315 = vperm.slane %v688, 3
        %v2336 = vunpack.c.l.b16 %v2295
        %v2337 = vunpack.c.l.b16 %v2296
        %v2338 = vunpack.c.l.b16 %v2297
        %v2339 = vunpack.c.l.b16 %v2298
        %v2340 = vunpack.c.l.b16 %v2299
        %v2341 = vunpack.c.l.b16 %v2300
        %v2342 = vunpack.c.l.b16 %v2301
        %v2343 = vunpack.c.l.b16 %v2302
        %v2344 = vunpack.c.l.b16 %v2303
        %v2345 = vunpack.c.l.b16 %v2304
        %v2346 = vunpack.c.l.b16 %v2305
        %v2347 = vunpack.c.l.b16 %v2306
        %v2348 = vunpack.c.l.b16 %v2307
        %v2349 = vunpack.c.l.b16 %v2308
        %v2350 = vunpack.c.l.b16 %v2309
        %v2351 = vunpack.c.l.b16 %v2310
        %v2352 = vunpack.c.l.b16 %v2311
        %v2353 = vunpack.c.l.b16 %v2312
        %v2354 = vunpack.c.l.b16 %v2313
        %v2355 = vunpack.c.l.b16 %v2314
        %v2356 = vsel %vm706, %v2337, %v2336
        %v2357 = vsel %vm710, %v2338, %v2356
        %v2358 = vsel %vm714, %v2339, %v2357
        %vm2359 = vcmask 1044484
        %v2360 = vsel %vm2359, %v2340, %v2358
        %vm2361 = vcmask 1045509
        %v2362 = vsel %vm2361, %v2341, %v2360
        %vm2363 = vcmask 1046534
        %v2364 = vsel %vm2363, %v2342, %v2362
        %vm2365 = vcmask 1047559
        %v2366 = vsel %vm2365, %v2343, %v2364
        %v2367 = vsel %vm706, %v2345, %v2344
        %v2368 = vsel %vm710, %v2346, %v2367
        %v2369 = vsel %vm714, %v2347, %v2368
        %v2370 = vsel %vm2359, %v2348, %v2369
        %v2371 = vsel %vm2361, %v2349, %v2370
        %v2372 = vsel %vm2363, %v2350, %v2371
        %v2373 = vsel %vm2365, %v2351, %v2372
        %v2374 = vsel %vm706, %v2353, %v2352
        %v2375 = vsel %vm710, %v2354, %v2374
        %v2376 = vsel %vm714, %v2355, %v2375
        %v2377 = vpack.c.b16 %v2373, %v2366
        %v2378 = vpack.c.b16 %v2376, %v2376
        %v2383 = vunpack.c.l.b16 %v2291
        %v2384 = vunpack.c.l.b16 %v2292
        %v2385 = vunpack.c.l.b16 %v2293
        %v2386 = vunpack.c.l.b16 %v2294
        %v2387 = vpack.c.b16 %v2384, %v2383
        %v2388 = vpack.c.b16 %v2386, %v2385
        %v2392 = vsel %vm818, %v2377, 0
        %v2395 = vsel %vm818, %v2378, 0
        %2397 = vmatpush.bf16.msra.mxu0 0
        %2398 = vmatpush.bf16.msra.mxu0 0
        %2399 = vmatpush.bf16.msra.mxu0 0
        %2400 = vmatpush.bf16.msra.mxu0 0
        %2401 = vmatpush.bf16.msra.mxu0 0
        %2402 = vmatpush.bf16.msra.mxu0 0
        %2403 = vmatpush.bf16.msra.mxu0 %v2388
        %2404 = vmatpush.bf16.msra.mxu0 %v2387
        %2405 = vmatmul.bf16.gmra.mxu0 %v2392
        %v2406 = vpop.f32.mrf.mxu0
        %v2407 = vadd.f32 %v2315, %v2406
        %v2408 = vpop.f32.mrf.mxu0
        %v2409 = vadd.f32 %v2315, %v2408
        %2410 = vmatmul.bf16.gmra.mxu0 %v2395
        %v2411 = vpop.f32.mrf.mxu0
        %v2412 = vadd.f32 %v2315, %v2411
        %v2413 = vpop.f32.mrf.mxu0
        %2414 = vdwg.mxu0
        %2425 = vst [vmem:[#allocation1] ss:$4 sm:$0xff] %v746
        %s2426 = scalar_lea.vmem [#allocation1], 1
        %2427 = vst [vmem:[%s2426] ss:$4 sm:$0xff] %v747
        %s2428 = scalar_lea.vmem [#allocation1], 2
        %2429 = vst [vmem:[%s2428] ss:$4 sm:$0xff] %v748
        %s2430 = scalar_lea.vmem [#allocation1], 3
        %2431 = vst [vmem:[%s2430] ss:$4 sm:$0xff] %v749
        %s2432 = scalar_lea.vmem [#allocation1], 32
        %2433 = vst [vmem:[%s2432] ss:$4 sm:$0xff] %v750
        %s2434 = scalar_lea.vmem [#allocation1], 33
        %2435 = vst [vmem:[%s2434] ss:$4 sm:$0xff] %v751
        %s2436 = scalar_lea.vmem [#allocation1], 34
        %2437 = vst [vmem:[%s2436] ss:$4 sm:$0xff] %v752
        %s2438 = scalar_lea.vmem [#allocation1], 35
        %2439 = vst [vmem:[%s2438] ss:$4 sm:$0xff] %v753
        %v2440 = vld.sshfl [vmem:[#allocation1] sm:$0xff pattern:$0x73625140]
        %v2441 = vld.sshfl [vmem:[#allocation1 + $0x20] sm:$0xff pattern:$0x73625140]
        %2442 = vst [vmem:[#allocation1] ss:$4 sm:$0xff] %v754
        %2443 = vst [vmem:[%s2426] ss:$4 sm:$0xff] %v755
        %v2444 = vld.sshfl [vmem:[#allocation1] sm:$0xff pattern:$0x73625140]
        %v2448 = vadd.f32 %v2407, %v2440
        %v2449 = vadd.f32 %v2409, %v2441
        %v2450 = vadd.f32 %v2412, %v2444
        %v2451 = vsel %vm818, %v2448, 0.0
        %2452 = vadd.xlane.f32.xlu0 %v2451
        %v2453 = vpop.xlane.xlu0 %2452
        %v2454 = vsel %vm818, %v2449, 0.0
        %2455 = vadd.xlane.f32.xlu0 %v2454
        %v2456 = vpop.xlane.xlu0 %2455
        %vm2457 = vcmask 257024
        %v2458 = vsel %vm2457, %v2450, 0.0
        %2459 = vadd.xlane.f32.xlu0 %v2458
        %v2460 = vpop.xlane.xlu0 %2459
        %v2461 = vrcp.pop 32.0
        %v2462 = vmul.f32 32.0, %v2461
        %v2463 = vsub.f32 1.0, %v2462
        %v2464 = vmul.f32 %v2461, %v2463
        %v2465 = vadd.f32 %v2461, %v2464
        %vm2466 = vweird.f32 %v2461
        %v2467 = vsel %vm2466, %v2461, %v2465
        %v2468 = vmul.f32 %v2453, %v2467
        %v2469 = vmul.f32 %v2456, %v2467
        %v2470 = vmul.f32 %v2460, %v2467
        %v2471 = vsub.f32 %v2448, %v2468
        %v2472 = vsub.f32 %v2449, %v2469
        %v2473 = vsub.f32 %v2450, %v2470
        %v2474 = vmul.f32 %v2471, %v2471
        %v2475 = vmul.f32 %v2472, %v2472
        %v2476 = vmul.f32 %v2473, %v2473
        %v2477 = vsel %vm818, %v2474, 0.0
        %2478 = vadd.xlane.f32.xlu0 %v2477
        %v2479 = vpop.xlane.xlu0 %2478
        %v2480 = vsel %vm818, %v2475, 0.0
        %2481 = vadd.xlane.f32.xlu0 %v2480
        %v2482 = vpop.xlane.xlu0 %2481
        %v2483 = vsel %vm2457, %v2476, 0.0
        %2484 = vadd.xlane.f32.xlu0 %v2483
        %v2485 = vpop.xlane.xlu0 %2484
        %v2486 = vmul.f32 %v2479, %v2467
        %v2487 = vmul.f32 %v2482, %v2467
        %v2488 = vmul.f32 %v2485, %v2467
        %v2489 = vadd.f32 %v2486, 1e-05
        %v2490 = vadd.f32 %v2487, 1e-05
        %v2491 = vadd.f32 %v2488, 1e-05
        %v2492 = vrsqrt.pop %v2489
        %v2493 = vmul.f32 %v2492, %v2489
        %v2494 = vmul.f32 %v2493, %v2492
        %v2495 = vmul.f32 0.5, %v2494
        %v2496 = vsub.f32 1.5, %v2495
        %v2497 = vmul.f32 %v2492, %v2496
        %vm2498 = vweird.f32 %v2489
        %vm2499 = vweird.f32 %v2492
        %vm2500 = vmor %vm2498, %vm2499
        %v2501 = vsel %vm2500, %v2492, %v2497
        %v2502 = vrsqrt.pop %v2490
        %v2503 = vmul.f32 %v2502, %v2490
        %v2504 = vmul.f32 %v2503, %v2502
        %v2505 = vmul.f32 0.5, %v2504
        %v2506 = vsub.f32 1.5, %v2505
        %v2507 = vmul.f32 %v2502, %v2506
        %vm2508 = vweird.f32 %v2490
        %vm2509 = vweird.f32 %v2502
        %vm2510 = vmor %vm2508, %vm2509
        %v2511 = vsel %vm2510, %v2502, %v2507
        %v2512 = vrsqrt.pop %v2491
        %v2513 = vmul.f32 %v2512, %v2491
        %v2514 = vmul.f32 %v2513, %v2512
        %v2515 = vmul.f32 0.5, %v2514
        %v2516 = vsub.f32 1.5, %v2515
        %v2517 = vmul.f32 %v2512, %v2516
        %vm2518 = vweird.f32 %v2491
        %vm2519 = vweird.f32 %v2512
        %vm2520 = vmor %vm2518, %vm2519
        %v2521 = vsel %vm2520, %v2512, %v2517
        %v2522 = vmul.f32 %v2471, %v2501
        %v2523 = vmul.f32 %v2472, %v2511
        %v2524 = vmul.f32 %v2473, %v2521
        %v2525 = vperm.slane %v688, 4
        %v2526 = vmul.f32 %v2522, %v2525
        %v2527 = vmul.f32 %v2523, %v2525
        %v2528 = vmul.f32 %v2524, %v2525
        %v2529 = vperm.slane %v688, 5
        %v2530 = vadd.f32 %v2526, %v2529
        %v2531 = vadd.f32 %v2527, %v2529
        %v2532 = vadd.f32 %v2528, %v2529
        %v2533 = vld [vmem:[%s6] sm:$0xf]
        %v2534 = vld [vmem:[%s6 + $0x4] sm:$0xf]
        %v2535 = vld [vmem:[%s6 + $0x8] sm:$0xf]
        %v2536 = vld [vmem:[%s6 + $0xc] sm:$0xf]
        %v2537 = vpack.c.bf16 %v2531, %v2530
        %v2538 = vpack.c.bf16 %v2532, %v2532
        %v2539 = vld [vmem:[#allocation2] sm:$0x1]
        %v2541 = vperm.slane %v2539, 0
        %v2547 = vunpack.c.l.b16 %v2533
        %v2548 = vunpack.c.l.b16 %v2534
        %v2549 = vunpack.c.l.b16 %v2535
        %v2550 = vunpack.c.l.b16 %v2536
        %v2551 = vpack.c.b16 %v2548, %v2547
        %v2552 = vpack.c.b16 %v2550, %v2549
        %v2556 = vsel %vm818, %v2537, 0
        %v2559 = vsel %vm818, %v2538, 0
        %2561 = vmatpush.bf16.msra.mxu0 0
        %2562 = vmatpush.bf16.msra.mxu0 0
        %2563 = vmatpush.bf16.msra.mxu0 0
        %2564 = vmatpush.bf16.msra.mxu0 0
        %2565 = vmatpush.bf16.msra.mxu0 0
        %2566 = vmatpush.bf16.msra.mxu0 0
        %2567 = vmatpush.bf16.msra.mxu0 %v2552
        %2568 = vmatpush.bf16.msra.mxu0 %v2551
        %2569 = vmatmul.bf16.gmra.mxu0 %v2556
        %v2570 = vpop.f32.mrf.mxu0
        %v2571 = vadd.f32 %v2541, %v2570
        %v2572 = vpop.f32.mrf.mxu0
        %v2573 = vadd.f32 %v2541, %v2572
        %2574 = vmatmul.bf16.gmra.mxu0 %v2559
        %v2575 = vpop.f32.mrf.mxu0
        %v2576 = vadd.f32 %v2541, %v2575
        %v2577 = vpop.f32.mrf.mxu0
        %2578 = vdwg.mxu0
        %v2579 = vmax.f32 %v2571, 0.0
        %v2580 = vmax.f32 %v2573, 0.0
        %v2581 = vmax.f32 %v2576, 0.0
        %v2582 = vld [vmem:[%s7] sm:$0xf]
        %v2583 = vld [vmem:[%s7 + $0x4] sm:$0xf]
        %v2584 = vld [vmem:[%s7 + $0x8] sm:$0xf]
        %v2585 = vld [vmem:[%s7 + $0xc] sm:$0xf]
        %v2586 = vld [vmem:[%s7 + $0x10] sm:$0xf]
        %v2587 = vld [vmem:[%s7 + $0x14] sm:$0xf]
        %v2588 = vld [vmem:[%s7 + $0x18] sm:$0xf]
        %v2589 = vld [vmem:[%s7 + $0x1c] sm:$0xf]
        %v2590 = vld [vmem:[%s7 + $0x20] sm:$0xf]
        %v2591 = vld [vmem:[%s7 + $0x24] sm:$0xf]
        %v2592 = vld [vmem:[%s7 + $0x28] sm:$0xf]
        %v2593 = vld [vmem:[%s7 + $0x2c] sm:$0xf]
        %v2594 = vld [vmem:[%s7 + $0x30] sm:$0xf]
        %v2595 = vld [vmem:[%s7 + $0x34] sm:$0xf]
        %v2596 = vld [vmem:[%s7 + $0x38] sm:$0xf]
        %v2597 = vld [vmem:[%s7 + $0x3c] sm:$0xf]
        %v2598 = vpack.c.bf16 %v2580, %v2579
        %v2599 = vpack.c.bf16 %v2581, %v2581
        %v2600 = vperm.slane %v688, 6
        %v2617 = vunpack.c.l.b16 %v2582
        %v2618 = vunpack.c.l.b16 %v2583
        %v2619 = vunpack.c.l.b16 %v2584
        %v2620 = vunpack.c.l.b16 %v2585
        %v2621 = vunpack.c.l.b16 %v2586
        %v2622 = vunpack.c.l.b16 %v2587
        %v2623 = vunpack.c.l.b16 %v2588
        %v2624 = vunpack.c.l.b16 %v2589
        %v2625 = vunpack.c.l.b16 %v2590
        %v2626 = vunpack.c.l.b16 %v2591
        %v2627 = vunpack.c.l.b16 %v2592
        %v2628 = vunpack.c.l.b16 %v2593
        %v2629 = vunpack.c.l.b16 %v2594
        %v2630 = vunpack.c.l.b16 %v2595
        %v2631 = vunpack.c.l.b16 %v2596
        %v2632 = vunpack.c.l.b16 %v2597
        %v2633 = vpack.c.b16 %v2618, %v2617
        %v2634 = vpack.c.b16 %v2620, %v2619
        %v2635 = vpack.c.b16 %v2622, %v2621
        %v2636 = vpack.c.b16 %v2624, %v2623
        %v2637 = vpack.c.b16 %v2626, %v2625
        %v2638 = vpack.c.b16 %v2628, %v2627
        %v2639 = vpack.c.b16 %v2630, %v2629
        %v2640 = vpack.c.b16 %v2632, %v2631
        %2649 = vmatpush.bf16.msra.mxu0 %v2640
        %2650 = vmatpush.bf16.msra.mxu0 %v2639
        %2651 = vmatpush.bf16.msra.mxu0 %v2638
        %2652 = vmatpush.bf16.msra.mxu0 %v2637
        %2653 = vmatpush.bf16.msra.mxu0 %v2636
        %2654 = vmatpush.bf16.msra.mxu0 %v2635
        %2655 = vmatpush.bf16.msra.mxu0 %v2634
        %2656 = vmatpush.bf16.msra.mxu0 %v2633
        %2657 = vmatmul.bf16.gmra.mxu0 %v2598
        %v2658 = vpop.f32.mrf.mxu0
        %v2659 = vadd.f32 %v2600, %v2658
        %v2660 = vpop.f32.mrf.mxu0
        %v2661 = vadd.f32 %v2600, %v2660
        %2662 = vmatmul.bf16.gmra.mxu0 %v2599
        %v2663 = vpop.f32.mrf.mxu0
        %v2664 = vadd.f32 %v2600, %v2663
        %v2665 = vpop.f32.mrf.mxu0
        %2666 = vdwg.mxu0
        %v2667 = vadd.f32 %v2659, %v2530
        %v2668 = vadd.f32 %v2661, %v2531
        %v2669 = vadd.f32 %v2664, %v2532
        %v2670 = vsel %vm818, %v2667, 0.0
        %2671 = vadd.xlane.f32.xlu0 %v2670
        %v2672 = vpop.xlane.xlu0 %2671
        %v2673 = vsel %vm818, %v2668, 0.0
        %2674 = vadd.xlane.f32.xlu0 %v2673
        %v2675 = vpop.xlane.xlu0 %2674
        %v2676 = vsel %vm2457, %v2669, 0.0
        %2677 = vadd.xlane.f32.xlu0 %v2676
        %v2678 = vpop.xlane.xlu0 %2677
        %v2679 = vmul.f32 %v2672, %v2467
        %v2680 = vmul.f32 %v2675, %v2467
        %v2681 = vmul.f32 %v2678, %v2467
        %v2682 = vsub.f32 %v2667, %v2679
        %v2683 = vsub.f32 %v2668, %v2680
        %v2684 = vsub.f32 %v2669, %v2681
        %v2685 = vmul.f32 %v2682, %v2682
        %v2686 = vmul.f32 %v2683, %v2683
        %v2687 = vmul.f32 %v2684, %v2684
        %v2688 = vsel %vm818, %v2685, 0.0
        %2689 = vadd.xlane.f32.xlu0 %v2688
        %v2690 = vpop.xlane.xlu0 %2689
        %v2691 = vsel %vm818, %v2686, 0.0
        %2692 = vadd.xlane.f32.xlu0 %v2691
        %v2693 = vpop.xlane.xlu0 %2692
        %v2694 = vsel %vm2457, %v2687, 0.0
        %2695 = vadd.xlane.f32.xlu0 %v2694
        %v2696 = vpop.xlane.xlu0 %2695
        %v2697 = vmul.f32 %v2690, %v2467
        %v2698 = vmul.f32 %v2693, %v2467
        %v2699 = vmul.f32 %v2696, %v2467
        %v2700 = vadd.f32 %v2697, 1e-05
        %v2701 = vadd.f32 %v2698, 1e-05
        %v2702 = vadd.f32 %v2699, 1e-05
        %v2703 = vrsqrt.pop %v2700
        %v2704 = vmul.f32 %v2703, %v2700
        %v2705 = vmul.f32 %v2704, %v2703
        %v2706 = vmul.f32 0.5, %v2705
        %v2707 = vsub.f32 1.5, %v2706
        %v2708 = vmul.f32 %v2703, %v2707
        %vm2709 = vweird.f32 %v2700
        %vm2710 = vweird.f32 %v2703
        %vm2711 = vmor %vm2709, %vm2710
        %v2712 = vsel %vm2711, %v2703, %v2708
        %v2713 = vrsqrt.pop %v2701
        %v2714 = vmul.f32 %v2713, %v2701
        %v2715 = vmul.f32 %v2714, %v2713
        %v2716 = vmul.f32 0.5, %v2715
        %v2717 = vsub.f32 1.5, %v2716
        %v2718 = vmul.f32 %v2713, %v2717
        %vm2719 = vweird.f32 %v2701
        %vm2720 = vweird.f32 %v2713
        %vm2721 = vmor %vm2719, %vm2720
        %v2722 = vsel %vm2721, %v2713, %v2718
        %v2723 = vrsqrt.pop %v2702
        %v2724 = vmul.f32 %v2723, %v2702
        %v2725 = vmul.f32 %v2724, %v2723
        %v2726 = vmul.f32 0.5, %v2725
        %v2727 = vsub.f32 1.5, %v2726
        %v2728 = vmul.f32 %v2723, %v2727
        %vm2729 = vweird.f32 %v2702
        %vm2730 = vweird.f32 %v2723
        %vm2731 = vmor %vm2729, %vm2730
        %v2732 = vsel %vm2731, %v2723, %v2728
        %v2733 = vmul.f32 %v2682, %v2712
        %v2734 = vmul.f32 %v2683, %v2722
        %v2735 = vmul.f32 %v2684, %v2732
        %v2736 = vperm.slane %v688, 7
        %v2737 = vmul.f32 %v2733, %v2736
        %v2738 = vmul.f32 %v2734, %v2736
        %v2739 = vmul.f32 %v2735, %v2736
        %v2740 = vperm.slane %v689, 0
        %v2741 = vadd.f32 %v2737, %v2740
        %v2742 = vadd.f32 %v2738, %v2740
        %v2743 = vadd.f32 %v2739, %v2740
        %s2744 = scalar_lea.vmem %s4, 32
        %v2745 = vld [vmem:[%s2744] sm:$0xf]
        %v2746 = vld [vmem:[%s2744 + $0x4] sm:$0xf]
        %v2747 = vld [vmem:[%s2744 + $0x8] sm:$0xf]
        %v2748 = vld [vmem:[%s2744 + $0xc] sm:$0xf]
        %v2749 = vpack.c.bf16 %v2742, %v2741
        %v2750 = vpack.c.bf16 %v2743, %v2743
        %v2751 = vperm.slane %v689, 1
        %v2756 = vunpack.c.l.b16 %v2745
        %v2757 = vunpack.c.l.b16 %v2746
        %v2758 = vunpack.c.l.b16 %v2747
        %v2759 = vunpack.c.l.b16 %v2748
        %v2760 = vpack.c.b16 %v2757, %v2756
        %v2761 = vpack.c.b16 %v2759, %v2758
        %v2765 = vsel %vm818, %v2749, 0
        %v2768 = vsel %vm818, %v2750, 0
        %2770 = vmatpush.bf16.msra.mxu0 0
        %2771 = vmatpush.bf16.msra.mxu0 0
        %2772 = vmatpush.bf16.msra.mxu0 0
        %2773 = vmatpush.bf16.msra.mxu0 0
        %2774 = vmatpush.bf16.msra.mxu0 0
        %2775 = vmatpush.bf16.msra.mxu0 0
        %2776 = vmatpush.bf16.msra.mxu0 %v2761
        %2777 = vmatpush.bf16.msra.mxu0 %v2760
        %2778 = vmatmul.bf16.gmra.mxu0 %v2765
        %v2779 = vpop.f32.mrf.mxu0
        %v2780 = vadd.f32 %v2751, %v2779
        %v2781 = vpop.f32.mrf.mxu0
        %v2782 = vadd.f32 %v2751, %v2781
        %2783 = vmatmul.bf16.gmra.mxu0 %v2768
        %v2784 = vpop.f32.mrf.mxu0
        %v2785 = vadd.f32 %v2751, %v2784
        %v2786 = vpop.f32.mrf.mxu0
        %2787 = vdwg.mxu0
        %v2788 = vmax.f32 %v2780, 0.0
        %v2789 = vmax.f32 %v2782, 0.0
        %v2790 = vmax.f32 %v2785, 0.0
        %v2791 = vadd.f32 %v2741, %v2788
        %v2792 = vadd.f32 %v2742, %v2789
        %v2793 = vadd.f32 %v2743, %v2790
        %v2794 = vsel %vm818, %v2791, 0.0
        %2795 = vadd.xlane.f32.xlu0 %v2794
        %v2796 = vpop.xlane.xlu0 %2795
        %v2797 = vsel %vm818, %v2792, 0.0
        %2798 = vadd.xlane.f32.xlu0 %v2797
        %v2799 = vpop.xlane.xlu0 %2798
        %v2800 = vsel %vm2457, %v2793, 0.0
        %2801 = vadd.xlane.f32.xlu0 %v2800
        %v2802 = vpop.xlane.xlu0 %2801
        %v2803 = vmul.f32 %v2796, %v2467
        %v2804 = vmul.f32 %v2799, %v2467
        %v2805 = vmul.f32 %v2802, %v2467
        %v2806 = vsub.f32 %v2791, %v2803
        %v2807 = vsub.f32 %v2792, %v2804
        %v2808 = vsub.f32 %v2793, %v2805
        %v2809 = vmul.f32 %v2806, %v2806
        %v2810 = vmul.f32 %v2807, %v2807
        %v2811 = vmul.f32 %v2808, %v2808
        %v2812 = vsel %vm818, %v2809, 0.0
        %2813 = vadd.xlane.f32.xlu0 %v2812
        %v2814 = vpop.xlane.xlu0 %2813
        %v2815 = vsel %vm818, %v2810, 0.0
        %2816 = vadd.xlane.f32.xlu0 %v2815
        %v2817 = vpop.xlane.xlu0 %2816
        %v2818 = vsel %vm2457, %v2811, 0.0
        %2819 = vadd.xlane.f32.xlu0 %v2818
        %v2820 = vpop.xlane.xlu0 %2819
        %v2821 = vmul.f32 %v2814, %v2467
        %v2822 = vmul.f32 %v2817, %v2467
        %v2823 = vmul.f32 %v2820, %v2467
        %v2824 = vadd.f32 %v2821, 1e-05
        %v2825 = vadd.f32 %v2822, 1e-05
        %v2826 = vadd.f32 %v2823, 1e-05
        %v2827 = vrsqrt.pop %v2824
        %v2828 = vmul.f32 %v2827, %v2824
        %v2829 = vmul.f32 %v2828, %v2827
        %v2830 = vmul.f32 0.5, %v2829
        %v2831 = vsub.f32 1.5, %v2830
        %v2832 = vmul.f32 %v2827, %v2831
        %vm2833 = vweird.f32 %v2824
        %vm2834 = vweird.f32 %v2827
        %vm2835 = vmor %vm2833, %vm2834
        %v2836 = vsel %vm2835, %v2827, %v2832
        %v2837 = vrsqrt.pop %v2825
        %v2838 = vmul.f32 %v2837, %v2825
        %v2839 = vmul.f32 %v2838, %v2837
        %v2840 = vmul.f32 0.5, %v2839
        %v2841 = vsub.f32 1.5, %v2840
        %v2842 = vmul.f32 %v2837, %v2841
        %vm2843 = vweird.f32 %v2825
        %vm2844 = vweird.f32 %v2837
        %vm2845 = vmor %vm2843, %vm2844
        %v2846 = vsel %vm2845, %v2837, %v2842
        %v2847 = vrsqrt.pop %v2826
        %v2848 = vmul.f32 %v2847, %v2826
        %v2849 = vmul.f32 %v2848, %v2847
        %v2850 = vmul.f32 0.5, %v2849
        %v2851 = vsub.f32 1.5, %v2850
        %v2852 = vmul.f32 %v2847, %v2851
        %vm2853 = vweird.f32 %v2826
        %vm2854 = vweird.f32 %v2847
        %vm2855 = vmor %vm2853, %vm2854
        %v2856 = vsel %vm2855, %v2847, %v2852
        %v2857 = vmul.f32 %v2806, %v2836
        %v2858 = vmul.f32 %v2807, %v2846
        %v2859 = vmul.f32 %v2808, %v2856
        %v2860 = vperm.slane %v689, 2
        %v2861 = vmul.f32 %v2857, %v2860
        %v2862 = vmul.f32 %v2858, %v2860
        %v2863 = vmul.f32 %v2859, %v2860
        %v2864 = vperm.slane %v689, 3
        %v2865 = vadd.f32 %v2861, %v2864
        %v2866 = vadd.f32 %v2862, %v2864
        %v2867 = vadd.f32 %v2863, %v2864
        %v2871 = vrot.slane %v2865, 2
        %v2872 = vrot.slane %v2865, 4
        %v2873 = vrot.slane %v2865, 6
        %v2874 = vrot.slane %v2866, 2
        %v2875 = vrot.slane %v2866, 4
        %v2876 = vrot.slane %v2866, 6
        %v2877 = vrot.slane %v2867, 2
        %2878 = vst [vmem:[#allocation1] ss:$4 sm:$0xff] %v2865
        %s2879 = scalar_lea.vmem [#allocation1], 1
        %2880 = vst [vmem:[%s2879] ss:$4 sm:$0xff] %v2871
        %s2881 = scalar_lea.vmem [#allocation1], 2
        %2882 = vst [vmem:[%s2881] ss:$4 sm:$0xff] %v2872
        %s2883 = scalar_lea.vmem [#allocation1], 3
        %2884 = vst [vmem:[%s2883] ss:$4 sm:$0xff] %v2873
        %s2885 = scalar_lea.vmem [#allocation1], 32
        %2886 = vst [vmem:[%s2885] ss:$4 sm:$0xff] %v2866
        %v2887 = vld.sshfl [vmem:[#allocation1] sm:$0xff pattern:$0x73625140]
        %v2888 = vld.sshfl [vmem:[#allocation1 + $0x20] sm:$0xff pattern:$0x73625140]
        %2889 = vst [vmem:[#allocation1] ss:$4 sm:$0xff] %v2874
        %2890 = vst [vmem:[%s2879] ss:$4 sm:$0xff] %v2875
        %2891 = vst [vmem:[%s2881] ss:$4 sm:$0xff] %v2876
        %2892 = vst [vmem:[%s2883] ss:$4 sm:$0xff] %v2867
        %2893 = vst [vmem:[%s2885] ss:$4 sm:$0xff] %v2877
        %v2894 = vld.sshfl [vmem:[#allocation1] sm:$0xff pattern:$0x73625140]
        %v2895 = vld.sshfl [vmem:[#allocation1 + $0x20] sm:$0xff pattern:$0x73625140]
        %2900 = vst.msk [vmem:[%s642] sm:$0xff] %vm818, %v2887
        %vm2901 = vcmask 254976
        %2902 = vst.msk [vmem:[%s642 + $0x8] sm:$0x3] %vm2901, %v2888
        %2903 = vst.msk [vmem:[%s642 + $0x10] sm:$0xff] %vm818, %v2894
        %2904 = vst.msk [vmem:[%s642 + $0x18] sm:$0x3] %vm2901, %v2895
        %v2905 = vld [vmem:[%s13] sm:$0xff]
        %v2906 = vld [vmem:[%s13 + $0x8] sm:$0x1f]
        %v2907 = vld [vmem:[%s635] sm:$0xf]
        %v2908 = vld [vmem:[%s635 + $0x4] sm:$0x1]
        %v2909 = vld [vmem:[%s635 + $0x8] sm:$0xf]
        %v2910 = vld [vmem:[%s635 + $0xc] sm:$0x1]
        %v2915 = vrot.slane %v2907, 3
        %v2916 = vrot.slane %v2908, 3
        %v2917 = vrot.slane %v2909, 3
        %v2918 = vrot.slane %v2910, 3
        %v2921 = vsel %vm702, %v2907, %v2915
        %v2922 = vsel %vm706, %v2907, %v2915
        %v2924 = vrot.slane %v2922, 1
        %v2925 = vsel %vm710, %v2907, %v2915
        %v2927 = vrot.slane %v2925, 2
        %v2928 = vsel %vm714, %v2907, %v2915
        %v2930 = vrot.slane %v2928, 3
        %v2933 = vsel %vm702, %v2908, %v2916
        %v2936 = vsel %vm702, %v2909, %v2917
        %v2937 = vsel %vm706, %v2909, %v2917
        %v2939 = vrot.slane %v2937, 1
        %v2940 = vsel %vm710, %v2909, %v2917
        %v2942 = vrot.slane %v2940, 2
        %v2943 = vsel %vm714, %v2909, %v2917
        %v2945 = vrot.slane %v2943, 3
        %v2948 = vsel %vm702, %v2910, %v2918
        %v2959 = vunpack.c.l.bf16 %v2921
        %v2960 = vunpack.c.l.bf16 %v2924
        %v2961 = vunpack.c.l.bf16 %v2927
        %v2962 = vunpack.c.l.bf16 %v2930
        %v2963 = vunpack.c.l.bf16 %v2933
        %v2964 = vunpack.c.l.bf16 %v2936
        %v2965 = vunpack.c.l.bf16 %v2939
        %v2966 = vunpack.c.l.bf16 %v2942
        %v2967 = vunpack.c.l.bf16 %v2945
        %v2968 = vunpack.c.l.bf16 %v2948
        %v2969 = vld [vmem:[%s10] sm:$0xf]
        %v2970 = vld [vmem:[%s10 + $0x4] sm:$0xf]
        %v2971 = vld [vmem:[%s10 + $0x8] sm:$0xf]
        %v2972 = vld [vmem:[%s10 + $0xc] sm:$0xf]
        %v2973 = vperm.slane %v2905, 0
        %2974 = vst [vmem:[#allocation1] ss:$9 sm:$0xff] %v2921
        %s2976 = scalar_lea.vmem [#allocation1], 1
        %2977 = vst [vmem:[%s2976] ss:$9 sm:$0xff] %v2924
        %s2979 = scalar_lea.vmem [#allocation1], 2
        %2980 = vst [vmem:[%s2979] ss:$9 sm:$0xff] %v2927
        %s2982 = scalar_lea.vmem [#allocation1], 3
        %2983 = vst [vmem:[%s2982] ss:$9 sm:$0xff] %v2930
        %s2984 = scalar_lea.vmem [#allocation1], 4
        %2985 = vst [vmem:[%s2984] ss:$9 sm:$0xff] %v2933
        %s2986 = scalar_lea.vmem [#allocation1], 5
        %2987 = vst [vmem:[%s2986] ss:$9 sm:$0xff] %v2936
        %s2989 = scalar_lea.vmem [#allocation1], 6
        %2990 = vst [vmem:[%s2989] ss:$9 sm:$0xff] %v2939
        %s2992 = scalar_lea.vmem [#allocation1], 7
        %2993 = vst [vmem:[%s2992] ss:$9 sm:$0xff] %v2942
        %v2994 = vld [vmem:[#allocation1] sm:$0xff]
        %2996 = vst [vmem:[#allocation1] ss:$9 sm:$0xff] %v2945
        %2997 = vst [vmem:[%s2976] ss:$9 sm:$0xff] %v2948
        %v2998 = vld [vmem:[#allocation1] sm:$0xff]
        %v3003 = vunpack.c.l.b16 %v2969
        %v3004 = vunpack.c.l.b16 %v2970
        %v3005 = vunpack.c.l.b16 %v2971
        %v3006 = vunpack.c.l.b16 %v2972
        %v3007 = vpack.c.b16 %v3004, %v3003
        %v3008 = vpack.c.b16 %v3006, %v3005
        %v3011 = vsel %vm818, %v2994, 0
        %v3013 = vsel %vm818, %v2998, 0
        %3015 = vmatpush.bf16.msra.mxu0 0
        %3016 = vmatpush.bf16.msra.mxu0 0
        %3017 = vmatpush.bf16.msra.mxu0 0
        %3018 = vmatpush.bf16.msra.mxu0 0
        %3019 = vmatpush.bf16.msra.mxu0 0
        %3020 = vmatpush.bf16.msra.mxu0 0
        %3021 = vmatpush.bf16.msra.mxu0 %v3008
        %3022 = vmatpush.bf16.msra.mxu0 %v3007
        %3023 = vmatmul.bf16.gmra.mxu0 %v3011
        %v3024 = vpop.f32.mrf.mxu0
        %v3025 = vadd.f32 %v2973, %v3024
        %v3026 = vpop.f32.mrf.mxu0
        %v3027 = vadd.f32 %v2973, %v3026
        %3028 = vmatmul.bf16.gmra.mxu0 %v3013
        %v3029 = vpop.f32.mrf.mxu0
        %v3030 = vadd.f32 %v2973, %v3029
        %v3031 = vpop.f32.mrf.mxu0
        %3032 = vdwg.mxu0
        %s3033 = scalar_lea.vmem %s10, 16
        %v3034 = vld [vmem:[%s3033] sm:$0xf]
        %v3035 = vld [vmem:[%s3033 + $0x4] sm:$0xf]
        %v3036 = vld [vmem:[%s3033 + $0x8] sm:$0xf]
        %v3037 = vld [vmem:[%s3033 + $0xc] sm:$0xf]
        %v3038 = vperm.slane %v2905, 1
        %3039 = vst [vmem:[#allocation1] ss:$9 sm:$0xff] %v2921
        %s3040 = scalar_lea.vmem [#allocation1], 1
        %3041 = vst [vmem:[%s3040] ss:$9 sm:$0xff] %v2924
        %s3042 = scalar_lea.vmem [#allocation1], 2
        %3043 = vst [vmem:[%s3042] ss:$9 sm:$0xff] %v2927
        %s3044 = scalar_lea.vmem [#allocation1], 3
        %3045 = vst [vmem:[%s3044] ss:$9 sm:$0xff] %v2930
        %s3046 = scalar_lea.vmem [#allocation1], 4
        %3047 = vst [vmem:[%s3046] ss:$9 sm:$0xff] %v2933
        %s3048 = scalar_lea.vmem [#allocation1], 5
        %3049 = vst [vmem:[%s3048] ss:$9 sm:$0xff] %v2936
        %s3050 = scalar_lea.vmem [#allocation1], 6
        %3051 = vst [vmem:[%s3050] ss:$9 sm:$0xff] %v2939
        %s3052 = scalar_lea.vmem [#allocation1], 7
        %3053 = vst [vmem:[%s3052] ss:$9 sm:$0xff] %v2942
        %v3054 = vld [vmem:[#allocation1] sm:$0xff]
        %3055 = vst [vmem:[#allocation1] ss:$9 sm:$0xff] %v2945
        %3056 = vst [vmem:[%s3040] ss:$9 sm:$0xff] %v2948
        %v3057 = vld [vmem:[#allocation1] sm:$0xff]
        %v3062 = vunpack.c.l.b16 %v3034
        %v3063 = vunpack.c.l.b16 %v3035
        %v3064 = vunpack.c.l.b16 %v3036
        %v3065 = vunpack.c.l.b16 %v3037
        %v3066 = vpack.c.b16 %v3063, %v3062
        %v3067 = vpack.c.b16 %v3065, %v3064
        %v3070 = vsel %vm818, %v3054, 0
        %v3072 = vsel %vm818, %v3057, 0
        %3074 = vmatpush.bf16.msra.mxu0 0
        %3075 = vmatpush.bf16.msra.mxu0 0
        %3076 = vmatpush.bf16.msra.mxu0 0
        %3077 = vmatpush.bf16.msra.mxu0 0
        %3078 = vmatpush.bf16.msra.mxu0 0
        %3079 = vmatpush.bf16.msra.mxu0 0
        %3080 = vmatpush.bf16.msra.mxu0 %v3067
        %3081 = vmatpush.bf16.msra.mxu0 %v3066
        %3082 = vmatmul.bf16.gmra.mxu0 %v3070
        %v3083 = vpop.f32.mrf.mxu0
        %v3084 = vadd.f32 %v3038, %v3083
        %v3085 = vpop.f32.mrf.mxu0
        %v3086 = vadd.f32 %v3038, %v3085
        %3087 = vmatmul.bf16.gmra.mxu0 %v3072
        %v3088 = vpop.f32.mrf.mxu0
        %v3089 = vadd.f32 %v3038, %v3088
        %v3090 = vpop.f32.mrf.mxu0
        %3091 = vdwg.mxu0
        %s3092 = scalar_lea.vmem %s10, 32
        %v3093 = vld [vmem:[%s3092] sm:$0xf]
        %v3094 = vld [vmem:[%s3092 + $0x4] sm:$0xf]
        %v3095 = vld [vmem:[%s3092 + $0x8] sm:$0xf]
        %v3096 = vld [vmem:[%s3092 + $0xc] sm:$0xf]
        %v3097 = vperm.slane %v2905, 2
        %3098 = vst [vmem:[#allocation1] ss:$9 sm:$0xff] %v2921
        %s3099 = scalar_lea.vmem [#allocation1], 1
        %3100 = vst [vmem:[%s3099] ss:$9 sm:$0xff] %v2924
        %s3101 = scalar_lea.vmem [#allocation1], 2
        %3102 = vst [vmem:[%s3101] ss:$9 sm:$0xff] %v2927
        %s3103 = scalar_lea.vmem [#allocation1], 3
        %3104 = vst [vmem:[%s3103] ss:$9 sm:$0xff] %v2930
        %s3105 = scalar_lea.vmem [#allocation1], 4
        %3106 = vst [vmem:[%s3105] ss:$9 sm:$0xff] %v2933
        %s3107 = scalar_lea.vmem [#allocation1], 5
        %3108 = vst [vmem:[%s3107] ss:$9 sm:$0xff] %v2936
        %s3109 = scalar_lea.vmem [#allocation1], 6
        %3110 = vst [vmem:[%s3109] ss:$9 sm:$0xff] %v2939
        %s3111 = scalar_lea.vmem [#allocation1], 7
        %3112 = vst [vmem:[%s3111] ss:$9 sm:$0xff] %v2942
        %v3113 = vld [vmem:[#allocation1] sm:$0xff]
        %3114 = vst [vmem:[#allocation1] ss:$9 sm:$0xff] %v2945
        %3115 = vst [vmem:[%s3099] ss:$9 sm:$0xff] %v2948
        %v3116 = vld [vmem:[#allocation1] sm:$0xff]
        %v3121 = vunpack.c.l.b16 %v3093
        %v3122 = vunpack.c.l.b16 %v3094
        %v3123 = vunpack.c.l.b16 %v3095
        %v3124 = vunpack.c.l.b16 %v3096
        %v3125 = vpack.c.b16 %v3122, %v3121
        %v3126 = vpack.c.b16 %v3124, %v3123
        %v3129 = vsel %vm818, %v3113, 0
        %v3131 = vsel %vm818, %v3116, 0
        %3133 = vmatpush.bf16.msra.mxu0 0
        %3134 = vmatpush.bf16.msra.mxu0 0
        %3135 = vmatpush.bf16.msra.mxu0 0
        %3136 = vmatpush.bf16.msra.mxu0 0
        %3137 = vmatpush.bf16.msra.mxu0 0
        %3138 = vmatpush.bf16.msra.mxu0 0
        %3139 = vmatpush.bf16.msra.mxu0 %v3126
        %3140 = vmatpush.bf16.msra.mxu0 %v3125
        %3141 = vmatmul.bf16.gmra.mxu0 %v3129
        %v3142 = vpop.f32.mrf.mxu0
        %v3143 = vadd.f32 %v3097, %v3142
        %v3144 = vpop.f32.mrf.mxu0
        %v3145 = vadd.f32 %v3097, %v3144
        %3146 = vmatmul.bf16.gmra.mxu0 %v3131
        %v3147 = vpop.f32.mrf.mxu0
        %v3148 = vadd.f32 %v3097, %v3147
        %v3149 = vpop.f32.mrf.mxu0
        %3150 = vdwg.mxu0
        %v3154 = vrot.slane %v3025, 1
        %v3155 = vrot.slane %v3025, 2
        %v3156 = vrot.slane %v3025, 3
        %v3157 = vrot.slane %v3025, 4
        %v3158 = vrot.slane %v3025, 5
        %v3159 = vrot.slane %v3025, 6
        %v3160 = vrot.slane %v3025, 7
        %v3161 = vrot.slane %v3027, 1
        %v3162 = vrot.slane %v3027, 2
        %v3163 = vrot.slane %v3027, 3
        %v3164 = vrot.slane %v3027, 4
        %v3165 = vrot.slane %v3027, 5
        %v3166 = vrot.slane %v3027, 6
        %v3167 = vrot.slane %v3027, 7
        %v3168 = vrot.slane %v3030, 1
        %v3169 = vrot.slane %v3030, 2
        %v3170 = vrot.slane %v3030, 3
        %v3174 = vrot.slane %v3084, 2
        %v3175 = vrot.slane %v3084, 4
        %v3176 = vrot.slane %v3084, 6
        %v3177 = vrot.slane %v3086, 2
        %v3178 = vrot.slane %v3086, 4
        %v3179 = vrot.slane %v3086, 6
        %v3180 = vrot.slane %v3089, 2
        %v3181 = vperm.slane %v3025, 0
        %v3182 = vperm.slane %v3154, 0
        %v3183 = vperm.slane %v3155, 0
        %v3184 = vperm.slane %v3156, 0
        %v3185 = vperm.slane %v3157, 0
        %v3186 = vperm.slane %v3158, 0
        %v3187 = vperm.slane %v3159, 0
        %v3188 = vperm.slane %v3160, 0
        %v3189 = vperm.slane %v3027, 0
        %v3190 = vperm.slane %v3161, 0
        %v3191 = vperm.slane %v3162, 0
        %v3192 = vperm.slane %v3163, 0
        %v3193 = vperm.slane %v3164, 0
        %v3194 = vperm.slane %v3165, 0
        %v3195 = vperm.slane %v3166, 0
        %v3196 = vperm.slane %v3167, 0
        %v3197 = vperm.slane %v3030, 0
        %v3198 = vperm.slane %v3168, 0
        %v3199 = vperm.slane %v3169, 0
        %v3200 = vperm.slane %v3170, 0
        %3221 = vst [vmem:[#allocation1] ss:$4 sm:$0xff] %v3084
        %s3222 = scalar_lea.vmem [#allocation1], 1
        %3223 = vst [vmem:[%s3222] ss:$4 sm:$0xff] %v3174
        %s3224 = scalar_lea.vmem [#allocation1], 2
        %3225 = vst [vmem:[%s3224] ss:$4 sm:$0xff] %v3175
        %s3226 = scalar_lea.vmem [#allocation1], 3
        %3227 = vst [vmem:[%s3226] ss:$4 sm:$0xff] %v3176
        %s3228 = scalar_lea.vmem [#allocation1], 32
        %3229 = vst [vmem:[%s3228] ss:$4 sm:$0xff] %v3086
        %v3230 = vld.sshfl [vmem:[#allocation1] sm:$0xff pattern:$0x73625140]
        %v3231 = vld.sshfl [vmem:[#allocation1 + $0x20] sm:$0xff pattern:$0x73625140]
        %3232 = vst [vmem:[#allocation1] ss:$4 sm:$0xff] %v3084
        %3233 = vst [vmem:[%s3222] ss:$4 sm:$0xff] %v3174
        %3234 = vst [vmem:[%s3224] ss:$4 sm:$0xff] %v3175
        %3235 = vst [vmem:[%s3226] ss:$4 sm:$0xff] %v3176
        %3236 = vst [vmem:[%s3228] ss:$4 sm:$0xff] %v3086
        %v3237 = vld.sshfl [vmem:[#allocation1] sm:$0xff pattern:$0x73625140]
        %v3238 = vld.sshfl [vmem:[#allocation1 + $0x20] sm:$0xff pattern:$0x73625140]
        %3239 = vst [vmem:[#allocation1] ss:$4 sm:$0xff] %v3084
        %3240 = vst [vmem:[%s3222] ss:$4 sm:$0xff] %v3174
        %3241 = vst [vmem:[%s3224] ss:$4 sm:$0xff] %v3175
        %3242 = vst [vmem:[%s3226] ss:$4 sm:$0xff] %v3176
        %3243 = vst [vmem:[%s3228] ss:$4 sm:$0xff] %v3086
        %v3244 = vld.sshfl [vmem:[#allocation1] sm:$0xff pattern:$0x73625140]
        %v3245 = vld.sshfl [vmem:[#allocation1 + $0x20] sm:$0xff pattern:$0x73625140]
        %3246 = vst [vmem:[#allocation1] ss:$4 sm:$0xff] %v3084
        %3247 = vst [vmem:[%s3222] ss:$4 sm:$0xff] %v3174
        %3248 = vst [vmem:[%s3224] ss:$4 sm:$0xff] %v3175
        %3249 = vst [vmem:[%s3226] ss:$4 sm:$0xff] %v3176
        %3250 = vst [vmem:[%s3228] ss:$4 sm:$0xff] %v3086
        %v3251 = vld.sshfl [vmem:[#allocation1] sm:$0xff pattern:$0x73625140]
        %v3252 = vld.sshfl [vmem:[#allocation1 + $0x20] sm:$0xff pattern:$0x73625140]
        %3253 = vst [vmem:[#allocation1] ss:$4 sm:$0xff] %v3084
        %3254 = vst [vmem:[%s3222] ss:$4 sm:$0xff] %v3174
        %3255 = vst [vmem:[%s3224] ss:$4 sm:$0xff] %v3175
        %3256 = vst [vmem:[%s3226] ss:$4 sm:$0xff] %v3176
        %3257 = vst [vmem:[%s3228] ss:$4 sm:$0xff] %v3086
        %v3258 = vld.sshfl [vmem:[#allocation1] sm:$0xff pattern:$0x73625140]
        %v3259 = vld.sshfl [vmem:[#allocation1 + $0x20] sm:$0xff pattern:$0x73625140]
        %3260 = vst [vmem:[#allocation1] ss:$4 sm:$0xff] %v3084
        %3261 = vst [vmem:[%s3222] ss:$4 sm:$0xff] %v3174
        %3262 = vst [vmem:[%s3224] ss:$4 sm:$0xff] %v3175
        %3263 = vst [vmem:[%s3226] ss:$4 sm:$0xff] %v3176
        %3264 = vst [vmem:[%s3228] ss:$4 sm:$0xff] %v3086
        %v3265 = vld.sshfl [vmem:[#allocation1] sm:$0xff pattern:$0x73625140]
        %v3266 = vld.sshfl [vmem:[#allocation1 + $0x20] sm:$0xff pattern:$0x73625140]
        %3267 = vst [vmem:[#allocation1] ss:$4 sm:$0xff] %v3084
        %3268 = vst [vmem:[%s3222] ss:$4 sm:$0xff] %v3174
        %3269 = vst [vmem:[%s3224] ss:$4 sm:$0xff] %v3175
        %3270 = vst [vmem:[%s3226] ss:$4 sm:$0xff] %v3176
        %3271 = vst [vmem:[%s3228] ss:$4 sm:$0xff] %v3086
        %v3272 = vld.sshfl [vmem:[#allocation1] sm:$0xff pattern:$0x73625140]
        %v3273 = vld.sshfl [vmem:[#allocation1 + $0x20] sm:$0xff pattern:$0x73625140]
        %3274 = vst [vmem:[#allocation1] ss:$4 sm:$0xff] %v3084
        %3275 = vst [vmem:[%s3222] ss:$4 sm:$0xff] %v3174
        %3276 = vst [vmem:[%s3224] ss:$4 sm:$0xff] %v3175
        %3277 = vst [vmem:[%s3226] ss:$4 sm:$0xff] %v3176
        %3278 = vst [vmem:[%s3228] ss:$4 sm:$0xff] %v3086
        %v3279 = vld.sshfl [vmem:[#allocation1] sm:$0xff pattern:$0x73625140]
        %v3280 = vld.sshfl [vmem:[#allocation1 + $0x20] sm:$0xff pattern:$0x73625140]
        %3281 = vst [vmem:[#allocation1] ss:$4 sm:$0xff] %v3084
        %3282 = vst [vmem:[%s3222] ss:$4 sm:$0xff] %v3174
        %3283 = vst [vmem:[%s3224] ss:$4 sm:$0xff] %v3175
        %3284 = vst [vmem:[%s3226] ss:$4 sm:$0xff] %v3176
        %3285 = vst [vmem:[%s3228] ss:$4 sm:$0xff] %v3086
        %v3286 = vld.sshfl [vmem:[#allocation1] sm:$0xff pattern:$0x73625140]
        %v3287 = vld.sshfl [vmem:[#allocation1 + $0x20] sm:$0xff pattern:$0x73625140]
        %3288 = vst [vmem:[#allocation1] ss:$4 sm:$0xff] %v3084
        %3289 = vst [vmem:[%s3222] ss:$4 sm:$0xff] %v3174
        %3290 = vst [vmem:[%s3224] ss:$4 sm:$0xff] %v3175
        %3291 = vst [vmem:[%s3226] ss:$4 sm:$0xff] %v3176
        %3292 = vst [vmem:[%s3228] ss:$4 sm:$0xff] %v3086
        %v3293 = vld.sshfl [vmem:[#allocation1] sm:$0xff pattern:$0x73625140]
        %v3294 = vld.sshfl [vmem:[#allocation1 + $0x20] sm:$0xff pattern:$0x73625140]
        %3295 = vst [vmem:[#allocation1] ss:$4 sm:$0xff] %v3177
        %3296 = vst [vmem:[%s3222] ss:$4 sm:$0xff] %v3178
        %3297 = vst [vmem:[%s3224] ss:$4 sm:$0xff] %v3179
        %3298 = vst [vmem:[%s3226] ss:$4 sm:$0xff] %v3089
        %3299 = vst [vmem:[%s3228] ss:$4 sm:$0xff] %v3180
        %v3300 = vld.sshfl [vmem:[#allocation1] sm:$0xff pattern:$0x73625140]
        %v3301 = vld.sshfl [vmem:[#allocation1 + $0x20] sm:$0xff pattern:$0x73625140]
        %3302 = vst [vmem:[#allocation1] ss:$4 sm:$0xff] %v3177
        %3303 = vst [vmem:[%s3222] ss:$4 sm:$0xff] %v3178
        %3304 = vst [vmem:[%s3224] ss:$4 sm:$0xff] %v3179
        %3305 = vst [vmem:[%s3226] ss:$4 sm:$0xff] %v3089
        %3306 = vst [vmem:[%s3228] ss:$4 sm:$0xff] %v3180
        %v3307 = vld.sshfl [vmem:[#allocation1] sm:$0xff pattern:$0x73625140]
        %v3308 = vld.sshfl [vmem:[#allocation1 + $0x20] sm:$0xff pattern:$0x73625140]
        %3309 = vst [vmem:[#allocation1] ss:$4 sm:$0xff] %v3177
        %3310 = vst [vmem:[%s3222] ss:$4 sm:$0xff] %v3178
        %3311 = vst [vmem:[%s3224] ss:$4 sm:$0xff] %v3179
        %3312 = vst [vmem:[%s3226] ss:$4 sm:$0xff] %v3089
        %3313 = vst [vmem:[%s3228] ss:$4 sm:$0xff] %v3180
        %v3314 = vld.sshfl [vmem:[#allocation1] sm:$0xff pattern:$0x73625140]
        %v3315 = vld.sshfl [vmem:[#allocation1 + $0x20] sm:$0xff pattern:$0x73625140]
        %3316 = vst [vmem:[#allocation1] ss:$4 sm:$0xff] %v3177
        %3317 = vst [vmem:[%s3222] ss:$4 sm:$0xff] %v3178
        %3318 = vst [vmem:[%s3224] ss:$4 sm:$0xff] %v3179
        %3319 = vst [vmem:[%s3226] ss:$4 sm:$0xff] %v3089
        %3320 = vst [vmem:[%s3228] ss:$4 sm:$0xff] %v3180
        %v3321 = vld.sshfl [vmem:[#allocation1] sm:$0xff pattern:$0x73625140]
        %v3322 = vld.sshfl [vmem:[#allocation1 + $0x20] sm:$0xff pattern:$0x73625140]
        %3323 = vst [vmem:[#allocation1] ss:$4 sm:$0xff] %v3177
        %3324 = vst [vmem:[%s3222] ss:$4 sm:$0xff] %v3178
        %3325 = vst [vmem:[%s3224] ss:$4 sm:$0xff] %v3179
        %3326 = vst [vmem:[%s3226] ss:$4 sm:$0xff] %v3089
        %3327 = vst [vmem:[%s3228] ss:$4 sm:$0xff] %v3180
        %v3328 = vld.sshfl [vmem:[#allocation1] sm:$0xff pattern:$0x73625140]
        %v3329 = vld.sshfl [vmem:[#allocation1 + $0x20] sm:$0xff pattern:$0x73625140]
        %3330 = vst [vmem:[#allocation1] ss:$4 sm:$0xff] %v3177
        %3331 = vst [vmem:[%s3222] ss:$4 sm:$0xff] %v3178
        %3332 = vst [vmem:[%s3224] ss:$4 sm:$0xff] %v3179
        %3333 = vst [vmem:[%s3226] ss:$4 sm:$0xff] %v3089
        %3334 = vst [vmem:[%s3228] ss:$4 sm:$0xff] %v3180
        %v3335 = vld.sshfl [vmem:[#allocation1] sm:$0xff pattern:$0x73625140]
        %v3336 = vld.sshfl [vmem:[#allocation1 + $0x20] sm:$0xff pattern:$0x73625140]
        %3337 = vst [vmem:[#allocation1] ss:$4 sm:$0xff] %v3177
        %3338 = vst [vmem:[%s3222] ss:$4 sm:$0xff] %v3178
        %3339 = vst [vmem:[%s3224] ss:$4 sm:$0xff] %v3179
        %3340 = vst [vmem:[%s3226] ss:$4 sm:$0xff] %v3089
        %3341 = vst [vmem:[%s3228] ss:$4 sm:$0xff] %v3180
        %v3342 = vld.sshfl [vmem:[#allocation1] sm:$0xff pattern:$0x73625140]
        %v3343 = vld.sshfl [vmem:[#allocation1 + $0x20] sm:$0xff pattern:$0x73625140]
        %3344 = vst [vmem:[#allocation1] ss:$4 sm:$0xff] %v3177
        %3345 = vst [vmem:[%s3222] ss:$4 sm:$0xff] %v3178
        %3346 = vst [vmem:[%s3224] ss:$4 sm:$0xff] %v3179
        %3347 = vst [vmem:[%s3226] ss:$4 sm:$0xff] %v3089
        %3348 = vst [vmem:[%s3228] ss:$4 sm:$0xff] %v3180
        %v3349 = vld.sshfl [vmem:[#allocation1] sm:$0xff pattern:$0x73625140]
        %v3350 = vld.sshfl [vmem:[#allocation1 + $0x20] sm:$0xff pattern:$0x73625140]
        %3351 = vst [vmem:[#allocation1] ss:$4 sm:$0xff] %v3177
        %3352 = vst [vmem:[%s3222] ss:$4 sm:$0xff] %v3178
        %3353 = vst [vmem:[%s3224] ss:$4 sm:$0xff] %v3179
        %3354 = vst [vmem:[%s3226] ss:$4 sm:$0xff] %v3089
        %3355 = vst [vmem:[%s3228] ss:$4 sm:$0xff] %v3180
        %v3356 = vld.sshfl [vmem:[#allocation1] sm:$0xff pattern:$0x73625140]
        %v3357 = vld.sshfl [vmem:[#allocation1 + $0x20] sm:$0xff pattern:$0x73625140]
        %3358 = vst [vmem:[#allocation1] ss:$4 sm:$0xff] %v3177
        %3359 = vst [vmem:[%s3222] ss:$4 sm:$0xff] %v3178
        %3360 = vst [vmem:[%s3224] ss:$4 sm:$0xff] %v3179
        %3361 = vst [vmem:[%s3226] ss:$4 sm:$0xff] %v3089
        %3362 = vst [vmem:[%s3228] ss:$4 sm:$0xff] %v3180
        %v3363 = vld.sshfl [vmem:[#allocation1] sm:$0xff pattern:$0x73625140]
        %v3364 = vld.sshfl [vmem:[#allocation1 + $0x20] sm:$0xff pattern:$0x73625140]
        %v3405 = vmul.f32 %v3181, %v3230
        %v3406 = vmul.f32 %v3181, %v3231
        %v3407 = vmul.f32 %v3182, %v3237
        %v3408 = vmul.f32 %v3182, %v3238
        %v3409 = vmul.f32 %v3183, %v3244
        %v3410 = vmul.f32 %v3183, %v3245
        %v3411 = vmul.f32 %v3184, %v3251
        %v3412 = vmul.f32 %v3184, %v3252
        %v3413 = vmul.f32 %v3185, %v3258
        %v3414 = vmul.f32 %v3185, %v3259
        %v3415 = vmul.f32 %v3186, %v3265
        %v3416 = vmul.f32 %v3186, %v3266
        %v3417 = vmul.f32 %v3187, %v3272
        %v3418 = vmul.f32 %v3187, %v3273
        %v3419 = vmul.f32 %v3188, %v3279
        %v3420 = vmul.f32 %v3188, %v3280
        %v3421 = vmul.f32 %v3189, %v3286
        %v3422 = vmul.f32 %v3189, %v3287
        %v3423 = vmul.f32 %v3190, %v3293
        %v3424 = vmul.f32 %v3190, %v3294
        %v3425 = vmul.f32 %v3191, %v3300
        %v3426 = vmul.f32 %v3191, %v3301
        %v3427 = vmul.f32 %v3192, %v3307
        %v3428 = vmul.f32 %v3192, %v3308
        %v3429 = vmul.f32 %v3193, %v3314
        %v3430 = vmul.f32 %v3193, %v3315
        %v3431 = vmul.f32 %v3194, %v3321
        %v3432 = vmul.f32 %v3194, %v3322
        %v3433 = vmul.f32 %v3195, %v3328
        %v3434 = vmul.f32 %v3195, %v3329
        %v3435 = vmul.f32 %v3196, %v3335
        %v3436 = vmul.f32 %v3196, %v3336
        %v3437 = vmul.f32 %v3197, %v3342
        %v3438 = vmul.f32 %v3197, %v3343
        %v3439 = vmul.f32 %v3198, %v3349
        %v3440 = vmul.f32 %v3198, %v3350
        %v3441 = vmul.f32 %v3199, %v3356
        %v3442 = vmul.f32 %v3199, %v3357
        %v3443 = vmul.f32 %v3200, %v3363
        %v3444 = vmul.f32 %v3200, %v3364
        %v3485 = vrot.slane %v3405, 2
        %v3486 = vrot.slane %v3405, 4
        %v3487 = vrot.slane %v3405, 6
        %v3488 = vrot.slane %v3407, 2
        %v3489 = vrot.slane %v3407, 4
        %v3490 = vrot.slane %v3407, 6
        %v3491 = vrot.slane %v3409, 2
        %v3492 = vrot.slane %v3409, 4
        %v3493 = vrot.slane %v3409, 6
        %v3494 = vrot.slane %v3411, 2
        %v3495 = vrot.slane %v3411, 4
        %v3496 = vrot.slane %v3411, 6
        %v3497 = vrot.slane %v3413, 2
        %v3498 = vrot.slane %v3413, 4
        %v3499 = vrot.slane %v3413, 6
        %v3500 = vrot.slane %v3415, 2
        %v3501 = vrot.slane %v3415, 4
        %v3502 = vrot.slane %v3415, 6
        %v3503 = vrot.slane %v3417, 2
        %v3504 = vrot.slane %v3417, 4
        %v3505 = vrot.slane %v3417, 6
        %v3506 = vrot.slane %v3419, 2
        %v3507 = vrot.slane %v3419, 4
        %v3508 = vrot.slane %v3419, 6
        %v3509 = vrot.slane %v3421, 2
        %v3510 = vrot.slane %v3421, 4
        %v3511 = vrot.slane %v3421, 6
        %v3512 = vrot.slane %v3423, 2
        %v3513 = vrot.slane %v3423, 4
        %v3514 = vrot.slane %v3423, 6
        %v3515 = vrot.slane %v3425, 2
        %v3516 = vrot.slane %v3425, 4
        %v3517 = vrot.slane %v3425, 6
        %v3518 = vrot.slane %v3427, 2
        %v3519 = vrot.slane %v3427, 4
        %v3520 = vrot.slane %v3427, 6
        %v3521 = vrot.slane %v3429, 2
        %v3522 = vrot.slane %v3429, 4
        %v3523 = vrot.slane %v3429, 6
        %v3524 = vrot.slane %v3431, 2
        %v3525 = vrot.slane %v3431, 4
        %v3526 = vrot.slane %v3431, 6
        %v3527 = vrot.slane %v3433, 2
        %v3528 = vrot.slane %v3433, 4
        %v3529 = vrot.slane %v3433, 6
        %v3530 = vrot.slane %v3435, 2
        %v3531 = vrot.slane %v3435, 4
        %v3532 = vrot.slane %v3435, 6
        %v3533 = vrot.slane %v3437, 2
        %v3534 = vrot.slane %v3437, 4
        %v3535 = vrot.slane %v3437, 6
        %v3536 = vrot.slane %v3439, 2
        %v3537 = vrot.slane %v3439, 4
        %v3538 = vrot.slane %v3439, 6
        %v3539 = vrot.slane %v3441, 2
        %v3540 = vrot.slane %v3441, 4
        %v3541 = vrot.slane %v3441, 6
        %v3542 = vrot.slane %v3443, 2
        %v3543 = vrot.slane %v3443, 4
        %v3544 = vrot.slane %v3443, 6
        %3545 = vst [vmem:[#allocation1] ss:$4 sm:$0xff] %v3405
        %s3546 = scalar_lea.vmem [#allocation1], 1
        %3547 = vst [vmem:[%s3546] ss:$4 sm:$0xff] %v3485
        %s3548 = scalar_lea.vmem [#allocation1], 2
        %3549 = vst [vmem:[%s3548] ss:$4 sm:$0xff] %v3486
        %s3550 = scalar_lea.vmem [#allocation1], 3
        %3551 = vst [vmem:[%s3550] ss:$4 sm:$0xff] %v3487
        %s3552 = scalar_lea.vmem [#allocation1], 32
        %3553 = vst [vmem:[%s3552] ss:$4 sm:$0xff] %v3406
        %s3554 = scalar_lea.vmem [#allocation1], 33
        %3555 = vst [vmem:[%s3554] ss:$4 sm:$0xff] %v3407
        %s3556 = scalar_lea.vmem [#allocation1], 34
        %3557 = vst [vmem:[%s3556] ss:$4 sm:$0xff] %v3488
        %s3558 = scalar_lea.vmem [#allocation1], 35
        %3559 = vst [vmem:[%s3558] ss:$4 sm:$0xff] %v3489
        %v3560 = vld.sshfl [vmem:[#allocation1] sm:$0xff pattern:$0x73625140]
        %v3561 = vld.sshfl [vmem:[#allocation1 + $0x20] sm:$0xff pattern:$0x73625140]
        %3562 = vst [vmem:[#allocation1] ss:$4 sm:$0xff] %v3490
        %3563 = vst [vmem:[%s3546] ss:$4 sm:$0xff] %v3408
        %3564 = vst [vmem:[%s3548] ss:$4 sm:$0xff] %v3409
        %3565 = vst [vmem:[%s3550] ss:$4 sm:$0xff] %v3491
        %3566 = vst [vmem:[%s3552] ss:$4 sm:$0xff] %v3492
        %3567 = vst [vmem:[%s3554] ss:$4 sm:$0xff] %v3493
        %3568 = vst [vmem:[%s3556] ss:$4 sm:$0xff] %v3410
        %3569 = vst [vmem:[%s3558] ss:$4 sm:$0xff] %v3411
        %v3570 = vld.sshfl [vmem:[#allocation1] sm:$0xff pattern:$0x73625140]
        %v3571 = vld.sshfl [vmem:[#allocation1 + $0x20] sm:$0xff pattern:$0x73625140]
        %3572 = vst [vmem:[#allocation1] ss:$4 sm:$0xff] %v3494
        %3573 = vst [vmem:[%s3546] ss:$4 sm:$0xff] %v3495
        %3574 = vst [vmem:[%s3548] ss:$4 sm:$0xff] %v3496
        %3575 = vst [vmem:[%s3550] ss:$4 sm:$0xff] %v3412
        %3576 = vst [vmem:[%s3552] ss:$4 sm:$0xff] %v3413
        %3577 = vst [vmem:[%s3554] ss:$4 sm:$0xff] %v3497
        %3578 = vst [vmem:[%s3556] ss:$4 sm:$0xff] %v3498
        %3579 = vst [vmem:[%s3558] ss:$4 sm:$0xff] %v3499
        %v3580 = vld.sshfl [vmem:[#allocation1] sm:$0xff pattern:$0x73625140]
        %v3581 = vld.sshfl [vmem:[#allocation1 + $0x20] sm:$0xff pattern:$0x73625140]
        %3582 = vst [vmem:[#allocation1] ss:$4 sm:$0xff] %v3414
        %3583 = vst [vmem:[%s3546] ss:$4 sm:$0xff] %v3415
        %3584 = vst [vmem:[%s3548] ss:$4 sm:$0xff] %v3500
        %3585 = vst [vmem:[%s3550] ss:$4 sm:$0xff] %v3501
        %3586 = vst [vmem:[%s3552] ss:$4 sm:$0xff] %v3502
        %3587 = vst [vmem:[%s3554] ss:$4 sm:$0xff] %v3416
        %3588 = vst [vmem:[%s3556] ss:$4 sm:$0xff] %v3417
        %3589 = vst [vmem:[%s3558] ss:$4 sm:$0xff] %v3503
        %v3590 = vld.sshfl [vmem:[#allocation1] sm:$0xff pattern:$0x73625140]
        %v3591 = vld.sshfl [vmem:[#allocation1 + $0x20] sm:$0xff pattern:$0x73625140]
        %3592 = vst [vmem:[#allocation1] ss:$4 sm:$0xff] %v3504
        %3593 = vst [vmem:[%s3546] ss:$4 sm:$0xff] %v3505
        %3594 = vst [vmem:[%s3548] ss:$4 sm:$0xff] %v3418
        %3595 = vst [vmem:[%s3550] ss:$4 sm:$0xff] %v3419
        %3596 = vst [vmem:[%s3552] ss:$4 sm:$0xff] %v3506
        %3597 = vst [vmem:[%s3554] ss:$4 sm:$0xff] %v3507
        %3598 = vst [vmem:[%s3556] ss:$4 sm:$0xff] %v3508
        %3599 = vst [vmem:[%s3558] ss:$4 sm:$0xff] %v3420
        %v3600 = vld.sshfl [vmem:[#allocation1] sm:$0xff pattern:$0x73625140]
        %v3601 = vld.sshfl [vmem:[#allocation1 + $0x20] sm:$0xff pattern:$0x73625140]
        %3602 = vst [vmem:[#allocation1] ss:$4 sm:$0xff] %v3421
        %3603 = vst [vmem:[%s3546] ss:$4 sm:$0xff] %v3509
        %3604 = vst [vmem:[%s3548] ss:$4 sm:$0xff] %v3510
        %3605 = vst [vmem:[%s3550] ss:$4 sm:$0xff] %v3511
        %3606 = vst [vmem:[%s3552] ss:$4 sm:$0xff] %v3422
        %3607 = vst [vmem:[%s3554] ss:$4 sm:$0xff] %v3423
        %3608 = vst [vmem:[%s3556] ss:$4 sm:$0xff] %v3512
        %3609 = vst [vmem:[%s3558] ss:$4 sm:$0xff] %v3513
        %v3610 = vld.sshfl [vmem:[#allocation1] sm:$0xff pattern:$0x73625140]
        %v3611 = vld.sshfl [vmem:[#allocation1 + $0x20] sm:$0xff pattern:$0x73625140]
        %3612 = vst [vmem:[#allocation1] ss:$4 sm:$0xff] %v3514
        %3613 = vst [vmem:[%s3546] ss:$4 sm:$0xff] %v3424
        %3614 = vst [vmem:[%s3548] ss:$4 sm:$0xff] %v3425
        %3615 = vst [vmem:[%s3550] ss:$4 sm:$0xff] %v3515
        %3616 = vst [vmem:[%s3552] ss:$4 sm:$0xff] %v3516
        %3617 = vst [vmem:[%s3554] ss:$4 sm:$0xff] %v3517
        %3618 = vst [vmem:[%s3556] ss:$4 sm:$0xff] %v3426
        %3619 = vst [vmem:[%s3558] ss:$4 sm:$0xff] %v3427
        %v3620 = vld.sshfl [vmem:[#allocation1] sm:$0xff pattern:$0x73625140]
        %v3621 = vld.sshfl [vmem:[#allocation1 + $0x20] sm:$0xff pattern:$0x73625140]
        %3622 = vst [vmem:[#allocation1] ss:$4 sm:$0xff] %v3518
        %3623 = vst [vmem:[%s3546] ss:$4 sm:$0xff] %v3519
        %3624 = vst [vmem:[%s3548] ss:$4 sm:$0xff] %v3520
        %3625 = vst [vmem:[%s3550] ss:$4 sm:$0xff] %v3428
        %3626 = vst [vmem:[%s3552] ss:$4 sm:$0xff] %v3429
        %3627 = vst [vmem:[%s3554] ss:$4 sm:$0xff] %v3521
        %3628 = vst [vmem:[%s3556] ss:$4 sm:$0xff] %v3522
        %3629 = vst [vmem:[%s3558] ss:$4 sm:$0xff] %v3523
        %v3630 = vld.sshfl [vmem:[#allocation1] sm:$0xff pattern:$0x73625140]
        %v3631 = vld.sshfl [vmem:[#allocation1 + $0x20] sm:$0xff pattern:$0x73625140]
        %3632 = vst [vmem:[#allocation1] ss:$4 sm:$0xff] %v3430
        %3633 = vst [vmem:[%s3546] ss:$4 sm:$0xff] %v3431
        %3634 = vst [vmem:[%s3548] ss:$4 sm:$0xff] %v3524
        %3635 = vst [vmem:[%s3550] ss:$4 sm:$0xff] %v3525
        %3636 = vst [vmem:[%s3552] ss:$4 sm:$0xff] %v3526
        %3637 = vst [vmem:[%s3554] ss:$4 sm:$0xff] %v3432
        %3638 = vst [vmem:[%s3556] ss:$4 sm:$0xff] %v3433
        %3639 = vst [vmem:[%s3558] ss:$4 sm:$0xff] %v3527
        %v3640 = vld.sshfl [vmem:[#allocation1] sm:$0xff pattern:$0x73625140]
        %v3641 = vld.sshfl [vmem:[#allocation1 + $0x20] sm:$0xff pattern:$0x73625140]
        %3642 = vst [vmem:[#allocation1] ss:$4 sm:$0xff] %v3528
        %3643 = vst [vmem:[%s3546] ss:$4 sm:$0xff] %v3529
        %3644 = vst [vmem:[%s3548] ss:$4 sm:$0xff] %v3434
        %3645 = vst [vmem:[%s3550] ss:$4 sm:$0xff] %v3435
        %3646 = vst [vmem:[%s3552] ss:$4 sm:$0xff] %v3530
        %3647 = vst [vmem:[%s3554] ss:$4 sm:$0xff] %v3531
        %3648 = vst [vmem:[%s3556] ss:$4 sm:$0xff] %v3532
        %3649 = vst [vmem:[%s3558] ss:$4 sm:$0xff] %v3436
        %v3650 = vld.sshfl [vmem:[#allocation1] sm:$0xff pattern:$0x73625140]
        %v3651 = vld.sshfl [vmem:[#allocation1 + $0x20] sm:$0xff pattern:$0x73625140]
        %3652 = vst [vmem:[#allocation1] ss:$4 sm:$0xff] %v3437
        %3653 = vst [vmem:[%s3546] ss:$4 sm:$0xff] %v3533
        %3654 = vst [vmem:[%s3548] ss:$4 sm:$0xff] %v3534
        %3655 = vst [vmem:[%s3550] ss:$4 sm:$0xff] %v3535
        %3656 = vst [vmem:[%s3552] ss:$4 sm:$0xff] %v3438
        %3657 = vst [vmem:[%s3554] ss:$4 sm:$0xff] %v3439
        %3658 = vst [vmem:[%s3556] ss:$4 sm:$0xff] %v3536
        %3659 = vst [vmem:[%s3558] ss:$4 sm:$0xff] %v3537
        %v3660 = vld.sshfl [vmem:[#allocation1] sm:$0xff pattern:$0x73625140]
        %v3661 = vld.sshfl [vmem:[#allocation1 + $0x20] sm:$0xff pattern:$0x73625140]
        %3662 = vst [vmem:[#allocation1] ss:$4 sm:$0xff] %v3538
        %3663 = vst [vmem:[%s3546] ss:$4 sm:$0xff] %v3440
        %3664 = vst [vmem:[%s3548] ss:$4 sm:$0xff] %v3441
        %3665 = vst [vmem:[%s3550] ss:$4 sm:$0xff] %v3539
        %3666 = vst [vmem:[%s3552] ss:$4 sm:$0xff] %v3540
        %3667 = vst [vmem:[%s3554] ss:$4 sm:$0xff] %v3541
        %3668 = vst [vmem:[%s3556] ss:$4 sm:$0xff] %v3442
        %3669 = vst [vmem:[%s3558] ss:$4 sm:$0xff] %v3443
        %v3670 = vld.sshfl [vmem:[#allocation1] sm:$0xff pattern:$0x73625140]
        %v3671 = vld.sshfl [vmem:[#allocation1 + $0x20] sm:$0xff pattern:$0x73625140]
        %3672 = vst [vmem:[#allocation1] ss:$4 sm:$0xff] %v3542
        %3673 = vst [vmem:[%s3546] ss:$4 sm:$0xff] %v3543
        %3674 = vst [vmem:[%s3548] ss:$4 sm:$0xff] %v3544
        %3675 = vst [vmem:[%s3550] ss:$4 sm:$0xff] %v3444
        %v3676 = vld.sshfl [vmem:[#allocation1] sm:$0xff pattern:$0x73625140]
        %v3677 = vsel %vm818, %v3560, 0
        %v3679 = vsel %vm818, %v3561, 0
        %v3681 = vsel %vm818, %v3570, 0
        %v3683 = vsel %vm818, %v3571, 0
        %v3685 = vsel %vm818, %v3580, 0
        %v3687 = vsel %vm818, %v3581, 0
        %v3689 = vsel %vm818, %v3590, 0
        %v3691 = vsel %vm818, %v3591, 0
        %v3693 = vsel %vm818, %v3600, 0
        %v3695 = vsel %vm818, %v3601, 0
        %v3697 = vsel %vm818, %v3610, 0
        %v3699 = vsel %vm818, %v3611, 0
        %v3701 = vsel %vm818, %v3620, 0
        %v3703 = vsel %vm818, %v3621, 0
        %v3705 = vsel %vm818, %v3630, 0
        %v3707 = vsel %vm818, %v3631, 0
        %v3709 = vsel %vm818, %v3640, 0
        %v3711 = vsel %vm818, %v3641, 0
        %v3713 = vsel %vm818, %v3650, 0
        %v3715 = vsel %vm818, %v3651, 0
        %v3717 = vsel %vm818, %v3660, 0
        %v3719 = vsel %vm818, %v3661, 0
        %v3721 = vsel %vm818, %v3670, 0
        %v3723 = vsel %vm818, %v3671, 0
        %v3725 = vsel %vm818, %v3676, 0
        %3727 = vmatpush.msra.mxu0 0.0
        %3728 = vmatpush.msra.mxu0 0.0
        %3729 = vmatpush.msra.mxu0 0.0
        %3730 = vmatpush.msra.mxu0 0.0
        %3731 = vmatpush.msra.mxu0 0.0
        %3732 = vmatpush.msra.mxu0 0.0
        %3733 = vmatpush.msra.mxu0 0.0
        %3734 = vmatpush.msra.mxu0 0.0
        %3735 = vmatpush.msra.mxu0 0.0
        %3736 = vmatpush.msra.mxu0 0.0
        %3737 = vmatpush.msra.mxu0 0.0
        %3738 = vmatpush.msra.mxu0 0.0
        %3739 = vmatpush.msra.mxu0 %v680
        %3740 = vmatpush.msra.mxu0 %v679
        %3741 = vmatpush.msra.mxu0 %v678
        %3742 = vmatpush.msra.mxu0 %v677
        %3743 = vmatmul.f32.gmra.mxu0 %v3677
        %v3744 = vpop.f32.mrf.mxu0
        %v3745 = vadd.f32 0.0, %v3744
        %3746 = vmatmul.f32.gmra.mxu0 %v3679
        %v3747 = vpop.f32.mrf.mxu0
        %v3748 = vadd.f32 0.0, %v3747
        %3749 = vmatmul.f32.gmra.mxu0 %v3681
        %v3750 = vpop.f32.mrf.mxu0
        %v3751 = vadd.f32 0.0, %v3750
        %3752 = vmatmul.f32.gmra.mxu0 %v3683
        %v3753 = vpop.f32.mrf.mxu0
        %v3754 = vadd.f32 0.0, %v3753
        %3755 = vmatmul.f32.gmra.mxu0 %v3685
        %v3756 = vpop.f32.mrf.mxu0
        %v3757 = vadd.f32 0.0, %v3756
        %3758 = vmatmul.f32.gmra.mxu0 %v3687
        %v3759 = vpop.f32.mrf.mxu0
        %v3760 = vadd.f32 0.0, %v3759
        %3761 = vmatmul.f32.gmra.mxu0 %v3689
        %v3762 = vpop.f32.mrf.mxu0
        %v3763 = vadd.f32 0.0, %v3762
        %3764 = vmatmul.f32.gmra.mxu0 %v3691
        %v3765 = vpop.f32.mrf.mxu0
        %v3766 = vadd.f32 0.0, %v3765
        %3767 = vmatmul.f32.gmra.mxu0 %v3693
        %v3768 = vpop.f32.mrf.mxu0
        %v3769 = vadd.f32 0.0, %v3768
        %3770 = vmatmul.f32.gmra.mxu0 %v3695
        %v3771 = vpop.f32.mrf.mxu0
        %v3772 = vadd.f32 0.0, %v3771
        %3773 = vmatmul.f32.gmra.mxu0 %v3697
        %v3774 = vpop.f32.mrf.mxu0
        %v3775 = vadd.f32 0.0, %v3774
        %3776 = vmatmul.f32.gmra.mxu0 %v3699
        %v3777 = vpop.f32.mrf.mxu0
        %v3778 = vadd.f32 0.0, %v3777
        %3779 = vmatmul.f32.gmra.mxu0 %v3701
        %v3780 = vpop.f32.mrf.mxu0
        %v3781 = vadd.f32 0.0, %v3780
        %3782 = vmatmul.f32.gmra.mxu0 %v3703
        %v3783 = vpop.f32.mrf.mxu0
        %v3784 = vadd.f32 0.0, %v3783
        %3785 = vmatmul.f32.gmra.mxu0 %v3705
        %v3786 = vpop.f32.mrf.mxu0
        %v3787 = vadd.f32 0.0, %v3786
        %3788 = vmatmul.f32.gmra.mxu0 %v3707
        %v3789 = vpop.f32.mrf.mxu0
        %v3790 = vadd.f32 0.0, %v3789
        %3791 = vmatmul.f32.gmra.mxu0 %v3709
        %v3792 = vpop.f32.mrf.mxu0
        %v3793 = vadd.f32 0.0, %v3792
        %3794 = vmatmul.f32.gmra.mxu0 %v3711
        %v3795 = vpop.f32.mrf.mxu0
        %v3796 = vadd.f32 0.0, %v3795
        %3797 = vmatmul.f32.gmra.mxu0 %v3713
        %v3798 = vpop.f32.mrf.mxu0
        %v3799 = vadd.f32 0.0, %v3798
        %3800 = vmatmul.f32.gmra.mxu0 %v3715
        %v3801 = vpop.f32.mrf.mxu0
        %v3802 = vadd.f32 0.0, %v3801
        %3803 = vmatmul.f32.gmra.mxu0 %v3717
        %v3804 = vpop.f32.mrf.mxu0
        %v3805 = vadd.f32 0.0, %v3804
        %3806 = vmatmul.f32.gmra.mxu0 %v3719
        %v3807 = vpop.f32.mrf.mxu0
        %v3808 = vadd.f32 0.0, %v3807
        %3809 = vmatmul.f32.gmra.mxu0 %v3721
        %v3810 = vpop.f32.mrf.mxu0
        %v3811 = vadd.f32 0.0, %v3810
        %3812 = vmatmul.f32.gmra.mxu0 %v3723
        %v3813 = vpop.f32.mrf.mxu0
        %v3814 = vadd.f32 0.0, %v3813
        %3815 = vmatmul.f32.gmra.mxu0 %v3725
        %v3816 = vpop.f32.mrf.mxu0
        %v3817 = vadd.f32 0.0, %v3816
        %3818 = vdwg.mxu0
        %v3844 = vrot.slane %v3745, 2
        %v3845 = vrot.slane %v3745, 4
        %v3846 = vrot.slane %v3745, 6
        %v3847 = vrot.slane %v3748, 2
        %v3848 = vrot.slane %v3748, 4
        %v3849 = vrot.slane %v3748, 6
        %v3850 = vrot.slane %v3751, 2
        %v3851 = vrot.slane %v3751, 4
        %v3852 = vrot.slane %v3751, 6
        %v3853 = vrot.slane %v3754, 2
        %v3854 = vrot.slane %v3754, 4
        %v3855 = vrot.slane %v3754, 6
        %v3856 = vrot.slane %v3757, 2
        %v3857 = vrot.slane %v3757, 4
        %v3858 = vrot.slane %v3757, 6
        %v3859 = vrot.slane %v3760, 2
        %v3860 = vrot.slane %v3760, 4
        %v3861 = vrot.slane %v3760, 6
        %v3862 = vrot.slane %v3763, 2
        %v3863 = vrot.slane %v3763, 4
        %v3864 = vrot.slane %v3763, 6
        %v3865 = vrot.slane %v3766, 2
        %v3866 = vrot.slane %v3766, 4
        %v3867 = vrot.slane %v3766, 6
        %v3868 = vrot.slane %v3769, 2
        %v3869 = vrot.slane %v3769, 4
        %v3870 = vrot.slane %v3769, 6
        %v3871 = vrot.slane %v3772, 2
        %v3872 = vrot.slane %v3772, 4
        %v3873 = vrot.slane %v3772, 6
        %v3874 = vrot.slane %v3775, 2
        %v3875 = vrot.slane %v3775, 4
        %v3876 = vrot.slane %v3775, 6
        %v3877 = vrot.slane %v3778, 2
        %v3878 = vrot.slane %v3778, 4
        %v3879 = vrot.slane %v3778, 6
        %v3880 = vrot.slane %v3781, 2
        %v3881 = vrot.slane %v3781, 4
        %v3882 = vrot.slane %v3781, 6
        %v3883 = vrot.slane %v3784, 2
        %v3884 = vrot.slane %v3784, 4
        %v3885 = vrot.slane %v3784, 6
        %v3886 = vrot.slane %v3787, 2
        %v3887 = vrot.slane %v3787, 4
        %v3888 = vrot.slane %v3787, 6
        %v3889 = vrot.slane %v3790, 2
        %v3890 = vrot.slane %v3790, 4
        %v3891 = vrot.slane %v3790, 6
        %v3892 = vrot.slane %v3793, 2
        %v3893 = vrot.slane %v3793, 4
        %v3894 = vrot.slane %v3793, 6
        %v3895 = vrot.slane %v3796, 2
        %v3896 = vrot.slane %v3796, 4
        %v3897 = vrot.slane %v3796, 6
        %v3898 = vrot.slane %v3799, 2
        %v3899 = vrot.slane %v3799, 4
        %v3900 = vrot.slane %v3799, 6
        %v3901 = vrot.slane %v3802, 2
        %v3902 = vrot.slane %v3802, 4
        %v3903 = vrot.slane %v3802, 6
        %v3904 = vrot.slane %v3805, 2
        %v3905 = vrot.slane %v3805, 4
        %v3906 = vrot.slane %v3805, 6
        %v3907 = vrot.slane %v3808, 2
        %v3908 = vrot.slane %v3808, 4
        %v3909 = vrot.slane %v3808, 6
        %v3910 = vrot.slane %v3811, 2
        %v3911 = vrot.slane %v3811, 4
        %v3912 = vrot.slane %v3811, 6
        %v3913 = vrot.slane %v3814, 2
        %v3914 = vrot.slane %v3814, 4
        %v3915 = vrot.slane %v3814, 6
        %v3916 = vrot.slane %v3817, 2
        %v3917 = vrot.slane %v3817, 4
        %v3918 = vrot.slane %v3817, 6
        %v3994 = vmul.f32 %v3745, 0.35355338
        %v3995 = vmul.f32 %v3844, 0.35355338
        %v3996 = vmul.f32 %v3845, 0.35355338
        %v3997 = vmul.f32 %v3846, 0.35355338
        %v3998 = vmul.f32 %v3748, 0.35355338
        %v3999 = vmul.f32 %v3847, 0.35355338
        %v4000 = vmul.f32 %v3848, 0.35355338
        %v4001 = vmul.f32 %v3849, 0.35355338
        %v4002 = vmul.f32 %v3751, 0.35355338
        %v4003 = vmul.f32 %v3850, 0.35355338
        %v4004 = vmul.f32 %v3851, 0.35355338
        %v4005 = vmul.f32 %v3852, 0.35355338
        %v4006 = vmul.f32 %v3754, 0.35355338
        %v4007 = vmul.f32 %v3853, 0.35355338
        %v4008 = vmul.f32 %v3854, 0.35355338
        %v4009 = vmul.f32 %v3855, 0.35355338
        %v4010 = vmul.f32 %v3757, 0.35355338
        %v4011 = vmul.f32 %v3856, 0.35355338
        %v4012 = vmul.f32 %v3857, 0.35355338
        %v4013 = vmul.f32 %v3858, 0.35355338
        %v4014 = vmul.f32 %v3760, 0.35355338
        %v4015 = vmul.f32 %v3859, 0.35355338
        %v4016 = vmul.f32 %v3860, 0.35355338
        %v4017 = vmul.f32 %v3861, 0.35355338
        %v4018 = vmul.f32 %v3763, 0.35355338
        %v4019 = vmul.f32 %v3862, 0.35355338
        %v4020 = vmul.f32 %v3863, 0.35355338
        %v4021 = vmul.f32 %v3864, 0.35355338
        %v4022 = vmul.f32 %v3766, 0.35355338
        %v4023 = vmul.f32 %v3865, 0.35355338
        %v4024 = vmul.f32 %v3866, 0.35355338
        %v4025 = vmul.f32 %v3867, 0.35355338
        %v4026 = vmul.f32 %v3769, 0.35355338
        %v4027 = vmul.f32 %v3868, 0.35355338
        %v4028 = vmul.f32 %v3869, 0.35355338
        %v4029 = vmul.f32 %v3870, 0.35355338
        %v4030 = vmul.f32 %v3772, 0.35355338
        %v4031 = vmul.f32 %v3871, 0.35355338
        %v4032 = vmul.f32 %v3872, 0.35355338
        %v4033 = vmul.f32 %v3873, 0.35355338
        %v4034 = vmul.f32 %v3775, 0.35355338
        %v4035 = vmul.f32 %v3874, 0.35355338
        %v4036 = vmul.f32 %v3875, 0.35355338
        %v4037 = vmul.f32 %v3876, 0.35355338
        %v4038 = vmul.f32 %v3778, 0.35355338
        %v4039 = vmul.f32 %v3877, 0.35355338
        %v4040 = vmul.f32 %v3878, 0.35355338
        %v4041 = vmul.f32 %v3879, 0.35355338
        %v4042 = vmul.f32 %v3781, 0.35355338
        %v4043 = vmul.f32 %v3880, 0.35355338
        %v4044 = vmul.f32 %v3881, 0.35355338
        %v4045 = vmul.f32 %v3882, 0.35355338
        %v4046 = vmul.f32 %v3784, 0.35355338
        %v4047 = vmul.f32 %v3883, 0.35355338
        %v4048 = vmul.f32 %v3884, 0.35355338
        %v4049 = vmul.f32 %v3885, 0.35355338
        %v4050 = vmul.f32 %v3787, 0.35355338
        %v4051 = vmul.f32 %v3886, 0.35355338
        %v4052 = vmul.f32 %v3887, 0.35355338
        %v4053 = vmul.f32 %v3888, 0.35355338
        %v4054 = vmul.f32 %v3790, 0.35355338
        %v4055 = vmul.f32 %v3889, 0.35355338
        %v4056 = vmul.f32 %v3890, 0.35355338
        %v4057 = vmul.f32 %v3891, 0.35355338
        %v4058 = vmul.f32 %v3793, 0.35355338
        %v4059 = vmul.f32 %v3892, 0.35355338
        %v4060 = vmul.f32 %v3893, 0.35355338
        %v4061 = vmul.f32 %v3894, 0.35355338
        %v4062 = vmul.f32 %v3796, 0.35355338
        %v4063 = vmul.f32 %v3895, 0.35355338
        %v4064 = vmul.f32 %v3896, 0.35355338
        %v4065 = vmul.f32 %v3897, 0.35355338
        %v4066 = vmul.f32 %v3799, 0.35355338
        %v4067 = vmul.f32 %v3898, 0.35355338
        %v4068 = vmul.f32 %v3899, 0.35355338
        %v4069 = vmul.f32 %v3900, 0.35355338
        %v4070 = vmul.f32 %v3802, 0.35355338
        %v4071 = vmul.f32 %v3901, 0.35355338
        %v4072 = vmul.f32 %v3902, 0.35355338
        %v4073 = vmul.f32 %v3903, 0.35355338
        %v4074 = vmul.f32 %v3805, 0.35355338
        %v4075 = vmul.f32 %v3904, 0.35355338
        %v4076 = vmul.f32 %v3905, 0.35355338
        %v4077 = vmul.f32 %v3906, 0.35355338
        %v4078 = vmul.f32 %v3808, 0.35355338
        %v4079 = vmul.f32 %v3907, 0.35355338
        %v4080 = vmul.f32 %v3908, 0.35355338
        %v4081 = vmul.f32 %v3909, 0.35355338
        %v4082 = vmul.f32 %v3811, 0.35355338
        %v4083 = vmul.f32 %v3910, 0.35355338
        %v4084 = vmul.f32 %v3911, 0.35355338
        %v4085 = vmul.f32 %v3912, 0.35355338
        %v4086 = vmul.f32 %v3814, 0.35355338
        %v4087 = vmul.f32 %v3913, 0.35355338
        %v4088 = vmul.f32 %v3914, 0.35355338
        %v4089 = vmul.f32 %v3915, 0.35355338
        %v4090 = vmul.f32 %v3817, 0.35355338
        %v4091 = vmul.f32 %v3916, 0.35355338
        %v4092 = vmul.f32 %v3917, 0.35355338
        %v4093 = vmul.f32 %v3918, 0.35355338
        %4194 = vst [vmem:[#allocation1] ss:$4 sm:$0xff] %v3994
        %s4195 = scalar_lea.vmem [#allocation1], 1
        %4196 = vst [vmem:[%s4195] ss:$4 sm:$0xff] %v3995
        %s4197 = scalar_lea.vmem [#allocation1], 2
        %4198 = vst [vmem:[%s4197] ss:$4 sm:$0xff] %v3996
        %s4199 = scalar_lea.vmem [#allocation1], 3
        %4200 = vst [vmem:[%s4199] ss:$4 sm:$0xff] %v3997
        %s4201 = scalar_lea.vmem [#allocation1], 32
        %4202 = vst [vmem:[%s4201] ss:$4 sm:$0xff] %v3998
        %v4203 = vld.sshfl [vmem:[#allocation1] sm:$0xff pattern:$0x73625140]
        %v4204 = vld.sshfl [vmem:[#allocation1 + $0x20] sm:$0xff pattern:$0x73625140]
        %4205 = vst [vmem:[#allocation1] ss:$4 sm:$0xff] %v3999
        %4206 = vst [vmem:[%s4195] ss:$4 sm:$0xff] %v4000
        %4207 = vst [vmem:[%s4197] ss:$4 sm:$0xff] %v4001
        %4208 = vst [vmem:[%s4199] ss:$4 sm:$0xff] %v4002
        %4209 = vst [vmem:[%s4201] ss:$4 sm:$0xff] %v4003
        %v4210 = vld.sshfl [vmem:[#allocation1] sm:$0xff pattern:$0x73625140]
        %v4211 = vld.sshfl [vmem:[#allocation1 + $0x20] sm:$0xff pattern:$0x73625140]
        %4212 = vst [vmem:[#allocation1] ss:$4 sm:$0xff] %v4004
        %4213 = vst [vmem:[%s4195] ss:$4 sm:$0xff] %v4005
        %4214 = vst [vmem:[%s4197] ss:$4 sm:$0xff] %v4006
        %4215 = vst [vmem:[%s4199] ss:$4 sm:$0xff] %v4007
        %4216 = vst [vmem:[%s4201] ss:$4 sm:$0xff] %v4008
        %v4217 = vld.sshfl [vmem:[#allocation1] sm:$0xff pattern:$0x73625140]
        %v4218 = vld.sshfl [vmem:[#allocation1 + $0x20] sm:$0xff pattern:$0x73625140]
        %4219 = vst [vmem:[#allocation1] ss:$4 sm:$0xff] %v4009
        %4220 = vst [vmem:[%s4195] ss:$4 sm:$0xff] %v4010
        %4221 = vst [vmem:[%s4197] ss:$4 sm:$0xff] %v4011
        %4222 = vst [vmem:[%s4199] ss:$4 sm:$0xff] %v4012
        %4223 = vst [vmem:[%s4201] ss:$4 sm:$0xff] %v4013
        %v4224 = vld.sshfl [vmem:[#allocation1] sm:$0xff pattern:$0x73625140]
        %v4225 = vld.sshfl [vmem:[#allocation1 + $0x20] sm:$0xff pattern:$0x73625140]
        %4226 = vst [vmem:[#allocation1] ss:$4 sm:$0xff] %v4014
        %4227 = vst [vmem:[%s4195] ss:$4 sm:$0xff] %v4015
        %4228 = vst [vmem:[%s4197] ss:$4 sm:$0xff] %v4016
        %4229 = vst [vmem:[%s4199] ss:$4 sm:$0xff] %v4017
        %4230 = vst [vmem:[%s4201] ss:$4 sm:$0xff] %v4018
        %v4231 = vld.sshfl [vmem:[#allocation1] sm:$0xff pattern:$0x73625140]
        %v4232 = vld.sshfl [vmem:[#allocation1 + $0x20] sm:$0xff pattern:$0x73625140]
        %4233 = vst [vmem:[#allocation1] ss:$4 sm:$0xff] %v4019
        %4234 = vst [vmem:[%s4195] ss:$4 sm:$0xff] %v4020
        %4235 = vst [vmem:[%s4197] ss:$4 sm:$0xff] %v4021
        %4236 = vst [vmem:[%s4199] ss:$4 sm:$0xff] %v4022
        %4237 = vst [vmem:[%s4201] ss:$4 sm:$0xff] %v4023
        %v4238 = vld.sshfl [vmem:[#allocation1] sm:$0xff pattern:$0x73625140]
        %v4239 = vld.sshfl [vmem:[#allocation1 + $0x20] sm:$0xff pattern:$0x73625140]
        %4240 = vst [vmem:[#allocation1] ss:$4 sm:$0xff] %v4024
        %4241 = vst [vmem:[%s4195] ss:$4 sm:$0xff] %v4025
        %4242 = vst [vmem:[%s4197] ss:$4 sm:$0xff] %v4026
        %4243 = vst [vmem:[%s4199] ss:$4 sm:$0xff] %v4027
        %4244 = vst [vmem:[%s4201] ss:$4 sm:$0xff] %v4028
        %v4245 = vld.sshfl [vmem:[#allocation1] sm:$0xff pattern:$0x73625140]
        %v4246 = vld.sshfl [vmem:[#allocation1 + $0x20] sm:$0xff pattern:$0x73625140]
        %4247 = vst [vmem:[#allocation1] ss:$4 sm:$0xff] %v4029
        %4248 = vst [vmem:[%s4195] ss:$4 sm:$0xff] %v4030
        %4249 = vst [vmem:[%s4197] ss:$4 sm:$0xff] %v4031
        %4250 = vst [vmem:[%s4199] ss:$4 sm:$0xff] %v4032
        %4251 = vst [vmem:[%s4201] ss:$4 sm:$0xff] %v4033
        %v4252 = vld.sshfl [vmem:[#allocation1] sm:$0xff pattern:$0x73625140]
        %v4253 = vld.sshfl [vmem:[#allocation1 + $0x20] sm:$0xff pattern:$0x73625140]
        %4254 = vst [vmem:[#allocation1] ss:$4 sm:$0xff] %v4034
        %4255 = vst [vmem:[%s4195] ss:$4 sm:$0xff] %v4035
        %4256 = vst [vmem:[%s4197] ss:$4 sm:$0xff] %v4036
        %4257 = vst [vmem:[%s4199] ss:$4 sm:$0xff] %v4037
        %4258 = vst [vmem:[%s4201] ss:$4 sm:$0xff] %v4038
        %v4259 = vld.sshfl [vmem:[#allocation1] sm:$0xff pattern:$0x73625140]
        %v4260 = vld.sshfl [vmem:[#allocation1 + $0x20] sm:$0xff pattern:$0x73625140]
        %4261 = vst [vmem:[#allocation1] ss:$4 sm:$0xff] %v4039
        %4262 = vst [vmem:[%s4195] ss:$4 sm:$0xff] %v4040
        %4263 = vst [vmem:[%s4197] ss:$4 sm:$0xff] %v4041
        %4264 = vst [vmem:[%s4199] ss:$4 sm:$0xff] %v4042
        %4265 = vst [vmem:[%s4201] ss:$4 sm:$0xff] %v4043
        %v4266 = vld.sshfl [vmem:[#allocation1] sm:$0xff pattern:$0x73625140]
        %v4267 = vld.sshfl [vmem:[#allocation1 + $0x20] sm:$0xff pattern:$0x73625140]
        %4268 = vst [vmem:[#allocation1] ss:$4 sm:$0xff] %v4044
        %4269 = vst [vmem:[%s4195] ss:$4 sm:$0xff] %v4045
        %4270 = vst [vmem:[%s4197] ss:$4 sm:$0xff] %v4046
        %4271 = vst [vmem:[%s4199] ss:$4 sm:$0xff] %v4047
        %4272 = vst [vmem:[%s4201] ss:$4 sm:$0xff] %v4048
        %v4273 = vld.sshfl [vmem:[#allocation1] sm:$0xff pattern:$0x73625140]
        %v4274 = vld.sshfl [vmem:[#allocation1 + $0x20] sm:$0xff pattern:$0x73625140]
        %4275 = vst [vmem:[#allocation1] ss:$4 sm:$0xff] %v4049
        %4276 = vst [vmem:[%s4195] ss:$4 sm:$0xff] %v4050
        %4277 = vst [vmem:[%s4197] ss:$4 sm:$0xff] %v4051
        %4278 = vst [vmem:[%s4199] ss:$4 sm:$0xff] %v4052
        %4279 = vst [vmem:[%s4201] ss:$4 sm:$0xff] %v4053
        %v4280 = vld.sshfl [vmem:[#allocation1] sm:$0xff pattern:$0x73625140]
        %v4281 = vld.sshfl [vmem:[#allocation1 + $0x20] sm:$0xff pattern:$0x73625140]
        %4282 = vst [vmem:[#allocation1] ss:$4 sm:$0xff] %v4054
        %4283 = vst [vmem:[%s4195] ss:$4 sm:$0xff] %v4055
        %4284 = vst [vmem:[%s4197] ss:$4 sm:$0xff] %v4056
        %4285 = vst [vmem:[%s4199] ss:$4 sm:$0xff] %v4057
        %4286 = vst [vmem:[%s4201] ss:$4 sm:$0xff] %v4058
        %v4287 = vld.sshfl [vmem:[#allocation1] sm:$0xff pattern:$0x73625140]
        %v4288 = vld.sshfl [vmem:[#allocation1 + $0x20] sm:$0xff pattern:$0x73625140]
        %4289 = vst [vmem:[#allocation1] ss:$4 sm:$0xff] %v4059
        %4290 = vst [vmem:[%s4195] ss:$4 sm:$0xff] %v4060
        %4291 = vst [vmem:[%s4197] ss:$4 sm:$0xff] %v4061
        %4292 = vst [vmem:[%s4199] ss:$4 sm:$0xff] %v4062
        %4293 = vst [vmem:[%s4201] ss:$4 sm:$0xff] %v4063
        %v4294 = vld.sshfl [vmem:[#allocation1] sm:$0xff pattern:$0x73625140]
        %v4295 = vld.sshfl [vmem:[#allocation1 + $0x20] sm:$0xff pattern:$0x73625140]
        %4296 = vst [vmem:[#allocation1] ss:$4 sm:$0xff] %v4064
        %4297 = vst [vmem:[%s4195] ss:$4 sm:$0xff] %v4065
        %4298 = vst [vmem:[%s4197] ss:$4 sm:$0xff] %v4066
        %4299 = vst [vmem:[%s4199] ss:$4 sm:$0xff] %v4067
        %4300 = vst [vmem:[%s4201] ss:$4 sm:$0xff] %v4068
        %v4301 = vld.sshfl [vmem:[#allocation1] sm:$0xff pattern:$0x73625140]
        %v4302 = vld.sshfl [vmem:[#allocation1 + $0x20] sm:$0xff pattern:$0x73625140]
        %4303 = vst [vmem:[#allocation1] ss:$4 sm:$0xff] %v4069
        %4304 = vst [vmem:[%s4195] ss:$4 sm:$0xff] %v4070
        %4305 = vst [vmem:[%s4197] ss:$4 sm:$0xff] %v4071
        %4306 = vst [vmem:[%s4199] ss:$4 sm:$0xff] %v4072
        %4307 = vst [vmem:[%s4201] ss:$4 sm:$0xff] %v4073
        %v4308 = vld.sshfl [vmem:[#allocation1] sm:$0xff pattern:$0x73625140]
        %v4309 = vld.sshfl [vmem:[#allocation1 + $0x20] sm:$0xff pattern:$0x73625140]
        %4310 = vst [vmem:[#allocation1] ss:$4 sm:$0xff] %v4074
        %4311 = vst [vmem:[%s4195] ss:$4 sm:$0xff] %v4075
        %4312 = vst [vmem:[%s4197] ss:$4 sm:$0xff] %v4076
        %4313 = vst [vmem:[%s4199] ss:$4 sm:$0xff] %v4077
        %4314 = vst [vmem:[%s4201] ss:$4 sm:$0xff] %v4078
        %v4315 = vld.sshfl [vmem:[#allocation1] sm:$0xff pattern:$0x73625140]
        %v4316 = vld.sshfl [vmem:[#allocation1 + $0x20] sm:$0xff pattern:$0x73625140]
        %4317 = vst [vmem:[#allocation1] ss:$4 sm:$0xff] %v4079
        %4318 = vst [vmem:[%s4195] ss:$4 sm:$0xff] %v4080
        %4319 = vst [vmem:[%s4197] ss:$4 sm:$0xff] %v4081
        %4320 = vst [vmem:[%s4199] ss:$4 sm:$0xff] %v4082
        %4321 = vst [vmem:[%s4201] ss:$4 sm:$0xff] %v4083
        %v4322 = vld.sshfl [vmem:[#allocation1] sm:$0xff pattern:$0x73625140]
        %v4323 = vld.sshfl [vmem:[#allocation1 + $0x20] sm:$0xff pattern:$0x73625140]
        %4324 = vst [vmem:[#allocation1] ss:$4 sm:$0xff] %v4084
        %4325 = vst [vmem:[%s4195] ss:$4 sm:$0xff] %v4085
        %4326 = vst [vmem:[%s4197] ss:$4 sm:$0xff] %v4086
        %4327 = vst [vmem:[%s4199] ss:$4 sm:$0xff] %v4087
        %4328 = vst [vmem:[%s4201] ss:$4 sm:$0xff] %v4088
        %v4329 = vld.sshfl [vmem:[#allocation1] sm:$0xff pattern:$0x73625140]
        %v4330 = vld.sshfl [vmem:[#allocation1 + $0x20] sm:$0xff pattern:$0x73625140]
        %4331 = vst [vmem:[#allocation1] ss:$4 sm:$0xff] %v4089
        %4332 = vst [vmem:[%s4195] ss:$4 sm:$0xff] %v4090
        %4333 = vst [vmem:[%s4197] ss:$4 sm:$0xff] %v4091
        %4334 = vst [vmem:[%s4199] ss:$4 sm:$0xff] %v4092
        %4335 = vst [vmem:[%s4201] ss:$4 sm:$0xff] %v4093
        %v4336 = vld.sshfl [vmem:[#allocation1] sm:$0xff pattern:$0x73625140]
        %v4337 = vld.sshfl [vmem:[#allocation1 + $0x20] sm:$0xff pattern:$0x73625140]
        %v4378 = vsel %vm1508, %v4203, -inf
        %vm4379 = vcmask 25600
        %v4380 = vsel %vm4379, %v4204, -inf
        %v4381 = vmax.f32 %v4378, %v4380
        %v4382 = vrot.slane %v4381, 4
        %v4383 = vmax.f32 %v4381, %v4382
        %v4384 = vrot.slane %v4383, 2
        %v4385 = vmax.f32 %v4383, %v4384
        %v4386 = vrot.slane %v4385, 1
        %v4387 = vmax.f32 %v4385, %v4386
        %v4388 = vsel %vm1508, %v4210, -inf
        %v4389 = vsel %vm4379, %v4211, -inf
        %v4390 = vmax.f32 %v4388, %v4389
        %v4391 = vrot.slane %v4390, 4
        %v4392 = vmax.f32 %v4390, %v4391
        %v4393 = vrot.slane %v4392, 2
        %v4394 = vmax.f32 %v4392, %v4393
        %v4395 = vrot.slane %v4394, 1
        %v4396 = vmax.f32 %v4394, %v4395
        %v4397 = vsel %vm1508, %v4217, -inf
        %v4398 = vsel %vm4379, %v4218, -inf
        %v4399 = vmax.f32 %v4397, %v4398
        %v4400 = vrot.slane %v4399, 4
        %v4401 = vmax.f32 %v4399, %v4400
        %v4402 = vrot.slane %v4401, 2
        %v4403 = vmax.f32 %v4401, %v4402
        %v4404 = vrot.slane %v4403, 1
        %v4405 = vmax.f32 %v4403, %v4404
        %v4406 = vsel %vm1508, %v4224, -inf
        %v4407 = vsel %vm4379, %v4225, -inf
        %v4408 = vmax.f32 %v4406, %v4407
        %v4409 = vrot.slane %v4408, 4
        %v4410 = vmax.f32 %v4408, %v4409
        %v4411 = vrot.slane %v4410, 2
        %v4412 = vmax.f32 %v4410, %v4411
        %v4413 = vrot.slane %v4412, 1
        %v4414 = vmax.f32 %v4412, %v4413
        %v4415 = vsel %vm1508, %v4231, -inf
        %v4416 = vsel %vm4379, %v4232, -inf
        %v4417 = vmax.f32 %v4415, %v4416
        %v4418 = vrot.slane %v4417, 4
        %v4419 = vmax.f32 %v4417, %v4418
        %v4420 = vrot.slane %v4419, 2
        %v4421 = vmax.f32 %v4419, %v4420
        %v4422 = vrot.slane %v4421, 1
        %v4423 = vmax.f32 %v4421, %v4422
        %v4424 = vsel %vm1508, %v4238, -inf
        %v4425 = vsel %vm4379, %v4239, -inf
        %v4426 = vmax.f32 %v4424, %v4425
        %v4427 = vrot.slane %v4426, 4
        %v4428 = vmax.f32 %v4426, %v4427
        %v4429 = vrot.slane %v4428, 2
        %v4430 = vmax.f32 %v4428, %v4429
        %v4431 = vrot.slane %v4430, 1
        %v4432 = vmax.f32 %v4430, %v4431
        %v4433 = vsel %vm1508, %v4245, -inf
        %v4434 = vsel %vm4379, %v4246, -inf
        %v4435 = vmax.f32 %v4433, %v4434
        %v4436 = vrot.slane %v4435, 4
        %v4437 = vmax.f32 %v4435, %v4436
        %v4438 = vrot.slane %v4437, 2
        %v4439 = vmax.f32 %v4437, %v4438
        %v4440 = vrot.slane %v4439, 1
        %v4441 = vmax.f32 %v4439, %v4440
        %v4442 = vsel %vm1508, %v4252, -inf
        %v4443 = vsel %vm4379, %v4253, -inf
        %v4444 = vmax.f32 %v4442, %v4443
        %v4445 = vrot.slane %v4444, 4
        %v4446 = vmax.f32 %v4444, %v4445
        %v4447 = vrot.slane %v4446, 2
        %v4448 = vmax.f32 %v4446, %v4447
        %v4449 = vrot.slane %v4448, 1
        %v4450 = vmax.f32 %v4448, %v4449
        %v4451 = vsel %vm1508, %v4259, -inf
        %v4452 = vsel %vm4379, %v4260, -inf
        %v4453 = vmax.f32 %v4451, %v4452
        %v4454 = vrot.slane %v4453, 4
        %v4455 = vmax.f32 %v4453, %v4454
        %v4456 = vrot.slane %v4455, 2
        %v4457 = vmax.f32 %v4455, %v4456
        %v4458 = vrot.slane %v4457, 1
        %v4459 = vmax.f32 %v4457, %v4458
        %v4460 = vsel %vm1508, %v4266, -inf
        %v4461 = vsel %vm4379, %v4267, -inf
        %v4462 = vmax.f32 %v4460, %v4461
        %v4463 = vrot.slane %v4462, 4
        %v4464 = vmax.f32 %v4462, %v4463
        %v4465 = vrot.slane %v4464, 2
        %v4466 = vmax.f32 %v4464, %v4465
        %v4467 = vrot.slane %v4466, 1
        %v4468 = vmax.f32 %v4466, %v4467
        %v4469 = vsel %vm1508, %v4273, -inf
        %v4470 = vsel %vm4379, %v4274, -inf
        %v4471 = vmax.f32 %v4469, %v4470
        %v4472 = vrot.slane %v4471, 4
        %v4473 = vmax.f32 %v4471, %v4472
        %v4474 = vrot.slane %v4473, 2
        %v4475 = vmax.f32 %v4473, %v4474
        %v4476 = vrot.slane %v4475, 1
        %v4477 = vmax.f32 %v4475, %v4476
        %v4478 = vsel %vm1508, %v4280, -inf
        %v4479 = vsel %vm4379, %v4281, -inf
        %v4480 = vmax.f32 %v4478, %v4479
        %v4481 = vrot.slane %v4480, 4
        %v4482 = vmax.f32 %v4480, %v4481
        %v4483 = vrot.slane %v4482, 2
        %v4484 = vmax.f32 %v4482, %v4483
        %v4485 = vrot.slane %v4484, 1
        %v4486 = vmax.f32 %v4484, %v4485
        %v4487 = vsel %vm1508, %v4287, -inf
        %v4488 = vsel %vm4379, %v4288, -inf
        %v4489 = vmax.f32 %v4487, %v4488
        %v4490 = vrot.slane %v4489, 4
        %v4491 = vmax.f32 %v4489, %v4490
        %v4492 = vrot.slane %v4491, 2
        %v4493 = vmax.f32 %v4491, %v4492
        %v4494 = vrot.slane %v4493, 1
        %v4495 = vmax.f32 %v4493, %v4494
        %v4496 = vsel %vm1508, %v4294, -inf
        %v4497 = vsel %vm4379, %v4295, -inf
        %v4498 = vmax.f32 %v4496, %v4497
        %v4499 = vrot.slane %v4498, 4
        %v4500 = vmax.f32 %v4498, %v4499
        %v4501 = vrot.slane %v4500, 2
        %v4502 = vmax.f32 %v4500, %v4501
        %v4503 = vrot.slane %v4502, 1
        %v4504 = vmax.f32 %v4502, %v4503
        %v4505 = vsel %vm1508, %v4301, -inf
        %v4506 = vsel %vm4379, %v4302, -inf
        %v4507 = vmax.f32 %v4505, %v4506
        %v4508 = vrot.slane %v4507, 4
        %v4509 = vmax.f32 %v4507, %v4508
        %v4510 = vrot.slane %v4509, 2
        %v4511 = vmax.f32 %v4509, %v4510
        %v4512 = vrot.slane %v4511, 1
        %v4513 = vmax.f32 %v4511, %v4512
        %v4514 = vsel %vm1508, %v4308, -inf
        %v4515 = vsel %vm4379, %v4309, -inf
        %v4516 = vmax.f32 %v4514, %v4515
        %v4517 = vrot.slane %v4516, 4
        %v4518 = vmax.f32 %v4516, %v4517
        %v4519 = vrot.slane %v4518, 2
        %v4520 = vmax.f32 %v4518, %v4519
        %v4521 = vrot.slane %v4520, 1
        %v4522 = vmax.f32 %v4520, %v4521
        %v4523 = vsel %vm1508, %v4315, -inf
        %v4524 = vsel %vm4379, %v4316, -inf
        %v4525 = vmax.f32 %v4523, %v4524
        %v4526 = vrot.slane %v4525, 4
        %v4527 = vmax.f32 %v4525, %v4526
        %v4528 = vrot.slane %v4527, 2
        %v4529 = vmax.f32 %v4527, %v4528
        %v4530 = vrot.slane %v4529, 1
        %v4531 = vmax.f32 %v4529, %v4530
        %v4532 = vsel %vm1508, %v4322, -inf
        %v4533 = vsel %vm4379, %v4323, -inf
        %v4534 = vmax.f32 %v4532, %v4533
        %v4535 = vrot.slane %v4534, 4
        %v4536 = vmax.f32 %v4534, %v4535
        %v4537 = vrot.slane %v4536, 2
        %v4538 = vmax.f32 %v4536, %v4537
        %v4539 = vrot.slane %v4538, 1
        %v4540 = vmax.f32 %v4538, %v4539
        %v4541 = vsel %vm1508, %v4329, -inf
        %v4542 = vsel %vm4379, %v4330, -inf
        %v4543 = vmax.f32 %v4541, %v4542
        %v4544 = vrot.slane %v4543, 4
        %v4545 = vmax.f32 %v4543, %v4544
        %v4546 = vrot.slane %v4545, 2
        %v4547 = vmax.f32 %v4545, %v4546
        %v4548 = vrot.slane %v4547, 1
        %v4549 = vmax.f32 %v4547, %v4548
        %v4550 = vsel %vm1508, %v4336, -inf
        %v4551 = vsel %vm4379, %v4337, -inf
        %v4552 = vmax.f32 %v4550, %v4551
        %v4553 = vrot.slane %v4552, 4
        %v4554 = vmax.f32 %v4552, %v4553
        %v4555 = vrot.slane %v4554, 2
        %v4556 = vmax.f32 %v4554, %v4555
        %v4557 = vrot.slane %v4556, 1
        %v4558 = vmax.f32 %v4556, %v4557
        %v4579 = vrot.slane %v4387, 2
        %v4580 = vrot.slane %v4387, 4
        %v4581 = vrot.slane %v4387, 6
        %v4582 = vrot.slane %v4396, 2
        %v4583 = vrot.slane %v4396, 4
        %v4584 = vrot.slane %v4396, 6
        %v4585 = vrot.slane %v4405, 2
        %v4586 = vrot.slane %v4405, 4
        %v4587 = vrot.slane %v4405, 6
        %v4588 = vrot.slane %v4414, 2
        %v4589 = vrot.slane %v4414, 4
        %v4590 = vrot.slane %v4414, 6
        %v4591 = vrot.slane %v4423, 2
        %v4592 = vrot.slane %v4423, 4
        %v4593 = vrot.slane %v4423, 6
        %v4594 = vrot.slane %v4432, 2
        %v4595 = vrot.slane %v4432, 4
        %v4596 = vrot.slane %v4432, 6
        %v4597 = vrot.slane %v4441, 2
        %v4598 = vrot.slane %v4441, 4
        %v4599 = vrot.slane %v4441, 6
        %v4600 = vrot.slane %v4450, 2
        %v4601 = vrot.slane %v4450, 4
        %v4602 = vrot.slane %v4450, 6
        %v4603 = vrot.slane %v4459, 2
        %v4604 = vrot.slane %v4459, 4
        %v4605 = vrot.slane %v4459, 6
        %v4606 = vrot.slane %v4468, 2
        %v4607 = vrot.slane %v4468, 4
        %v4608 = vrot.slane %v4468, 6
        %v4609 = vrot.slane %v4477, 2
        %v4610 = vrot.slane %v4477, 4
        %v4611 = vrot.slane %v4477, 6
        %v4612 = vrot.slane %v4486, 2
        %v4613 = vrot.slane %v4486, 4
        %v4614 = vrot.slane %v4486, 6
        %v4615 = vrot.slane %v4495, 2
        %v4616 = vrot.slane %v4495, 4
        %v4617 = vrot.slane %v4495, 6
        %v4618 = vrot.slane %v4504, 2
        %v4619 = vrot.slane %v4504, 4
        %v4620 = vrot.slane %v4504, 6
        %v4621 = vrot.slane %v4513, 2
        %v4622 = vrot.slane %v4513, 4
        %v4623 = vrot.slane %v4513, 6
        %v4624 = vrot.slane %v4522, 2
        %v4625 = vrot.slane %v4522, 4
        %v4626 = vrot.slane %v4522, 6
        %v4627 = vrot.slane %v4531, 2
        %v4628 = vrot.slane %v4531, 4
        %v4629 = vrot.slane %v4531, 6
        %v4630 = vrot.slane %v4540, 2
        %v4631 = vrot.slane %v4540, 4
        %v4632 = vrot.slane %v4540, 6
        %v4633 = vrot.slane %v4549, 2
        %v4634 = vrot.slane %v4549, 4
        %v4635 = vrot.slane %v4549, 6
        %v4636 = vrot.slane %v4558, 2
        %v4637 = vrot.slane %v4558, 4
        %v4638 = vrot.slane %v4558, 6
        %v4699 = vsub.f32 %v3994, %v4387
        %v4700 = vsub.f32 %v3995, %v4579
        %v4701 = vsub.f32 %v3996, %v4580
        %v4702 = vsub.f32 %v3997, %v4581
        %v4703 = vsub.f32 %v3998, %v4387
        %v4704 = vsub.f32 %v3999, %v4396
        %v4705 = vsub.f32 %v4000, %v4582
        %v4706 = vsub.f32 %v4001, %v4583
        %v4707 = vsub.f32 %v4002, %v4584
        %v4708 = vsub.f32 %v4003, %v4396
        %v4709 = vsub.f32 %v4004, %v4405
        %v4710 = vsub.f32 %v4005, %v4585
        %v4711 = vsub.f32 %v4006, %v4586
        %v4712 = vsub.f32 %v4007, %v4587
        %v4713 = vsub.f32 %v4008, %v4405
        %v4714 = vsub.f32 %v4009, %v4414
        %v4715 = vsub.f32 %v4010, %v4588
        %v4716 = vsub.f32 %v4011, %v4589
        %v4717 = vsub.f32 %v4012, %v4590
        %v4718 = vsub.f32 %v4013, %v4414
        %v4719 = vsub.f32 %v4014, %v4423
        %v4720 = vsub.f32 %v4015, %v4591
        %v4721 = vsub.f32 %v4016, %v4592
        %v4722 = vsub.f32 %v4017, %v4593
        %v4723 = vsub.f32 %v4018, %v4423
        %v4724 = vsub.f32 %v4019, %v4432
        %v4725 = vsub.f32 %v4020, %v4594
        %v4726 = vsub.f32 %v4021, %v4595
        %v4727 = vsub.f32 %v4022, %v4596
        %v4728 = vsub.f32 %v4023, %v4432
        %v4729 = vsub.f32 %v4024, %v4441
        %v4730 = vsub.f32 %v4025, %v4597
        %v4731 = vsub.f32 %v4026, %v4598
        %v4732 = vsub.f32 %v4027, %v4599
        %v4733 = vsub.f32 %v4028, %v4441
        %v4734 = vsub.f32 %v4029, %v4450
        %v4735 = vsub.f32 %v4030, %v4600
        %v4736 = vsub.f32 %v4031, %v4601
        %v4737 = vsub.f32 %v4032, %v4602
        %v4738 = vsub.f32 %v4033, %v4450
        %v4739 = vsub.f32 %v4034, %v4459
        %v4740 = vsub.f32 %v4035, %v4603
        %v4741 = vsub.f32 %v4036, %v4604
        %v4742 = vsub.f32 %v4037, %v4605
        %v4743 = vsub.f32 %v4038, %v4459
        %v4744 = vsub.f32 %v4039, %v4468
        %v4745 = vsub.f32 %v4040, %v4606
        %v4746 = vsub.f32 %v4041, %v4607
        %v4747 = vsub.f32 %v4042, %v4608
        %v4748 = vsub.f32 %v4043, %v4468
        %v4749 = vsub.f32 %v4044, %v4477
        %v4750 = vsub.f32 %v4045, %v4609
        %v4751 = vsub.f32 %v4046, %v4610
        %v4752 = vsub.f32 %v4047, %v4611
        %v4753 = vsub.f32 %v4048, %v4477
        %v4754 = vsub.f32 %v4049, %v4486
        %v4755 = vsub.f32 %v4050, %v4612
        %v4756 = vsub.f32 %v4051, %v4613
        %v4757 = vsub.f32 %v4052, %v4614
        %v4758 = vsub.f32 %v4053, %v4486
        %v4759 = vsub.f32 %v4054, %v4495
        %v4760 = vsub.f32 %v4055, %v4615
        %v4761 = vsub.f32 %v4056, %v4616
        %v4762 = vsub.f32 %v4057, %v4617
        %v4763 = vsub.f32 %v4058, %v4495
        %v4764 = vsub.f32 %v4059, %v4504
        %v4765 = vsub.f32 %v4060, %v4618
        %v4766 = vsub.f32 %v4061, %v4619
        %v4767 = vsub.f32 %v4062, %v4620
        %v4768 = vsub.f32 %v4063, %v4504
        %v4769 = vsub.f32 %v4064, %v4513
        %v4770 = vsub.f32 %v4065, %v4621
        %v4771 = vsub.f32 %v4066, %v4622
        %v4772 = vsub.f32 %v4067, %v4623
        %v4773 = vsub.f32 %v4068, %v4513
        %v4774 = vsub.f32 %v4069, %v4522
        %v4775 = vsub.f32 %v4070, %v4624
        %v4776 = vsub.f32 %v4071, %v4625
        %v4777 = vsub.f32 %v4072, %v4626
        %v4778 = vsub.f32 %v4073, %v4522
        %v4779 = vsub.f32 %v4074, %v4531
        %v4780 = vsub.f32 %v4075, %v4627
        %v4781 = vsub.f32 %v4076, %v4628
        %v4782 = vsub.f32 %v4077, %v4629
        %v4783 = vsub.f32 %v4078, %v4531
        %v4784 = vsub.f32 %v4079, %v4540
        %v4785 = vsub.f32 %v4080, %v4630
        %v4786 = vsub.f32 %v4081, %v4631
        %v4787 = vsub.f32 %v4082, %v4632
        %v4788 = vsub.f32 %v4083, %v4540
        %v4789 = vsub.f32 %v4084, %v4549
        %v4790 = vsub.f32 %v4085, %v4633
        %v4791 = vsub.f32 %v4086, %v4634
        %v4792 = vsub.f32 %v4087, %v4635
        %v4793 = vsub.f32 %v4088, %v4549
        %v4794 = vsub.f32 %v4089, %v4558
        %v4795 = vsub.f32 %v4090, %v4636
        %v4796 = vsub.f32 %v4091, %v4637
        %v4797 = vsub.f32 %v4092, %v4638
        %v4798 = vsub.f32 %v4093, %v4558
        %v4799 = vmul.f32 %v4699, 1.442695
        %v4800 = vpow.pop %v4799
        %v4801 = vmul.f32 %v4700, 1.442695
        %v4802 = vpow.pop %v4801
        %v4803 = vmul.f32 %v4701, 1.442695
        %v4804 = vpow.pop %v4803
        %v4805 = vmul.f32 %v4702, 1.442695
        %v4806 = vpow.pop %v4805
        %v4807 = vmul.f32 %v4703, 1.442695
        %v4808 = vpow.pop %v4807
        %v4809 = vmul.f32 %v4704, 1.442695
        %v4810 = vpow.pop %v4809
        %v4811 = vmul.f32 %v4705, 1.442695
        %v4812 = vpow.pop %v4811
        %v4813 = vmul.f32 %v4706, 1.442695
        %v4814 = vpow.pop %v4813
        %v4815 = vmul.f32 %v4707, 1.442695
        %v4816 = vpow.pop %v4815
        %v4817 = vmul.f32 %v4708, 1.442695
        %v4818 = vpow.pop %v4817
        %v4819 = vmul.f32 %v4709, 1.442695
        %v4820 = vpow.pop %v4819
        %v4821 = vmul.f32 %v4710, 1.442695
        %v4822 = vpow.pop %v4821
        %v4823 = vmul.f32 %v4711, 1.442695
        %v4824 = vpow.pop %v4823
        %v4825 = vmul.f32 %v4712, 1.442695
        %v4826 = vpow.pop %v4825
        %v4827 = vmul.f32 %v4713, 1.442695
        %v4828 = vpow.pop %v4827
        %v4829 = vmul.f32 %v4714, 1.442695
        %v4830 = vpow.pop %v4829
        %v4831 = vmul.f32 %v4715, 1.442695
        %v4832 = vpow.pop %v4831
        %v4833 = vmul.f32 %v4716, 1.442695
        %v4834 = vpow.pop %v4833
        %v4835 = vmul.f32 %v4717, 1.442695
        %v4836 = vpow.pop %v4835
        %v4837 = vmul.f32 %v4718, 1.442695
        %v4838 = vpow.pop %v4837
        %v4839 = vmul.f32 %v4719, 1.442695
        %v4840 = vpow.pop %v4839
        %v4841 = vmul.f32 %v4720, 1.442695
        %v4842 = vpow.pop %v4841
        %v4843 = vmul.f32 %v4721, 1.442695
        %v4844 = vpow.pop %v4843
        %v4845 = vmul.f32 %v4722, 1.442695
        %v4846 = vpow.pop %v4845
        %v4847 = vmul.f32 %v4723, 1.442695
        %v4848 = vpow.pop %v4847
        %v4849 = vmul.f32 %v4724, 1.442695
        %v4850 = vpow.pop %v4849
        %v4851 = vmul.f32 %v4725, 1.442695
        %v4852 = vpow.pop %v4851
        %v4853 = vmul.f32 %v4726, 1.442695
        %v4854 = vpow.pop %v4853
        %v4855 = vmul.f32 %v4727, 1.442695
        %v4856 = vpow.pop %v4855
        %v4857 = vmul.f32 %v4728, 1.442695
        %v4858 = vpow.pop %v4857
        %v4859 = vmul.f32 %v4729, 1.442695
        %v4860 = vpow.pop %v4859
        %v4861 = vmul.f32 %v4730, 1.442695
        %v4862 = vpow.pop %v4861
        %v4863 = vmul.f32 %v4731, 1.442695
        %v4864 = vpow.pop %v4863
        %v4865 = vmul.f32 %v4732, 1.442695
        %v4866 = vpow.pop %v4865
        %v4867 = vmul.f32 %v4733, 1.442695
        %v4868 = vpow.pop %v4867
        %v4869 = vmul.f32 %v4734, 1.442695
        %v4870 = vpow.pop %v4869
        %v4871 = vmul.f32 %v4735, 1.442695
        %v4872 = vpow.pop %v4871
        %v4873 = vmul.f32 %v4736, 1.442695
        %v4874 = vpow.pop %v4873
        %v4875 = vmul.f32 %v4737, 1.442695
        %v4876 = vpow.pop %v4875
        %v4877 = vmul.f32 %v4738, 1.442695
        %v4878 = vpow.pop %v4877
        %v4879 = vmul.f32 %v4739, 1.442695
        %v4880 = vpow.pop %v4879
        %v4881 = vmul.f32 %v4740, 1.442695
        %v4882 = vpow.pop %v4881
        %v4883 = vmul.f32 %v4741, 1.442695
        %v4884 = vpow.pop %v4883
        %v4885 = vmul.f32 %v4742, 1.442695
        %v4886 = vpow.pop %v4885
        %v4887 = vmul.f32 %v4743, 1.442695
        %v4888 = vpow.pop %v4887
        %v4889 = vmul.f32 %v4744, 1.442695
        %v4890 = vpow.pop %v4889
        %v4891 = vmul.f32 %v4745, 1.442695
        %v4892 = vpow.pop %v4891
        %v4893 = vmul.f32 %v4746, 1.442695
        %v4894 = vpow.pop %v4893
        %v4895 = vmul.f32 %v4747, 1.442695
        %v4896 = vpow.pop %v4895
        %v4897 = vmul.f32 %v4748, 1.442695
        %v4898 = vpow.pop %v4897
        %v4899 = vmul.f32 %v4749, 1.442695
        %v4900 = vpow.pop %v4899
        %v4901 = vmul.f32 %v4750, 1.442695
        %v4902 = vpow.pop %v4901
        %v4903 = vmul.f32 %v4751, 1.442695
        %v4904 = vpow.pop %v4903
        %v4905 = vmul.f32 %v4752, 1.442695
        %v4906 = vpow.pop %v4905
        %v4907 = vmul.f32 %v4753, 1.442695
        %v4908 = vpow.pop %v4907
        %v4909 = vmul.f32 %v4754, 1.442695
        %v4910 = vpow.pop %v4909
        %v4911 = vmul.f32 %v4755, 1.442695
        %v4912 = vpow.pop %v4911
        %v4913 = vmul.f32 %v4756, 1.442695
        %v4914 = vpow.pop %v4913
        %v4915 = vmul.f32 %v4757, 1.442695
        %v4916 = vpow.pop %v4915
        %v4917 = vmul.f32 %v4758, 1.442695
        %v4918 = vpow.pop %v4917
        %v4919 = vmul.f32 %v4759, 1.442695
        %v4920 = vpow.pop %v4919
        %v4921 = vmul.f32 %v4760, 1.442695
        %v4922 = vpow.pop %v4921
        %v4923 = vmul.f32 %v4761, 1.442695
        %v4924 = vpow.pop %v4923
        %v4925 = vmul.f32 %v4762, 1.442695
        %v4926 = vpow.pop %v4925
        %v4927 = vmul.f32 %v4763, 1.442695
        %v4928 = vpow.pop %v4927
        %v4929 = vmul.f32 %v4764, 1.442695
        %v4930 = vpow.pop %v4929
        %v4931 = vmul.f32 %v4765, 1.442695
        %v4932 = vpow.pop %v4931
        %v4933 = vmul.f32 %v4766, 1.442695
        %v4934 = vpow.pop %v4933
        %v4935 = vmul.f32 %v4767, 1.442695
        %v4936 = vpow.pop %v4935
        %v4937 = vmul.f32 %v4768, 1.442695
        %v4938 = vpow.pop %v4937
        %v4939 = vmul.f32 %v4769, 1.442695
        %v4940 = vpow.pop %v4939
        %v4941 = vmul.f32 %v4770, 1.442695
        %v4942 = vpow.pop %v4941
        %v4943 = vmul.f32 %v4771, 1.442695
        %v4944 = vpow.pop %v4943
        %v4945 = vmul.f32 %v4772, 1.442695
        %v4946 = vpow.pop %v4945
        %v4947 = vmul.f32 %v4773, 1.442695
        %v4948 = vpow.pop %v4947
        %v4949 = vmul.f32 %v4774, 1.442695
        %v4950 = vpow.pop %v4949
        %v4951 = vmul.f32 %v4775, 1.442695
        %v4952 = vpow.pop %v4951
        %v4953 = vmul.f32 %v4776, 1.442695
        %v4954 = vpow.pop %v4953
        %v4955 = vmul.f32 %v4777, 1.442695
        %v4956 = vpow.pop %v4955
        %v4957 = vmul.f32 %v4778, 1.442695
        %v4958 = vpow.pop %v4957
        %v4959 = vmul.f32 %v4779, 1.442695
        %v4960 = vpow.pop %v4959
        %v4961 = vmul.f32 %v4780, 1.442695
        %v4962 = vpow.pop %v4961
        %v4963 = vmul.f32 %v4781, 1.442695
        %v4964 = vpow.pop %v4963
        %v4965 = vmul.f32 %v4782, 1.442695
        %v4966 = vpow.pop %v4965
        %v4967 = vmul.f32 %v4783, 1.442695
        %v4968 = vpow.pop %v4967
        %v4969 = vmul.f32 %v4784, 1.442695
        %v4970 = vpow.pop %v4969
        %v4971 = vmul.f32 %v4785, 1.442695
        %v4972 = vpow.pop %v4971
        %v4973 = vmul.f32 %v4786, 1.442695
        %v4974 = vpow.pop %v4973
        %v4975 = vmul.f32 %v4787, 1.442695
        %v4976 = vpow.pop %v4975
        %v4977 = vmul.f32 %v4788, 1.442695
        %v4978 = vpow.pop %v4977
        %v4979 = vmul.f32 %v4789, 1.442695
        %v4980 = vpow.pop %v4979
        %v4981 = vmul.f32 %v4790, 1.442695
        %v4982 = vpow.pop %v4981
        %v4983 = vmul.f32 %v4791, 1.442695
        %v4984 = vpow.pop %v4983
        %v4985 = vmul.f32 %v4792, 1.442695
        %v4986 = vpow.pop %v4985
        %v4987 = vmul.f32 %v4793, 1.442695
        %v4988 = vpow.pop %v4987
        %v4989 = vmul.f32 %v4794, 1.442695
        %v4990 = vpow.pop %v4989
        %v4991 = vmul.f32 %v4795, 1.442695
        %v4992 = vpow.pop %v4991
        %v4993 = vmul.f32 %v4796, 1.442695
        %v4994 = vpow.pop %v4993
        %v4995 = vmul.f32 %v4797, 1.442695
        %v4996 = vpow.pop %v4995
        %v4997 = vmul.f32 %v4798, 1.442695
        %v4998 = vpow.pop %v4997
        %5099 = vst [vmem:[#allocation1] ss:$4 sm:$0xff] %v4800
        %s5100 = scalar_lea.vmem [#allocation1], 1
        %5101 = vst [vmem:[%s5100] ss:$4 sm:$0xff] %v4802
        %s5102 = scalar_lea.vmem [#allocation1], 2
        %5103 = vst [vmem:[%s5102] ss:$4 sm:$0xff] %v4804
        %s5104 = scalar_lea.vmem [#allocation1], 3
        %5105 = vst [vmem:[%s5104] ss:$4 sm:$0xff] %v4806
        %s5106 = scalar_lea.vmem [#allocation1], 32
        %5107 = vst [vmem:[%s5106] ss:$4 sm:$0xff] %v4808
        %v5108 = vld.sshfl [vmem:[#allocation1] sm:$0xff pattern:$0x73625140]
        %v5109 = vld.sshfl [vmem:[#allocation1 + $0x20] sm:$0xff pattern:$0x73625140]
        %5110 = vst [vmem:[#allocation1] ss:$4 sm:$0xff] %v4810
        %5111 = vst [vmem:[%s5100] ss:$4 sm:$0xff] %v4812
        %5112 = vst [vmem:[%s5102] ss:$4 sm:$0xff] %v4814
        %5113 = vst [vmem:[%s5104] ss:$4 sm:$0xff] %v4816
        %5114 = vst [vmem:[%s5106] ss:$4 sm:$0xff] %v4818
        %v5115 = vld.sshfl [vmem:[#allocation1] sm:$0xff pattern:$0x73625140]
        %v5116 = vld.sshfl [vmem:[#allocation1 + $0x20] sm:$0xff pattern:$0x73625140]
        %5117 = vst [vmem:[#allocation1] ss:$4 sm:$0xff] %v4820
        %5118 = vst [vmem:[%s5100] ss:$4 sm:$0xff] %v4822
        %5119 = vst [vmem:[%s5102] ss:$4 sm:$0xff] %v4824
        %5120 = vst [vmem:[%s5104] ss:$4 sm:$0xff] %v4826
        %5121 = vst [vmem:[%s5106] ss:$4 sm:$0xff] %v4828
        %v5122 = vld.sshfl [vmem:[#allocation1] sm:$0xff pattern:$0x73625140]
        %v5123 = vld.sshfl [vmem:[#allocation1 + $0x20] sm:$0xff pattern:$0x73625140]
        %5124 = vst [vmem:[#allocation1] ss:$4 sm:$0xff] %v4830
        %5125 = vst [vmem:[%s5100] ss:$4 sm:$0xff] %v4832
        %5126 = vst [vmem:[%s5102] ss:$4 sm:$0xff] %v4834
        %5127 = vst [vmem:[%s5104] ss:$4 sm:$0xff] %v4836
        %5128 = vst [vmem:[%s5106] ss:$4 sm:$0xff] %v4838
        %v5129 = vld.sshfl [vmem:[#allocation1] sm:$0xff pattern:$0x73625140]
        %v5130 = vld.sshfl [vmem:[#allocation1 + $0x20] sm:$0xff pattern:$0x73625140]
        %5131 = vst [vmem:[#allocation1] ss:$4 sm:$0xff] %v4840
        %5132 = vst [vmem:[%s5100] ss:$4 sm:$0xff] %v4842
        %5133 = vst [vmem:[%s5102] ss:$4 sm:$0xff] %v4844
        %5134 = vst [vmem:[%s5104] ss:$4 sm:$0xff] %v4846
        %5135 = vst [vmem:[%s5106] ss:$4 sm:$0xff] %v4848
        %v5136 = vld.sshfl [vmem:[#allocation1] sm:$0xff pattern:$0x73625140]
        %v5137 = vld.sshfl [vmem:[#allocation1 + $0x20] sm:$0xff pattern:$0x73625140]
        %5138 = vst [vmem:[#allocation1] ss:$4 sm:$0xff] %v4850
        %5139 = vst [vmem:[%s5100] ss:$4 sm:$0xff] %v4852
        %5140 = vst [vmem:[%s5102] ss:$4 sm:$0xff] %v4854
        %5141 = vst [vmem:[%s5104] ss:$4 sm:$0xff] %v4856
        %5142 = vst [vmem:[%s5106] ss:$4 sm:$0xff] %v4858
        %v5143 = vld.sshfl [vmem:[#allocation1] sm:$0xff pattern:$0x73625140]
        %v5144 = vld.sshfl [vmem:[#allocation1 + $0x20] sm:$0xff pattern:$0x73625140]
        %5145 = vst [vmem:[#allocation1] ss:$4 sm:$0xff] %v4860
        %5146 = vst [vmem:[%s5100] ss:$4 sm:$0xff] %v4862
        %5147 = vst [vmem:[%s5102] ss:$4 sm:$0xff] %v4864
        %5148 = vst [vmem:[%s5104] ss:$4 sm:$0xff] %v4866
        %5149 = vst [vmem:[%s5106] ss:$4 sm:$0xff] %v4868
        %v5150 = vld.sshfl [vmem:[#allocation1] sm:$0xff pattern:$0x73625140]
        %v5151 = vld.sshfl [vmem:[#allocation1 + $0x20] sm:$0xff pattern:$0x73625140]
        %5152 = vst [vmem:[#allocation1] ss:$4 sm:$0xff] %v4870
        %5153 = vst [vmem:[%s5100] ss:$4 sm:$0xff] %v4872
        %5154 = vst [vmem:[%s5102] ss:$4 sm:$0xff] %v4874
        %5155 = vst [vmem:[%s5104] ss:$4 sm:$0xff] %v4876
        %5156 = vst [vmem:[%s5106] ss:$4 sm:$0xff] %v4878
        %v5157 = vld.sshfl [vmem:[#allocation1] sm:$0xff pattern:$0x73625140]
        %v5158 = vld.sshfl [vmem:[#allocation1 + $0x20] sm:$0xff pattern:$0x73625140]
        %5159 = vst [vmem:[#allocation1] ss:$4 sm:$0xff] %v4880
        %5160 = vst [vmem:[%s5100] ss:$4 sm:$0xff] %v4882
        %5161 = vst [vmem:[%s5102] ss:$4 sm:$0xff] %v4884
        %5162 = vst [vmem:[%s5104] ss:$4 sm:$0xff] %v4886
        %5163 = vst [vmem:[%s5106] ss:$4 sm:$0xff] %v4888
        %v5164 = vld.sshfl [vmem:[#allocation1] sm:$0xff pattern:$0x73625140]
        %v5165 = vld.sshfl [vmem:[#allocation1 + $0x20] sm:$0xff pattern:$0x73625140]
        %5166 = vst [vmem:[#allocation1] ss:$4 sm:$0xff] %v4890
        %5167 = vst [vmem:[%s5100] ss:$4 sm:$0xff] %v4892
        %5168 = vst [vmem:[%s5102] ss:$4 sm:$0xff] %v4894
        %5169 = vst [vmem:[%s5104] ss:$4 sm:$0xff] %v4896
        %5170 = vst [vmem:[%s5106] ss:$4 sm:$0xff] %v4898
        %v5171 = vld.sshfl [vmem:[#allocation1] sm:$0xff pattern:$0x73625140]
        %v5172 = vld.sshfl [vmem:[#allocation1 + $0x20] sm:$0xff pattern:$0x73625140]
        %5173 = vst [vmem:[#allocation1] ss:$4 sm:$0xff] %v4900
        %5174 = vst [vmem:[%s5100] ss:$4 sm:$0xff] %v4902
        %5175 = vst [vmem:[%s5102] ss:$4 sm:$0xff] %v4904
        %5176 = vst [vmem:[%s5104] ss:$4 sm:$0xff] %v4906
        %5177 = vst [vmem:[%s5106] ss:$4 sm:$0xff] %v4908
        %v5178 = vld.sshfl [vmem:[#allocation1] sm:$0xff pattern:$0x73625140]
        %v5179 = vld.sshfl [vmem:[#allocation1 + $0x20] sm:$0xff pattern:$0x73625140]
        %5180 = vst [vmem:[#allocation1] ss:$4 sm:$0xff] %v4910
        %5181 = vst [vmem:[%s5100] ss:$4 sm:$0xff] %v4912
        %5182 = vst [vmem:[%s5102] ss:$4 sm:$0xff] %v4914
        %5183 = vst [vmem:[%s5104] ss:$4 sm:$0xff] %v4916
        %5184 = vst [vmem:[%s5106] ss:$4 sm:$0xff] %v4918
        %v5185 = vld.sshfl [vmem:[#allocation1] sm:$0xff pattern:$0x73625140]
        %v5186 = vld.sshfl [vmem:[#allocation1 + $0x20] sm:$0xff pattern:$0x73625140]
        %5187 = vst [vmem:[#allocation1] ss:$4 sm:$0xff] %v4920
        %5188 = vst [vmem:[%s5100] ss:$4 sm:$0xff] %v4922
        %5189 = vst [vmem:[%s5102] ss:$4 sm:$0xff] %v4924
        %5190 = vst [vmem:[%s5104] ss:$4 sm:$0xff] %v4926
        %5191 = vst [vmem:[%s5106] ss:$4 sm:$0xff] %v4928
        %v5192 = vld.sshfl [vmem:[#allocation1] sm:$0xff pattern:$0x73625140]
        %v5193 = vld.sshfl [vmem:[#allocation1 + $0x20] sm:$0xff pattern:$0x73625140]
        %5194 = vst [vmem:[#allocation1] ss:$4 sm:$0xff] %v4930
        %5195 = vst [vmem:[%s5100] ss:$4 sm:$0xff] %v4932
        %5196 = vst [vmem:[%s5102] ss:$4 sm:$0xff] %v4934
        %5197 = vst [vmem:[%s5104] ss:$4 sm:$0xff] %v4936
        %5198 = vst [vmem:[%s5106] ss:$4 sm:$0xff] %v4938
        %v5199 = vld.sshfl [vmem:[#allocation1] sm:$0xff pattern:$0x73625140]
        %v5200 = vld.sshfl [vmem:[#allocation1 + $0x20] sm:$0xff pattern:$0x73625140]
        %5201 = vst [vmem:[#allocation1] ss:$4 sm:$0xff] %v4940
        %5202 = vst [vmem:[%s5100] ss:$4 sm:$0xff] %v4942
        %5203 = vst [vmem:[%s5102] ss:$4 sm:$0xff] %v4944
        %5204 = vst [vmem:[%s5104] ss:$4 sm:$0xff] %v4946
        %5205 = vst [vmem:[%s5106] ss:$4 sm:$0xff] %v4948
        %v5206 = vld.sshfl [vmem:[#allocation1] sm:$0xff pattern:$0x73625140]
        %v5207 = vld.sshfl [vmem:[#allocation1 + $0x20] sm:$0xff pattern:$0x73625140]
        %5208 = vst [vmem:[#allocation1] ss:$4 sm:$0xff] %v4950
        %5209 = vst [vmem:[%s5100] ss:$4 sm:$0xff] %v4952
        %5210 = vst [vmem:[%s5102] ss:$4 sm:$0xff] %v4954
        %5211 = vst [vmem:[%s5104] ss:$4 sm:$0xff] %v4956
        %5212 = vst [vmem:[%s5106] ss:$4 sm:$0xff] %v4958
        %v5213 = vld.sshfl [vmem:[#allocation1] sm:$0xff pattern:$0x73625140]
        %v5214 = vld.sshfl [vmem:[#allocation1 + $0x20] sm:$0xff pattern:$0x73625140]
        %5215 = vst [vmem:[#allocation1] ss:$4 sm:$0xff] %v4960
        %5216 = vst [vmem:[%s5100] ss:$4 sm:$0xff] %v4962
        %5217 = vst [vmem:[%s5102] ss:$4 sm:$0xff] %v4964
        %5218 = vst [vmem:[%s5104] ss:$4 sm:$0xff] %v4966
        %5219 = vst [vmem:[%s5106] ss:$4 sm:$0xff] %v4968
        %v5220 = vld.sshfl [vmem:[#allocation1] sm:$0xff pattern:$0x73625140]
        %v5221 = vld.sshfl [vmem:[#allocation1 + $0x20] sm:$0xff pattern:$0x73625140]
        %5222 = vst [vmem:[#allocation1] ss:$4 sm:$0xff] %v4970
        %5223 = vst [vmem:[%s5100] ss:$4 sm:$0xff] %v4972
        %5224 = vst [vmem:[%s5102] ss:$4 sm:$0xff] %v4974
        %5225 = vst [vmem:[%s5104] ss:$4 sm:$0xff] %v4976
        %5226 = vst [vmem:[%s5106] ss:$4 sm:$0xff] %v4978
        %v5227 = vld.sshfl [vmem:[#allocation1] sm:$0xff pattern:$0x73625140]
        %v5228 = vld.sshfl [vmem:[#allocation1 + $0x20] sm:$0xff pattern:$0x73625140]
        %5229 = vst [vmem:[#allocation1] ss:$4 sm:$0xff] %v4980
        %5230 = vst [vmem:[%s5100] ss:$4 sm:$0xff] %v4982
        %5231 = vst [vmem:[%s5102] ss:$4 sm:$0xff] %v4984
        %5232 = vst [vmem:[%s5104] ss:$4 sm:$0xff] %v4986
        %5233 = vst [vmem:[%s5106] ss:$4 sm:$0xff] %v4988
        %v5234 = vld.sshfl [vmem:[#allocation1] sm:$0xff pattern:$0x73625140]
        %v5235 = vld.sshfl [vmem:[#allocation1 + $0x20] sm:$0xff pattern:$0x73625140]
        %5236 = vst [vmem:[#allocation1] ss:$4 sm:$0xff] %v4990
        %5237 = vst [vmem:[%s5100] ss:$4 sm:$0xff] %v4992
        %5238 = vst [vmem:[%s5102] ss:$4 sm:$0xff] %v4994
        %5239 = vst [vmem:[%s5104] ss:$4 sm:$0xff] %v4996
        %5240 = vst [vmem:[%s5106] ss:$4 sm:$0xff] %v4998
        %v5241 = vld.sshfl [vmem:[#allocation1] sm:$0xff pattern:$0x73625140]
        %v5242 = vld.sshfl [vmem:[#allocation1 + $0x20] sm:$0xff pattern:$0x73625140]
        %v5283 = vsel %vm1508, %v5108, 0.0
        %v5284 = vsel %vm4379, %v5109, 0.0
        %v5285 = vadd.f32 %v5283, %v5284
        %v5286 = vrot.slane %v5285, 4
        %v5287 = vadd.f32 %v5285, %v5286
        %v5288 = vrot.slane %v5287, 2
        %v5289 = vadd.f32 %v5287, %v5288
        %v5290 = vrot.slane %v5289, 1
        %v5291 = vadd.f32 %v5289, %v5290
        %v5292 = vsel %vm1508, %v5115, 0.0
        %v5293 = vsel %vm4379, %v5116, 0.0
        %v5294 = vadd.f32 %v5292, %v5293
        %v5295 = vrot.slane %v5294, 4
        %v5296 = vadd.f32 %v5294, %v5295
        %v5297 = vrot.slane %v5296, 2
        %v5298 = vadd.f32 %v5296, %v5297
        %v5299 = vrot.slane %v5298, 1
        %v5300 = vadd.f32 %v5298, %v5299
        %v5301 = vsel %vm1508, %v5122, 0.0
        %v5302 = vsel %vm4379, %v5123, 0.0
        %v5303 = vadd.f32 %v5301, %v5302
        %v5304 = vrot.slane %v5303, 4
        %v5305 = vadd.f32 %v5303, %v5304
        %v5306 = vrot.slane %v5305, 2
        %v5307 = vadd.f32 %v5305, %v5306
        %v5308 = vrot.slane %v5307, 1
        %v5309 = vadd.f32 %v5307, %v5308
        %v5310 = vsel %vm1508, %v5129, 0.0
        %v5311 = vsel %vm4379, %v5130, 0.0
        %v5312 = vadd.f32 %v5310, %v5311
        %v5313 = vrot.slane %v5312, 4
        %v5314 = vadd.f32 %v5312, %v5313
        %v5315 = vrot.slane %v5314, 2
        %v5316 = vadd.f32 %v5314, %v5315
        %v5317 = vrot.slane %v5316, 1
        %v5318 = vadd.f32 %v5316, %v5317
        %v5319 = vsel %vm1508, %v5136, 0.0
        %v5320 = vsel %vm4379, %v5137, 0.0
        %v5321 = vadd.f32 %v5319, %v5320
        %v5322 = vrot.slane %v5321, 4
        %v5323 = vadd.f32 %v5321, %v5322
        %v5324 = vrot.slane %v5323, 2
        %v5325 = vadd.f32 %v5323, %v5324
        %v5326 = vrot.slane %v5325, 1
        %v5327 = vadd.f32 %v5325, %v5326
        %v5328 = vsel %vm1508, %v5143, 0.0
        %v5329 = vsel %vm4379, %v5144, 0.0
        %v5330 = vadd.f32 %v5328, %v5329
        %v5331 = vrot.slane %v5330, 4
        %v5332 = vadd.f32 %v5330, %v5331
        %v5333 = vrot.slane %v5332, 2
        %v5334 = vadd.f32 %v5332, %v5333
        %v5335 = vrot.slane %v5334, 1
        %v5336 = vadd.f32 %v5334, %v5335
        %v5337 = vsel %vm1508, %v5150, 0.0
        %v5338 = vsel %vm4379, %v5151, 0.0
        %v5339 = vadd.f32 %v5337, %v5338
        %v5340 = vrot.slane %v5339, 4
        %v5341 = vadd.f32 %v5339, %v5340
        %v5342 = vrot.slane %v5341, 2
        %v5343 = vadd.f32 %v5341, %v5342
        %v5344 = vrot.slane %v5343, 1
        %v5345 = vadd.f32 %v5343, %v5344
        %v5346 = vsel %vm1508, %v5157, 0.0
        %v5347 = vsel %vm4379, %v5158, 0.0
        %v5348 = vadd.f32 %v5346, %v5347
        %v5349 = vrot.slane %v5348, 4
        %v5350 = vadd.f32 %v5348, %v5349
        %v5351 = vrot.slane %v5350, 2
        %v5352 = vadd.f32 %v5350, %v5351
        %v5353 = vrot.slane %v5352, 1
        %v5354 = vadd.f32 %v5352, %v5353
        %v5355 = vsel %vm1508, %v5164, 0.0
        %v5356 = vsel %vm4379, %v5165, 0.0
        %v5357 = vadd.f32 %v5355, %v5356
        %v5358 = vrot.slane %v5357, 4
        %v5359 = vadd.f32 %v5357, %v5358
        %v5360 = vrot.slane %v5359, 2
        %v5361 = vadd.f32 %v5359, %v5360
        %v5362 = vrot.slane %v5361, 1
        %v5363 = vadd.f32 %v5361, %v5362
        %v5364 = vsel %vm1508, %v5171, 0.0
        %v5365 = vsel %vm4379, %v5172, 0.0
        %v5366 = vadd.f32 %v5364, %v5365
        %v5367 = vrot.slane %v5366, 4
        %v5368 = vadd.f32 %v5366, %v5367
        %v5369 = vrot.slane %v5368, 2
        %v5370 = vadd.f32 %v5368, %v5369
        %v5371 = vrot.slane %v5370, 1
        %v5372 = vadd.f32 %v5370, %v5371
        %v5373 = vsel %vm1508, %v5178, 0.0
        %v5374 = vsel %vm4379, %v5179, 0.0
        %v5375 = vadd.f32 %v5373, %v5374
        %v5376 = vrot.slane %v5375, 4
        %v5377 = vadd.f32 %v5375, %v5376
        %v5378 = vrot.slane %v5377, 2
        %v5379 = vadd.f32 %v5377, %v5378
        %v5380 = vrot.slane %v5379, 1
        %v5381 = vadd.f32 %v5379, %v5380
        %v5382 = vsel %vm1508, %v5185, 0.0
        %v5383 = vsel %vm4379, %v5186, 0.0
        %v5384 = vadd.f32 %v5382, %v5383
        %v5385 = vrot.slane %v5384, 4
        %v5386 = vadd.f32 %v5384, %v5385
        %v5387 = vrot.slane %v5386, 2
        %v5388 = vadd.f32 %v5386, %v5387
        %v5389 = vrot.slane %v5388, 1
        %v5390 = vadd.f32 %v5388, %v5389
        %v5391 = vsel %vm1508, %v5192, 0.0
        %v5392 = vsel %vm4379, %v5193, 0.0
        %v5393 = vadd.f32 %v5391, %v5392
        %v5394 = vrot.slane %v5393, 4
        %v5395 = vadd.f32 %v5393, %v5394
        %v5396 = vrot.slane %v5395, 2
        %v5397 = vadd.f32 %v5395, %v5396
        %v5398 = vrot.slane %v5397, 1
        %v5399 = vadd.f32 %v5397, %v5398
        %v5400 = vsel %vm1508, %v5199, 0.0
        %v5401 = vsel %vm4379, %v5200, 0.0
        %v5402 = vadd.f32 %v5400, %v5401
        %v5403 = vrot.slane %v5402, 4
        %v5404 = vadd.f32 %v5402, %v5403
        %v5405 = vrot.slane %v5404, 2
        %v5406 = vadd.f32 %v5404, %v5405
        %v5407 = vrot.slane %v5406, 1
        %v5408 = vadd.f32 %v5406, %v5407
        %v5409 = vsel %vm1508, %v5206, 0.0
        %v5410 = vsel %vm4379, %v5207, 0.0
        %v5411 = vadd.f32 %v5409, %v5410
        %v5412 = vrot.slane %v5411, 4
        %v5413 = vadd.f32 %v5411, %v5412
        %v5414 = vrot.slane %v5413, 2
        %v5415 = vadd.f32 %v5413, %v5414
        %v5416 = vrot.slane %v5415, 1
        %v5417 = vadd.f32 %v5415, %v5416
        %v5418 = vsel %vm1508, %v5213, 0.0
        %v5419 = vsel %vm4379, %v5214, 0.0
        %v5420 = vadd.f32 %v5418, %v5419
        %v5421 = vrot.slane %v5420, 4
        %v5422 = vadd.f32 %v5420, %v5421
        %v5423 = vrot.slane %v5422, 2
        %v5424 = vadd.f32 %v5422, %v5423
        %v5425 = vrot.slane %v5424, 1
        %v5426 = vadd.f32 %v5424, %v5425
        %v5427 = vsel %vm1508, %v5220, 0.0
        %v5428 = vsel %vm4379, %v5221, 0.0
        %v5429 = vadd.f32 %v5427, %v5428
        %v5430 = vrot.slane %v5429, 4
        %v5431 = vadd.f32 %v5429, %v5430
        %v5432 = vrot.slane %v5431, 2
        %v5433 = vadd.f32 %v5431, %v5432
        %v5434 = vrot.slane %v5433, 1
        %v5435 = vadd.f32 %v5433, %v5434
        %v5436 = vsel %vm1508, %v5227, 0.0
        %v5437 = vsel %vm4379, %v5228, 0.0
        %v5438 = vadd.f32 %v5436, %v5437
        %v5439 = vrot.slane %v5438, 4
        %v5440 = vadd.f32 %v5438, %v5439
        %v5441 = vrot.slane %v5440, 2
        %v5442 = vadd.f32 %v5440, %v5441
        %v5443 = vrot.slane %v5442, 1
        %v5444 = vadd.f32 %v5442, %v5443
        %v5445 = vsel %vm1508, %v5234, 0.0
        %v5446 = vsel %vm4379, %v5235, 0.0
        %v5447 = vadd.f32 %v5445, %v5446
        %v5448 = vrot.slane %v5447, 4
        %v5449 = vadd.f32 %v5447, %v5448
        %v5450 = vrot.slane %v5449, 2
        %v5451 = vadd.f32 %v5449, %v5450
        %v5452 = vrot.slane %v5451, 1
        %v5453 = vadd.f32 %v5451, %v5452
        %v5454 = vsel %vm1508, %v5241, 0.0
        %v5455 = vsel %vm4379, %v5242, 0.0
        %v5456 = vadd.f32 %v5454, %v5455
        %v5457 = vrot.slane %v5456, 4
        %v5458 = vadd.f32 %v5456, %v5457
        %v5459 = vrot.slane %v5458, 2
        %v5460 = vadd.f32 %v5458, %v5459
        %v5461 = vrot.slane %v5460, 1
        %v5462 = vadd.f32 %v5460, %v5461
        %v5463 = vrcp.pop %v5291
        %v5464 = vrcp.pop %v5300
        %v5465 = vrcp.pop %v5309
        %v5466 = vrcp.pop %v5318
        %v5467 = vrcp.pop %v5327
        %v5468 = vrcp.pop %v5336
        %v5469 = vrcp.pop %v5345
        %v5470 = vrcp.pop %v5354
        %v5471 = vrcp.pop %v5363
        %v5472 = vrcp.pop %v5372
        %v5473 = vrcp.pop %v5381
        %v5474 = vrcp.pop %v5390
        %v5475 = vrcp.pop %v5399
        %v5476 = vrcp.pop %v5408
        %v5477 = vrcp.pop %v5417
        %v5478 = vrcp.pop %v5426
        %v5479 = vrcp.pop %v5435
        %v5480 = vrcp.pop %v5444
        %v5481 = vrcp.pop %v5453
        %v5482 = vrcp.pop %v5462
        %v5503 = vrot.slane %v5463, 2
        %v5504 = vrot.slane %v5463, 4
        %v5505 = vrot.slane %v5463, 6
        %v5506 = vrot.slane %v5464, 2
        %v5507 = vrot.slane %v5464, 4
        %v5508 = vrot.slane %v5464, 6
        %v5509 = vrot.slane %v5465, 2
        %v5510 = vrot.slane %v5465, 4
        %v5511 = vrot.slane %v5465, 6
        %v5512 = vrot.slane %v5466, 2
        %v5513 = vrot.slane %v5466, 4
        %v5514 = vrot.slane %v5466, 6
        %v5515 = vrot.slane %v5467, 2
        %v5516 = vrot.slane %v5467, 4
        %v5517 = vrot.slane %v5467, 6
        %v5518 = vrot.slane %v5468, 2
        %v5519 = vrot.slane %v5468, 4
        %v5520 = vrot.slane %v5468, 6
        %v5521 = vrot.slane %v5469, 2
        %v5522 = vrot.slane %v5469, 4
        %v5523 = vrot.slane %v5469, 6
        %v5524 = vrot.slane %v5470, 2
        %v5525 = vrot.slane %v5470, 4
        %v5526 = vrot.slane %v5470, 6
        %v5527 = vrot.slane %v5471, 2
        %v5528 = vrot.slane %v5471, 4
        %v5529 = vrot.slane %v5471, 6
        %v5530 = vrot.slane %v5472, 2
        %v5531 = vrot.slane %v5472, 4
        %v5532 = vrot.slane %v5472, 6
        %v5533 = vrot.slane %v5473, 2
        %v5534 = vrot.slane %v5473, 4
        %v5535 = vrot.slane %v5473, 6
        %v5536 = vrot.slane %v5474, 2
        %v5537 = vrot.slane %v5474, 4
        %v5538 = vrot.slane %v5474, 6
        %v5539 = vrot.slane %v5475, 2
        %v5540 = vrot.slane %v5475, 4
        %v5541 = vrot.slane %v5475, 6
        %v5542 = vrot.slane %v5476, 2
        %v5543 = vrot.slane %v5476, 4
        %v5544 = vrot.slane %v5476, 6
        %v5545 = vrot.slane %v5477, 2
        %v5546 = vrot.slane %v5477, 4
        %v5547 = vrot.slane %v5477, 6
        %v5548 = vrot.slane %v5478, 2
        %v5549 = vrot.slane %v5478, 4
        %v5550 = vrot.slane %v5478, 6
        %v5551 = vrot.slane %v5479, 2
        %v5552 = vrot.slane %v5479, 4
        %v5553 = vrot.slane %v5479, 6
        %v5554 = vrot.slane %v5480, 2
        %v5555 = vrot.slane %v5480, 4
        %v5556 = vrot.slane %v5480, 6
        %v5557 = vrot.slane %v5481, 2
        %v5558 = vrot.slane %v5481, 4
        %v5559 = vrot.slane %v5481, 6
        %v5560 = vrot.slane %v5482, 2
        %v5561 = vrot.slane %v5482, 4
        %v5562 = vrot.slane %v5482, 6
        %v5623 = vmul.f32 %v4800, %v5463
        %v5624 = vmul.f32 %v4802, %v5503
        %v5625 = vmul.f32 %v4804, %v5504
        %v5626 = vmul.f32 %v4806, %v5505
        %v5627 = vmul.f32 %v4808, %v5463
        %v5628 = vmul.f32 %v4810, %v5464
        %v5629 = vmul.f32 %v4812, %v5506
        %v5630 = vmul.f32 %v4814, %v5507
        %v5631 = vmul.f32 %v4816, %v5508
        %v5632 = vmul.f32 %v4818, %v5464
        %v5633 = vmul.f32 %v4820, %v5465
        %v5634 = vmul.f32 %v4822, %v5509
        %v5635 = vmul.f32 %v4824, %v5510
        %v5636 = vmul.f32 %v4826, %v5511
        %v5637 = vmul.f32 %v4828, %v5465
        %v5638 = vmul.f32 %v4830, %v5466
        %v5639 = vmul.f32 %v4832, %v5512
        %v5640 = vmul.f32 %v4834, %v5513
        %v5641 = vmul.f32 %v4836, %v5514
        %v5642 = vmul.f32 %v4838, %v5466
        %v5643 = vmul.f32 %v4840, %v5467
        %v5644 = vmul.f32 %v4842, %v5515
        %v5645 = vmul.f32 %v4844, %v5516
        %v5646 = vmul.f32 %v4846, %v5517
        %v5647 = vmul.f32 %v4848, %v5467
        %v5648 = vmul.f32 %v4850, %v5468
        %v5649 = vmul.f32 %v4852, %v5518
        %v5650 = vmul.f32 %v4854, %v5519
        %v5651 = vmul.f32 %v4856, %v5520
        %v5652 = vmul.f32 %v4858, %v5468
        %v5653 = vmul.f32 %v4860, %v5469
        %v5654 = vmul.f32 %v4862, %v5521
        %v5655 = vmul.f32 %v4864, %v5522
        %v5656 = vmul.f32 %v4866, %v5523
        %v5657 = vmul.f32 %v4868, %v5469
        %v5658 = vmul.f32 %v4870, %v5470
        %v5659 = vmul.f32 %v4872, %v5524
        %v5660 = vmul.f32 %v4874, %v5525
        %v5661 = vmul.f32 %v4876, %v5526
        %v5662 = vmul.f32 %v4878, %v5470
        %v5663 = vmul.f32 %v4880, %v5471
        %v5664 = vmul.f32 %v4882, %v5527
        %v5665 = vmul.f32 %v4884, %v5528
        %v5666 = vmul.f32 %v4886, %v5529
        %v5667 = vmul.f32 %v4888, %v5471
        %v5668 = vmul.f32 %v4890, %v5472
        %v5669 = vmul.f32 %v4892, %v5530
        %v5670 = vmul.f32 %v4894, %v5531
        %v5671 = vmul.f32 %v4896, %v5532
        %v5672 = vmul.f32 %v4898, %v5472
        %v5673 = vmul.f32 %v4900, %v5473
        %v5674 = vmul.f32 %v4902, %v5533
        %v5675 = vmul.f32 %v4904, %v5534
        %v5676 = vmul.f32 %v4906, %v5535
        %v5677 = vmul.f32 %v4908, %v5473
        %v5678 = vmul.f32 %v4910, %v5474
        %v5679 = vmul.f32 %v4912, %v5536
        %v5680 = vmul.f32 %v4914, %v5537
        %v5681 = vmul.f32 %v4916, %v5538
        %v5682 = vmul.f32 %v4918, %v5474
        %v5683 = vmul.f32 %v4920, %v5475
        %v5684 = vmul.f32 %v4922, %v5539
        %v5685 = vmul.f32 %v4924, %v5540
        %v5686 = vmul.f32 %v4926, %v5541
        %v5687 = vmul.f32 %v4928, %v5475
        %v5688 = vmul.f32 %v4930, %v5476
        %v5689 = vmul.f32 %v4932, %v5542
        %v5690 = vmul.f32 %v4934, %v5543
        %v5691 = vmul.f32 %v4936, %v5544
        %v5692 = vmul.f32 %v4938, %v5476
        %v5693 = vmul.f32 %v4940, %v5477
        %v5694 = vmul.f32 %v4942, %v5545
        %v5695 = vmul.f32 %v4944, %v5546
        %v5696 = vmul.f32 %v4946, %v5547
        %v5697 = vmul.f32 %v4948, %v5477
        %v5698 = vmul.f32 %v4950, %v5478
        %v5699 = vmul.f32 %v4952, %v5548
        %v5700 = vmul.f32 %v4954, %v5549
        %v5701 = vmul.f32 %v4956, %v5550
        %v5702 = vmul.f32 %v4958, %v5478
        %v5703 = vmul.f32 %v4960, %v5479
        %v5704 = vmul.f32 %v4962, %v5551
        %v5705 = vmul.f32 %v4964, %v5552
        %v5706 = vmul.f32 %v4966, %v5553
        %v5707 = vmul.f32 %v4968, %v5479
        %v5708 = vmul.f32 %v4970, %v5480
        %v5709 = vmul.f32 %v4972, %v5554
        %v5710 = vmul.f32 %v4974, %v5555
        %v5711 = vmul.f32 %v4976, %v5556
        %v5712 = vmul.f32 %v4978, %v5480
        %v5713 = vmul.f32 %v4980, %v5481
        %v5714 = vmul.f32 %v4982, %v5557
        %v5715 = vmul.f32 %v4984, %v5558
        %v5716 = vmul.f32 %v4986, %v5559
        %v5717 = vmul.f32 %v4988, %v5481
        %v5718 = vmul.f32 %v4990, %v5482
        %v5719 = vmul.f32 %v4992, %v5560
        %v5720 = vmul.f32 %v4994, %v5561
        %v5721 = vmul.f32 %v4996, %v5562
        %v5722 = vmul.f32 %v4998, %v5482
        %5823 = vst [vmem:[#allocation1] ss:$4 sm:$0xff] %v5623
        %s5824 = scalar_lea.vmem [#allocation1], 1
        %5825 = vst [vmem:[%s5824] ss:$4 sm:$0xff] %v5624
        %s5826 = scalar_lea.vmem [#allocation1], 2
        %5827 = vst [vmem:[%s5826] ss:$4 sm:$0xff] %v5625
        %s5828 = scalar_lea.vmem [#allocation1], 3
        %5829 = vst [vmem:[%s5828] ss:$4 sm:$0xff] %v5626
        %s5830 = scalar_lea.vmem [#allocation1], 32
        %5831 = vst [vmem:[%s5830] ss:$4 sm:$0xff] %v5627
        %s5832 = scalar_lea.vmem [#allocation1], 33
        %5833 = vst [vmem:[%s5832] ss:$4 sm:$0xff] %v5628
        %s5834 = scalar_lea.vmem [#allocation1], 34
        %5835 = vst [vmem:[%s5834] ss:$4 sm:$0xff] %v5629
        %s5836 = scalar_lea.vmem [#allocation1], 35
        %5837 = vst [vmem:[%s5836] ss:$4 sm:$0xff] %v5630
        %v5838 = vld.sshfl [vmem:[#allocation1] sm:$0xff pattern:$0x73625140]
        %v5839 = vld.sshfl [vmem:[#allocation1 + $0x20] sm:$0xff pattern:$0x73625140]
        %5840 = vst [vmem:[#allocation1] ss:$4 sm:$0xff] %v5631
        %5841 = vst [vmem:[%s5824] ss:$4 sm:$0xff] %v5632
        %5842 = vst [vmem:[%s5826] ss:$4 sm:$0xff] %v5633
        %5843 = vst [vmem:[%s5828] ss:$4 sm:$0xff] %v5634
        %5844 = vst [vmem:[%s5830] ss:$4 sm:$0xff] %v5635
        %5845 = vst [vmem:[%s5832] ss:$4 sm:$0xff] %v5636
        %5846 = vst [vmem:[%s5834] ss:$4 sm:$0xff] %v5637
        %5847 = vst [vmem:[%s5836] ss:$4 sm:$0xff] %v5638
        %v5848 = vld.sshfl [vmem:[#allocation1] sm:$0xff pattern:$0x73625140]
        %v5849 = vld.sshfl [vmem:[#allocation1 + $0x20] sm:$0xff pattern:$0x73625140]
        %5850 = vst [vmem:[#allocation1] ss:$4 sm:$0xff] %v5639
        %5851 = vst [vmem:[%s5824] ss:$4 sm:$0xff] %v5640
        %5852 = vst [vmem:[%s5826] ss:$4 sm:$0xff] %v5641
        %5853 = vst [vmem:[%s5828] ss:$4 sm:$0xff] %v5642
        %5854 = vst [vmem:[%s5830] ss:$4 sm:$0xff] %v5643
        %5855 = vst [vmem:[%s5832] ss:$4 sm:$0xff] %v5644
        %5856 = vst [vmem:[%s5834] ss:$4 sm:$0xff] %v5645
        %5857 = vst [vmem:[%s5836] ss:$4 sm:$0xff] %v5646
        %v5858 = vld.sshfl [vmem:[#allocation1] sm:$0xff pattern:$0x73625140]
        %v5859 = vld.sshfl [vmem:[#allocation1 + $0x20] sm:$0xff pattern:$0x73625140]
        %5860 = vst [vmem:[#allocation1] ss:$4 sm:$0xff] %v5647
        %5861 = vst [vmem:[%s5824] ss:$4 sm:$0xff] %v5648
        %5862 = vst [vmem:[%s5826] ss:$4 sm:$0xff] %v5649
        %5863 = vst [vmem:[%s5828] ss:$4 sm:$0xff] %v5650
        %5864 = vst [vmem:[%s5830] ss:$4 sm:$0xff] %v5651
        %5865 = vst [vmem:[%s5832] ss:$4 sm:$0xff] %v5652
        %5866 = vst [vmem:[%s5834] ss:$4 sm:$0xff] %v5653
        %5867 = vst [vmem:[%s5836] ss:$4 sm:$0xff] %v5654
        %v5868 = vld.sshfl [vmem:[#allocation1] sm:$0xff pattern:$0x73625140]
        %v5869 = vld.sshfl [vmem:[#allocation1 + $0x20] sm:$0xff pattern:$0x73625140]
        %5870 = vst [vmem:[#allocation1] ss:$4 sm:$0xff] %v5655
        %5871 = vst [vmem:[%s5824] ss:$4 sm:$0xff] %v5656
        %5872 = vst [vmem:[%s5826] ss:$4 sm:$0xff] %v5657
        %5873 = vst [vmem:[%s5828] ss:$4 sm:$0xff] %v5658
        %5874 = vst [vmem:[%s5830] ss:$4 sm:$0xff] %v5659
        %5875 = vst [vmem:[%s5832] ss:$4 sm:$0xff] %v5660
        %5876 = vst [vmem:[%s5834] ss:$4 sm:$0xff] %v5661
        %5877 = vst [vmem:[%s5836] ss:$4 sm:$0xff] %v5662
        %v5878 = vld.sshfl [vmem:[#allocation1] sm:$0xff pattern:$0x73625140]
        %v5879 = vld.sshfl [vmem:[#allocation1 + $0x20] sm:$0xff pattern:$0x73625140]
        %5880 = vst [vmem:[#allocation1] ss:$4 sm:$0xff] %v5663
        %5881 = vst [vmem:[%s5824] ss:$4 sm:$0xff] %v5664
        %5882 = vst [vmem:[%s5826] ss:$4 sm:$0xff] %v5665
        %5883 = vst [vmem:[%s5828] ss:$4 sm:$0xff] %v5666
        %5884 = vst [vmem:[%s5830] ss:$4 sm:$0xff] %v5667
        %5885 = vst [vmem:[%s5832] ss:$4 sm:$0xff] %v5668
        %5886 = vst [vmem:[%s5834] ss:$4 sm:$0xff] %v5669
        %5887 = vst [vmem:[%s5836] ss:$4 sm:$0xff] %v5670
        %v5888 = vld.sshfl [vmem:[#allocation1] sm:$0xff pattern:$0x73625140]
        %v5889 = vld.sshfl [vmem:[#allocation1 + $0x20] sm:$0xff pattern:$0x73625140]
        %5890 = vst [vmem:[#allocation1] ss:$4 sm:$0xff] %v5671
        %5891 = vst [vmem:[%s5824] ss:$4 sm:$0xff] %v5672
        %5892 = vst [vmem:[%s5826] ss:$4 sm:$0xff] %v5673
        %5893 = vst [vmem:[%s5828] ss:$4 sm:$0xff] %v5674
        %5894 = vst [vmem:[%s5830] ss:$4 sm:$0xff] %v5675
        %5895 = vst [vmem:[%s5832] ss:$4 sm:$0xff] %v5676
        %5896 = vst [vmem:[%s5834] ss:$4 sm:$0xff] %v5677
        %5897 = vst [vmem:[%s5836] ss:$4 sm:$0xff] %v5678
        %v5898 = vld.sshfl [vmem:[#allocation1] sm:$0xff pattern:$0x73625140]
        %v5899 = vld.sshfl [vmem:[#allocation1 + $0x20] sm:$0xff pattern:$0x73625140]
        %5900 = vst [vmem:[#allocation1] ss:$4 sm:$0xff] %v5679
        %5901 = vst [vmem:[%s5824] ss:$4 sm:$0xff] %v5680
        %5902 = vst [vmem:[%s5826] ss:$4 sm:$0xff] %v5681
        %5903 = vst [vmem:[%s5828] ss:$4 sm:$0xff] %v5682
        %5904 = vst [vmem:[%s5830] ss:$4 sm:$0xff] %v5683
        %5905 = vst [vmem:[%s5832] ss:$4 sm:$0xff] %v5684
        %5906 = vst [vmem:[%s5834] ss:$4 sm:$0xff] %v5685
        %5907 = vst [vmem:[%s5836] ss:$4 sm:$0xff] %v5686
        %v5908 = vld.sshfl [vmem:[#allocation1] sm:$0xff pattern:$0x73625140]
        %v5909 = vld.sshfl [vmem:[#allocation1 + $0x20] sm:$0xff pattern:$0x73625140]
        %5910 = vst [vmem:[#allocation1] ss:$4 sm:$0xff] %v5687
        %5911 = vst [vmem:[%s5824] ss:$4 sm:$0xff] %v5688
        %5912 = vst [vmem:[%s5826] ss:$4 sm:$0xff] %v5689
        %5913 = vst [vmem:[%s5828] ss:$4 sm:$0xff] %v5690
        %5914 = vst [vmem:[%s5830] ss:$4 sm:$0xff] %v5691
        %5915 = vst [vmem:[%s5832] ss:$4 sm:$0xff] %v5692
        %5916 = vst [vmem:[%s5834] ss:$4 sm:$0xff] %v5693
        %5917 = vst [vmem:[%s5836] ss:$4 sm:$0xff] %v5694
        %v5918 = vld.sshfl [vmem:[#allocation1] sm:$0xff pattern:$0x73625140]
        %v5919 = vld.sshfl [vmem:[#allocation1 + $0x20] sm:$0xff pattern:$0x73625140]
        %5920 = vst [vmem:[#allocation1] ss:$4 sm:$0xff] %v5695
        %5921 = vst [vmem:[%s5824] ss:$4 sm:$0xff] %v5696
        %5922 = vst [vmem:[%s5826] ss:$4 sm:$0xff] %v5697
        %5923 = vst [vmem:[%s5828] ss:$4 sm:$0xff] %v5698
        %5924 = vst [vmem:[%s5830] ss:$4 sm:$0xff] %v5699
        %5925 = vst [vmem:[%s5832] ss:$4 sm:$0xff] %v5700
        %5926 = vst [vmem:[%s5834] ss:$4 sm:$0xff] %v5701
        %5927 = vst [vmem:[%s5836] ss:$4 sm:$0xff] %v5702
        %v5928 = vld.sshfl [vmem:[#allocation1] sm:$0xff pattern:$0x73625140]
        %v5929 = vld.sshfl [vmem:[#allocation1 + $0x20] sm:$0xff pattern:$0x73625140]
        %5930 = vst [vmem:[#allocation1] ss:$4 sm:$0xff] %v5703
        %5931 = vst [vmem:[%s5824] ss:$4 sm:$0xff] %v5704
        %5932 = vst [vmem:[%s5826] ss:$4 sm:$0xff] %v5705
        %5933 = vst [vmem:[%s5828] ss:$4 sm:$0xff] %v5706
        %5934 = vst [vmem:[%s5830] ss:$4 sm:$0xff] %v5707
        %5935 = vst [vmem:[%s5832] ss:$4 sm:$0xff] %v5708
        %5936 = vst [vmem:[%s5834] ss:$4 sm:$0xff] %v5709
        %5937 = vst [vmem:[%s5836] ss:$4 sm:$0xff] %v5710
        %v5938 = vld.sshfl [vmem:[#allocation1] sm:$0xff pattern:$0x73625140]
        %v5939 = vld.sshfl [vmem:[#allocation1 + $0x20] sm:$0xff pattern:$0x73625140]
        %5940 = vst [vmem:[#allocation1] ss:$4 sm:$0xff] %v5711
        %5941 = vst [vmem:[%s5824] ss:$4 sm:$0xff] %v5712
        %5942 = vst [vmem:[%s5826] ss:$4 sm:$0xff] %v5713
        %5943 = vst [vmem:[%s5828] ss:$4 sm:$0xff] %v5714
        %5944 = vst [vmem:[%s5830] ss:$4 sm:$0xff] %v5715
        %5945 = vst [vmem:[%s5832] ss:$4 sm:$0xff] %v5716
        %5946 = vst [vmem:[%s5834] ss:$4 sm:$0xff] %v5717
        %5947 = vst [vmem:[%s5836] ss:$4 sm:$0xff] %v5718
        %v5948 = vld.sshfl [vmem:[#allocation1] sm:$0xff pattern:$0x73625140]
        %v5949 = vld.sshfl [vmem:[#allocation1 + $0x20] sm:$0xff pattern:$0x73625140]
        %5950 = vst [vmem:[#allocation1] ss:$4 sm:$0xff] %v5719
        %5951 = vst [vmem:[%s5824] ss:$4 sm:$0xff] %v5720
        %5952 = vst [vmem:[%s5826] ss:$4 sm:$0xff] %v5721
        %5953 = vst [vmem:[%s5828] ss:$4 sm:$0xff] %v5722
        %v5954 = vld.sshfl [vmem:[#allocation1] sm:$0xff pattern:$0x73625140]
        %v5955 = vsel %vm1508, %v5838, 0
        %v5957 = vsel %vm1508, %v5839, 0
        %v5959 = vsel %vm1508, %v5848, 0
        %v5961 = vsel %vm1508, %v5849, 0
        %v5963 = vsel %vm1508, %v5858, 0
        %v5965 = vsel %vm1508, %v5859, 0
        %v5967 = vsel %vm1508, %v5868, 0
        %v5969 = vsel %vm1508, %v5869, 0
        %v5971 = vsel %vm1508, %v5878, 0
        %v5973 = vsel %vm1508, %v5879, 0
        %v5975 = vsel %vm1508, %v5888, 0
        %v5977 = vsel %vm1508, %v5889, 0
        %v5979 = vsel %vm1508, %v5898, 0
        %v5981 = vsel %vm1508, %v5899, 0
        %v5983 = vsel %vm1508, %v5908, 0
        %v5985 = vsel %vm1508, %v5909, 0
        %v5987 = vsel %vm1508, %v5918, 0
        %v5989 = vsel %vm1508, %v5919, 0
        %v5991 = vsel %vm1508, %v5928, 0
        %v5993 = vsel %vm1508, %v5929, 0
        %v5995 = vsel %vm1508, %v5938, 0
        %v5997 = vsel %vm1508, %v5939, 0
        %v5999 = vsel %vm1508, %v5948, 0
        %v6001 = vsel %vm1508, %v5949, 0
        %v6003 = vsel %vm1508, %v5954, 0
        %6005 = vmatpush.msra.mxu0 0.0
        %6006 = vmatpush.msra.mxu0 0.0
        %6007 = vmatpush.msra.mxu0 0.0
        %6008 = vmatpush.msra.mxu0 0.0
        %6009 = vmatpush.msra.mxu0 0.0
        %6010 = vmatpush.msra.mxu0 0.0
        %6011 = vmatpush.msra.mxu0 0.0
        %6012 = vmatpush.msra.mxu0 0.0
        %6013 = vmatpush.msra.mxu0 0.0
        %6014 = vmatpush.msra.mxu0 0.0
        %6015 = vmatpush.msra.mxu0 0.0
        %6016 = vmatpush.msra.mxu0 0.0
        %6017 = vmatpush.msra.mxu0 0.0
        %6018 = vmatpush.msra.mxu0 0.0
        %6019 = vmatpush.msra.mxu0 0.0
        %6020 = vmatpush.msra.mxu0 %v2051
        %6021 = vmatmul.f32.gmra.mxu0 %v5955
        %v6022 = vpop.f32.mrf.mxu0
        %v6023 = vadd.f32 0.0, %v6022
        %6024 = vmatmul.f32.gmra.mxu0 %v5957
        %v6025 = vpop.f32.mrf.mxu0
        %v6026 = vadd.f32 0.0, %v6025
        %6027 = vmatmul.f32.gmra.mxu0 %v5959
        %v6028 = vpop.f32.mrf.mxu0
        %v6029 = vadd.f32 0.0, %v6028
        %6030 = vmatmul.f32.gmra.mxu0 %v5961
        %v6031 = vpop.f32.mrf.mxu0
        %v6032 = vadd.f32 0.0, %v6031
        %6033 = vmatmul.f32.gmra.mxu0 %v5963
        %v6034 = vpop.f32.mrf.mxu0
        %v6035 = vadd.f32 0.0, %v6034
        %6036 = vmatmul.f32.gmra.mxu0 %v5965
        %v6037 = vpop.f32.mrf.mxu0
        %v6038 = vadd.f32 0.0, %v6037
        %6039 = vmatmul.f32.gmra.mxu0 %v5967
        %v6040 = vpop.f32.mrf.mxu0
        %v6041 = vadd.f32 0.0, %v6040
        %6042 = vmatmul.f32.gmra.mxu0 %v5969
        %v6043 = vpop.f32.mrf.mxu0
        %v6044 = vadd.f32 0.0, %v6043
        %6045 = vmatmul.f32.gmra.mxu0 %v5971
        %v6046 = vpop.f32.mrf.mxu0
        %v6047 = vadd.f32 0.0, %v6046
        %6048 = vmatmul.f32.gmra.mxu0 %v5973
        %v6049 = vpop.f32.mrf.mxu0
        %v6050 = vadd.f32 0.0, %v6049
        %6051 = vmatmul.f32.gmra.mxu0 %v5975
        %v6052 = vpop.f32.mrf.mxu0
        %v6053 = vadd.f32 0.0, %v6052
        %6054 = vmatmul.f32.gmra.mxu0 %v5977
        %v6055 = vpop.f32.mrf.mxu0
        %v6056 = vadd.f32 0.0, %v6055
        %6057 = vmatmul.f32.gmra.mxu0 %v5979
        %v6058 = vpop.f32.mrf.mxu0
        %v6059 = vadd.f32 0.0, %v6058
        %6060 = vmatmul.f32.gmra.mxu0 %v5981
        %v6061 = vpop.f32.mrf.mxu0
        %v6062 = vadd.f32 0.0, %v6061
        %6063 = vmatmul.f32.gmra.mxu0 %v5983
        %v6064 = vpop.f32.mrf.mxu0
        %v6065 = vadd.f32 0.0, %v6064
        %6066 = vmatmul.f32.gmra.mxu0 %v5985
        %v6067 = vpop.f32.mrf.mxu0
        %v6068 = vadd.f32 0.0, %v6067
        %6069 = vmatmul.f32.gmra.mxu0 %v5987
        %v6070 = vpop.f32.mrf.mxu0
        %v6071 = vadd.f32 0.0, %v6070
        %6072 = vmatmul.f32.gmra.mxu0 %v5989
        %v6073 = vpop.f32.mrf.mxu0
        %v6074 = vadd.f32 0.0, %v6073
        %6075 = vmatmul.f32.gmra.mxu0 %v5991
        %v6076 = vpop.f32.mrf.mxu0
        %v6077 = vadd.f32 0.0, %v6076
        %6078 = vmatmul.f32.gmra.mxu0 %v5993
        %v6079 = vpop.f32.mrf.mxu0
        %v6080 = vadd.f32 0.0, %v6079
        %6081 = vmatmul.f32.gmra.mxu0 %v5995
        %v6082 = vpop.f32.mrf.mxu0
        %v6083 = vadd.f32 0.0, %v6082
        %6084 = vmatmul.f32.gmra.mxu0 %v5997
        %v6085 = vpop.f32.mrf.mxu0
        %v6086 = vadd.f32 0.0, %v6085
        %6087 = vmatmul.f32.gmra.mxu0 %v5999
        %v6088 = vpop.f32.mrf.mxu0
        %v6089 = vadd.f32 0.0, %v6088
        %6090 = vmatmul.f32.gmra.mxu0 %v6001
        %v6091 = vpop.f32.mrf.mxu0
        %v6092 = vadd.f32 0.0, %v6091
        %6093 = vmatmul.f32.gmra.mxu0 %v6003
        %v6094 = vpop.f32.mrf.mxu0
        %v6095 = vadd.f32 0.0, %v6094
        %6096 = vdwg.mxu0
        %v6122 = vrot.slane %v6023, 2
        %v6123 = vrot.slane %v6023, 4
        %v6124 = vrot.slane %v6023, 6
        %v6125 = vrot.slane %v6026, 2
        %v6126 = vrot.slane %v6026, 4
        %v6127 = vrot.slane %v6026, 6
        %v6128 = vrot.slane %v6029, 2
        %v6129 = vrot.slane %v6029, 4
        %v6130 = vrot.slane %v6029, 6
        %v6131 = vrot.slane %v6032, 2
        %v6132 = vrot.slane %v6032, 4
        %v6133 = vrot.slane %v6032, 6
        %v6134 = vrot.slane %v6035, 2
        %v6135 = vrot.slane %v6035, 4
        %v6136 = vrot.slane %v6035, 6
        %v6137 = vrot.slane %v6038, 2
        %v6138 = vrot.slane %v6038, 4
        %v6139 = vrot.slane %v6038, 6
        %v6140 = vrot.slane %v6041, 2
        %v6141 = vrot.slane %v6041, 4
        %v6142 = vrot.slane %v6041, 6
        %v6143 = vrot.slane %v6044, 2
        %v6144 = vrot.slane %v6044, 4
        %v6145 = vrot.slane %v6044, 6
        %v6146 = vrot.slane %v6047, 2
        %v6147 = vrot.slane %v6047, 4
        %v6148 = vrot.slane %v6047, 6
        %v6149 = vrot.slane %v6050, 2
        %v6150 = vrot.slane %v6050, 4
        %v6151 = vrot.slane %v6050, 6
        %v6152 = vrot.slane %v6053, 2
        %v6153 = vrot.slane %v6053, 4
        %v6154 = vrot.slane %v6053, 6
        %v6155 = vrot.slane %v6056, 2
        %v6156 = vrot.slane %v6056, 4
        %v6157 = vrot.slane %v6056, 6
        %v6158 = vrot.slane %v6059, 2
        %v6159 = vrot.slane %v6059, 4
        %v6160 = vrot.slane %v6059, 6
        %v6161 = vrot.slane %v6062, 2
        %v6162 = vrot.slane %v6062, 4
        %v6163 = vrot.slane %v6062, 6
        %v6164 = vrot.slane %v6065, 2
        %v6165 = vrot.slane %v6065, 4
        %v6166 = vrot.slane %v6065, 6
        %v6167 = vrot.slane %v6068, 2
        %v6168 = vrot.slane %v6068, 4
        %v6169 = vrot.slane %v6068, 6
        %v6170 = vrot.slane %v6071, 2
        %v6171 = vrot.slane %v6071, 4
        %v6172 = vrot.slane %v6071, 6
        %v6173 = vrot.slane %v6074, 2
        %v6174 = vrot.slane %v6074, 4
        %v6175 = vrot.slane %v6074, 6
        %v6176 = vrot.slane %v6077, 2
        %v6177 = vrot.slane %v6077, 4
        %v6178 = vrot.slane %v6077, 6
        %v6179 = vrot.slane %v6080, 2
        %v6180 = vrot.slane %v6080, 4
        %v6181 = vrot.slane %v6080, 6
        %v6182 = vrot.slane %v6083, 2
        %v6183 = vrot.slane %v6083, 4
        %v6184 = vrot.slane %v6083, 6
        %v6185 = vrot.slane %v6086, 2
        %v6186 = vrot.slane %v6086, 4
        %v6187 = vrot.slane %v6086, 6
        %v6188 = vrot.slane %v6089, 2
        %v6189 = vrot.slane %v6089, 4
        %v6190 = vrot.slane %v6089, 6
        %v6191 = vrot.slane %v6092, 2
        %v6192 = vrot.slane %v6092, 4
        %v6193 = vrot.slane %v6092, 6
        %v6194 = vrot.slane %v6095, 2
        %v6195 = vrot.slane %v6095, 4
        %v6196 = vrot.slane %v6095, 6
        %v6275 = vrot.slane %v3143, 2
        %v6276 = vrot.slane %v3143, 4
        %v6277 = vrot.slane %v3143, 6
        %v6278 = vrot.slane %v3145, 2
        %v6279 = vrot.slane %v3145, 4
        %v6280 = vrot.slane %v3145, 6
        %v6281 = vrot.slane %v3148, 2
        %v6289 = vmul.f32 %v6023, %v3143
        %v6290 = vmul.f32 %v6122, %v6275
        %v6291 = vmul.f32 %v6123, %v6276
        %v6292 = vmul.f32 %v6124, %v6277
        %v6293 = vmul.f32 %v6026, %v3145
        %v6294 = vmul.f32 %v6125, %v3143
        %v6295 = vmul.f32 %v6126, %v6275
        %v6296 = vmul.f32 %v6127, %v6276
        %v6297 = vmul.f32 %v6029, %v6277
        %v6298 = vmul.f32 %v6128, %v3145
        %v6299 = vmul.f32 %v6129, %v3143
        %v6300 = vmul.f32 %v6130, %v6275
        %v6301 = vmul.f32 %v6032, %v6276
        %v6302 = vmul.f32 %v6131, %v6277
        %v6303 = vmul.f32 %v6132, %v3145
        %v6304 = vmul.f32 %v6133, %v3143
        %v6305 = vmul.f32 %v6035, %v6275
        %v6306 = vmul.f32 %v6134, %v6276
        %v6307 = vmul.f32 %v6135, %v6277
        %v6308 = vmul.f32 %v6136, %v3145
        %v6309 = vmul.f32 %v6038, %v3143
        %v6310 = vmul.f32 %v6137, %v6275
        %v6311 = vmul.f32 %v6138, %v6276
        %v6312 = vmul.f32 %v6139, %v6277
        %v6313 = vmul.f32 %v6041, %v3145
        %v6314 = vmul.f32 %v6140, %v3143
        %v6315 = vmul.f32 %v6141, %v6275
        %v6316 = vmul.f32 %v6142, %v6276
        %v6317 = vmul.f32 %v6044, %v6277
        %v6318 = vmul.f32 %v6143, %v3145
        %v6319 = vmul.f32 %v6144, %v3143
        %v6320 = vmul.f32 %v6145, %v6275
        %v6321 = vmul.f32 %v6047, %v6276
        %v6322 = vmul.f32 %v6146, %v6277
        %v6323 = vmul.f32 %v6147, %v3145
        %v6324 = vmul.f32 %v6148, %v3143
        %v6325 = vmul.f32 %v6050, %v6275
        %v6326 = vmul.f32 %v6149, %v6276
        %v6327 = vmul.f32 %v6150, %v6277
        %v6328 = vmul.f32 %v6151, %v3145
        %v6329 = vmul.f32 %v6053, %v3143
        %v6330 = vmul.f32 %v6152, %v6275
        %v6331 = vmul.f32 %v6153, %v6276
        %v6332 = vmul.f32 %v6154, %v6277
        %v6333 = vmul.f32 %v6056, %v3145
        %v6334 = vmul.f32 %v6155, %v3143
        %v6335 = vmul.f32 %v6156, %v6275
        %v6336 = vmul.f32 %v6157, %v6276
        %v6337 = vmul.f32 %v6059, %v6277
        %v6338 = vmul.f32 %v6158, %v3145
        %v6339 = vmul.f32 %v6159, %v6278
        %v6340 = vmul.f32 %v6160, %v6279
        %v6341 = vmul.f32 %v6062, %v6280
        %v6342 = vmul.f32 %v6161, %v3148
        %v6343 = vmul.f32 %v6162, %v6281
        %v6344 = vmul.f32 %v6163, %v6278
        %v6345 = vmul.f32 %v6065, %v6279
        %v6346 = vmul.f32 %v6164, %v6280
        %v6347 = vmul.f32 %v6165, %v3148
        %v6348 = vmul.f32 %v6166, %v6281
        %v6349 = vmul.f32 %v6068, %v6278
        %v6350 = vmul.f32 %v6167, %v6279
        %v6351 = vmul.f32 %v6168, %v6280
        %v6352 = vmul.f32 %v6169, %v3148
        %v6353 = vmul.f32 %v6071, %v6281
        %v6354 = vmul.f32 %v6170, %v6278
        %v6355 = vmul.f32 %v6171, %v6279
        %v6356 = vmul.f32 %v6172, %v6280
        %v6357 = vmul.f32 %v6074, %v3148
        %v6358 = vmul.f32 %v6173, %v6281
        %v6359 = vmul.f32 %v6174, %v6278
        %v6360 = vmul.f32 %v6175, %v6279
        %v6361 = vmul.f32 %v6077, %v6280
        %v6362 = vmul.f32 %v6176, %v3148
        %v6363 = vmul.f32 %v6177, %v6281
        %v6364 = vmul.f32 %v6178, %v6278
        %v6365 = vmul.f32 %v6080, %v6279
        %v6366 = vmul.f32 %v6179, %v6280
        %v6367 = vmul.f32 %v6180, %v3148
        %v6368 = vmul.f32 %v6181, %v6281
        %v6369 = vmul.f32 %v6083, %v6278
        %v6370 = vmul.f32 %v6182, %v6279
        %v6371 = vmul.f32 %v6183, %v6280
        %v6372 = vmul.f32 %v6184, %v3148
        %v6373 = vmul.f32 %v6086, %v6281
        %v6374 = vmul.f32 %v6185, %v6278
        %v6375 = vmul.f32 %v6186, %v6279
        %v6376 = vmul.f32 %v6187, %v6280
        %v6377 = vmul.f32 %v6089, %v3148
        %v6378 = vmul.f32 %v6188, %v6281
        %v6379 = vmul.f32 %v6189, %v6278
        %v6380 = vmul.f32 %v6190, %v6279
        %v6381 = vmul.f32 %v6092, %v6280
        %v6382 = vmul.f32 %v6191, %v3148
        %v6383 = vmul.f32 %v6192, %v6281
        %v6384 = vmul.f32 %v6193, %v6278
        %v6385 = vmul.f32 %v6095, %v6279
        %v6386 = vmul.f32 %v6194, %v6280
        %v6387 = vmul.f32 %v6195, %v3148
        %v6388 = vmul.f32 %v6196, %v6281
        %6489 = vst [vmem:[#allocation1] ss:$4 sm:$0xff] %v6289
        %s6490 = scalar_lea.vmem [#allocation1], 1
        %6491 = vst [vmem:[%s6490] ss:$4 sm:$0xff] %v6290
        %s6492 = scalar_lea.vmem [#allocation1], 2
        %6493 = vst [vmem:[%s6492] ss:$4 sm:$0xff] %v6291
        %s6494 = scalar_lea.vmem [#allocation1], 3
        %6495 = vst [vmem:[%s6494] ss:$4 sm:$0xff] %v6292
        %s6496 = scalar_lea.vmem [#allocation1], 32
        %6497 = vst [vmem:[%s6496] ss:$4 sm:$0xff] %v6293
        %v6498 = vld.sshfl [vmem:[#allocation1] sm:$0xff pattern:$0x73625140]
        %v6499 = vld.sshfl [vmem:[#allocation1 + $0x20] sm:$0xff pattern:$0x73625140]
        %6500 = vst [vmem:[#allocation1] ss:$4 sm:$0xff] %v6294
        %6501 = vst [vmem:[%s6490] ss:$4 sm:$0xff] %v6295
        %6502 = vst [vmem:[%s6492] ss:$4 sm:$0xff] %v6296
        %6503 = vst [vmem:[%s6494] ss:$4 sm:$0xff] %v6297
        %6504 = vst [vmem:[%s6496] ss:$4 sm:$0xff] %v6298
        %v6505 = vld.sshfl [vmem:[#allocation1] sm:$0xff pattern:$0x73625140]
        %v6506 = vld.sshfl [vmem:[#allocation1 + $0x20] sm:$0xff pattern:$0x73625140]
        %6507 = vst [vmem:[#allocation1] ss:$4 sm:$0xff] %v6299
        %6508 = vst [vmem:[%s6490] ss:$4 sm:$0xff] %v6300
        %6509 = vst [vmem:[%s6492] ss:$4 sm:$0xff] %v6301
        %6510 = vst [vmem:[%s6494] ss:$4 sm:$0xff] %v6302
        %6511 = vst [vmem:[%s6496] ss:$4 sm:$0xff] %v6303
        %v6512 = vld.sshfl [vmem:[#allocation1] sm:$0xff pattern:$0x73625140]
        %v6513 = vld.sshfl [vmem:[#allocation1 + $0x20] sm:$0xff pattern:$0x73625140]
        %6514 = vst [vmem:[#allocation1] ss:$4 sm:$0xff] %v6304
        %6515 = vst [vmem:[%s6490] ss:$4 sm:$0xff] %v6305
        %6516 = vst [vmem:[%s6492] ss:$4 sm:$0xff] %v6306
        %6517 = vst [vmem:[%s6494] ss:$4 sm:$0xff] %v6307
        %6518 = vst [vmem:[%s6496] ss:$4 sm:$0xff] %v6308
        %v6519 = vld.sshfl [vmem:[#allocation1] sm:$0xff pattern:$0x73625140]
        %v6520 = vld.sshfl [vmem:[#allocation1 + $0x20] sm:$0xff pattern:$0x73625140]
        %6521 = vst [vmem:[#allocation1] ss:$4 sm:$0xff] %v6309
        %6522 = vst [vmem:[%s6490] ss:$4 sm:$0xff] %v6310
        %6523 = vst [vmem:[%s6492] ss:$4 sm:$0xff] %v6311
        %6524 = vst [vmem:[%s6494] ss:$4 sm:$0xff] %v6312
        %6525 = vst [vmem:[%s6496] ss:$4 sm:$0xff] %v6313
        %v6526 = vld.sshfl [vmem:[#allocation1] sm:$0xff pattern:$0x73625140]
        %v6527 = vld.sshfl [vmem:[#allocation1 + $0x20] sm:$0xff pattern:$0x73625140]
        %6528 = vst [vmem:[#allocation1] ss:$4 sm:$0xff] %v6314
        %6529 = vst [vmem:[%s6490] ss:$4 sm:$0xff] %v6315
        %6530 = vst [vmem:[%s6492] ss:$4 sm:$0xff] %v6316
        %6531 = vst [vmem:[%s6494] ss:$4 sm:$0xff] %v6317
        %6532 = vst [vmem:[%s6496] ss:$4 sm:$0xff] %v6318
        %v6533 = vld.sshfl [vmem:[#allocation1] sm:$0xff pattern:$0x73625140]
        %v6534 = vld.sshfl [vmem:[#allocation1 + $0x20] sm:$0xff pattern:$0x73625140]
        %6535 = vst [vmem:[#allocation1] ss:$4 sm:$0xff] %v6319
        %6536 = vst [vmem:[%s6490] ss:$4 sm:$0xff] %v6320
        %6537 = vst [vmem:[%s6492] ss:$4 sm:$0xff] %v6321
        %6538 = vst [vmem:[%s6494] ss:$4 sm:$0xff] %v6322
        %6539 = vst [vmem:[%s6496] ss:$4 sm:$0xff] %v6323
        %v6540 = vld.sshfl [vmem:[#allocation1] sm:$0xff pattern:$0x73625140]
        %v6541 = vld.sshfl [vmem:[#allocation1 + $0x20] sm:$0xff pattern:$0x73625140]
        %6542 = vst [vmem:[#allocation1] ss:$4 sm:$0xff] %v6324
        %6543 = vst [vmem:[%s6490] ss:$4 sm:$0xff] %v6325
        %6544 = vst [vmem:[%s6492] ss:$4 sm:$0xff] %v6326
        %6545 = vst [vmem:[%s6494] ss:$4 sm:$0xff] %v6327
        %6546 = vst [vmem:[%s6496] ss:$4 sm:$0xff] %v6328
        %v6547 = vld.sshfl [vmem:[#allocation1] sm:$0xff pattern:$0x73625140]
        %v6548 = vld.sshfl [vmem:[#allocation1 + $0x20] sm:$0xff pattern:$0x73625140]
        %6549 = vst [vmem:[#allocation1] ss:$4 sm:$0xff] %v6329
        %6550 = vst [vmem:[%s6490] ss:$4 sm:$0xff] %v6330
        %6551 = vst [vmem:[%s6492] ss:$4 sm:$0xff] %v6331
        %6552 = vst [vmem:[%s6494] ss:$4 sm:$0xff] %v6332
        %6553 = vst [vmem:[%s6496] ss:$4 sm:$0xff] %v6333
        %v6554 = vld.sshfl [vmem:[#allocation1] sm:$0xff pattern:$0x73625140]
        %v6555 = vld.sshfl [vmem:[#allocation1 + $0x20] sm:$0xff pattern:$0x73625140]
        %6556 = vst [vmem:[#allocation1] ss:$4 sm:$0xff] %v6334
        %6557 = vst [vmem:[%s6490] ss:$4 sm:$0xff] %v6335
        %6558 = vst [vmem:[%s6492] ss:$4 sm:$0xff] %v6336
        %6559 = vst [vmem:[%s6494] ss:$4 sm:$0xff] %v6337
        %6560 = vst [vmem:[%s6496] ss:$4 sm:$0xff] %v6338
        %v6561 = vld.sshfl [vmem:[#allocation1] sm:$0xff pattern:$0x73625140]
        %v6562 = vld.sshfl [vmem:[#allocation1 + $0x20] sm:$0xff pattern:$0x73625140]
        %6563 = vst [vmem:[#allocation1] ss:$4 sm:$0xff] %v6339
        %6564 = vst [vmem:[%s6490] ss:$4 sm:$0xff] %v6340
        %6565 = vst [vmem:[%s6492] ss:$4 sm:$0xff] %v6341
        %6566 = vst [vmem:[%s6494] ss:$4 sm:$0xff] %v6342
        %6567 = vst [vmem:[%s6496] ss:$4 sm:$0xff] %v6343
        %v6568 = vld.sshfl [vmem:[#allocation1] sm:$0xff pattern:$0x73625140]
        %v6569 = vld.sshfl [vmem:[#allocation1 + $0x20] sm:$0xff pattern:$0x73625140]
        %6570 = vst [vmem:[#allocation1] ss:$4 sm:$0xff] %v6344
        %6571 = vst [vmem:[%s6490] ss:$4 sm:$0xff] %v6345
        %6572 = vst [vmem:[%s6492] ss:$4 sm:$0xff] %v6346
        %6573 = vst [vmem:[%s6494] ss:$4 sm:$0xff] %v6347
        %6574 = vst [vmem:[%s6496] ss:$4 sm:$0xff] %v6348
        %v6575 = vld.sshfl [vmem:[#allocation1] sm:$0xff pattern:$0x73625140]
        %v6576 = vld.sshfl [vmem:[#allocation1 + $0x20] sm:$0xff pattern:$0x73625140]
        %6577 = vst [vmem:[#allocation1] ss:$4 sm:$0xff] %v6349
        %6578 = vst [vmem:[%s6490] ss:$4 sm:$0xff] %v6350
        %6579 = vst [vmem:[%s6492] ss:$4 sm:$0xff] %v6351
        %6580 = vst [vmem:[%s6494] ss:$4 sm:$0xff] %v6352
        %6581 = vst [vmem:[%s6496] ss:$4 sm:$0xff] %v6353
        %v6582 = vld.sshfl [vmem:[#allocation1] sm:$0xff pattern:$0x73625140]
        %v6583 = vld.sshfl [vmem:[#allocation1 + $0x20] sm:$0xff pattern:$0x73625140]
        %6584 = vst [vmem:[#allocation1] ss:$4 sm:$0xff] %v6354
        %6585 = vst [vmem:[%s6490] ss:$4 sm:$0xff] %v6355
        %6586 = vst [vmem:[%s6492] ss:$4 sm:$0xff] %v6356
        %6587 = vst [vmem:[%s6494] ss:$4 sm:$0xff] %v6357
        %6588 = vst [vmem:[%s6496] ss:$4 sm:$0xff] %v6358
        %v6589 = vld.sshfl [vmem:[#allocation1] sm:$0xff pattern:$0x73625140]
        %v6590 = vld.sshfl [vmem:[#allocation1 + $0x20] sm:$0xff pattern:$0x73625140]
        %6591 = vst [vmem:[#allocation1] ss:$4 sm:$0xff] %v6359
        %6592 = vst [vmem:[%s6490] ss:$4 sm:$0xff] %v6360
        %6593 = vst [vmem:[%s6492] ss:$4 sm:$0xff] %v6361
        %6594 = vst [vmem:[%s6494] ss:$4 sm:$0xff] %v6362
        %6595 = vst [vmem:[%s6496] ss:$4 sm:$0xff] %v6363
        %v6596 = vld.sshfl [vmem:[#allocation1] sm:$0xff pattern:$0x73625140]
        %v6597 = vld.sshfl [vmem:[#allocation1 + $0x20] sm:$0xff pattern:$0x73625140]
        %6598 = vst [vmem:[#allocation1] ss:$4 sm:$0xff] %v6364
        %6599 = vst [vmem:[%s6490] ss:$4 sm:$0xff] %v6365
        %6600 = vst [vmem:[%s6492] ss:$4 sm:$0xff] %v6366
        %6601 = vst [vmem:[%s6494] ss:$4 sm:$0xff] %v6367
        %6602 = vst [vmem:[%s6496] ss:$4 sm:$0xff] %v6368
        %v6603 = vld.sshfl [vmem:[#allocation1] sm:$0xff pattern:$0x73625140]
        %v6604 = vld.sshfl [vmem:[#allocation1 + $0x20] sm:$0xff pattern:$0x73625140]
        %6605 = vst [vmem:[#allocation1] ss:$4 sm:$0xff] %v6369
        %6606 = vst [vmem:[%s6490] ss:$4 sm:$0xff] %v6370
        %6607 = vst [vmem:[%s6492] ss:$4 sm:$0xff] %v6371
        %6608 = vst [vmem:[%s6494] ss:$4 sm:$0xff] %v6372
        %6609 = vst [vmem:[%s6496] ss:$4 sm:$0xff] %v6373
        %v6610 = vld.sshfl [vmem:[#allocation1] sm:$0xff pattern:$0x73625140]
        %v6611 = vld.sshfl [vmem:[#allocation1 + $0x20] sm:$0xff pattern:$0x73625140]
        %6612 = vst [vmem:[#allocation1] ss:$4 sm:$0xff] %v6374
        %6613 = vst [vmem:[%s6490] ss:$4 sm:$0xff] %v6375
        %6614 = vst [vmem:[%s6492] ss:$4 sm:$0xff] %v6376
        %6615 = vst [vmem:[%s6494] ss:$4 sm:$0xff] %v6377
        %6616 = vst [vmem:[%s6496] ss:$4 sm:$0xff] %v6378
        %v6617 = vld.sshfl [vmem:[#allocation1] sm:$0xff pattern:$0x73625140]
        %v6618 = vld.sshfl [vmem:[#allocation1 + $0x20] sm:$0xff pattern:$0x73625140]
        %6619 = vst [vmem:[#allocation1] ss:$4 sm:$0xff] %v6379
        %6620 = vst [vmem:[%s6490] ss:$4 sm:$0xff] %v6380
        %6621 = vst [vmem:[%s6492] ss:$4 sm:$0xff] %v6381
        %6622 = vst [vmem:[%s6494] ss:$4 sm:$0xff] %v6382
        %6623 = vst [vmem:[%s6496] ss:$4 sm:$0xff] %v6383
        %v6624 = vld.sshfl [vmem:[#allocation1] sm:$0xff pattern:$0x73625140]
        %v6625 = vld.sshfl [vmem:[#allocation1 + $0x20] sm:$0xff pattern:$0x73625140]
        %6626 = vst [vmem:[#allocation1] ss:$4 sm:$0xff] %v6384
        %6627 = vst [vmem:[%s6490] ss:$4 sm:$0xff] %v6385
        %6628 = vst [vmem:[%s6492] ss:$4 sm:$0xff] %v6386
        %6629 = vst [vmem:[%s6494] ss:$4 sm:$0xff] %v6387
        %6630 = vst [vmem:[%s6496] ss:$4 sm:$0xff] %v6388
        %v6631 = vld.sshfl [vmem:[#allocation1] sm:$0xff pattern:$0x73625140]
        %v6632 = vld.sshfl [vmem:[#allocation1 + $0x20] sm:$0xff pattern:$0x73625140]
        %v6673 = vsel %vm818, %v6498, 0.0
        %v6674 = vsel %vm2901, %v6499, 0.0
        %v6675 = vadd.f32 %v6673, %v6674
        %v6676 = vrot.slane %v6675, 4
        %v6677 = vadd.f32 %v6675, %v6676
        %v6678 = vrot.slane %v6677, 2
        %v6679 = vadd.f32 %v6677, %v6678
        %v6680 = vrot.slane %v6679, 1
        %v6681 = vadd.f32 %v6679, %v6680
        %v6682 = vsel %vm818, %v6505, 0.0
        %v6683 = vsel %vm2901, %v6506, 0.0
        %v6684 = vadd.f32 %v6682, %v6683
        %v6685 = vrot.slane %v6684, 4
        %v6686 = vadd.f32 %v6684, %v6685
        %v6687 = vrot.slane %v6686, 2
        %v6688 = vadd.f32 %v6686, %v6687
        %v6689 = vrot.slane %v6688, 1
        %v6690 = vadd.f32 %v6688, %v6689
        %v6691 = vsel %vm818, %v6512, 0.0
        %v6692 = vsel %vm2901, %v6513, 0.0
        %v6693 = vadd.f32 %v6691, %v6692
        %v6694 = vrot.slane %v6693, 4
        %v6695 = vadd.f32 %v6693, %v6694
        %v6696 = vrot.slane %v6695, 2
        %v6697 = vadd.f32 %v6695, %v6696
        %v6698 = vrot.slane %v6697, 1
        %v6699 = vadd.f32 %v6697, %v6698
        %v6700 = vsel %vm818, %v6519, 0.0
        %v6701 = vsel %vm2901, %v6520, 0.0
        %v6702 = vadd.f32 %v6700, %v6701
        %v6703 = vrot.slane %v6702, 4
        %v6704 = vadd.f32 %v6702, %v6703
        %v6705 = vrot.slane %v6704, 2
        %v6706 = vadd.f32 %v6704, %v6705
        %v6707 = vrot.slane %v6706, 1
        %v6708 = vadd.f32 %v6706, %v6707
        %v6709 = vsel %vm818, %v6526, 0.0
        %v6710 = vsel %vm2901, %v6527, 0.0
        %v6711 = vadd.f32 %v6709, %v6710
        %v6712 = vrot.slane %v6711, 4
        %v6713 = vadd.f32 %v6711, %v6712
        %v6714 = vrot.slane %v6713, 2
        %v6715 = vadd.f32 %v6713, %v6714
        %v6716 = vrot.slane %v6715, 1
        %v6717 = vadd.f32 %v6715, %v6716
        %v6718 = vsel %vm818, %v6533, 0.0
        %v6719 = vsel %vm2901, %v6534, 0.0
        %v6720 = vadd.f32 %v6718, %v6719
        %v6721 = vrot.slane %v6720, 4
        %v6722 = vadd.f32 %v6720, %v6721
        %v6723 = vrot.slane %v6722, 2
        %v6724 = vadd.f32 %v6722, %v6723
        %v6725 = vrot.slane %v6724, 1
        %v6726 = vadd.f32 %v6724, %v6725
        %v6727 = vsel %vm818, %v6540, 0.0
        %v6728 = vsel %vm2901, %v6541, 0.0
        %v6729 = vadd.f32 %v6727, %v6728
        %v6730 = vrot.slane %v6729, 4
        %v6731 = vadd.f32 %v6729, %v6730
        %v6732 = vrot.slane %v6731, 2
        %v6733 = vadd.f32 %v6731, %v6732
        %v6734 = vrot.slane %v6733, 1
        %v6735 = vadd.f32 %v6733, %v6734
        %v6736 = vsel %vm818, %v6547, 0.0
        %v6737 = vsel %vm2901, %v6548, 0.0
        %v6738 = vadd.f32 %v6736, %v6737
        %v6739 = vrot.slane %v6738, 4
        %v6740 = vadd.f32 %v6738, %v6739
        %v6741 = vrot.slane %v6740, 2
        %v6742 = vadd.f32 %v6740, %v6741
        %v6743 = vrot.slane %v6742, 1
        %v6744 = vadd.f32 %v6742, %v6743
        %v6745 = vsel %vm818, %v6554, 0.0
        %v6746 = vsel %vm2901, %v6555, 0.0
        %v6747 = vadd.f32 %v6745, %v6746
        %v6748 = vrot.slane %v6747, 4
        %v6749 = vadd.f32 %v6747, %v6748
        %v6750 = vrot.slane %v6749, 2
        %v6751 = vadd.f32 %v6749, %v6750
        %v6752 = vrot.slane %v6751, 1
        %v6753 = vadd.f32 %v6751, %v6752
        %v6754 = vsel %vm818, %v6561, 0.0
        %v6755 = vsel %vm2901, %v6562, 0.0
        %v6756 = vadd.f32 %v6754, %v6755
        %v6757 = vrot.slane %v6756, 4
        %v6758 = vadd.f32 %v6756, %v6757
        %v6759 = vrot.slane %v6758, 2
        %v6760 = vadd.f32 %v6758, %v6759
        %v6761 = vrot.slane %v6760, 1
        %v6762 = vadd.f32 %v6760, %v6761
        %v6763 = vsel %vm818, %v6568, 0.0
        %v6764 = vsel %vm2901, %v6569, 0.0
        %v6765 = vadd.f32 %v6763, %v6764
        %v6766 = vrot.slane %v6765, 4
        %v6767 = vadd.f32 %v6765, %v6766
        %v6768 = vrot.slane %v6767, 2
        %v6769 = vadd.f32 %v6767, %v6768
        %v6770 = vrot.slane %v6769, 1
        %v6771 = vadd.f32 %v6769, %v6770
        %v6772 = vsel %vm818, %v6575, 0.0
        %v6773 = vsel %vm2901, %v6576, 0.0
        %v6774 = vadd.f32 %v6772, %v6773
        %v6775 = vrot.slane %v6774, 4
        %v6776 = vadd.f32 %v6774, %v6775
        %v6777 = vrot.slane %v6776, 2
        %v6778 = vadd.f32 %v6776, %v6777
        %v6779 = vrot.slane %v6778, 1
        %v6780 = vadd.f32 %v6778, %v6779
        %v6781 = vsel %vm818, %v6582, 0.0
        %v6782 = vsel %vm2901, %v6583, 0.0
        %v6783 = vadd.f32 %v6781, %v6782
        %v6784 = vrot.slane %v6783, 4
        %v6785 = vadd.f32 %v6783, %v6784
        %v6786 = vrot.slane %v6785, 2
        %v6787 = vadd.f32 %v6785, %v6786
        %v6788 = vrot.slane %v6787, 1
        %v6789 = vadd.f32 %v6787, %v6788
        %v6790 = vsel %vm818, %v6589, 0.0
        %v6791 = vsel %vm2901, %v6590, 0.0
        %v6792 = vadd.f32 %v6790, %v6791
        %v6793 = vrot.slane %v6792, 4
        %v6794 = vadd.f32 %v6792, %v6793
        %v6795 = vrot.slane %v6794, 2
        %v6796 = vadd.f32 %v6794, %v6795
        %v6797 = vrot.slane %v6796, 1
        %v6798 = vadd.f32 %v6796, %v6797
        %v6799 = vsel %vm818, %v6596, 0.0
        %v6800 = vsel %vm2901, %v6597, 0.0
        %v6801 = vadd.f32 %v6799, %v6800
        %v6802 = vrot.slane %v6801, 4
        %v6803 = vadd.f32 %v6801, %v6802
        %v6804 = vrot.slane %v6803, 2
        %v6805 = vadd.f32 %v6803, %v6804
        %v6806 = vrot.slane %v6805, 1
        %v6807 = vadd.f32 %v6805, %v6806
        %v6808 = vsel %vm818, %v6603, 0.0
        %v6809 = vsel %vm2901, %v6604, 0.0
        %v6810 = vadd.f32 %v6808, %v6809
        %v6811 = vrot.slane %v6810, 4
        %v6812 = vadd.f32 %v6810, %v6811
        %v6813 = vrot.slane %v6812, 2
        %v6814 = vadd.f32 %v6812, %v6813
        %v6815 = vrot.slane %v6814, 1
        %v6816 = vadd.f32 %v6814, %v6815
        %v6817 = vsel %vm818, %v6610, 0.0
        %v6818 = vsel %vm2901, %v6611, 0.0
        %v6819 = vadd.f32 %v6817, %v6818
        %v6820 = vrot.slane %v6819, 4
        %v6821 = vadd.f32 %v6819, %v6820
        %v6822 = vrot.slane %v6821, 2
        %v6823 = vadd.f32 %v6821, %v6822
        %v6824 = vrot.slane %v6823, 1
        %v6825 = vadd.f32 %v6823, %v6824
        %v6826 = vsel %vm818, %v6617, 0.0
        %v6827 = vsel %vm2901, %v6618, 0.0
        %v6828 = vadd.f32 %v6826, %v6827
        %v6829 = vrot.slane %v6828, 4
        %v6830 = vadd.f32 %v6828, %v6829
        %v6831 = vrot.slane %v6830, 2
        %v6832 = vadd.f32 %v6830, %v6831
        %v6833 = vrot.slane %v6832, 1
        %v6834 = vadd.f32 %v6832, %v6833
        %v6835 = vsel %vm818, %v6624, 0.0
        %v6836 = vsel %vm2901, %v6625, 0.0
        %v6837 = vadd.f32 %v6835, %v6836
        %v6838 = vrot.slane %v6837, 4
        %v6839 = vadd.f32 %v6837, %v6838
        %v6840 = vrot.slane %v6839, 2
        %v6841 = vadd.f32 %v6839, %v6840
        %v6842 = vrot.slane %v6841, 1
        %v6843 = vadd.f32 %v6841, %v6842
        %v6844 = vsel %vm818, %v6631, 0.0
        %v6845 = vsel %vm2901, %v6632, 0.0
        %v6846 = vadd.f32 %v6844, %v6845
        %v6847 = vrot.slane %v6846, 4
        %v6848 = vadd.f32 %v6846, %v6847
        %v6849 = vrot.slane %v6848, 2
        %v6850 = vadd.f32 %v6848, %v6849
        %v6851 = vrot.slane %v6850, 1
        %v6852 = vadd.f32 %v6850, %v6851
        %s6853 = scalar_lea.vmem %s10, 48
        %v6854 = vld [vmem:[%s6853] sm:$0xf]
        %v6855 = vld [vmem:[%s6853 + $0x4] sm:$0xf]
        %v6856 = vld [vmem:[%s6853 + $0x8] sm:$0xf]
        %v6857 = vld [vmem:[%s6853 + $0xc] sm:$0xf]
        %v6858 = vpack.c.bf16 %v6681, %v6681
        %v6859 = vpack.c.bf16 %v6690, %v6690
        %v6860 = vpack.c.bf16 %v6699, %v6699
        %v6861 = vpack.c.bf16 %v6708, %v6708
        %v6862 = vpack.c.bf16 %v6717, %v6717
        %v6863 = vpack.c.bf16 %v6726, %v6726
        %v6864 = vpack.c.bf16 %v6735, %v6735
        %v6865 = vpack.c.bf16 %v6744, %v6744
        %v6866 = vpack.c.bf16 %v6753, %v6753
        %v6867 = vpack.c.bf16 %v6762, %v6762
        %v6868 = vpack.c.bf16 %v6771, %v6771
        %v6869 = vpack.c.bf16 %v6780, %v6780
        %v6870 = vpack.c.bf16 %v6789, %v6789
        %v6871 = vpack.c.bf16 %v6798, %v6798
        %v6872 = vpack.c.bf16 %v6807, %v6807
        %v6873 = vpack.c.bf16 %v6816, %v6816
        %v6874 = vpack.c.bf16 %v6825, %v6825
        %v6875 = vpack.c.bf16 %v6834, %v6834
        %v6876 = vpack.c.bf16 %v6843, %v6843
        %v6877 = vpack.c.bf16 %v6852, %v6852
        %v6878 = vperm.slane %v2905, 3
        %v6899 = vunpack.c.l.b16 %v6858
        %v6900 = vunpack.c.l.b16 %v6859
        %v6901 = vunpack.c.l.b16 %v6860
        %v6902 = vunpack.c.l.b16 %v6861
        %v6903 = vunpack.c.l.b16 %v6862
        %v6904 = vunpack.c.l.b16 %v6863
        %v6905 = vunpack.c.l.b16 %v6864
        %v6906 = vunpack.c.l.b16 %v6865
        %v6907 = vunpack.c.l.b16 %v6866
        %v6908 = vunpack.c.l.b16 %v6867
        %v6909 = vunpack.c.l.b16 %v6868
        %v6910 = vunpack.c.l.b16 %v6869
        %v6911 = vunpack.c.l.b16 %v6870
        %v6912 = vunpack.c.l.b16 %v6871
        %v6913 = vunpack.c.l.b16 %v6872
        %v6914 = vunpack.c.l.b16 %v6873
        %v6915 = vunpack.c.l.b16 %v6874
        %v6916 = vunpack.c.l.b16 %v6875
        %v6917 = vunpack.c.l.b16 %v6876
        %v6918 = vunpack.c.l.b16 %v6877
        %v6919 = vsel %vm706, %v6900, %v6899
        %v6920 = vsel %vm710, %v6901, %v6919
        %v6921 = vsel %vm714, %v6902, %v6920
        %v6922 = vsel %vm2359, %v6903, %v6921
        %v6923 = vsel %vm2361, %v6904, %v6922
        %v6924 = vsel %vm2363, %v6905, %v6923
        %v6925 = vsel %vm2365, %v6906, %v6924
        %v6926 = vsel %vm706, %v6908, %v6907
        %v6927 = vsel %vm710, %v6909, %v6926
        %v6928 = vsel %vm714, %v6910, %v6927
        %v6929 = vsel %vm2359, %v6911, %v6928
        %v6930 = vsel %vm2361, %v6912, %v6929
        %v6931 = vsel %vm2363, %v6913, %v6930
        %v6932 = vsel %vm2365, %v6914, %v6931
        %v6933 = vsel %vm706, %v6916, %v6915
        %v6934 = vsel %vm710, %v6917, %v6933
        %v6935 = vsel %vm714, %v6918, %v6934
        %v6936 = vpack.c.b16 %v6932, %v6925
        %v6937 = vpack.c.b16 %v6935, %v6935
        %v6942 = vunpack.c.l.b16 %v6854
        %v6943 = vunpack.c.l.b16 %v6855
        %v6944 = vunpack.c.l.b16 %v6856
        %v6945 = vunpack.c.l.b16 %v6857
        %v6946 = vpack.c.b16 %v6943, %v6942
        %v6947 = vpack.c.b16 %v6945, %v6944
        %v6951 = vsel %vm818, %v6936, 0
        %v6954 = vsel %vm818, %v6937, 0
        %6956 = vmatpush.bf16.msra.mxu0 0
        %6957 = vmatpush.bf16.msra.mxu0 0
        %6958 = vmatpush.bf16.msra.mxu0 0
        %6959 = vmatpush.bf16.msra.mxu0 0
        %6960 = vmatpush.bf16.msra.mxu0 0
        %6961 = vmatpush.bf16.msra.mxu0 0
        %6962 = vmatpush.bf16.msra.mxu0 %v6947
        %6963 = vmatpush.bf16.msra.mxu0 %v6946
        %6964 = vmatmul.bf16.gmra.mxu0 %v6951
        %v6965 = vpop.f32.mrf.mxu0
        %v6966 = vadd.f32 %v6878, %v6965
        %v6967 = vpop.f32.mrf.mxu0
        %v6968 = vadd.f32 %v6878, %v6967
        %6969 = vmatmul.bf16.gmra.mxu0 %v6954
        %v6970 = vpop.f32.mrf.mxu0
        %v6971 = vadd.f32 %v6878, %v6970
        %v6972 = vpop.f32.mrf.mxu0
        %6973 = vdwg.mxu0
        %v6977 = vrot.slane %v6966, 2
        %v6978 = vrot.slane %v6966, 4
        %v6979 = vrot.slane %v6966, 6
        %v6980 = vrot.slane %v6968, 2
        %v6981 = vrot.slane %v6968, 4
        %v6982 = vrot.slane %v6968, 6
        %v6983 = vrot.slane %v6971, 2
        %v6991 = vadd.f32 %v2959, %v6966
        %v6992 = vadd.f32 %v2960, %v6977
        %v6993 = vadd.f32 %v2961, %v6978
        %v6994 = vadd.f32 %v2962, %v6979
        %v6995 = vadd.f32 %v2963, %v6968
        %v6996 = vadd.f32 %v2964, %v6980
        %v6997 = vadd.f32 %v2965, %v6981
        %v6998 = vadd.f32 %v2966, %v6982
        %v6999 = vadd.f32 %v2967, %v6971
        %v7000 = vadd.f32 %v2968, %v6983
        %7011 = vst [vmem:[#allocation1] ss:$4 sm:$0xff] %v6991
        %s7012 = scalar_lea.vmem [#allocation1], 1
        %7013 = vst [vmem:[%s7012] ss:$4 sm:$0xff] %v6992
        %s7014 = scalar_lea.vmem [#allocation1], 2
        %7015 = vst [vmem:[%s7014] ss:$4 sm:$0xff] %v6993
        %s7016 = scalar_lea.vmem [#allocation1], 3
        %7017 = vst [vmem:[%s7016] ss:$4 sm:$0xff] %v6994
        %s7018 = scalar_lea.vmem [#allocation1], 32
        %7019 = vst [vmem:[%s7018] ss:$4 sm:$0xff] %v6995
        %s7020 = scalar_lea.vmem [#allocation1], 33
        %7021 = vst [vmem:[%s7020] ss:$4 sm:$0xff] %v6996
        %s7022 = scalar_lea.vmem [#allocation1], 34
        %7023 = vst [vmem:[%s7022] ss:$4 sm:$0xff] %v6997
        %s7024 = scalar_lea.vmem [#allocation1], 35
        %7025 = vst [vmem:[%s7024] ss:$4 sm:$0xff] %v6998
        %v7026 = vld.sshfl [vmem:[#allocation1] sm:$0xff pattern:$0x73625140]
        %v7027 = vld.sshfl [vmem:[#allocation1 + $0x20] sm:$0xff pattern:$0x73625140]
        %7028 = vst [vmem:[#allocation1] ss:$4 sm:$0xff] %v6999
        %7029 = vst [vmem:[%s7012] ss:$4 sm:$0xff] %v7000
        %v7030 = vld.sshfl [vmem:[#allocation1] sm:$0xff pattern:$0x73625140]
        %v7034 = vsel %vm818, %v7026, 0.0
        %7035 = vadd.xlane.f32.xlu0 %v7034
        %v7036 = vpop.xlane.xlu0 %7035
        %v7037 = vsel %vm818, %v7027, 0.0
        %7038 = vadd.xlane.f32.xlu0 %v7037
        %v7039 = vpop.xlane.xlu0 %7038
        %v7040 = vsel %vm2457, %v7030, 0.0
        %7041 = vadd.xlane.f32.xlu0 %v7040
        %v7042 = vpop.xlane.xlu0 %7041
        %v7043 = vmul.f32 %v7036, %v2467
        %v7044 = vmul.f32 %v7039, %v2467
        %v7045 = vmul.f32 %v7042, %v2467
        %v7050 = vunpack.c.l.s4 269488144
        %v7051 = vunpack.c.0.s8 %v7050
        %v7052 = vperm.slane %v7043, %v7051
        %v7054 = vunpack.c.l.s4 842150450
        %v7055 = vunpack.c.0.s8 %v7054
        %v7056 = vperm.slane %v7043, %v7055
        %v7058 = vunpack.c.l.s4 1414812756
        %v7059 = vunpack.c.0.s8 %v7058
        %v7060 = vperm.slane %v7043, %v7059
        %v7062 = vunpack.c.l.s4 1987475062
        %v7063 = vunpack.c.0.s8 %v7062
        %v7064 = vperm.slane %v7043, %v7063
        %v7066 = vunpack.c.l.s4 269488144
        %v7067 = vunpack.c.0.s8 %v7066
        %v7068 = vperm.slane %v7044, %v7067
        %v7070 = vunpack.c.l.s4 842150450
        %v7071 = vunpack.c.0.s8 %v7070
        %v7072 = vperm.slane %v7044, %v7071
        %v7074 = vunpack.c.l.s4 1414812756
        %v7075 = vunpack.c.0.s8 %v7074
        %v7076 = vperm.slane %v7044, %v7075
        %v7078 = vunpack.c.l.s4 1987475062
        %v7079 = vunpack.c.0.s8 %v7078
        %v7080 = vperm.slane %v7044, %v7079
        %v7082 = vunpack.c.l.s4 269488144
        %v7083 = vunpack.c.0.s8 %v7082
        %v7084 = vperm.slane %v7045, %v7083
        %v7086 = vunpack.c.l.s4 842150450
        %v7087 = vunpack.c.0.s8 %v7086
        %v7088 = vperm.slane %v7045, %v7087
        %v7099 = vsub.f32 %v6991, %v7052
        %v7100 = vsub.f32 %v6992, %v7056
        %v7101 = vsub.f32 %v6993, %v7060
        %v7102 = vsub.f32 %v6994, %v7064
        %v7103 = vsub.f32 %v6995, %v7068
        %v7104 = vsub.f32 %v6996, %v7072
        %v7105 = vsub.f32 %v6997, %v7076
        %v7106 = vsub.f32 %v6998, %v7080
        %v7107 = vsub.f32 %v6999, %v7084
        %v7108 = vsub.f32 %v7000, %v7088
        %v7109 = vmul.f32 %v7099, %v7099
        %v7110 = vmul.f32 %v7100, %v7100
        %v7111 = vmul.f32 %v7101, %v7101
        %v7112 = vmul.f32 %v7102, %v7102
        %v7113 = vmul.f32 %v7103, %v7103
        %v7114 = vmul.f32 %v7104, %v7104
        %v7115 = vmul.f32 %v7105, %v7105
        %v7116 = vmul.f32 %v7106, %v7106
        %v7117 = vmul.f32 %v7107, %v7107
        %v7118 = vmul.f32 %v7108, %v7108
        %7129 = vst [vmem:[#allocation1] ss:$4 sm:$0xff] %v7109
        %s7130 = scalar_lea.vmem [#allocation1], 1
        %7131 = vst [vmem:[%s7130] ss:$4 sm:$0xff] %v7110
        %s7132 = scalar_lea.vmem [#allocation1], 2
        %7133 = vst [vmem:[%s7132] ss:$4 sm:$0xff] %v7111
        %s7134 = scalar_lea.vmem [#allocation1], 3
        %7135 = vst [vmem:[%s7134] ss:$4 sm:$0xff] %v7112
        %s7136 = scalar_lea.vmem [#allocation1], 32
        %7137 = vst [vmem:[%s7136] ss:$4 sm:$0xff] %v7113
        %s7138 = scalar_lea.vmem [#allocation1], 33
        %7139 = vst [vmem:[%s7138] ss:$4 sm:$0xff] %v7114
        %s7140 = scalar_lea.vmem [#allocation1], 34
        %7141 = vst [vmem:[%s7140] ss:$4 sm:$0xff] %v7115
        %s7142 = scalar_lea.vmem [#allocation1], 35
        %7143 = vst [vmem:[%s7142] ss:$4 sm:$0xff] %v7116
        %v7144 = vld.sshfl [vmem:[#allocation1] sm:$0xff pattern:$0x73625140]
        %v7145 = vld.sshfl [vmem:[#allocation1 + $0x20] sm:$0xff pattern:$0x73625140]
        %7146 = vst [vmem:[#allocation1] ss:$4 sm:$0xff] %v7117
        %7147 = vst [vmem:[%s7130] ss:$4 sm:$0xff] %v7118
        %v7148 = vld.sshfl [vmem:[#allocation1] sm:$0xff pattern:$0x73625140]
        %v7152 = vsel %vm818, %v7144, 0.0
        %7153 = vadd.xlane.f32.xlu0 %v7152
        %v7154 = vpop.xlane.xlu0 %7153
        %v7155 = vsel %vm818, %v7145, 0.0
        %7156 = vadd.xlane.f32.xlu0 %v7155
        %v7157 = vpop.xlane.xlu0 %7156
        %v7158 = vsel %vm2457, %v7148, 0.0
        %7159 = vadd.xlane.f32.xlu0 %v7158
        %v7160 = vpop.xlane.xlu0 %7159
        %v7161 = vmul.f32 %v7154, %v2467
        %v7162 = vmul.f32 %v7157, %v2467
        %v7163 = vmul.f32 %v7160, %v2467
        %v7164 = vadd.f32 %v7161, 1e-05
        %v7165 = vadd.f32 %v7162, 1e-05
        %v7166 = vadd.f32 %v7163, 1e-05
        %v7167 = vrsqrt.pop %v7164
        %v7168 = vmul.f32 %v7167, %v7164
        %v7169 = vmul.f32 %v7168, %v7167
        %v7170 = vmul.f32 0.5, %v7169
        %v7171 = vsub.f32 1.5, %v7170
        %v7172 = vmul.f32 %v7167, %v7171
        %vm7173 = vweird.f32 %v7164
        %vm7174 = vweird.f32 %v7167
        %vm7175 = vmor %vm7173, %vm7174
        %v7176 = vsel %vm7175, %v7167, %v7172
        %v7177 = vrsqrt.pop %v7165
        %v7178 = vmul.f32 %v7177, %v7165
        %v7179 = vmul.f32 %v7178, %v7177
        %v7180 = vmul.f32 0.5, %v7179
        %v7181 = vsub.f32 1.5, %v7180
        %v7182 = vmul.f32 %v7177, %v7181
        %vm7183 = vweird.f32 %v7165
        %vm7184 = vweird.f32 %v7177
        %vm7185 = vmor %vm7183, %vm7184
        %v7186 = vsel %vm7185, %v7177, %v7182
        %v7187 = vrsqrt.pop %v7166
        %v7188 = vmul.f32 %v7187, %v7166
        %v7189 = vmul.f32 %v7188, %v7187
        %v7190 = vmul.f32 0.5, %v7189
        %v7191 = vsub.f32 1.5, %v7190
        %v7192 = vmul.f32 %v7187, %v7191
        %vm7193 = vweird.f32 %v7166
        %vm7194 = vweird.f32 %v7187
        %vm7195 = vmor %vm7193, %vm7194
        %v7196 = vsel %vm7195, %v7187, %v7192
        %v7201 = vunpack.c.l.s4 269488144
        %v7202 = vunpack.c.0.s8 %v7201
        %v7203 = vperm.slane %v7176, %v7202
        %v7205 = vunpack.c.l.s4 842150450
        %v7206 = vunpack.c.0.s8 %v7205
        %v7207 = vperm.slane %v7176, %v7206
        %v7209 = vunpack.c.l.s4 1414812756
        %v7210 = vunpack.c.0.s8 %v7209
        %v7211 = vperm.slane %v7176, %v7210
        %v7213 = vunpack.c.l.s4 1987475062
        %v7214 = vunpack.c.0.s8 %v7213
        %v7215 = vperm.slane %v7176, %v7214
        %v7217 = vunpack.c.l.s4 269488144
        %v7218 = vunpack.c.0.s8 %v7217
        %v7219 = vperm.slane %v7186, %v7218
        %v7221 = vunpack.c.l.s4 842150450
        %v7222 = vunpack.c.0.s8 %v7221
        %v7223 = vperm.slane %v7186, %v7222
        %v7225 = vunpack.c.l.s4 1414812756
        %v7226 = vunpack.c.0.s8 %v7225
        %v7227 = vperm.slane %v7186, %v7226
        %v7229 = vunpack.c.l.s4 1987475062
        %v7230 = vunpack.c.0.s8 %v7229
        %v7231 = vperm.slane %v7186, %v7230
        %v7233 = vunpack.c.l.s4 269488144
        %v7234 = vunpack.c.0.s8 %v7233
        %v7235 = vperm.slane %v7196, %v7234
        %v7237 = vunpack.c.l.s4 842150450
        %v7238 = vunpack.c.0.s8 %v7237
        %v7239 = vperm.slane %v7196, %v7238
        %v7250 = vmul.f32 %v7099, %v7203
        %v7251 = vmul.f32 %v7100, %v7207
        %v7252 = vmul.f32 %v7101, %v7211
        %v7253 = vmul.f32 %v7102, %v7215
        %v7254 = vmul.f32 %v7103, %v7219
        %v7255 = vmul.f32 %v7104, %v7223
        %v7256 = vmul.f32 %v7105, %v7227
        %v7257 = vmul.f32 %v7106, %v7231
        %v7258 = vmul.f32 %v7107, %v7235
        %v7259 = vmul.f32 %v7108, %v7239
        %v7260 = vperm.slane %v2905, 4
        %v7262 = vrot.slane %v7260, 2
        %v7263 = vrot.slane %v7260, 4
        %v7264 = vrot.slane %v7260, 6
        %v7268 = vmul.f32 %v7250, %v7260
        %v7269 = vmul.f32 %v7251, %v7262
        %v7270 = vmul.f32 %v7252, %v7263
        %v7271 = vmul.f32 %v7253, %v7264
        %v7272 = vmul.f32 %v7254, %v7260
        %v7273 = vmul.f32 %v7255, %v7262
        %v7274 = vmul.f32 %v7256, %v7263
        %v7275 = vmul.f32 %v7257, %v7264
        %v7276 = vmul.f32 %v7258, %v7260
        %v7277 = vmul.f32 %v7259, %v7262
        %v7278 = vperm.slane %v2905, 5
        %v7280 = vrot.slane %v7278, 2
        %v7281 = vrot.slane %v7278, 4
        %v7282 = vrot.slane %v7278, 6
        %v7286 = vadd.f32 %v7268, %v7278
        %v7287 = vadd.f32 %v7269, %v7280
        %v7288 = vadd.f32 %v7270, %v7281
        %v7289 = vadd.f32 %v7271, %v7282
        %v7290 = vadd.f32 %v7272, %v7278
        %v7291 = vadd.f32 %v7273, %v7280
        %v7292 = vadd.f32 %v7274, %v7281
        %v7293 = vadd.f32 %v7275, %v7282
        %v7294 = vadd.f32 %v7276, %v7278
        %v7295 = vadd.f32 %v7277, %v7280
        %s7296 = scalar_lea.vmem %s10, 64
        %v7297 = vld [vmem:[%s7296] sm:$0xf]
        %v7298 = vld [vmem:[%s7296 + $0x4] sm:$0xf]
        %v7299 = vld [vmem:[%s7296 + $0x8] sm:$0xf]
        %v7300 = vld [vmem:[%s7296 + $0xc] sm:$0xf]
        %7311 = vst [vmem:[#allocation1] ss:$4 sm:$0xff] %v7286
        %s7312 = scalar_lea.vmem [#allocation1], 1
        %7313 = vst [vmem:[%s7312] ss:$4 sm:$0xff] %v7287
        %s7314 = scalar_lea.vmem [#allocation1], 2
        %7315 = vst [vmem:[%s7314] ss:$4 sm:$0xff] %v7288
        %s7316 = scalar_lea.vmem [#allocation1], 3
        %7317 = vst [vmem:[%s7316] ss:$4 sm:$0xff] %v7289
        %s7318 = scalar_lea.vmem [#allocation1], 32
        %7319 = vst [vmem:[%s7318] ss:$4 sm:$0xff] %v7290
        %s7320 = scalar_lea.vmem [#allocation1], 33
        %7321 = vst [vmem:[%s7320] ss:$4 sm:$0xff] %v7291
        %s7322 = scalar_lea.vmem [#allocation1], 34
        %7323 = vst [vmem:[%s7322] ss:$4 sm:$0xff] %v7292
        %s7324 = scalar_lea.vmem [#allocation1], 35
        %7325 = vst [vmem:[%s7324] ss:$4 sm:$0xff] %v7293
        %v7326 = vld.sshfl [vmem:[#allocation1] sm:$0xff pattern:$0x73625140]
        %v7327 = vld.sshfl [vmem:[#allocation1 + $0x20] sm:$0xff pattern:$0x73625140]
        %7328 = vst [vmem:[#allocation1] ss:$4 sm:$0xff] %v7294
        %7329 = vst [vmem:[%s7312] ss:$4 sm:$0xff] %v7295
        %v7330 = vld.sshfl [vmem:[#allocation1] sm:$0xff pattern:$0x73625140]
        %v7334 = vpack.c.bf16 %v7327, %v7326
        %v7335 = vpack.c.bf16 %v7330, %v7330
        %v7336 = vperm.slane %v2905, 6
        %v7341 = vunpack.c.l.b16 %v7297
        %v7342 = vunpack.c.l.b16 %v7298
        %v7343 = vunpack.c.l.b16 %v7299
        %v7344 = vunpack.c.l.b16 %v7300
        %v7345 = vpack.c.b16 %v7342, %v7341
        %v7346 = vpack.c.b16 %v7344, %v7343
        %v7350 = vsel %vm818, %v7334, 0
        %v7353 = vsel %vm818, %v7335, 0
        %7355 = vmatpush.bf16.msra.mxu0 0
        %7356 = vmatpush.bf16.msra.mxu0 0
        %7357 = vmatpush.bf16.msra.mxu0 0
        %7358 = vmatpush.bf16.msra.mxu0 0
        %7359 = vmatpush.bf16.msra.mxu0 0
        %7360 = vmatpush.bf16.msra.mxu0 0
        %7361 = vmatpush.bf16.msra.mxu0 %v7346
        %7362 = vmatpush.bf16.msra.mxu0 %v7345
        %7363 = vmatmul.bf16.gmra.mxu0 %v7350
        %v7364 = vpop.f32.mrf.mxu0
        %v7365 = vadd.f32 %v7336, %v7364
        %v7366 = vpop.f32.mrf.mxu0
        %v7367 = vadd.f32 %v7336, %v7366
        %7368 = vmatmul.bf16.gmra.mxu0 %v7353
        %v7369 = vpop.f32.mrf.mxu0
        %v7370 = vadd.f32 %v7336, %v7369
        %v7371 = vpop.f32.mrf.mxu0
        %7372 = vdwg.mxu0
        %v7373 = vmax.f32 %v7365, 0.0
        %v7374 = vmax.f32 %v7367, 0.0
        %v7375 = vmax.f32 %v7370, 0.0
        %s7376 = scalar_lea.vmem %s10, 80
        %v7377 = vld [vmem:[%s7376] sm:$0xf]
        %v7378 = vld [vmem:[%s7376 + $0x4] sm:$0xf]
        %v7379 = vld [vmem:[%s7376 + $0x8] sm:$0xf]
        %v7380 = vld [vmem:[%s7376 + $0xc] sm:$0xf]
        %v7381 = vpack.c.bf16 %v7374, %v7373
        %v7382 = vpack.c.bf16 %v7375, %v7375
        %v7383 = vperm.slane %v2905, 7
        %v7388 = vunpack.c.l.b16 %v7377
        %v7389 = vunpack.c.l.b16 %v7378
        %v7390 = vunpack.c.l.b16 %v7379
        %v7391 = vunpack.c.l.b16 %v7380
        %v7392 = vpack.c.b16 %v7389, %v7388
        %v7393 = vpack.c.b16 %v7391, %v7390
        %v7397 = vsel %vm818, %v7381, 0
        %v7400 = vsel %vm818, %v7382, 0
        %7402 = vmatpush.bf16.msra.mxu0 0
        %7403 = vmatpush.bf16.msra.mxu0 0
        %7404 = vmatpush.bf16.msra.mxu0 0
        %7405 = vmatpush.bf16.msra.mxu0 0
        %7406 = vmatpush.bf16.msra.mxu0 0
        %7407 = vmatpush.bf16.msra.mxu0 0
        %7408 = vmatpush.bf16.msra.mxu0 %v7393
        %7409 = vmatpush.bf16.msra.mxu0 %v7392
        %7410 = vmatmul.bf16.gmra.mxu0 %v7397
        %v7411 = vpop.f32.mrf.mxu0
        %v7412 = vadd.f32 %v7383, %v7411
        %v7413 = vpop.f32.mrf.mxu0
        %v7414 = vadd.f32 %v7383, %v7413
        %7415 = vmatmul.bf16.gmra.mxu0 %v7400
        %v7416 = vpop.f32.mrf.mxu0
        %v7417 = vadd.f32 %v7383, %v7416
        %v7418 = vpop.f32.mrf.mxu0
        %7419 = vdwg.mxu0
        %v7423 = vrot.slane %v7412, 2
        %v7424 = vrot.slane %v7412, 4
        %v7425 = vrot.slane %v7412, 6
        %v7426 = vrot.slane %v7414, 2
        %v7427 = vrot.slane %v7414, 4
        %v7428 = vrot.slane %v7414, 6
        %v7429 = vrot.slane %v7417, 2
        %v7437 = vadd.f32 %v7286, %v7412
        %v7438 = vadd.f32 %v7287, %v7423
        %v7439 = vadd.f32 %v7288, %v7424
        %v7440 = vadd.f32 %v7289, %v7425
        %v7441 = vadd.f32 %v7290, %v7414
        %v7442 = vadd.f32 %v7291, %v7426
        %v7443 = vadd.f32 %v7292, %v7427
        %v7444 = vadd.f32 %v7293, %v7428
        %v7445 = vadd.f32 %v7294, %v7417
        %v7446 = vadd.f32 %v7295, %v7429
        %7457 = vst [vmem:[#allocation1] ss:$4 sm:$0xff] %v7437
        %s7458 = scalar_lea.vmem [#allocation1], 1
        %7459 = vst [vmem:[%s7458] ss:$4 sm:$0xff] %v7438
        %s7460 = scalar_lea.vmem [#allocation1], 2
        %7461 = vst [vmem:[%s7460] ss:$4 sm:$0xff] %v7439
        %s7462 = scalar_lea.vmem [#allocation1], 3
        %7463 = vst [vmem:[%s7462] ss:$4 sm:$0xff] %v7440
        %s7464 = scalar_lea.vmem [#allocation1], 32
        %7465 = vst [vmem:[%s7464] ss:$4 sm:$0xff] %v7441
        %s7466 = scalar_lea.vmem [#allocation1], 33
        %7467 = vst [vmem:[%s7466] ss:$4 sm:$0xff] %v7442
        %s7468 = scalar_lea.vmem [#allocation1], 34
        %7469 = vst [vmem:[%s7468] ss:$4 sm:$0xff] %v7443
        %s7470 = scalar_lea.vmem [#allocation1], 35
        %7471 = vst [vmem:[%s7470] ss:$4 sm:$0xff] %v7444
        %v7472 = vld.sshfl [vmem:[#allocation1] sm:$0xff pattern:$0x73625140]
        %v7473 = vld.sshfl [vmem:[#allocation1 + $0x20] sm:$0xff pattern:$0x73625140]
        %7474 = vst [vmem:[#allocation1] ss:$4 sm:$0xff] %v7445
        %7475 = vst [vmem:[%s7458] ss:$4 sm:$0xff] %v7446
        %v7476 = vld.sshfl [vmem:[#allocation1] sm:$0xff pattern:$0x73625140]
        %v7480 = vsel %vm818, %v7472, 0.0
        %7481 = vadd.xlane.f32.xlu0 %v7480
        %v7482 = vpop.xlane.xlu0 %7481
        %v7483 = vsel %vm818, %v7473, 0.0
        %7484 = vadd.xlane.f32.xlu0 %v7483
        %v7485 = vpop.xlane.xlu0 %7484
        %v7486 = vsel %vm2457, %v7476, 0.0
        %7487 = vadd.xlane.f32.xlu0 %v7486
        %v7488 = vpop.xlane.xlu0 %7487
        %v7489 = vmul.f32 %v7482, %v2467
        %v7490 = vmul.f32 %v7485, %v2467
        %v7491 = vmul.f32 %v7488, %v2467
        %v7496 = vunpack.c.l.s4 269488144
        %v7497 = vunpack.c.0.s8 %v7496
        %v7498 = vperm.slane %v7489, %v7497
        %v7500 = vunpack.c.l.s4 842150450
        %v7501 = vunpack.c.0.s8 %v7500
        %v7502 = vperm.slane %v7489, %v7501
        %v7504 = vunpack.c.l.s4 1414812756
        %v7505 = vunpack.c.0.s8 %v7504
        %v7506 = vperm.slane %v7489, %v7505
        %v7508 = vunpack.c.l.s4 1987475062
        %v7509 = vunpack.c.0.s8 %v7508
        %v7510 = vperm.slane %v7489, %v7509
        %v7512 = vunpack.c.l.s4 269488144
        %v7513 = vunpack.c.0.s8 %v7512
        %v7514 = vperm.slane %v7490, %v7513
        %v7516 = vunpack.c.l.s4 842150450
        %v7517 = vunpack.c.0.s8 %v7516
        %v7518 = vperm.slane %v7490, %v7517
        %v7520 = vunpack.c.l.s4 1414812756
        %v7521 = vunpack.c.0.s8 %v7520
        %v7522 = vperm.slane %v7490, %v7521
        %v7524 = vunpack.c.l.s4 1987475062
        %v7525 = vunpack.c.0.s8 %v7524
        %v7526 = vperm.slane %v7490, %v7525
        %v7528 = vunpack.c.l.s4 269488144
        %v7529 = vunpack.c.0.s8 %v7528
        %v7530 = vperm.slane %v7491, %v7529
        %v7532 = vunpack.c.l.s4 842150450
        %v7533 = vunpack.c.0.s8 %v7532
        %v7534 = vperm.slane %v7491, %v7533
        %v7545 = vsub.f32 %v7437, %v7498
        %v7546 = vsub.f32 %v7438, %v7502
        %v7547 = vsub.f32 %v7439, %v7506
        %v7548 = vsub.f32 %v7440, %v7510
        %v7549 = vsub.f32 %v7441, %v7514
        %v7550 = vsub.f32 %v7442, %v7518
        %v7551 = vsub.f32 %v7443, %v7522
        %v7552 = vsub.f32 %v7444, %v7526
        %v7553 = vsub.f32 %v7445, %v7530
        %v7554 = vsub.f32 %v7446, %v7534
        %v7555 = vmul.f32 %v7545, %v7545
        %v7556 = vmul.f32 %v7546, %v7546
        %v7557 = vmul.f32 %v7547, %v7547
        %v7558 = vmul.f32 %v7548, %v7548
        %v7559 = vmul.f32 %v7549, %v7549
        %v7560 = vmul.f32 %v7550, %v7550
        %v7561 = vmul.f32 %v7551, %v7551
        %v7562 = vmul.f32 %v7552, %v7552
        %v7563 = vmul.f32 %v7553, %v7553
        %v7564 = vmul.f32 %v7554, %v7554
        %7575 = vst [vmem:[#allocation1] ss:$4 sm:$0xff] %v7555
        %s7576 = scalar_lea.vmem [#allocation1], 1
        %7577 = vst [vmem:[%s7576] ss:$4 sm:$0xff] %v7556
        %s7578 = scalar_lea.vmem [#allocation1], 2
        %7579 = vst [vmem:[%s7578] ss:$4 sm:$0xff] %v7557
        %s7580 = scalar_lea.vmem [#allocation1], 3
        %7581 = vst [vmem:[%s7580] ss:$4 sm:$0xff] %v7558
        %s7582 = scalar_lea.vmem [#allocation1], 32
        %7583 = vst [vmem:[%s7582] ss:$4 sm:$0xff] %v7559
        %s7584 = scalar_lea.vmem [#allocation1], 33
        %7585 = vst [vmem:[%s7584] ss:$4 sm:$0xff] %v7560
        %s7586 = scalar_lea.vmem [#allocation1], 34
        %7587 = vst [vmem:[%s7586] ss:$4 sm:$0xff] %v7561
        %s7588 = scalar_lea.vmem [#allocation1], 35
        %7589 = vst [vmem:[%s7588] ss:$4 sm:$0xff] %v7562
        %v7590 = vld.sshfl [vmem:[#allocation1] sm:$0xff pattern:$0x73625140]
        %v7591 = vld.sshfl [vmem:[#allocation1 + $0x20] sm:$0xff pattern:$0x73625140]
        %7592 = vst [vmem:[#allocation1] ss:$4 sm:$0xff] %v7563
        %7593 = vst [vmem:[%s7576] ss:$4 sm:$0xff] %v7564
        %v7594 = vld.sshfl [vmem:[#allocation1] sm:$0xff pattern:$0x73625140]
        %v7598 = vsel %vm818, %v7590, 0.0
        %7599 = vadd.xlane.f32.xlu0 %v7598
        %v7600 = vpop.xlane.xlu0 %7599
        %v7601 = vsel %vm818, %v7591, 0.0
        %7602 = vadd.xlane.f32.xlu0 %v7601
        %v7603 = vpop.xlane.xlu0 %7602
        %v7604 = vsel %vm2457, %v7594, 0.0
        %7605 = vadd.xlane.f32.xlu0 %v7604
        %v7606 = vpop.xlane.xlu0 %7605
        %v7607 = vmul.f32 %v7600, %v2467
        %v7608 = vmul.f32 %v7603, %v2467
        %v7609 = vmul.f32 %v7606, %v2467
        %v7610 = vadd.f32 %v7607, 1e-05
        %v7611 = vadd.f32 %v7608, 1e-05
        %v7612 = vadd.f32 %v7609, 1e-05
        %v7613 = vrsqrt.pop %v7610
        %v7614 = vmul.f32 %v7613, %v7610
        %v7615 = vmul.f32 %v7614, %v7613
        %v7616 = vmul.f32 0.5, %v7615
        %v7617 = vsub.f32 1.5, %v7616
        %v7618 = vmul.f32 %v7613, %v7617
        %vm7619 = vweird.f32 %v7610
        %vm7620 = vweird.f32 %v7613
        %vm7621 = vmor %vm7619, %vm7620
        %v7622 = vsel %vm7621, %v7613, %v7618
        %v7623 = vrsqrt.pop %v7611
        %v7624 = vmul.f32 %v7623, %v7611
        %v7625 = vmul.f32 %v7624, %v7623
        %v7626 = vmul.f32 0.5, %v7625
        %v7627 = vsub.f32 1.5, %v7626
        %v7628 = vmul.f32 %v7623, %v7627
        %vm7629 = vweird.f32 %v7611
        %vm7630 = vweird.f32 %v7623
        %vm7631 = vmor %vm7629, %vm7630
        %v7632 = vsel %vm7631, %v7623, %v7628
        %v7633 = vrsqrt.pop %v7612
        %v7634 = vmul.f32 %v7633, %v7612
        %v7635 = vmul.f32 %v7634, %v7633
        %v7636 = vmul.f32 0.5, %v7635
        %v7637 = vsub.f32 1.5, %v7636
        %v7638 = vmul.f32 %v7633, %v7637
        %vm7639 = vweird.f32 %v7612
        %vm7640 = vweird.f32 %v7633
        %vm7641 = vmor %vm7639, %vm7640
        %v7642 = vsel %vm7641, %v7633, %v7638
        %v7647 = vunpack.c.l.s4 269488144
        %v7648 = vunpack.c.0.s8 %v7647
        %v7649 = vperm.slane %v7622, %v7648
        %v7651 = vunpack.c.l.s4 842150450
        %v7652 = vunpack.c.0.s8 %v7651
        %v7653 = vperm.slane %v7622, %v7652
        %v7655 = vunpack.c.l.s4 1414812756
        %v7656 = vunpack.c.0.s8 %v7655
        %v7657 = vperm.slane %v7622, %v7656
        %v7659 = vunpack.c.l.s4 1987475062
        %v7660 = vunpack.c.0.s8 %v7659
        %v7661 = vperm.slane %v7622, %v7660
        %v7663 = vunpack.c.l.s4 269488144
        %v7664 = vunpack.c.0.s8 %v7663
        %v7665 = vperm.slane %v7632, %v7664
        %v7667 = vunpack.c.l.s4 842150450
        %v7668 = vunpack.c.0.s8 %v7667
        %v7669 = vperm.slane %v7632, %v7668
        %v7671 = vunpack.c.l.s4 1414812756
        %v7672 = vunpack.c.0.s8 %v7671
        %v7673 = vperm.slane %v7632, %v7672
        %v7675 = vunpack.c.l.s4 1987475062
        %v7676 = vunpack.c.0.s8 %v7675
        %v7677 = vperm.slane %v7632, %v7676
        %v7679 = vunpack.c.l.s4 269488144
        %v7680 = vunpack.c.0.s8 %v7679
        %v7681 = vperm.slane %v7642, %v7680
        %v7683 = vunpack.c.l.s4 842150450
        %v7684 = vunpack.c.0.s8 %v7683
        %v7685 = vperm.slane %v7642, %v7684
        %v7696 = vmul.f32 %v7545, %v7649
        %v7697 = vmul.f32 %v7546, %v7653
        %v7698 = vmul.f32 %v7547, %v7657
        %v7699 = vmul.f32 %v7548, %v7661
        %v7700 = vmul.f32 %v7549, %v7665
        %v7701 = vmul.f32 %v7550, %v7669
        %v7702 = vmul.f32 %v7551, %v7673
        %v7703 = vmul.f32 %v7552, %v7677
        %v7704 = vmul.f32 %v7553, %v7681
        %v7705 = vmul.f32 %v7554, %v7685
        %v7706 = vperm.slane %v2906, 0
        %v7708 = vrot.slane %v7706, 2
        %v7709 = vrot.slane %v7706, 4
        %v7710 = vrot.slane %v7706, 6
        %v7714 = vmul.f32 %v7696, %v7706
        %v7715 = vmul.f32 %v7697, %v7708
        %v7716 = vmul.f32 %v7698, %v7709
        %v7717 = vmul.f32 %v7699, %v7710
        %v7718 = vmul.f32 %v7700, %v7706
        %v7719 = vmul.f32 %v7701, %v7708
        %v7720 = vmul.f32 %v7702, %v7709
        %v7721 = vmul.f32 %v7703, %v7710
        %v7722 = vmul.f32 %v7704, %v7706
        %v7723 = vmul.f32 %v7705, %v7708
        %v7724 = vperm.slane %v2906, 1
        %v7726 = vrot.slane %v7724, 2
        %v7727 = vrot.slane %v7724, 4
        %v7728 = vrot.slane %v7724, 6
        %v7732 = vadd.f32 %v7714, %v7724
        %v7733 = vadd.f32 %v7715, %v7726
        %v7734 = vadd.f32 %v7716, %v7727
        %v7735 = vadd.f32 %v7717, %v7728
        %v7736 = vadd.f32 %v7718, %v7724
        %v7737 = vadd.f32 %v7719, %v7726
        %v7738 = vadd.f32 %v7720, %v7727
        %v7739 = vadd.f32 %v7721, %v7728
        %v7740 = vadd.f32 %v7722, %v7724
        %v7741 = vadd.f32 %v7723, %v7726
        %v7742 = vld [vmem:[%s11] sm:$0xf]
        %v7743 = vld [vmem:[%s11 + $0x4] sm:$0xf]
        %v7744 = vld [vmem:[%s11 + $0x8] sm:$0xf]
        %v7745 = vld [vmem:[%s11 + $0xc] sm:$0xf]
        %7756 = vst [vmem:[#allocation1] ss:$4 sm:$0xff] %v7732
        %s7757 = scalar_lea.vmem [#allocation1], 1
        %7758 = vst [vmem:[%s7757] ss:$4 sm:$0xff] %v7733
        %s7759 = scalar_lea.vmem [#allocation1], 2
        %7760 = vst [vmem:[%s7759] ss:$4 sm:$0xff] %v7734
        %s7761 = scalar_lea.vmem [#allocation1], 3
        %7762 = vst [vmem:[%s7761] ss:$4 sm:$0xff] %v7735
        %s7763 = scalar_lea.vmem [#allocation1], 32
        %7764 = vst [vmem:[%s7763] ss:$4 sm:$0xff] %v7736
        %s7765 = scalar_lea.vmem [#allocation1], 33
        %7766 = vst [vmem:[%s7765] ss:$4 sm:$0xff] %v7737
        %s7767 = scalar_lea.vmem [#allocation1], 34
        %7768 = vst [vmem:[%s7767] ss:$4 sm:$0xff] %v7738
        %s7769 = scalar_lea.vmem [#allocation1], 35
        %7770 = vst [vmem:[%s7769] ss:$4 sm:$0xff] %v7739
        %v7771 = vld.sshfl [vmem:[#allocation1] sm:$0xff pattern:$0x73625140]
        %v7772 = vld.sshfl [vmem:[#allocation1 + $0x20] sm:$0xff pattern:$0x73625140]
        %7773 = vst [vmem:[#allocation1] ss:$4 sm:$0xff] %v7740
        %7774 = vst [vmem:[%s7757] ss:$4 sm:$0xff] %v7741
        %v7775 = vld.sshfl [vmem:[#allocation1] sm:$0xff pattern:$0x73625140]
        %v7779 = vpack.c.bf16 %v7772, %v7771
        %v7780 = vpack.c.bf16 %v7775, %v7775
        %v7781 = vld [vmem:[#allocation4] sm:$0x1]
        %v7783 = vperm.slane %v7781, 0
        %v7789 = vunpack.c.l.b16 %v7742
        %v7790 = vunpack.c.l.b16 %v7743
        %v7791 = vunpack.c.l.b16 %v7744
        %v7792 = vunpack.c.l.b16 %v7745
        %v7793 = vpack.c.b16 %v7790, %v7789
        %v7794 = vpack.c.b16 %v7792, %v7791
        %v7798 = vsel %vm818, %v7779, 0
        %v7801 = vsel %vm818, %v7780, 0
        %7803 = vmatpush.bf16.msra.mxu0 0
        %7804 = vmatpush.bf16.msra.mxu0 0
        %7805 = vmatpush.bf16.msra.mxu0 0
        %7806 = vmatpush.bf16.msra.mxu0 0
        %7807 = vmatpush.bf16.msra.mxu0 0
        %7808 = vmatpush.bf16.msra.mxu0 0
        %7809 = vmatpush.bf16.msra.mxu0 %v7794
        %7810 = vmatpush.bf16.msra.mxu0 %v7793
        %7811 = vmatmul.bf16.gmra.mxu0 %v7798
        %v7812 = vpop.f32.mrf.mxu0
        %v7813 = vadd.f32 %v7783, %v7812
        %v7814 = vpop.f32.mrf.mxu0
        %v7815 = vadd.f32 %v7783, %v7814
        %7816 = vmatmul.bf16.gmra.mxu0 %v7801
        %v7817 = vpop.f32.mrf.mxu0
        %v7818 = vadd.f32 %v7783, %v7817
        %v7819 = vpop.f32.mrf.mxu0
        %7820 = vdwg.mxu0
        %v7821 = vmax.f32 %v7813, 0.0
        %v7822 = vmax.f32 %v7815, 0.0
        %v7823 = vmax.f32 %v7818, 0.0
        %v7824 = vld [vmem:[%s12] sm:$0xf]
        %v7825 = vld [vmem:[%s12 + $0x4] sm:$0xf]
        %v7826 = vld [vmem:[%s12 + $0x8] sm:$0xf]
        %v7827 = vld [vmem:[%s12 + $0xc] sm:$0xf]
        %v7828 = vld [vmem:[%s12 + $0x10] sm:$0xf]
        %v7829 = vld [vmem:[%s12 + $0x14] sm:$0xf]
        %v7830 = vld [vmem:[%s12 + $0x18] sm:$0xf]
        %v7831 = vld [vmem:[%s12 + $0x1c] sm:$0xf]
        %v7832 = vld [vmem:[%s12 + $0x20] sm:$0xf]
        %v7833 = vld [vmem:[%s12 + $0x24] sm:$0xf]
        %v7834 = vld [vmem:[%s12 + $0x28] sm:$0xf]
        %v7835 = vld [vmem:[%s12 + $0x2c] sm:$0xf]
        %v7836 = vld [vmem:[%s12 + $0x30] sm:$0xf]
        %v7837 = vld [vmem:[%s12 + $0x34] sm:$0xf]
        %v7838 = vld [vmem:[%s12 + $0x38] sm:$0xf]
        %v7839 = vld [vmem:[%s12 + $0x3c] sm:$0xf]
        %v7840 = vpack.c.bf16 %v7822, %v7821
        %v7841 = vpack.c.bf16 %v7823, %v7823
        %v7842 = vperm.slane %v2906, 2
        %v7859 = vunpack.c.l.b16 %v7824
        %v7860 = vunpack.c.l.b16 %v7825
        %v7861 = vunpack.c.l.b16 %v7826
        %v7862 = vunpack.c.l.b16 %v7827
        %v7863 = vunpack.c.l.b16 %v7828
        %v7864 = vunpack.c.l.b16 %v7829
        %v7865 = vunpack.c.l.b16 %v7830
        %v7866 = vunpack.c.l.b16 %v7831
        %v7867 = vunpack.c.l.b16 %v7832
        %v7868 = vunpack.c.l.b16 %v7833
        %v7869 = vunpack.c.l.b16 %v7834
        %v7870 = vunpack.c.l.b16 %v7835
        %v7871 = vunpack.c.l.b16 %v7836
        %v7872 = vunpack.c.l.b16 %v7837
        %v7873 = vunpack.c.l.b16 %v7838
        %v7874 = vunpack.c.l.b16 %v7839
        %v7875 = vpack.c.b16 %v7860, %v7859
        %v7876 = vpack.c.b16 %v7862, %v7861
        %v7877 = vpack.c.b16 %v7864, %v7863
        %v7878 = vpack.c.b16 %v7866, %v7865
        %v7879 = vpack.c.b16 %v7868, %v7867
        %v7880 = vpack.c.b16 %v7870, %v7869
        %v7881 = vpack.c.b16 %v7872, %v7871
        %v7882 = vpack.c.b16 %v7874, %v7873
        %7891 = vmatpush.bf16.msra.mxu0 %v7882
        %7892 = vmatpush.bf16.msra.mxu0 %v7881
        %7893 = vmatpush.bf16.msra.mxu0 %v7880
        %7894 = vmatpush.bf16.msra.mxu0 %v7879
        %7895 = vmatpush.bf16.msra.mxu0 %v7878
        %7896 = vmatpush.bf16.msra.mxu0 %v7877
        %7897 = vmatpush.bf16.msra.mxu0 %v7876
        %7898 = vmatpush.bf16.msra.mxu0 %v7875
        %7899 = vmatmul.bf16.gmra.mxu0 %v7840
        %v7900 = vpop.f32.mrf.mxu0
        %v7901 = vadd.f32 %v7842, %v7900
        %v7902 = vpop.f32.mrf.mxu0
        %v7903 = vadd.f32 %v7842, %v7902
        %7904 = vmatmul.bf16.gmra.mxu0 %v7841
        %v7905 = vpop.f32.mrf.mxu0
        %v7906 = vadd.f32 %v7842, %v7905
        %v7907 = vpop.f32.mrf.mxu0
        %7908 = vdwg.mxu0
        %v7912 = vrot.slane %v7901, 2
        %v7913 = vrot.slane %v7901, 4
        %v7914 = vrot.slane %v7901, 6
        %v7915 = vrot.slane %v7903, 2
        %v7916 = vrot.slane %v7903, 4
        %v7917 = vrot.slane %v7903, 6
        %v7918 = vrot.slane %v7906, 2
        %v7926 = vadd.f32 %v7732, %v7901
        %v7927 = vadd.f32 %v7733, %v7912
        %v7928 = vadd.f32 %v7734, %v7913
        %v7929 = vadd.f32 %v7735, %v7914
        %v7930 = vadd.f32 %v7736, %v7903
        %v7931 = vadd.f32 %v7737, %v7915
        %v7932 = vadd.f32 %v7738, %v7916
        %v7933 = vadd.f32 %v7739, %v7917
        %v7934 = vadd.f32 %v7740, %v7906
        %v7935 = vadd.f32 %v7741, %v7918
        %7946 = vst [vmem:[#allocation1] ss:$4 sm:$0xff] %v7926
        %s7947 = scalar_lea.vmem [#allocation1], 1
        %7948 = vst [vmem:[%s7947] ss:$4 sm:$0xff] %v7927
        %s7949 = scalar_lea.vmem [#allocation1], 2
        %7950 = vst [vmem:[%s7949] ss:$4 sm:$0xff] %v7928
        %s7951 = scalar_lea.vmem [#allocation1], 3
        %7952 = vst [vmem:[%s7951] ss:$4 sm:$0xff] %v7929
        %s7953 = scalar_lea.vmem [#allocation1], 32
        %7954 = vst [vmem:[%s7953] ss:$4 sm:$0xff] %v7930
        %s7955 = scalar_lea.vmem [#allocation1], 33
        %7956 = vst [vmem:[%s7955] ss:$4 sm:$0xff] %v7931
        %s7957 = scalar_lea.vmem [#allocation1], 34
        %7958 = vst [vmem:[%s7957] ss:$4 sm:$0xff] %v7932
        %s7959 = scalar_lea.vmem [#allocation1], 35
        %7960 = vst [vmem:[%s7959] ss:$4 sm:$0xff] %v7933
        %v7961 = vld.sshfl [vmem:[#allocation1] sm:$0xff pattern:$0x73625140]
        %v7962 = vld.sshfl [vmem:[#allocation1 + $0x20] sm:$0xff pattern:$0x73625140]
        %7963 = vst [vmem:[#allocation1] ss:$4 sm:$0xff] %v7934
        %7964 = vst [vmem:[%s7947] ss:$4 sm:$0xff] %v7935
        %v7965 = vld.sshfl [vmem:[#allocation1] sm:$0xff pattern:$0x73625140]
        %v7969 = vsel %vm818, %v7961, 0.0
        %7970 = vadd.xlane.f32.xlu0 %v7969
        %v7971 = vpop.xlane.xlu0 %7970
        %v7972 = vsel %vm818, %v7962, 0.0
        %7973 = vadd.xlane.f32.xlu0 %v7972
        %v7974 = vpop.xlane.xlu0 %7973
        %v7975 = vsel %vm2457, %v7965, 0.0
        %7976 = vadd.xlane.f32.xlu0 %v7975
        %v7977 = vpop.xlane.xlu0 %7976
        %v7978 = vmul.f32 %v7971, %v2467
        %v7979 = vmul.f32 %v7974, %v2467
        %v7980 = vmul.f32 %v7977, %v2467
        %v7985 = vunpack.c.l.s4 269488144
        %v7986 = vunpack.c.0.s8 %v7985
        %v7987 = vperm.slane %v7978, %v7986
        %v7989 = vunpack.c.l.s4 842150450
        %v7990 = vunpack.c.0.s8 %v7989
        %v7991 = vperm.slane %v7978, %v7990
        %v7993 = vunpack.c.l.s4 1414812756
        %v7994 = vunpack.c.0.s8 %v7993
        %v7995 = vperm.slane %v7978, %v7994
        %v7997 = vunpack.c.l.s4 1987475062
        %v7998 = vunpack.c.0.s8 %v7997
        %v7999 = vperm.slane %v7978, %v7998
        %v8001 = vunpack.c.l.s4 269488144
        %v8002 = vunpack.c.0.s8 %v8001
        %v8003 = vperm.slane %v7979, %v8002
        %v8005 = vunpack.c.l.s4 842150450
        %v8006 = vunpack.c.0.s8 %v8005
        %v8007 = vperm.slane %v7979, %v8006
        %v8009 = vunpack.c.l.s4 1414812756
        %v8010 = vunpack.c.0.s8 %v8009
        %v8011 = vperm.slane %v7979, %v8010
        %v8013 = vunpack.c.l.s4 1987475062
        %v8014 = vunpack.c.0.s8 %v8013
        %v8015 = vperm.slane %v7979, %v8014
        %v8017 = vunpack.c.l.s4 269488144
        %v8018 = vunpack.c.0.s8 %v8017
        %v8019 = vperm.slane %v7980, %v8018
        %v8021 = vunpack.c.l.s4 842150450
        %v8022 = vunpack.c.0.s8 %v8021
        %v8023 = vperm.slane %v7980, %v8022
        %v8034 = vsub.f32 %v7926, %v7987
        %v8035 = vsub.f32 %v7927, %v7991
        %v8036 = vsub.f32 %v7928, %v7995
        %v8037 = vsub.f32 %v7929, %v7999
        %v8038 = vsub.f32 %v7930, %v8003
        %v8039 = vsub.f32 %v7931, %v8007
        %v8040 = vsub.f32 %v7932, %v8011
        %v8041 = vsub.f32 %v7933, %v8015
        %v8042 = vsub.f32 %v7934, %v8019
        %v8043 = vsub.f32 %v7935, %v8023
        %v8044 = vmul.f32 %v8034, %v8034
        %v8045 = vmul.f32 %v8035, %v8035
        %v8046 = vmul.f32 %v8036, %v8036
        %v8047 = vmul.f32 %v8037, %v8037
        %v8048 = vmul.f32 %v8038, %v8038
        %v8049 = vmul.f32 %v8039, %v8039
        %v8050 = vmul.f32 %v8040, %v8040
        %v8051 = vmul.f32 %v8041, %v8041
        %v8052 = vmul.f32 %v8042, %v8042
        %v8053 = vmul.f32 %v8043, %v8043
        %8064 = vst [vmem:[#allocation1] ss:$4 sm:$0xff] %v8044
        %s8065 = scalar_lea.vmem [#allocation1], 1
        %8066 = vst [vmem:[%s8065] ss:$4 sm:$0xff] %v8045
        %s8067 = scalar_lea.vmem [#allocation1], 2
        %8068 = vst [vmem:[%s8067] ss:$4 sm:$0xff] %v8046
        %s8069 = scalar_lea.vmem [#allocation1], 3
        %8070 = vst [vmem:[%s8069] ss:$4 sm:$0xff] %v8047
        %s8071 = scalar_lea.vmem [#allocation1], 32
        %8072 = vst [vmem:[%s8071] ss:$4 sm:$0xff] %v8048
        %s8073 = scalar_lea.vmem [#allocation1], 33
        %8074 = vst [vmem:[%s8073] ss:$4 sm:$0xff] %v8049
        %s8075 = scalar_lea.vmem [#allocation1], 34
        %8076 = vst [vmem:[%s8075] ss:$4 sm:$0xff] %v8050
        %s8077 = scalar_lea.vmem [#allocation1], 35
        %8078 = vst [vmem:[%s8077] ss:$4 sm:$0xff] %v8051
        %v8079 = vld.sshfl [vmem:[#allocation1] sm:$0xff pattern:$0x73625140]
        %v8080 = vld.sshfl [vmem:[#allocation1 + $0x20] sm:$0xff pattern:$0x73625140]
        %8081 = vst [vmem:[#allocation1] ss:$4 sm:$0xff] %v8052
        %8082 = vst [vmem:[%s8065] ss:$4 sm:$0xff] %v8053
        %v8083 = vld.sshfl [vmem:[#allocation1] sm:$0xff pattern:$0x73625140]
        %v8087 = vsel %vm818, %v8079, 0.0
        %8088 = vadd.xlane.f32.xlu0 %v8087
        %v8089 = vpop.xlane.xlu0 %8088
        %v8090 = vsel %vm818, %v8080, 0.0
        %8091 = vadd.xlane.f32.xlu0 %v8090
        %v8092 = vpop.xlane.xlu0 %8091
        %v8093 = vsel %vm2457, %v8083, 0.0
        %8094 = vadd.xlane.f32.xlu0 %v8093
        %v8095 = vpop.xlane.xlu0 %8094
        %v8096 = vmul.f32 %v8089, %v2467
        %v8097 = vmul.f32 %v8092, %v2467
        %v8098 = vmul.f32 %v8095, %v2467
        %v8099 = vadd.f32 %v8096, 1e-05
        %v8100 = vadd.f32 %v8097, 1e-05
        %v8101 = vadd.f32 %v8098, 1e-05
        %v8102 = vrsqrt.pop %v8099
        %v8103 = vmul.f32 %v8102, %v8099
        %v8104 = vmul.f32 %v8103, %v8102
        %v8105 = vmul.f32 0.5, %v8104
        %v8106 = vsub.f32 1.5, %v8105
        %v8107 = vmul.f32 %v8102, %v8106
        %vm8108 = vweird.f32 %v8099
        %vm8109 = vweird.f32 %v8102
        %vm8110 = vmor %vm8108, %vm8109
        %v8111 = vsel %vm8110, %v8102, %v8107
        %v8112 = vrsqrt.pop %v8100
        %v8113 = vmul.f32 %v8112, %v8100
        %v8114 = vmul.f32 %v8113, %v8112
        %v8115 = vmul.f32 0.5, %v8114
        %v8116 = vsub.f32 1.5, %v8115
        %v8117 = vmul.f32 %v8112, %v8116
        %vm8118 = vweird.f32 %v8100
        %vm8119 = vweird.f32 %v8112
        %vm8120 = vmor %vm8118, %vm8119
        %v8121 = vsel %vm8120, %v8112, %v8117
        %v8122 = vrsqrt.pop %v8101
        %v8123 = vmul.f32 %v8122, %v8101
        %v8124 = vmul.f32 %v8123, %v8122
        %v8125 = vmul.f32 0.5, %v8124
        %v8126 = vsub.f32 1.5, %v8125
        %v8127 = vmul.f32 %v8122, %v8126
        %vm8128 = vweird.f32 %v8101
        %vm8129 = vweird.f32 %v8122
        %vm8130 = vmor %vm8128, %vm8129
        %v8131 = vsel %vm8130, %v8122, %v8127
        %v8136 = vunpack.c.l.s4 269488144
        %v8137 = vunpack.c.0.s8 %v8136
        %v8138 = vperm.slane %v8111, %v8137
        %v8140 = vunpack.c.l.s4 842150450
        %v8141 = vunpack.c.0.s8 %v8140
        %v8142 = vperm.slane %v8111, %v8141
        %v8144 = vunpack.c.l.s4 1414812756
        %v8145 = vunpack.c.0.s8 %v8144
        %v8146 = vperm.slane %v8111, %v8145
        %v8148 = vunpack.c.l.s4 1987475062
        %v8149 = vunpack.c.0.s8 %v8148
        %v8150 = vperm.slane %v8111, %v8149
        %v8152 = vunpack.c.l.s4 269488144
        %v8153 = vunpack.c.0.s8 %v8152
        %v8154 = vperm.slane %v8121, %v8153
        %v8156 = vunpack.c.l.s4 842150450
        %v8157 = vunpack.c.0.s8 %v8156
        %v8158 = vperm.slane %v8121, %v8157
        %v8160 = vunpack.c.l.s4 1414812756
        %v8161 = vunpack.c.0.s8 %v8160
        %v8162 = vperm.slane %v8121, %v8161
        %v8164 = vunpack.c.l.s4 1987475062
        %v8165 = vunpack.c.0.s8 %v8164
        %v8166 = vperm.slane %v8121, %v8165
        %v8168 = vunpack.c.l.s4 269488144
        %v8169 = vunpack.c.0.s8 %v8168
        %v8170 = vperm.slane %v8131, %v8169
        %v8172 = vunpack.c.l.s4 842150450
        %v8173 = vunpack.c.0.s8 %v8172
        %v8174 = vperm.slane %v8131, %v8173
        %v8185 = vmul.f32 %v8034, %v8138
        %v8186 = vmul.f32 %v8035, %v8142
        %v8187 = vmul.f32 %v8036, %v8146
        %v8188 = vmul.f32 %v8037, %v8150
        %v8189 = vmul.f32 %v8038, %v8154
        %v8190 = vmul.f32 %v8039, %v8158
        %v8191 = vmul.f32 %v8040, %v8162
        %v8192 = vmul.f32 %v8041, %v8166
        %v8193 = vmul.f32 %v8042, %v8170
        %v8194 = vmul.f32 %v8043, %v8174
        %v8195 = vperm.slane %v2906, 3
        %v8197 = vrot.slane %v8195, 2
        %v8198 = vrot.slane %v8195, 4
        %v8199 = vrot.slane %v8195, 6
        %v8203 = vmul.f32 %v8185, %v8195
        %v8204 = vmul.f32 %v8186, %v8197
        %v8205 = vmul.f32 %v8187, %v8198
        %v8206 = vmul.f32 %v8188, %v8199
        %v8207 = vmul.f32 %v8189, %v8195
        %v8208 = vmul.f32 %v8190, %v8197
        %v8209 = vmul.f32 %v8191, %v8198
        %v8210 = vmul.f32 %v8192, %v8199
        %v8211 = vmul.f32 %v8193, %v8195
        %v8212 = vmul.f32 %v8194, %v8197
        %v8213 = vperm.slane %v2906, 4
        %v8215 = vrot.slane %v8213, 2
        %v8216 = vrot.slane %v8213, 4
        %v8217 = vrot.slane %v8213, 6
        %v8221 = vadd.f32 %v8203, %v8213
        %v8222 = vadd.f32 %v8204, %v8215
        %v8223 = vadd.f32 %v8205, %v8216
        %v8224 = vadd.f32 %v8206, %v8217
        %v8225 = vadd.f32 %v8207, %v8213
        %v8226 = vadd.f32 %v8208, %v8215
        %v8227 = vadd.f32 %v8209, %v8216
        %v8228 = vadd.f32 %v8210, %v8217
        %v8229 = vadd.f32 %v8211, %v8213
        %v8230 = vadd.f32 %v8212, %v8215
        %8241 = vst [vmem:[#allocation1] ss:$4 sm:$0xff] %v8221
        %s8242 = scalar_lea.vmem [#allocation1], 1
        %8243 = vst [vmem:[%s8242] ss:$4 sm:$0xff] %v8222
        %s8244 = scalar_lea.vmem [#allocation1], 2
        %8245 = vst [vmem:[%s8244] ss:$4 sm:$0xff] %v8223
        %s8246 = scalar_lea.vmem [#allocation1], 3
        %8247 = vst [vmem:[%s8246] ss:$4 sm:$0xff] %v8224
        %s8248 = scalar_lea.vmem [#allocation1], 32
        %8249 = vst [vmem:[%s8248] ss:$4 sm:$0xff] %v8225
        %v8250 = vld.sshfl [vmem:[#allocation1] sm:$0xff pattern:$0x73625140]
        %v8251 = vld.sshfl [vmem:[#allocation1 + $0x20] sm:$0xff pattern:$0x73625140]
        %8252 = vst [vmem:[#allocation1] ss:$4 sm:$0xff] %v8226
        %8253 = vst [vmem:[%s8242] ss:$4 sm:$0xff] %v8227
        %8254 = vst [vmem:[%s8244] ss:$4 sm:$0xff] %v8228
        %8255 = vst [vmem:[%s8246] ss:$4 sm:$0xff] %v8229
        %8256 = vst [vmem:[%s8248] ss:$4 sm:$0xff] %v8230
        %v8257 = vld.sshfl [vmem:[#allocation1] sm:$0xff pattern:$0x73625140]
        %v8258 = vld.sshfl [vmem:[#allocation1 + $0x20] sm:$0xff pattern:$0x73625140]
        %8263 = vst.msk [vmem:[%s649] sm:$0xff] %vm818, %v8250
        %8264 = vst.msk [vmem:[%s649 + $0x8] sm:$0x3] %vm2901, %v8251
        %8265 = vst.msk [vmem:[%s649 + $0x10] sm:$0xff] %vm818, %v8257
        %8266 = vst.msk [vmem:[%s649 + $0x18] sm:$0x3] %vm2901, %v8258
        %s8267 = smul.u32 2, %s30
        %p8268 = scmp.lt.s32.totalorder %s8267, 3
        %s8269 = scalar_select %p8268, %s8267, 3
        %s8270 = smul.addr %s8269, 2
        %s8271 = smul.addr %s8270, 8
        %s8272 = scalar_lea.vmem %s15, %s8271
        %s8273 = smul.u32 2, %s30
        %p8274 = scmp.lt.s32.totalorder %s8273, 3
        %s8275 = scalar_select %p8274, %s8273, 3
        %s8276 = smul.addr %s8275, 2
        %s8277 = smul.addr %s8276, 8
        %s8278 = scalar_lea.vmem %s16, %s8277
        // Predicated region
        $region89: #{game_prediction_forward.1} parent=79 // pred_check
          %p8279 = pneg %p383
        $region90: #{game_prediction_forward.1} parent=79 // pred_check_branch
          %8281 = sbr.rel (%p8279) target = $region92
        $region91: #{game_prediction_forward.1} parent=79 // pred_region
          %s8282 = smul.u32 2, %s30
        $region92: #{game_prediction_forward.1} parent=79 // pred_fallthru
          _
        // Predicated region
        $region93: #{game_prediction_forward.1} parent=79 // pred_check
          %p8283 = pneg %p409
        $region94: #{game_prediction_forward.1} parent=79 // pred_check_branch
          %8285 = sbr.rel (%p8283) target = $region96
        $region95: #{game_prediction_forward.1} parent=79 // pred_region
          %s8286 = smul.u32 2, %s30
        $region96: #{game_prediction_forward.1} parent=79 // pred_fallthru
          _
      $region80: #{game_prediction_forward.1} parent=5 // pred_fallthru
        _
      %p8287 = scmp.le.s32.totalorder 2, %s25
      // Predicated region
      $region97: #{game_prediction_forward.1} parent=5 // pred_check
        %p8288 = pneg %p8287
      $region98: #{game_prediction_forward.1} parent=5 // pred_check_branch
        %8290 = sbr.rel (%p8288) target = $region100
      $region99: #{game_prediction_forward.1} parent=5 // pred_region
        %s8291 = ssub.s32 %s25, 2
        // Predicated region
        $region101: #{game_prediction_forward.1} parent=99 // pred_check
          %p8292 = pneg %p389
        $region102: #{game_prediction_forward.1} parent=99 // pred_check_branch
          %8294 = sbr.rel (%p8292) target = $region104
        $region103: #{game_prediction_forward.1} parent=99 // pred_region
          %s8295 = smul.u32 2, %s31
          %p8296 = scmp.lt.s32.totalorder %s8295, 3
          %s8297 = scalar_select %p8296, %s8295, 3
          %s8298 = smul.addr %s8297, 2
          %s8299 = smul.addr %s8298, 8
          %s8300 = scalar_lea.vmem %s15, %s8299
        $region104: #{game_prediction_forward.1} parent=99 // pred_fallthru
          _
        // Predicated region
        $region105: #{game_prediction_forward.1} parent=99 // pred_check
          %p8301 = pneg %p415
        $region106: #{game_prediction_forward.1} parent=99 // pred_check_branch
          %8303 = sbr.rel (%p8301) target = $region108
        $region107: #{game_prediction_forward.1} parent=99 // pred_region
          %s8304 = smul.u32 2, %s31
          %p8305 = scmp.lt.s32.totalorder %s8304, 3
          %s8306 = scalar_select %p8305, %s8304, 3
          %s8307 = smul.addr %s8306, 2
          %s8308 = smul.addr %s8307, 8
          %s8309 = scalar_lea.vmem %s16, %s8308
        $region108: #{game_prediction_forward.1} parent=99 // pred_fallthru
          _
      $region100: #{game_prediction_forward.1} parent=5 // pred_fallthru
        _
    $region6: #{game_prediction_forward.1} parent=1 // loop_footer
      %s29 = sadd.s32 1, %s25
    $region7: #{game_prediction_forward.1} parent=1 // loop_footer_branch
      %24 = sbr.rel target = $region3
    $region8: #{game_prediction_forward.1} parent=1 // loop_exit
      _
    %8310 = vsyncpa [#allocation3], 1
    %s8311 = scalar_lea.sflag [#allocation3], 1
    %8312 = vsyncpa %s8311, 1
    %8313 = vsyncpa [#allocation5], 1

</llo_original>
